<compile_context>
chip_gen: v5e
topology: v5e:2x2
jax: 0.10.0
libtpu: 0.0.40
codegen_flags: <defaults>
</compile_context>

<pallas_src>
import jax
import jax.numpy as jnp
from jax.experimental import pallas as pl
from jax.experimental.pallas import tpu as pltpu

IN_FEATURES = 100
IN_PAD = 128            # latent padded to a full lane tile
LABEL_DIM = 10
LABEL_PAD = 16          # sublane-friendly K for the bf16 label matmul
W_IMG, H_IMG = 28, 28
OUT_DIM = W_IMG * H_IMG  # 784
OUT_PAD = 896            # 7 * 128, lane-dense output store
EPS = 1e-5


def _bn_relu(h, gamma, beta):
    """Fused BatchNorm1d (training mode: batch stats, biased var) + ReLU.

    One pass over h: sum & sum-of-squares together, then a single
    h * scale + shift.
    """
    inv_n = 1.0 / h.shape[0]
    s = jnp.sum(h, axis=0, keepdims=True)
    ss = jnp.sum(h * h, axis=0, keepdims=True)
    mean = s * inv_n
    var = jnp.maximum(ss * inv_n - mean * mean, 0.0)
    scale = gamma * jax.lax.rsqrt(var + EPS)
    shift = beta - mean * scale
    return jnp.maximum(h * scale + shift, 0.0)


def generator_kernel(
    z_ref, label_ref,
    w1_ref, g1_ref, be1_ref,
    w2_ref, g2_ref, be2_ref,
    w3a_ref, w3b_ref, g3_ref, be3_ref,
    w4_ref, g4_ref, be4_ref,
    w5_ref, b5_ref,
    out_ref,
):
    bf16 = jnp.bfloat16
    z = z_ref[...].astype(bf16)        # (B, 128) zero-padded latent
    lab = label_ref[...].astype(bf16)  # (B, 16) zero-padded one-hot (exact in bf16)

    # fc_layer_1: Linear(100 -> 256) [bias cancelled by BN] + BN + ReLU
    h1 = jnp.dot(z, w1_ref[...], preferred_element_type=jnp.float32)
    x = _bn_relu(h1, g1_ref[...], be1_ref[...])

    # fc_layer_2: Linear(10 -> 256) [bias cancelled by BN] + BN + ReLU
    h2 = jnp.dot(lab, w2_ref[...], preferred_element_type=jnp.float32)
    y = _bn_relu(h2, g2_ref[...], be2_ref[...])

    # fc_layer_3: cat([x, y], 1) @ W3  ==  x @ W3[:256] + y @ W3[256:]
    h3 = (jnp.dot(x.astype(bf16), w3a_ref[...], preferred_element_type=jnp.float32)
          + jnp.dot(y.astype(bf16), w3b_ref[...], preferred_element_type=jnp.float32))
    h3 = _bn_relu(h3, g3_ref[...], be3_ref[...])

    # fc_layer_4: Linear(512 -> 1024) [bias cancelled by BN] + BN + ReLU
    h4 = jnp.dot(h3.astype(bf16), w4_ref[...], preferred_element_type=jnp.float32)
    h4 = _bn_relu(h4, g4_ref[...], be4_ref[...])

    # fc_layer_final: Linear(1024 -> 784, padded to 896) + tanh
    h5 = jnp.dot(h4.astype(bf16), w5_ref[...],
                 preferred_element_type=jnp.float32) + b5_ref[...]
    out_ref[...] = jnp.tanh(h5)


def generator_forward(z, label, params):
    """z: (B, 100) f32 latent, label: (B, 10) f32 one-hot. Returns (B, 784)."""
    B = z.shape[0]
    z_pad = jnp.pad(z, ((0, 0), (0, IN_PAD - IN_FEATURES)))
    lab_pad = jnp.pad(label, ((0, 0), (0, LABEL_PAD - LABEL_DIM)))
    args = (z_pad, lab_pad) + tuple(params)
    out_pad = pl.pallas_call(
        generator_kernel,
        out_shape=jax.ShapeDtypeStruct((B, OUT_PAD), jnp.float32),
        in_specs=[pl.BlockSpec(memory_space=pltpu.MemorySpace.VMEM)] * len(args),
        out_specs=pl.BlockSpec(memory_space=pltpu.MemorySpace.VMEM),
        compiler_params=pltpu.CompilerParams(
            vmem_limit_bytes=32 * 1024 * 1024),
    )(*args)
    return out_pad[:, :OUT_DIM]


def init_params(key):
    """Deterministic synthetic parameters.

    Weights stored as (in, out) in bfloat16; BN gamma/beta and the final bias
    stay f32.  Pre-BN biases are omitted (mathematically dead under
    training-mode BatchNorm).  W1 is row-padded 100->128, W2 row-padded
    10->16, W5/b5 are column-padded 784->896.
    """
    keys = jax.random.split(key, 9)

    def lin_w(k, fan_in, fan_out):
        kw, kb = jax.random.split(k)
        w = jax.random.normal(kw, (fan_in, fan_out), jnp.float32) * 0.05
        b = jax.random.normal(kb, (fan_out,), jnp.float32) * 0.02
        return w, b

    def bn(k, n):
        kg, kb = jax.random.split(k)
        gamma = 1.0 + 0.1 * jax.random.normal(kg, (1, n), jnp.float32)
        beta = 0.05 * jax.random.normal(kb, (1, n), jnp.float32)
        return gamma, beta

    w1, _ = lin_w(keys[0], IN_FEATURES, 256)
    g1, be1 = bn(keys[1], 256)
    w2, _ = lin_w(keys[2], LABEL_DIM, 256)
    g2, be2 = bn(keys[3], 256)
    w3, _ = lin_w(keys[4], 512, 512)
    g3, be3 = bn(keys[5], 512)
    w4, _ = lin_w(keys[6], 512, 1024)
    g4, be4 = bn(keys[7], 1024)
    w5, b5 = lin_w(keys[8], 1024, OUT_DIM)

    # K / N padding for lane/sublane alignment (zero rows / cols => same math).
    w1p = jnp.zeros((IN_PAD, 256), jnp.float32).at[:IN_FEATURES].set(w1)
    w2p = jnp.zeros((LABEL_PAD, 256), jnp.float32).at[:LABEL_DIM].set(w2)
    w5p = jnp.zeros((1024, OUT_PAD), jnp.float32).at[:, :OUT_DIM].set(w5)
    b5p = jnp.zeros((1, OUT_PAD), jnp.float32).at[0, :OUT_DIM].set(b5)

    # Split W3 at the concat boundary (x-part: first 256 rows, y-part: last 256).
    w3a, w3b = w3[:256], w3[256:]

    bf = lambda w: w.astype(jnp.bfloat16)
    return (bf(w1p), g1, be1,
            bf(w2p), g2, be2,
            bf(w3a), bf(w3b), g3, be3,
            bf(w4), g4, be4,
            bf(w5p), b5p)


def reference_forward(z, label, params):
    """Pure-JAX reference using the same bf16 weights / bf16 matmul inputs."""
    (w1p, g1, be1, w2p, g2, be2,
     w3a, w3b, g3, be3, w4, g4, be4, w5p, b5p) = params

    def dot16(x, w):
        return jnp.dot(x.astype(jnp.bfloat16), w,
                       preferred_element_type=jnp.float32)

    def bn_relu(h, g, be):
        m = jnp.mean(h, axis=0, keepdims=True)
        v = jnp.mean(jnp.square(h - m), axis=0, keepdims=True)
        return jnp.maximum((h - m) / jnp.sqrt(v + EPS) * g + be, 0.0)

    z_pad = jnp.pad(z, ((0, 0), (0, IN_PAD - IN_FEATURES)))
    lab_pad = jnp.pad(label, ((0, 0), (0, LABEL_PAD - LABEL_DIM)))
    x = bn_relu(dot16(z_pad, w1p), g1, be1)
    y = bn_relu(dot16(lab_pad, w2p), g2, be2)
    h3 = bn_relu(dot16(x, w3a) + dot16(y, w3b), g3, be3)
    h4 = bn_relu(dot16(h3, w4), g4, be4)
    out = jnp.tanh(dot16(h4, w5p) + b5p)
    return out[:, :OUT_DIM]


if __name__ == "__main__":
    key = jax.random.PRNGKey(0)
    k_z, k_lab, k_p = jax.random.split(key, 3)

    # Small demo batch (sublane-aligned); BatchNorm sees the full batch inside
    # the single pallas_call, matching PyTorch training-mode semantics.
    B = 16
    z = jax.random.normal(k_z, (B, IN_FEATURES), jnp.float32)          # latent
    label_ids = jax.random.randint(k_lab, (B,), 0, LABEL_DIM)
    label = jax.nn.one_hot(label_ids, LABEL_DIM, dtype=jnp.float32)    # condition

    params = init_params(k_p)

    out = generator_forward(z, label, params)
    out = jax.block_until_ready(out)

    ref = reference_forward(z, label, params)
    assert out.shape == (B, OUT_DIM)
    # bf16 weights + fused one-pass BN -> slightly looser tolerance than f32.
    assert jnp.allclose(out, ref, rtol=1e-2, atol=1e-2), (
        float(jnp.max(jnp.abs(out - ref))))

    print("KERNEL_OK")
</pallas_src>

<mosaic_0001>
module attributes {stable_mosaic.version = 11 : i64} {
  func.func @generator_kernel(%arg0: memref<16x128xf32, #tpu.memory_space<vmem>>, %arg1: memref<16x16xf32, #tpu.memory_space<vmem>>, %arg2: memref<128x256xbf16, #tpu.memory_space<vmem>>, %arg3: memref<1x256xf32, #tpu.memory_space<vmem>>, %arg4: memref<1x256xf32, #tpu.memory_space<vmem>>, %arg5: memref<16x256xbf16, #tpu.memory_space<vmem>>, %arg6: memref<1x256xf32, #tpu.memory_space<vmem>>, %arg7: memref<1x256xf32, #tpu.memory_space<vmem>>, %arg8: memref<256x512xbf16, #tpu.memory_space<vmem>>, %arg9: memref<256x512xbf16, #tpu.memory_space<vmem>>, %arg10: memref<1x512xf32, #tpu.memory_space<vmem>>, %arg11: memref<1x512xf32, #tpu.memory_space<vmem>>, %arg12: memref<512x1024xbf16, #tpu.memory_space<vmem>>, %arg13: memref<1x1024xf32, #tpu.memory_space<vmem>>, %arg14: memref<1x1024xf32, #tpu.memory_space<vmem>>, %arg15: memref<1024x896xbf16, #tpu.memory_space<vmem>>, %arg16: memref<1x896xf32, #tpu.memory_space<vmem>>, %arg17: memref<16x896xf32, #tpu.memory_space<vmem>>) attributes {dimension_semantics = [], scalar_prefetch = 0 : i64, scratch_operands = 0 : i64, tpu.core_type = #tpu.core_type<tc>} {
    %c0 = arith.constant 0 : index
    %c0_0 = arith.constant 0 : index
    %0 = vector.load %arg0[%c0, %c0_0] : memref<16x128xf32, #tpu.memory_space<vmem>>, vector<16x128xf32>
    %1 = arith.truncf %0 : vector<16x128xf32> to vector<16x128xbf16>
    %c0_1 = arith.constant 0 : index
    %c0_2 = arith.constant 0 : index
    %2 = vector.load %arg1[%c0_1, %c0_2] : memref<16x16xf32, #tpu.memory_space<vmem>>, vector<16x16xf32>
    %3 = arith.truncf %2 : vector<16x16xf32> to vector<16x16xbf16>
    %c0_3 = arith.constant 0 : index
    %c0_4 = arith.constant 0 : index
    %4 = vector.load %arg2[%c0_3, %c0_4] : memref<128x256xbf16, #tpu.memory_space<vmem>>, vector<128x256xbf16>
    %cst = arith.constant dense<0.000000e+00> : vector<16x256xf32>
    %5 = tpu.matmul %1, %4, %cst {dimension_numbers = #tpu.dot_dimension_numbers<[1], [0], [0], [1], [0, 0, 1, 1], [], []>} : vector<16x128xbf16>, vector<128x256xbf16>, vector<16x256xf32> -> vector<16x256xf32>
    %c0_5 = arith.constant 0 : index
    %c0_6 = arith.constant 0 : index
    %6 = vector.load %arg3[%c0_5, %c0_6] : memref<1x256xf32, #tpu.memory_space<vmem>>, vector<1x256xf32>
    %c0_7 = arith.constant 0 : index
    %c0_8 = arith.constant 0 : index
    %7 = vector.load %arg4[%c0_7, %c0_8] : memref<1x256xf32, #tpu.memory_space<vmem>>, vector<1x256xf32>
    %cst_9 = arith.constant dense<0.000000e+00> : vector<256xf32>
    %8 = vector.multi_reduction <add>, %5, %cst_9 [0] : vector<16x256xf32> to vector<256xf32>
    %9 = vector.shape_cast %8 : vector<256xf32> to vector<1x256xf32>
    %10 = arith.mulf %5, %5 : vector<16x256xf32>
    %cst_10 = arith.constant dense<0.000000e+00> : vector<256xf32>
    %11 = vector.multi_reduction <add>, %10, %cst_10 [0] : vector<16x256xf32> to vector<256xf32>
    %12 = vector.shape_cast %11 : vector<256xf32> to vector<1x256xf32>
    %cst_11 = arith.constant 6.250000e-02 : f32
    %13 = vector.broadcast %cst_11 : f32 to vector<1x256xf32>
    %14 = arith.mulf %9, %13 : vector<1x256xf32>
    %cst_12 = arith.constant 6.250000e-02 : f32
    %15 = vector.broadcast %cst_12 : f32 to vector<1x256xf32>
    %16 = arith.mulf %12, %15 : vector<1x256xf32>
    %17 = arith.mulf %14, %14 : vector<1x256xf32>
    %18 = arith.subf %16, %17 : vector<1x256xf32>
    %cst_13 = arith.constant 0.000000e+00 : f32
    %19 = vector.broadcast %cst_13 : f32 to vector<1x256xf32>
    %20 = arith.maximumf %18, %19 : vector<1x256xf32>
    %cst_14 = arith.constant 9.99999974E-6 : f32
    %21 = vector.broadcast %cst_14 : f32 to vector<1x256xf32>
    %22 = arith.addf %20, %21 : vector<1x256xf32>
    %23 = math.rsqrt %22 : vector<1x256xf32>
    %24 = arith.mulf %6, %23 : vector<1x256xf32>
    %25 = arith.mulf %14, %24 : vector<1x256xf32>
    %26 = arith.subf %7, %25 : vector<1x256xf32>
    %27 = vector.broadcast %24 : vector<1x256xf32> to vector<16x256xf32>
    %28 = arith.mulf %5, %27 : vector<16x256xf32>
    %29 = vector.broadcast %26 : vector<1x256xf32> to vector<16x256xf32>
    %30 = arith.addf %28, %29 : vector<16x256xf32>
    %cst_15 = arith.constant 0.000000e+00 : f32
    %31 = vector.broadcast %cst_15 : f32 to vector<16x256xf32>
    %32 = arith.maximumf %30, %31 : vector<16x256xf32>
    %c0_16 = arith.constant 0 : index
    %c0_17 = arith.constant 0 : index
    %33 = vector.load %arg5[%c0_16, %c0_17] : memref<16x256xbf16, #tpu.memory_space<vmem>>, vector<16x256xbf16>
    %cst_18 = arith.constant dense<0.000000e+00> : vector<16x256xf32>
    %34 = tpu.matmul %3, %33, %cst_18 {dimension_numbers = #tpu.dot_dimension_numbers<[1], [0], [0], [1], [0, 0, 1, 1], [], []>} : vector<16x16xbf16>, vector<16x256xbf16>, vector<16x256xf32> -> vector<16x256xf32>
    %c0_19 = arith.constant 0 : index
    %c0_20 = arith.constant 0 : index
    %35 = vector.load %arg6[%c0_19, %c0_20] : memref<1x256xf32, #tpu.memory_space<vmem>>, vector<1x256xf32>
    %c0_21 = arith.constant 0 : index
    %c0_22 = arith.constant 0 : index
    %36 = vector.load %arg7[%c0_21, %c0_22] : memref<1x256xf32, #tpu.memory_space<vmem>>, vector<1x256xf32>
    %cst_23 = arith.constant dense<0.000000e+00> : vector<256xf32>
    %37 = vector.multi_reduction <add>, %34, %cst_23 [0] : vector<16x256xf32> to vector<256xf32>
    %38 = vector.shape_cast %37 : vector<256xf32> to vector<1x256xf32>
    %39 = arith.mulf %34, %34 : vector<16x256xf32>
    %cst_24 = arith.constant dense<0.000000e+00> : vector<256xf32>
    %40 = vector.multi_reduction <add>, %39, %cst_24 [0] : vector<16x256xf32> to vector<256xf32>
    %41 = vector.shape_cast %40 : vector<256xf32> to vector<1x256xf32>
    %cst_25 = arith.constant 6.250000e-02 : f32
    %42 = vector.broadcast %cst_25 : f32 to vector<1x256xf32>
    %43 = arith.mulf %38, %42 : vector<1x256xf32>
    %cst_26 = arith.constant 6.250000e-02 : f32
    %44 = vector.broadcast %cst_26 : f32 to vector<1x256xf32>
    %45 = arith.mulf %41, %44 : vector<1x256xf32>
    %46 = arith.mulf %43, %43 : vector<1x256xf32>
    %47 = arith.subf %45, %46 : vector<1x256xf32>
    %cst_27 = arith.constant 0.000000e+00 : f32
    %48 = vector.broadcast %cst_27 : f32 to vector<1x256xf32>
    %49 = arith.maximumf %47, %48 : vector<1x256xf32>
    %cst_28 = arith.constant 9.99999974E-6 : f32
    %50 = vector.broadcast %cst_28 : f32 to vector<1x256xf32>
    %51 = arith.addf %49, %50 : vector<1x256xf32>
    %52 = math.rsqrt %51 : vector<1x256xf32>
    %53 = arith.mulf %35, %52 : vector<1x256xf32>
    %54 = arith.mulf %43, %53 : vector<1x256xf32>
    %55 = arith.subf %36, %54 : vector<1x256xf32>
    %56 = vector.broadcast %53 : vector<1x256xf32> to vector<16x256xf32>
    %57 = arith.mulf %34, %56 : vector<16x256xf32>
    %58 = vector.broadcast %55 : vector<1x256xf32> to vector<16x256xf32>
    %59 = arith.addf %57, %58 : vector<16x256xf32>
    %cst_29 = arith.constant 0.000000e+00 : f32
    %60 = vector.broadcast %cst_29 : f32 to vector<16x256xf32>
    %61 = arith.maximumf %59, %60 : vector<16x256xf32>
    %62 = arith.truncf %32 : vector<16x256xf32> to vector<16x256xbf16>
    %c0_30 = arith.constant 0 : index
    %c0_31 = arith.constant 0 : index
    %63 = vector.load %arg8[%c0_30, %c0_31] : memref<256x512xbf16, #tpu.memory_space<vmem>>, vector<256x512xbf16>
    %cst_32 = arith.constant dense<0.000000e+00> : vector<16x512xf32>
    %64 = tpu.matmul %62, %63, %cst_32 {dimension_numbers = #tpu.dot_dimension_numbers<[1], [0], [0], [1], [0, 0, 1, 1], [], []>} : vector<16x256xbf16>, vector<256x512xbf16>, vector<16x512xf32> -> vector<16x512xf32>
    %65 = arith.truncf %61 : vector<16x256xf32> to vector<16x256xbf16>
    %c0_33 = arith.constant 0 : index
    %c0_34 = arith.constant 0 : index
    %66 = vector.load %arg9[%c0_33, %c0_34] : memref<256x512xbf16, #tpu.memory_space<vmem>>, vector<256x512xbf16>
    %cst_35 = arith.constant dense<0.000000e+00> : vector<16x512xf32>
    %67 = tpu.matmul %65, %66, %cst_35 {dimension_numbers = #tpu.dot_dimension_numbers<[1], [0], [0], [1], [0, 0, 1, 1], [], []>} : vector<16x256xbf16>, vector<256x512xbf16>, vector<16x512xf32> -> vector<16x512xf32>
    %68 = arith.addf %64, %67 : vector<16x512xf32>
    %c0_36 = arith.constant 0 : index
    %c0_37 = arith.constant 0 : index
    %69 = vector.load %arg10[%c0_36, %c0_37] : memref<1x512xf32, #tpu.memory_space<vmem>>, vector<1x512xf32>
    %c0_38 = arith.constant 0 : index
    %c0_39 = arith.constant 0 : index
    %70 = vector.load %arg11[%c0_38, %c0_39] : memref<1x512xf32, #tpu.memory_space<vmem>>, vector<1x512xf32>
    %cst_40 = arith.constant dense<0.000000e+00> : vector<512xf32>
    %71 = vector.multi_reduction <add>, %68, %cst_40 [0] : vector<16x512xf32> to vector<512xf32>
    %72 = vector.shape_cast %71 : vector<512xf32> to vector<1x512xf32>
    %73 = arith.mulf %68, %68 : vector<16x512xf32>
    %cst_41 = arith.constant dense<0.000000e+00> : vector<512xf32>
    %74 = vector.multi_reduction <add>, %73, %cst_41 [0] : vector<16x512xf32> to vector<512xf32>
    %75 = vector.shape_cast %74 : vector<512xf32> to vector<1x512xf32>
    %cst_42 = arith.constant 6.250000e-02 : f32
    %76 = vector.broadcast %cst_42 : f32 to vector<1x512xf32>
    %77 = arith.mulf %72, %76 : vector<1x512xf32>
    %cst_43 = arith.constant 6.250000e-02 : f32
    %78 = vector.broadcast %cst_43 : f32 to vector<1x512xf32>
    %79 = arith.mulf %75, %78 : vector<1x512xf32>
    %80 = arith.mulf %77, %77 : vector<1x512xf32>
    %81 = arith.subf %79, %80 : vector<1x512xf32>
    %cst_44 = arith.constant 0.000000e+00 : f32
    %82 = vector.broadcast %cst_44 : f32 to vector<1x512xf32>
    %83 = arith.maximumf %81, %82 : vector<1x512xf32>
    %cst_45 = arith.constant 9.99999974E-6 : f32
    %84 = vector.broadcast %cst_45 : f32 to vector<1x512xf32>
    %85 = arith.addf %83, %84 : vector<1x512xf32>
    %86 = math.rsqrt %85 : vector<1x512xf32>
    %87 = arith.mulf %69, %86 : vector<1x512xf32>
    %88 = arith.mulf %77, %87 : vector<1x512xf32>
    %89 = arith.subf %70, %88 : vector<1x512xf32>
    %90 = vector.broadcast %87 : vector<1x512xf32> to vector<16x512xf32>
    %91 = arith.mulf %68, %90 : vector<16x512xf32>
    %92 = vector.broadcast %89 : vector<1x512xf32> to vector<16x512xf32>
    %93 = arith.addf %91, %92 : vector<16x512xf32>
    %cst_46 = arith.constant 0.000000e+00 : f32
    %94 = vector.broadcast %cst_46 : f32 to vector<16x512xf32>
    %95 = arith.maximumf %93, %94 : vector<16x512xf32>
    %96 = arith.truncf %95 : vector<16x512xf32> to vector<16x512xbf16>
    %c0_47 = arith.constant 0 : index
    %c0_48 = arith.constant 0 : index
    %97 = vector.load %arg12[%c0_47, %c0_48] : memref<512x1024xbf16, #tpu.memory_space<vmem>>, vector<512x1024xbf16>
    %cst_49 = arith.constant dense<0.000000e+00> : vector<16x1024xf32>
    %98 = tpu.matmul %96, %97, %cst_49 {dimension_numbers = #tpu.dot_dimension_numbers<[1], [0], [0], [1], [0, 0, 1, 1], [], []>} : vector<16x512xbf16>, vector<512x1024xbf16>, vector<16x1024xf32> -> vector<16x1024xf32>
    %c0_50 = arith.constant 0 : index
    %c0_51 = arith.constant 0 : index
    %99 = vector.load %arg13[%c0_50, %c0_51] : memref<1x1024xf32, #tpu.memory_space<vmem>>, vector<1x1024xf32>
    %c0_52 = arith.constant 0 : index
    %c0_53 = arith.constant 0 : index
    %100 = vector.load %arg14[%c0_52, %c0_53] : memref<1x1024xf32, #tpu.memory_space<vmem>>, vector<1x1024xf32>
    %cst_54 = arith.constant dense<0.000000e+00> : vector<1024xf32>
    %101 = vector.multi_reduction <add>, %98, %cst_54 [0] : vector<16x1024xf32> to vector<1024xf32>
    %102 = vector.shape_cast %101 : vector<1024xf32> to vector<1x1024xf32>
    %103 = arith.mulf %98, %98 : vector<16x1024xf32>
    %cst_55 = arith.constant dense<0.000000e+00> : vector<1024xf32>
    %104 = vector.multi_reduction <add>, %103, %cst_55 [0] : vector<16x1024xf32> to vector<1024xf32>
    %105 = vector.shape_cast %104 : vector<1024xf32> to vector<1x1024xf32>
    %cst_56 = arith.constant 6.250000e-02 : f32
    %106 = vector.broadcast %cst_56 : f32 to vector<1x1024xf32>
    %107 = arith.mulf %102, %106 : vector<1x1024xf32>
    %cst_57 = arith.constant 6.250000e-02 : f32
    %108 = vector.broadcast %cst_57 : f32 to vector<1x1024xf32>
    %109 = arith.mulf %105, %108 : vector<1x1024xf32>
    %110 = arith.mulf %107, %107 : vector<1x1024xf32>
    %111 = arith.subf %109, %110 : vector<1x1024xf32>
    %cst_58 = arith.constant 0.000000e+00 : f32
    %112 = vector.broadcast %cst_58 : f32 to vector<1x1024xf32>
    %113 = arith.maximumf %111, %112 : vector<1x1024xf32>
    %cst_59 = arith.constant 9.99999974E-6 : f32
    %114 = vector.broadcast %cst_59 : f32 to vector<1x1024xf32>
    %115 = arith.addf %113, %114 : vector<1x1024xf32>
    %116 = math.rsqrt %115 : vector<1x1024xf32>
    %117 = arith.mulf %99, %116 : vector<1x1024xf32>
    %118 = arith.mulf %107, %117 : vector<1x1024xf32>
    %119 = arith.subf %100, %118 : vector<1x1024xf32>
    %120 = vector.broadcast %117 : vector<1x1024xf32> to vector<16x1024xf32>
    %121 = arith.mulf %98, %120 : vector<16x1024xf32>
    %122 = vector.broadcast %119 : vector<1x1024xf32> to vector<16x1024xf32>
    %123 = arith.addf %121, %122 : vector<16x1024xf32>
    %cst_60 = arith.constant 0.000000e+00 : f32
    %124 = vector.broadcast %cst_60 : f32 to vector<16x1024xf32>
    %125 = arith.maximumf %123, %124 : vector<16x1024xf32>
    %126 = arith.truncf %125 : vector<16x1024xf32> to vector<16x1024xbf16>
    %c0_61 = arith.constant 0 : index
    %c0_62 = arith.constant 0 : index
    %127 = vector.load %arg15[%c0_61, %c0_62] : memref<1024x896xbf16, #tpu.memory_space<vmem>>, vector<1024x896xbf16>
    %cst_63 = arith.constant dense<0.000000e+00> : vector<16x896xf32>
    %128 = tpu.matmul %126, %127, %cst_63 {dimension_numbers = #tpu.dot_dimension_numbers<[1], [0], [0], [1], [0, 0, 1, 1], [], []>} : vector<16x1024xbf16>, vector<1024x896xbf16>, vector<16x896xf32> -> vector<16x896xf32>
    %c0_64 = arith.constant 0 : index
    %c0_65 = arith.constant 0 : index
    %129 = vector.load %arg16[%c0_64, %c0_65] : memref<1x896xf32, #tpu.memory_space<vmem>>, vector<1x896xf32>
    %130 = vector.broadcast %129 : vector<1x896xf32> to vector<16x896xf32>
    %131 = arith.addf %128, %130 : vector<16x896xf32>
    %132 = math.tanh %131 : vector<16x896xf32>
    %c0_66 = arith.constant 0 : index
    %c0_67 = arith.constant 0 : index
    %133 = vector.load %arg17[%c0_66, %c0_67] : memref<16x896xf32, #tpu.memory_space<vmem>>, vector<16x896xf32>
    tpu.vector_store %arg17[%c0_66, %c0_67], %132 {strides = array<i32>} : memref<16x896xf32, #tpu.memory_space<vmem>>, vector<16x896xf32>,
    return
  }
}

</mosaic_0001>

<llo_original>
// kernel: tpu_custom_call.1
$region0: #{tpu_custom_call.1}
  #allocation0 [shape = 'u32[]', space=smem, size = 0x4, offset = 0x4, fixed_abs, tag = 'smem constant byte address 0x4 - core index']
  #allocation1 [shape = 'u32[72,128]{1,0:T(1,128)}', space=vmem, size = 0x9000, scoped, tag = 'internal scratch']
  %s0 = inlined_call_operand.hbm [shape: f32[16,128], index: 0, kind: input, shape index: {}]
  %s1 = inlined_call_operand.hbm [shape: f32[16,16], index: 1, kind: input, shape index: {}]
  %s2 = inlined_call_operand.hbm [shape: bf16[128,256], index: 2, kind: input, shape index: {}]
  %s3 = inlined_call_operand.hbm [shape: f32[1,256], index: 3, kind: input, shape index: {}]
  %s4 = inlined_call_operand.hbm [shape: f32[1,256], index: 4, kind: input, shape index: {}]
  %s5 = inlined_call_operand.hbm [shape: bf16[16,256], index: 5, kind: input, shape index: {}]
  %s6 = inlined_call_operand.hbm [shape: f32[1,256], index: 6, kind: input, shape index: {}]
  %s7 = inlined_call_operand.hbm [shape: f32[1,256], index: 7, kind: input, shape index: {}]
  %s8 = inlined_call_operand.hbm [shape: bf16[256,512], index: 8, kind: input, shape index: {}]
  %s9 = inlined_call_operand.hbm [shape: bf16[256,512], index: 9, kind: input, shape index: {}]
  %s10 = inlined_call_operand.hbm [shape: f32[1,512], index: 10, kind: input, shape index: {}]
  %s11 = inlined_call_operand.hbm [shape: f32[1,512], index: 11, kind: input, shape index: {}]
  %s12 = inlined_call_operand.hbm [shape: bf16[512,1024], index: 12, kind: input, shape index: {}]
  %s13 = inlined_call_operand.hbm [shape: f32[1,1024], index: 13, kind: input, shape index: {}]
  %s14 = inlined_call_operand.hbm [shape: f32[1,1024], index: 14, kind: input, shape index: {}]
  %s15 = inlined_call_operand.hbm [shape: bf16[1024,896], index: 15, kind: input, shape index: {}]
  %s16 = inlined_call_operand.hbm [shape: f32[1,896], index: 16, kind: input, shape index: {}]
  %s17 = inlined_call_operand.hbm [shape: f32[16,896], index: 17, kind: output, shape index: {}]
  %s18 = sld [smem:[#allocation0]]
  $region146: #{tpu_custom_call.1} parent=0
    _
  %s20 = ssub.s32 1, %s18
  %s21 = scalar_select 0, %s20, %s18
  $region1: #{tpu_custom_call.1} parent=0
    #allocation2 [shape = 'u8[8192]{0}', space=vmem, size = 0x2000, scoped, tag = 'input window, operand 0, single buffered']
    #allocation3 [shape = 's32[1]{0}', space=sflag, size = 0x4, scoped, tag = 'scoped memory for tpu_custom_call.1']
    #allocation4 [shape = 's32[1]{0}', space=sflag, size = 0x4, scoped, tag = 'scoped memory for tpu_custom_call.1']
    #allocation5 [shape = 'u8[8192]{0}', space=vmem, size = 0x2000, scoped, tag = 'input window, operand 1, single buffered']
    #allocation6 [shape = 's32[1]{0}', space=sflag, size = 0x4, scoped, tag = 'scoped memory for tpu_custom_call.1']
    #allocation7 [shape = 'u8[65536]{0}', space=vmem, size = 0x10000, scoped, tag = 'input window, operand 2, single buffered']
    #allocation8 [shape = 'u8[1024]{0}', space=vmem, size = 0x400, scoped, tag = 'input window, operand 3, single buffered']
    #allocation9 [shape = 's32[1]{0}', space=sflag, size = 0x4, scoped, tag = 'scoped memory for tpu_custom_call.1']
    #allocation10 [shape = 'u8[1024]{0}', space=vmem, size = 0x400, scoped, tag = 'input window, operand 4, single buffered']
    #allocation11 [shape = 'u8[8192]{0}', space=vmem, size = 0x2000, scoped, tag = 'input window, operand 5, single buffered']
    #allocation12 [shape = 's32[1]{0}', space=sflag, size = 0x4, scoped, tag = 'scoped memory for tpu_custom_call.1']
    #allocation13 [shape = 'u8[1024]{0}', space=vmem, size = 0x400, scoped, tag = 'input window, operand 6, single buffered']
    #allocation14 [shape = 'u8[1024]{0}', space=vmem, size = 0x400, scoped, tag = 'input window, operand 7, single buffered']
    #allocation15 [shape = 's32[1]{0}', space=sflag, size = 0x4, scoped, tag = 'scoped memory for tpu_custom_call.1']
    #allocation16 [shape = 'u8[262144]{0}', space=vmem, size = 0x40000, scoped, tag = 'input window, operand 8, single buffered']
    #allocation17 [shape = 'u8[262144]{0}', space=vmem, size = 0x40000, scoped, tag = 'input window, operand 9, single buffered']
    #allocation18 [shape = 's32[1]{0}', space=sflag, size = 0x4, scoped, tag = 'scoped memory for tpu_custom_call.1']
    #allocation19 [shape = 'u8[2048]{0}', space=vmem, size = 0x800, scoped, tag = 'input window, operand 10, single buffered']
    #allocation20 [shape = 'u8[2048]{0}', space=vmem, size = 0x800, scoped, tag = 'input window, operand 11, single buffered']
    #allocation21 [shape = 's32[1]{0}', space=sflag, size = 0x4, scoped, tag = 'scoped memory for tpu_custom_call.1']
    #allocation22 [shape = 'u8[1048576]{0}', space=vmem, size = 0x100000, scoped, tag = 'input window, operand 12, single buffered']
    #allocation23 [shape = 'u8[4096]{0}', space=vmem, size = 0x1000, scoped, tag = 'input window, operand 13, single buffered']
    #allocation24 [shape = 's32[1]{0}', space=sflag, size = 0x4, scoped, tag = 'scoped memory for tpu_custom_call.1']
    #allocation25 [shape = 'u8[4096]{0}', space=vmem, size = 0x1000, scoped, tag = 'input window, operand 14, single buffered']
    #allocation26 [shape = 'u8[1835008]{0}', space=vmem, size = 0x1c0000, scoped, tag = 'input window, operand 15, single buffered']
    #allocation27 [shape = 's32[1]{0}', space=sflag, size = 0x4, scoped, tag = 'scoped memory for tpu_custom_call.1']
    #allocation28 [shape = 'u8[3584]{0}', space=vmem, size = 0x1000, scoped, tag = 'input window, operand 16, single buffered']
    #allocation29 [shape = 'u8[57344]{0}', space=vmem, size = 0xe000, scoped, tag = 'output window, operand 0, single buffered']
    %22 = vsyncpa [#allocation3], 0
    %23 = vsyncpa [#allocation6], 0
    %24 = vsyncpa [#allocation9], 0
    %25 = vsyncpa [#allocation12], 0
    %26 = vsyncpa [#allocation15], 0
    %27 = vsyncpa [#allocation18], 0
    %28 = vsyncpa [#allocation21], 0
    %29 = vsyncpa [#allocation24], 0
    %30 = vsyncpa [#allocation27], 0
    %31 = vsyncpa [#allocation4], 0
    // Predicated region
    $region2: #{tpu_custom_call.1} parent=1 // pred_check
      _
    $region3: #{tpu_custom_call.1} parent=1 // pred_check_branch
      %33 = sbr.rel (0) target = $region5
    $region4: #{tpu_custom_call.1} parent=1 // pred_region
      %35 = vsyncadd [#allocation3], 0
      %s36 = sshll.u32 %s0, 4
      %s37 = int_to_ptr.hbm [resolvable:$true] %s36
      %s38 = sshll.u32 [#allocation2], 4
      %s39 = int_to_ptr.vmem [resolvable:$true] %s38
      %44 = dma.hbm_to_vmem [thread:$0]  %s37, 256, %s39, [#allocation3], 128, 128, 8
    $region5: #{tpu_custom_call.1} parent=1 // pred_fallthru
      _
    // Predicated region
    $region6: #{tpu_custom_call.1} parent=1 // pred_check
      _
    $region7: #{tpu_custom_call.1} parent=1 // pred_check_branch
      %46 = sbr.rel (0) target = $region9
    $region8: #{tpu_custom_call.1} parent=1 // pred_region
      %48 = vsyncadd [#allocation6], 0
      %s49 = sshll.u32 %s1, 4
      %s50 = int_to_ptr.hbm [resolvable:$true] %s49
      %s51 = sshll.u32 [#allocation5], 4
      %s52 = int_to_ptr.vmem [resolvable:$true] %s51
      %57 = dma.hbm_to_vmem [thread:$0]  %s50, 256, %s52, [#allocation6], 128, 128, 8
    $region9: #{tpu_custom_call.1} parent=1 // pred_fallthru
      _
    // Predicated region
    $region10: #{tpu_custom_call.1} parent=1 // pred_check
      _
    $region11: #{tpu_custom_call.1} parent=1 // pred_check_branch
      %59 = sbr.rel (0) target = $region13
    $region12: #{tpu_custom_call.1} parent=1 // pred_region
      %61 = vsyncadd [#allocation6], 0
      %s62 = sshll.u32 %s2, 4
      %s63 = int_to_ptr.hbm [resolvable:$true] %s62
      %s64 = sshll.u32 [#allocation7], 4
      %s65 = int_to_ptr.vmem [resolvable:$true] %s64
      %70 = dma.hbm_to_vmem [thread:$0]  %s63, 2048, %s65, [#allocation6], 128, 128, 8
    $region13: #{tpu_custom_call.1} parent=1 // pred_fallthru
      _
    // Predicated region
    $region14: #{tpu_custom_call.1} parent=1 // pred_check
      _
    $region15: #{tpu_custom_call.1} parent=1 // pred_check_branch
      %72 = sbr.rel (0) target = $region17
    $region16: #{tpu_custom_call.1} parent=1 // pred_region
      %74 = vsyncadd [#allocation9], 0
      %s76 = sshll.u32 %s3, 4
      %s77 = int_to_ptr.hbm [resolvable:$true] %s76
      %s78 = sshll.u32 [#allocation8], 4
      %s79 = int_to_ptr.vmem [resolvable:$true] %s78
      %81 = dma.hbm_to_vmem [thread:$0]  %s77, 32, %s79, [#allocation9]
    $region17: #{tpu_custom_call.1} parent=1 // pred_fallthru
      _
    // Predicated region
    $region18: #{tpu_custom_call.1} parent=1 // pred_check
      _
    $region19: #{tpu_custom_call.1} parent=1 // pred_check_branch
      %83 = sbr.rel (0) target = $region21
    $region20: #{tpu_custom_call.1} parent=1 // pred_region
      %85 = vsyncadd [#allocation9], 0
      %s87 = sshll.u32 %s4, 4
      %s88 = int_to_ptr.hbm [resolvable:$true] %s87
      %s89 = sshll.u32 [#allocation10], 4
      %s90 = int_to_ptr.vmem [resolvable:$true] %s89
      %92 = dma.hbm_to_vmem [thread:$0]  %s88, 32, %s90, [#allocation9]
    $region21: #{tpu_custom_call.1} parent=1 // pred_fallthru
      _
    // Predicated region
    $region22: #{tpu_custom_call.1} parent=1 // pred_check
      _
    $region23: #{tpu_custom_call.1} parent=1 // pred_check_branch
      %94 = sbr.rel (0) target = $region25
    $region24: #{tpu_custom_call.1} parent=1 // pred_region
      %96 = vsyncadd [#allocation12], 0
      %s97 = sshll.u32 %s5, 4
      %s98 = int_to_ptr.hbm [resolvable:$true] %s97
      %s99 = sshll.u32 [#allocation11], 4
      %s100 = int_to_ptr.vmem [resolvable:$true] %s99
      %105 = dma.hbm_to_vmem [thread:$0]  %s98, 256, %s100, [#allocation12], 128, 128, 8
    $region25: #{tpu_custom_call.1} parent=1 // pred_fallthru
      _
    // Predicated region
    $region26: #{tpu_custom_call.1} parent=1 // pred_check
      _
    $region27: #{tpu_custom_call.1} parent=1 // pred_check_branch
      %107 = sbr.rel (0) target = $region29
    $region28: #{tpu_custom_call.1} parent=1 // pred_region
      %109 = vsyncadd [#allocation12], 0
      %s111 = sshll.u32 %s6, 4
      %s112 = int_to_ptr.hbm [resolvable:$true] %s111
      %s113 = sshll.u32 [#allocation13], 4
      %s114 = int_to_ptr.vmem [resolvable:$true] %s113
      %116 = dma.hbm_to_vmem [thread:$0]  %s112, 32, %s114, [#allocation12]
    $region29: #{tpu_custom_call.1} parent=1 // pred_fallthru
      _
    // Predicated region
    $region30: #{tpu_custom_call.1} parent=1 // pred_check
      _
    $region31: #{tpu_custom_call.1} parent=1 // pred_check_branch
      %118 = sbr.rel (0) target = $region33
    $region32: #{tpu_custom_call.1} parent=1 // pred_region
      %120 = vsyncadd [#allocation15], 0
      %s122 = sshll.u32 %s7, 4
      %s123 = int_to_ptr.hbm [resolvable:$true] %s122
      %s124 = sshll.u32 [#allocation14], 4
      %s125 = int_to_ptr.vmem [resolvable:$true] %s124
      %127 = dma.hbm_to_vmem [thread:$0]  %s123, 32, %s125, [#allocation15]
    $region33: #{tpu_custom_call.1} parent=1 // pred_fallthru
      _
    // Predicated region
    $region34: #{tpu_custom_call.1} parent=1 // pred_check
      _
    $region35: #{tpu_custom_call.1} parent=1 // pred_check_branch
      %129 = sbr.rel (0) target = $region37
    $region36: #{tpu_custom_call.1} parent=1 // pred_region
      %131 = vsyncadd [#allocation15], 0
      %s132 = sshll.u32 %s8, 4
      %s133 = int_to_ptr.hbm [resolvable:$true] %s132
      %s134 = sshll.u32 [#allocation16], 4
      %s135 = int_to_ptr.vmem [resolvable:$true] %s134
      %140 = dma.hbm_to_vmem [thread:$0]  %s133, 8192, %s135, [#allocation15], 256, 256, 16
    $region37: #{tpu_custom_call.1} parent=1 // pred_fallthru
      _
    // Predicated region
    $region38: #{tpu_custom_call.1} parent=1 // pred_check
      _
    $region39: #{tpu_custom_call.1} parent=1 // pred_check_branch
      %142 = sbr.rel (0) target = $region41
    $region40: #{tpu_custom_call.1} parent=1 // pred_region
      %144 = vsyncadd [#allocation18], 0
      %s145 = sshll.u32 %s9, 4
      %s146 = int_to_ptr.hbm [resolvable:$true] %s145
      %s147 = sshll.u32 [#allocation17], 4
      %s148 = int_to_ptr.vmem [resolvable:$true] %s147
      %153 = dma.hbm_to_vmem [thread:$0]  %s146, 8192, %s148, [#allocation18], 256, 256, 16
    $region41: #{tpu_custom_call.1} parent=1 // pred_fallthru
      _
    // Predicated region
    $region42: #{tpu_custom_call.1} parent=1 // pred_check
      _
    $region43: #{tpu_custom_call.1} parent=1 // pred_check_branch
      %155 = sbr.rel (0) target = $region45
    $region44: #{tpu_custom_call.1} parent=1 // pred_region
      %157 = vsyncadd [#allocation18], 0
      %s159 = sshll.u32 %s10, 4
      %s160 = int_to_ptr.hbm [resolvable:$true] %s159
      %s161 = sshll.u32 [#allocation19], 4
      %s162 = int_to_ptr.vmem [resolvable:$true] %s161
      %164 = dma.hbm_to_vmem [thread:$0]  %s160, 64, %s162, [#allocation18]
    $region45: #{tpu_custom_call.1} parent=1 // pred_fallthru
      _
    // Predicated region
    $region46: #{tpu_custom_call.1} parent=1 // pred_check
      _
    $region47: #{tpu_custom_call.1} parent=1 // pred_check_branch
      %166 = sbr.rel (0) target = $region49
    $region48: #{tpu_custom_call.1} parent=1 // pred_region
      %168 = vsyncadd [#allocation21], 0
      %s170 = sshll.u32 %s11, 4
      %s171 = int_to_ptr.hbm [resolvable:$true] %s170
      %s172 = sshll.u32 [#allocation20], 4
      %s173 = int_to_ptr.vmem [resolvable:$true] %s172
      %175 = dma.hbm_to_vmem [thread:$0]  %s171, 64, %s173, [#allocation21]
    $region49: #{tpu_custom_call.1} parent=1 // pred_fallthru
      _
    // Predicated region
    $region50: #{tpu_custom_call.1} parent=1 // pred_check
      _
    $region51: #{tpu_custom_call.1} parent=1 // pred_check_branch
      %177 = sbr.rel (0) target = $region53
    $region52: #{tpu_custom_call.1} parent=1 // pred_region
      %179 = vsyncadd [#allocation21], 0
      %s180 = sshll.u32 %s12, 4
      %s181 = int_to_ptr.hbm [resolvable:$true] %s180
      %s182 = sshll.u32 [#allocation22], 4
      %s183 = int_to_ptr.vmem [resolvable:$true] %s182
      %188 = dma.hbm_to_vmem [thread:$0]  %s181, 32768, %s183, [#allocation21], 512, 512, 32
    $region53: #{tpu_custom_call.1} parent=1 // pred_fallthru
      _
    // Predicated region
    $region54: #{tpu_custom_call.1} parent=1 // pred_check
      _
    $region55: #{tpu_custom_call.1} parent=1 // pred_check_branch
      %190 = sbr.rel (0) target = $region57
    $region56: #{tpu_custom_call.1} parent=1 // pred_region
      %192 = vsyncadd [#allocation24], 0
      %s194 = sshll.u32 %s13, 4
      %s195 = int_to_ptr.hbm [resolvable:$true] %s194
      %s196 = sshll.u32 [#allocation23], 4
      %s197 = int_to_ptr.vmem [resolvable:$true] %s196
      %199 = dma.hbm_to_vmem [thread:$0]  %s195, 128, %s197, [#allocation24]
    $region57: #{tpu_custom_call.1} parent=1 // pred_fallthru
      _
    // Predicated region
    $region58: #{tpu_custom_call.1} parent=1 // pred_check
      _
    $region59: #{tpu_custom_call.1} parent=1 // pred_check_branch
      %201 = sbr.rel (0) target = $region61
    $region60: #{tpu_custom_call.1} parent=1 // pred_region
      %203 = vsyncadd [#allocation24], 0
      %s205 = sshll.u32 %s14, 4
      %s206 = int_to_ptr.hbm [resolvable:$true] %s205
      %s207 = sshll.u32 [#allocation25], 4
      %s208 = int_to_ptr.vmem [resolvable:$true] %s207
      %210 = dma.hbm_to_vmem [thread:$0]  %s206, 128, %s208, [#allocation24]
    $region61: #{tpu_custom_call.1} parent=1 // pred_fallthru
      _
    // Predicated region
    $region62: #{tpu_custom_call.1} parent=1 // pred_check
      _
    $region63: #{tpu_custom_call.1} parent=1 // pred_check_branch
      %212 = sbr.rel (0) target = $region65
    $region64: #{tpu_custom_call.1} parent=1 // pred_region
      %214 = vsyncadd [#allocation27], 0
      %s215 = sshll.u32 %s15, 4
      %s216 = int_to_ptr.hbm [resolvable:$true] %s215
      %s217 = sshll.u32 [#allocation26], 4
      %s218 = int_to_ptr.vmem [resolvable:$true] %s217
      %223 = dma.hbm_to_vmem [thread:$0]  %s216, 57344, %s218, [#allocation27], 448, 448, 28
    $region65: #{tpu_custom_call.1} parent=1 // pred_fallthru
      _
    // Predicated region
    $region66: #{tpu_custom_call.1} parent=1 // pred_check
      _
    $region67: #{tpu_custom_call.1} parent=1 // pred_check_branch
      %225 = sbr.rel (0) target = $region69
    $region68: #{tpu_custom_call.1} parent=1 // pred_region
      %227 = vsyncadd [#allocation27], 0
      %s229 = sshll.u32 %s16, 4
      %s230 = int_to_ptr.hbm [resolvable:$true] %s229
      %s231 = sshll.u32 [#allocation28], 4
      %s232 = int_to_ptr.vmem [resolvable:$true] %s231
      %234 = dma.hbm_to_vmem [thread:$0]  %s230, 112, %s232, [#allocation27]
    $region69: #{tpu_custom_call.1} parent=1 // pred_fallthru
      _
    // Predicated region
    $region70: #{tpu_custom_call.1} parent=1 // pred_check
      _
    $region71: #{tpu_custom_call.1} parent=1 // pred_check_branch
      %236 = sbr.rel (0) target = $region73
    $region72: #{tpu_custom_call.1} parent=1 // pred_region
      %238 = dma.done [#allocation3], 256
    $region73: #{tpu_custom_call.1} parent=1 // pred_fallthru
      _
    // Predicated region
    $region74: #{tpu_custom_call.1} parent=1 // pred_check
      _
    $region75: #{tpu_custom_call.1} parent=1 // pred_check_branch
      %240 = sbr.rel (0) target = $region77
    $region76: #{tpu_custom_call.1} parent=1 // pred_region
      %242 = dma.done [#allocation6], 256
    $region77: #{tpu_custom_call.1} parent=1 // pred_fallthru
      _
    // Predicated region
    $region78: #{tpu_custom_call.1} parent=1 // pred_check
      _
    $region79: #{tpu_custom_call.1} parent=1 // pred_check_branch
      %244 = sbr.rel (0) target = $region81
    $region80: #{tpu_custom_call.1} parent=1 // pred_region
      %246 = dma.done [#allocation6], 2048
    $region81: #{tpu_custom_call.1} parent=1 // pred_fallthru
      _
    // Predicated region
    $region82: #{tpu_custom_call.1} parent=1 // pred_check
      _
    $region83: #{tpu_custom_call.1} parent=1 // pred_check_branch
      %248 = sbr.rel (0) target = $region85
    $region84: #{tpu_custom_call.1} parent=1 // pred_region
      %250 = dma.done [#allocation9], 32
    $region85: #{tpu_custom_call.1} parent=1 // pred_fallthru
      _
    // Predicated region
    $region86: #{tpu_custom_call.1} parent=1 // pred_check
      _
    $region87: #{tpu_custom_call.1} parent=1 // pred_check_branch
      %252 = sbr.rel (0) target = $region89
    $region88: #{tpu_custom_call.1} parent=1 // pred_region
      %254 = dma.done [#allocation9], 32
    $region89: #{tpu_custom_call.1} parent=1 // pred_fallthru
      _
    // Predicated region
    $region90: #{tpu_custom_call.1} parent=1 // pred_check
      _
    $region91: #{tpu_custom_call.1} parent=1 // pred_check_branch
      %256 = sbr.rel (0) target = $region93
    $region92: #{tpu_custom_call.1} parent=1 // pred_region
      %258 = dma.done [#allocation12], 256
    $region93: #{tpu_custom_call.1} parent=1 // pred_fallthru
      _
    // Predicated region
    $region94: #{tpu_custom_call.1} parent=1 // pred_check
      _
    $region95: #{tpu_custom_call.1} parent=1 // pred_check_branch
      %260 = sbr.rel (0) target = $region97
    $region96: #{tpu_custom_call.1} parent=1 // pred_region
      %262 = dma.done [#allocation12], 32
    $region97: #{tpu_custom_call.1} parent=1 // pred_fallthru
      _
    // Predicated region
    $region98: #{tpu_custom_call.1} parent=1 // pred_check
      _
    $region99: #{tpu_custom_call.1} parent=1 // pred_check_branch
      %264 = sbr.rel (0) target = $region101
    $region100: #{tpu_custom_call.1} parent=1 // pred_region
      %266 = dma.done [#allocation15], 32
    $region101: #{tpu_custom_call.1} parent=1 // pred_fallthru
      _
    // Predicated region
    $region102: #{tpu_custom_call.1} parent=1 // pred_check
      _
    $region103: #{tpu_custom_call.1} parent=1 // pred_check_branch
      %268 = sbr.rel (0) target = $region105
    $region104: #{tpu_custom_call.1} parent=1 // pred_region
      %270 = dma.done [#allocation15], 8192
    $region105: #{tpu_custom_call.1} parent=1 // pred_fallthru
      _
    // Predicated region
    $region106: #{tpu_custom_call.1} parent=1 // pred_check
      _
    $region107: #{tpu_custom_call.1} parent=1 // pred_check_branch
      %272 = sbr.rel (0) target = $region109
    $region108: #{tpu_custom_call.1} parent=1 // pred_region
      %274 = dma.done [#allocation18], 8192
    $region109: #{tpu_custom_call.1} parent=1 // pred_fallthru
      _
    // Predicated region
    $region110: #{tpu_custom_call.1} parent=1 // pred_check
      _
    $region111: #{tpu_custom_call.1} parent=1 // pred_check_branch
      %276 = sbr.rel (0) target = $region113
    $region112: #{tpu_custom_call.1} parent=1 // pred_region
      %278 = dma.done [#allocation18], 64
    $region113: #{tpu_custom_call.1} parent=1 // pred_fallthru
      _
    // Predicated region
    $region114: #{tpu_custom_call.1} parent=1 // pred_check
      _
    $region115: #{tpu_custom_call.1} parent=1 // pred_check_branch
      %280 = sbr.rel (0) target = $region117
    $region116: #{tpu_custom_call.1} parent=1 // pred_region
      %282 = dma.done [#allocation21], 64
    $region117: #{tpu_custom_call.1} parent=1 // pred_fallthru
      _
    // Predicated region
    $region118: #{tpu_custom_call.1} parent=1 // pred_check
      _
    $region119: #{tpu_custom_call.1} parent=1 // pred_check_branch
      %284 = sbr.rel (0) target = $region121
    $region120: #{tpu_custom_call.1} parent=1 // pred_region
      %286 = dma.done [#allocation21], 32768
    $region121: #{tpu_custom_call.1} parent=1 // pred_fallthru
      _
    // Predicated region
    $region122: #{tpu_custom_call.1} parent=1 // pred_check
      _
    $region123: #{tpu_custom_call.1} parent=1 // pred_check_branch
      %288 = sbr.rel (0) target = $region125
    $region124: #{tpu_custom_call.1} parent=1 // pred_region
      %290 = dma.done [#allocation24], 128
    $region125: #{tpu_custom_call.1} parent=1 // pred_fallthru
      _
    // Predicated region
    $region126: #{tpu_custom_call.1} parent=1 // pred_check
      _
    $region127: #{tpu_custom_call.1} parent=1 // pred_check_branch
      %292 = sbr.rel (0) target = $region129
    $region128: #{tpu_custom_call.1} parent=1 // pred_region
      %294 = dma.done [#allocation24], 128
    $region129: #{tpu_custom_call.1} parent=1 // pred_fallthru
      _
    // Predicated region
    $region130: #{tpu_custom_call.1} parent=1 // pred_check
      _
    $region131: #{tpu_custom_call.1} parent=1 // pred_check_branch
      %296 = sbr.rel (0) target = $region133
    $region132: #{tpu_custom_call.1} parent=1 // pred_region
      %298 = dma.done [#allocation27], 57344
    $region133: #{tpu_custom_call.1} parent=1 // pred_fallthru
      _
    // Predicated region
    $region134: #{tpu_custom_call.1} parent=1 // pred_check
      _
    $region135: #{tpu_custom_call.1} parent=1 // pred_check_branch
      %300 = sbr.rel (0) target = $region137
    $region136: #{tpu_custom_call.1} parent=1 // pred_region
      %302 = dma.done [#allocation27], 112
    $region137: #{tpu_custom_call.1} parent=1 // pred_fallthru
      _
    %v304 = vld [vmem:[#allocation2] sm:$0xff]
    %v305 = vld [vmem:[#allocation2 + $0x8] sm:$0xff]
    %v306 = vpack.c.bf16 %v305, %v304
    %v307 = vld [vmem:[#allocation5] sm:$0xff]
    %v308 = vld [vmem:[#allocation5 + $0x8] sm:$0xff]
    %v309 = vpack.c.bf16 %v308, %v307
    %v310 = vld [vmem:[#allocation7] sm:$0xff]
    %v311 = vld [vmem:[#allocation7 + $0x8] sm:$0xff]
    %v312 = vld [vmem:[#allocation7 + $0x10] sm:$0xff]
    %v313 = vld [vmem:[#allocation7 + $0x18] sm:$0xff]
    %v314 = vld [vmem:[#allocation7 + $0x20] sm:$0xff]
    %v315 = vld [vmem:[#allocation7 + $0x28] sm:$0xff]
    %v316 = vld [vmem:[#allocation7 + $0x30] sm:$0xff]
    %v317 = vld [vmem:[#allocation7 + $0x38] sm:$0xff]
    %v318 = vld [vmem:[#allocation7 + $0x40] sm:$0xff]
    %v319 = vld [vmem:[#allocation7 + $0x48] sm:$0xff]
    %v320 = vld [vmem:[#allocation7 + $0x50] sm:$0xff]
    %v321 = vld [vmem:[#allocation7 + $0x58] sm:$0xff]
    %v322 = vld [vmem:[#allocation7 + $0x60] sm:$0xff]
    %v323 = vld [vmem:[#allocation7 + $0x68] sm:$0xff]
    %v324 = vld [vmem:[#allocation7 + $0x70] sm:$0xff]
    %v325 = vld [vmem:[#allocation7 + $0x78] sm:$0xff]
    %v342 = vunpack.c.l.b16 %v310
    %v343 = vunpack.c.h.b16 %v310
    %v344 = vunpack.c.l.b16 %v311
    %v345 = vunpack.c.h.b16 %v311
    %v346 = vunpack.c.l.b16 %v312
    %v347 = vunpack.c.h.b16 %v312
    %v348 = vunpack.c.l.b16 %v313
    %v349 = vunpack.c.h.b16 %v313
    %v350 = vunpack.c.l.b16 %v314
    %v351 = vunpack.c.h.b16 %v314
    %v352 = vunpack.c.l.b16 %v315
    %v353 = vunpack.c.h.b16 %v315
    %v354 = vunpack.c.l.b16 %v316
    %v355 = vunpack.c.h.b16 %v316
    %v356 = vunpack.c.l.b16 %v317
    %v357 = vunpack.c.h.b16 %v317
    %v358 = vunpack.c.l.b16 %v318
    %v359 = vunpack.c.h.b16 %v318
    %v360 = vunpack.c.l.b16 %v319
    %v361 = vunpack.c.h.b16 %v319
    %v362 = vunpack.c.l.b16 %v320
    %v363 = vunpack.c.h.b16 %v320
    %v364 = vunpack.c.l.b16 %v321
    %v365 = vunpack.c.h.b16 %v321
    %v366 = vunpack.c.l.b16 %v322
    %v367 = vunpack.c.h.b16 %v322
    %v368 = vunpack.c.l.b16 %v323
    %v369 = vunpack.c.h.b16 %v323
    %v370 = vunpack.c.l.b16 %v324
    %v371 = vunpack.c.h.b16 %v324
    %v372 = vunpack.c.l.b16 %v325
    %v373 = vunpack.c.h.b16 %v325
    %v374 = vpack.c.b16 %v344, %v342
    %v375 = vpack.c.b16 %v345, %v343
    %v376 = vpack.c.b16 %v348, %v346
    %v377 = vpack.c.b16 %v349, %v347
    %v378 = vpack.c.b16 %v352, %v350
    %v379 = vpack.c.b16 %v353, %v351
    %v380 = vpack.c.b16 %v356, %v354
    %v381 = vpack.c.b16 %v357, %v355
    %v382 = vpack.c.b16 %v360, %v358
    %v383 = vpack.c.b16 %v361, %v359
    %v384 = vpack.c.b16 %v364, %v362
    %v385 = vpack.c.b16 %v365, %v363
    %v386 = vpack.c.b16 %v368, %v366
    %v387 = vpack.c.b16 %v369, %v367
    %v388 = vpack.c.b16 %v372, %v370
    %v389 = vpack.c.b16 %v373, %v371
    %406 = vmatpush.bf16.msra.mxu0 %v388
    %407 = vmatpush.bf16.msra.mxu0 %v386
    %408 = vmatpush.bf16.msra.mxu0 %v384
    %409 = vmatpush.bf16.msra.mxu0 %v382
    %410 = vmatpush.bf16.msra.mxu0 %v380
    %411 = vmatpush.bf16.msra.mxu0 %v378
    %412 = vmatpush.bf16.msra.mxu0 %v376
    %413 = vmatpush.bf16.msra.mxu0 %v374
    %414 = vmatmul.bf16.gmra.mxu0 %v306
    %v415 = vpop.f32.mrf.mxu0
    %v416 = vadd.f32 0.0, %v415
    %v417 = vpop.f32.mrf.mxu0
    %v418 = vadd.f32 0.0, %v417
    %419 = vdwg.mxu0
    %420 = vmatpush.bf16.msra.mxu0 %v389
    %421 = vmatpush.bf16.msra.mxu0 %v387
    %422 = vmatpush.bf16.msra.mxu0 %v385
    %423 = vmatpush.bf16.msra.mxu0 %v383
    %424 = vmatpush.bf16.msra.mxu0 %v381
    %425 = vmatpush.bf16.msra.mxu0 %v379
    %426 = vmatpush.bf16.msra.mxu0 %v377
    %427 = vmatpush.bf16.msra.mxu0 %v375
    %428 = vmatmul.bf16.gmra.mxu0 %v306
    %v429 = vpop.f32.mrf.mxu0
    %v430 = vadd.f32 0.0, %v429
    %v431 = vpop.f32.mrf.mxu0
    %v432 = vadd.f32 0.0, %v431
    %433 = vdwg.mxu0
    %v434 = vld [vmem:[#allocation8] sm:$0x3]
    %v435 = vld [vmem:[#allocation10] sm:$0x3]
    %v436 = vadd.f32 %v416, %v418
    %v437 = vrot.slane %v436, 4
    %v438 = vadd.f32 %v436, %v437
    %v439 = vrot.slane %v438, 2
    %v440 = vadd.f32 %v438, %v439
    %v441 = vrot.slane %v440, 1
    %v442 = vadd.f32 %v440, %v441
    %v443 = vadd.f32 %v430, %v432
    %v444 = vrot.slane %v443, 4
    %v445 = vadd.f32 %v443, %v444
    %v446 = vrot.slane %v445, 2
    %v447 = vadd.f32 %v445, %v446
    %v448 = vrot.slane %v447, 1
    %v449 = vadd.f32 %v447, %v448
    %v450 = vmul.f32 %v416, %v416
    %v451 = vmul.f32 %v430, %v430
    %v452 = vmul.f32 %v418, %v418
    %v453 = vmul.f32 %v432, %v432
    %v454 = vadd.f32 %v450, %v452
    %v455 = vrot.slane %v454, 4
    %v456 = vadd.f32 %v454, %v455
    %v457 = vrot.slane %v456, 2
    %v458 = vadd.f32 %v456, %v457
    %v459 = vrot.slane %v458, 1
    %v460 = vadd.f32 %v458, %v459
    %v461 = vadd.f32 %v451, %v453
    %v462 = vrot.slane %v461, 4
    %v463 = vadd.f32 %v461, %v462
    %v464 = vrot.slane %v463, 2
    %v465 = vadd.f32 %v463, %v464
    %v466 = vrot.slane %v465, 1
    %v467 = vadd.f32 %v465, %v466
    %v468 = vmul.f32 %v442, 0.0625
    %v469 = vmul.f32 %v449, 0.0625
    %v470 = vmul.f32 %v460, 0.0625
    %v471 = vmul.f32 %v467, 0.0625
    %v472 = vmul.f32 %v468, %v468
    %v473 = vmul.f32 %v469, %v469
    %v474 = vsub.f32 %v470, %v472
    %v475 = vsub.f32 %v471, %v473
    %v476 = vmax.f32 %v474, 0.0
    %v477 = vmax.f32 %v475, 0.0
    %v478 = vadd.f32 %v476, 1e-05
    %v479 = vadd.f32 %v477, 1e-05
    %v480 = vrsqrt.pop %v478
    %v481 = vmul.f32 %v480, %v478
    %v482 = vmul.f32 %v481, %v480
    %v483 = vmul.f32 0.5, %v482
    %v484 = vsub.f32 1.5, %v483
    %v485 = vmul.f32 %v480, %v484
    %vm486 = vweird.f32 %v478
    %vm487 = vweird.f32 %v480
    %vm488 = vmor %vm486, %vm487
    %v489 = vsel %vm488, %v480, %v485
    %v490 = vrsqrt.pop %v479
    %v491 = vmul.f32 %v490, %v479
    %v492 = vmul.f32 %v491, %v490
    %v493 = vmul.f32 0.5, %v492
    %v494 = vsub.f32 1.5, %v493
    %v495 = vmul.f32 %v490, %v494
    %vm496 = vweird.f32 %v479
    %vm497 = vweird.f32 %v490
    %vm498 = vmor %vm496, %vm497
    %v499 = vsel %vm498, %v490, %v495
    %v502 = vrot.slane %v499, 7
    %vm503 = vcmask 1040384
    %v504 = vsel %vm503, %v489, %v502
    %v506 = vmul.f32 %v434, %v504
    %v508 = vperm.slane %v506, 0
    %v509 = vperm.slane %v506, 1
    %v512 = vmul.f32 %v468, %v508
    %v513 = vmul.f32 %v469, %v509
    %v516 = vrot.slane %v513, 7
    %v517 = vsel %vm503, %v512, %v516
    %v519 = vsub.f32 %v435, %v517
    %v520 = vmul.f32 %v416, %v508
    %v521 = vmul.f32 %v430, %v509
    %v522 = vmul.f32 %v418, %v508
    %v523 = vmul.f32 %v432, %v509
    %v525 = vperm.slane %v519, 0
    %v526 = vperm.slane %v519, 1
    %v529 = vadd.f32 %v520, %v525
    %v530 = vadd.f32 %v521, %v526
    %v531 = vadd.f32 %v522, %v525
    %v532 = vadd.f32 %v523, %v526
    %v533 = vmax.f32 %v529, 0.0
    %v534 = vmax.f32 %v530, 0.0
    %v535 = vmax.f32 %v531, 0.0
    %v536 = vmax.f32 %v532, 0.0
    %v537 = vld [vmem:[#allocation11] sm:$0xff]
    %v538 = vld [vmem:[#allocation11 + $0x8] sm:$0xff]
    %v541 = vunpack.c.l.b16 %v537
    %v542 = vunpack.c.h.b16 %v537
    %v543 = vunpack.c.l.b16 %v538
    %v544 = vunpack.c.h.b16 %v538
    %v545 = vpack.c.b16 %v543, %v541
    %v546 = vpack.c.b16 %v544, %v542
    %vm549 = vcmask 130048
    %v551 = vsel %vm549, %v309, 0
    %553 = vmatpush.bf16.msra.mxu0 0
    %554 = vmatpush.bf16.msra.mxu0 0
    %555 = vmatpush.bf16.msra.mxu0 0
    %556 = vmatpush.bf16.msra.mxu0 0
    %557 = vmatpush.bf16.msra.mxu0 0
    %558 = vmatpush.bf16.msra.mxu0 0
    %559 = vmatpush.bf16.msra.mxu0 0
    %560 = vmatpush.bf16.msra.mxu0 %v545
    %561 = vmatmul.bf16.gmra.mxu0 %v551
    %v562 = vpop.f32.mrf.mxu0
    %v563 = vadd.f32 0.0, %v562
    %v564 = vpop.f32.mrf.mxu0
    %v565 = vadd.f32 0.0, %v564
    %566 = vdwg.mxu0
    %567 = vmatpush.bf16.msra.mxu0 0
    %568 = vmatpush.bf16.msra.mxu0 0
    %569 = vmatpush.bf16.msra.mxu0 0
    %570 = vmatpush.bf16.msra.mxu0 0
    %571 = vmatpush.bf16.msra.mxu0 0
    %572 = vmatpush.bf16.msra.mxu0 0
    %573 = vmatpush.bf16.msra.mxu0 0
    %574 = vmatpush.bf16.msra.mxu0 %v546
    %575 = vmatmul.bf16.gmra.mxu0 %v551
    %v576 = vpop.f32.mrf.mxu0
    %v577 = vadd.f32 0.0, %v576
    %v578 = vpop.f32.mrf.mxu0
    %v579 = vadd.f32 0.0, %v578
    %580 = vdwg.mxu0
    %v581 = vld [vmem:[#allocation13] sm:$0x3]
    %v582 = vld [vmem:[#allocation14] sm:$0x3]
    %v583 = vadd.f32 %v563, %v565
    %v584 = vrot.slane %v583, 4
    %v585 = vadd.f32 %v583, %v584
    %v586 = vrot.slane %v585, 2
    %v587 = vadd.f32 %v585, %v586
    %v588 = vrot.slane %v587, 1
    %v589 = vadd.f32 %v587, %v588
    %v590 = vadd.f32 %v577, %v579
    %v591 = vrot.slane %v590, 4
    %v592 = vadd.f32 %v590, %v591
    %v593 = vrot.slane %v592, 2
    %v594 = vadd.f32 %v592, %v593
    %v595 = vrot.slane %v594, 1
    %v596 = vadd.f32 %v594, %v595
    %v597 = vmul.f32 %v563, %v563
    %v598 = vmul.f32 %v577, %v577
    %v599 = vmul.f32 %v565, %v565
    %v600 = vmul.f32 %v579, %v579
    %v601 = vadd.f32 %v597, %v599
    %v602 = vrot.slane %v601, 4
    %v603 = vadd.f32 %v601, %v602
    %v604 = vrot.slane %v603, 2
    %v605 = vadd.f32 %v603, %v604
    %v606 = vrot.slane %v605, 1
    %v607 = vadd.f32 %v605, %v606
    %v608 = vadd.f32 %v598, %v600
    %v609 = vrot.slane %v608, 4
    %v610 = vadd.f32 %v608, %v609
    %v611 = vrot.slane %v610, 2
    %v612 = vadd.f32 %v610, %v611
    %v613 = vrot.slane %v612, 1
    %v614 = vadd.f32 %v612, %v613
    %v615 = vmul.f32 %v589, 0.0625
    %v616 = vmul.f32 %v596, 0.0625
    %v617 = vmul.f32 %v607, 0.0625
    %v618 = vmul.f32 %v614, 0.0625
    %v619 = vmul.f32 %v615, %v615
    %v620 = vmul.f32 %v616, %v616
    %v621 = vsub.f32 %v617, %v619
    %v622 = vsub.f32 %v618, %v620
    %v623 = vmax.f32 %v621, 0.0
    %v624 = vmax.f32 %v622, 0.0
    %v625 = vadd.f32 %v623, 1e-05
    %v626 = vadd.f32 %v624, 1e-05
    %v627 = vrsqrt.pop %v625
    %v628 = vmul.f32 %v627, %v625
    %v629 = vmul.f32 %v628, %v627
    %v630 = vmul.f32 0.5, %v629
    %v631 = vsub.f32 1.5, %v630
    %v632 = vmul.f32 %v627, %v631
    %vm633 = vweird.f32 %v625
    %vm634 = vweird.f32 %v627
    %vm635 = vmor %vm633, %vm634
    %v636 = vsel %vm635, %v627, %v632
    %v637 = vrsqrt.pop %v626
    %v638 = vmul.f32 %v637, %v626
    %v639 = vmul.f32 %v638, %v637
    %v640 = vmul.f32 0.5, %v639
    %v641 = vsub.f32 1.5, %v640
    %v642 = vmul.f32 %v637, %v641
    %vm643 = vweird.f32 %v626
    %vm644 = vweird.f32 %v637
    %vm645 = vmor %vm643, %vm644
    %v646 = vsel %vm645, %v637, %v642
    %v649 = vrot.slane %v646, 7
    %v650 = vsel %vm503, %v636, %v649
    %v652 = vmul.f32 %v581, %v650
    %v654 = vperm.slane %v652, 0
    %v655 = vperm.slane %v652, 1
    %v658 = vmul.f32 %v615, %v654
    %v659 = vmul.f32 %v616, %v655
    %v662 = vrot.slane %v659, 7
    %v663 = vsel %vm503, %v658, %v662
    %v665 = vsub.f32 %v582, %v663
    %v666 = vmul.f32 %v563, %v654
    %v667 = vmul.f32 %v577, %v655
    %v668 = vmul.f32 %v565, %v654
    %v669 = vmul.f32 %v579, %v655
    %v671 = vperm.slane %v665, 0
    %v672 = vperm.slane %v665, 1
    %v675 = vadd.f32 %v666, %v671
    %v676 = vadd.f32 %v667, %v672
    %v677 = vadd.f32 %v668, %v671
    %v678 = vadd.f32 %v669, %v672
    %v679 = vmax.f32 %v675, 0.0
    %v680 = vmax.f32 %v676, 0.0
    %v681 = vmax.f32 %v677, 0.0
    %v682 = vmax.f32 %v678, 0.0
    %v683 = vpack.c.bf16 %v535, %v533
    %v684 = vpack.c.bf16 %v536, %v534
    %v685 = vld [vmem:[#allocation16] sm:$0xff]
    %v686 = vld [vmem:[#allocation16 + $0x8] sm:$0xff]
    %v687 = vld [vmem:[#allocation16 + $0x10] sm:$0xff]
    %v688 = vld [vmem:[#allocation16 + $0x18] sm:$0xff]
    %v689 = vld [vmem:[#allocation16 + $0x20] sm:$0xff]
    %v690 = vld [vmem:[#allocation16 + $0x28] sm:$0xff]
    %v691 = vld [vmem:[#allocation16 + $0x30] sm:$0xff]
    %v692 = vld [vmem:[#allocation16 + $0x38] sm:$0xff]
    %v693 = vld [vmem:[#allocation16 + $0x40] sm:$0xff]
    %v694 = vld [vmem:[#allocation16 + $0x48] sm:$0xff]
    %v695 = vld [vmem:[#allocation16 + $0x50] sm:$0xff]
    %v696 = vld [vmem:[#allocation16 + $0x58] sm:$0xff]
    %v697 = vld [vmem:[#allocation16 + $0x60] sm:$0xff]
    %v698 = vld [vmem:[#allocation16 + $0x68] sm:$0xff]
    %v699 = vld [vmem:[#allocation16 + $0x70] sm:$0xff]
    %v700 = vld [vmem:[#allocation16 + $0x78] sm:$0xff]
    %v701 = vld [vmem:[#allocation16 + $0x80] sm:$0xff]
    %v702 = vld [vmem:[#allocation16 + $0x88] sm:$0xff]
    %v703 = vld [vmem:[#allocation16 + $0x90] sm:$0xff]
    %v704 = vld [vmem:[#allocation16 + $0x98] sm:$0xff]
    %v705 = vld [vmem:[#allocation16 + $0xa0] sm:$0xff]
    %v706 = vld [vmem:[#allocation16 + $0xa8] sm:$0xff]
    %v707 = vld [vmem:[#allocation16 + $0xb0] sm:$0xff]
    %v708 = vld [vmem:[#allocation16 + $0xb8] sm:$0xff]
    %v709 = vld [vmem:[#allocation16 + $0xc0] sm:$0xff]
    %v710 = vld [vmem:[#allocation16 + $0xc8] sm:$0xff]
    %v711 = vld [vmem:[#allocation16 + $0xd0] sm:$0xff]
    %v712 = vld [vmem:[#allocation16 + $0xd8] sm:$0xff]
    %v713 = vld [vmem:[#allocation16 + $0xe0] sm:$0xff]
    %v714 = vld [vmem:[#allocation16 + $0xe8] sm:$0xff]
    %v715 = vld [vmem:[#allocation16 + $0xf0] sm:$0xff]
    %v716 = vld [vmem:[#allocation16 + $0xf8] sm:$0xff]
    %v717 = vld [vmem:[#allocation16 + $0x100] sm:$0xff]
    %v718 = vld [vmem:[#allocation16 + $0x108] sm:$0xff]
    %v719 = vld [vmem:[#allocation16 + $0x110] sm:$0xff]
    %v720 = vld [vmem:[#allocation16 + $0x118] sm:$0xff]
    %v721 = vld [vmem:[#allocation16 + $0x120] sm:$0xff]
    %v722 = vld [vmem:[#allocation16 + $0x128] sm:$0xff]
    %v723 = vld [vmem:[#allocation16 + $0x130] sm:$0xff]
    %v724 = vld [vmem:[#allocation16 + $0x138] sm:$0xff]
    %v725 = vld [vmem:[#allocation16 + $0x140] sm:$0xff]
    %v726 = vld [vmem:[#allocation16 + $0x148] sm:$0xff]
    %v727 = vld [vmem:[#allocation16 + $0x150] sm:$0xff]
    %v728 = vld [vmem:[#allocation16 + $0x158] sm:$0xff]
    %v729 = vld [vmem:[#allocation16 + $0x160] sm:$0xff]
    %v730 = vld [vmem:[#allocation16 + $0x168] sm:$0xff]
    %v731 = vld [vmem:[#allocation16 + $0x170] sm:$0xff]
    %v732 = vld [vmem:[#allocation16 + $0x178] sm:$0xff]
    %v733 = vld [vmem:[#allocation16 + $0x180] sm:$0xff]
    %v734 = vld [vmem:[#allocation16 + $0x188] sm:$0xff]
    %v735 = vld [vmem:[#allocation16 + $0x190] sm:$0xff]
    %v736 = vld [vmem:[#allocation16 + $0x198] sm:$0xff]
    %v737 = vld [vmem:[#allocation16 + $0x1a0] sm:$0xff]
    %v738 = vld [vmem:[#allocation16 + $0x1a8] sm:$0xff]
    %v739 = vld [vmem:[#allocation16 + $0x1b0] sm:$0xff]
    %v740 = vld [vmem:[#allocation16 + $0x1b8] sm:$0xff]
    %v741 = vld [vmem:[#allocation16 + $0x1c0] sm:$0xff]
    %v742 = vld [vmem:[#allocation16 + $0x1c8] sm:$0xff]
    %v743 = vld [vmem:[#allocation16 + $0x1d0] sm:$0xff]
    %v744 = vld [vmem:[#allocation16 + $0x1d8] sm:$0xff]
    %v745 = vld [vmem:[#allocation16 + $0x1e0] sm:$0xff]
    %v746 = vld [vmem:[#allocation16 + $0x1e8] sm:$0xff]
    %v747 = vld [vmem:[#allocation16 + $0x1f0] sm:$0xff]
    %v748 = vld [vmem:[#allocation16 + $0x1f8] sm:$0xff]
    %v749 = vpack.c.bf16 %v681, %v679
    %v750 = vpack.c.bf16 %v682, %v680
    %v751 = vld [vmem:[#allocation17] sm:$0xff]
    %v752 = vld [vmem:[#allocation17 + $0x8] sm:$0xff]
    %v753 = vld [vmem:[#allocation17 + $0x10] sm:$0xff]
    %v754 = vld [vmem:[#allocation17 + $0x18] sm:$0xff]
    %v755 = vld [vmem:[#allocation17 + $0x20] sm:$0xff]
    %v756 = vld [vmem:[#allocation17 + $0x28] sm:$0xff]
    %v757 = vld [vmem:[#allocation17 + $0x30] sm:$0xff]
    %v758 = vld [vmem:[#allocation17 + $0x38] sm:$0xff]
    %v759 = vld [vmem:[#allocation17 + $0x40] sm:$0xff]
    %v760 = vld [vmem:[#allocation17 + $0x48] sm:$0xff]
    %v761 = vld [vmem:[#allocation17 + $0x50] sm:$0xff]
    %v762 = vld [vmem:[#allocation17 + $0x58] sm:$0xff]
    %v763 = vld [vmem:[#allocation17 + $0x60] sm:$0xff]
    %v764 = vld [vmem:[#allocation17 + $0x68] sm:$0xff]
    %v765 = vld [vmem:[#allocation17 + $0x70] sm:$0xff]
    %v766 = vld [vmem:[#allocation17 + $0x78] sm:$0xff]
    %v767 = vld [vmem:[#allocation17 + $0x80] sm:$0xff]
    %v768 = vld [vmem:[#allocation17 + $0x88] sm:$0xff]
    %v769 = vld [vmem:[#allocation17 + $0x90] sm:$0xff]
    %v770 = vld [vmem:[#allocation17 + $0x98] sm:$0xff]
    %v771 = vld [vmem:[#allocation17 + $0xa0] sm:$0xff]
    %v772 = vld [vmem:[#allocation17 + $0xa8] sm:$0xff]
    %v773 = vld [vmem:[#allocation17 + $0xb0] sm:$0xff]
    %v774 = vld [vmem:[#allocation17 + $0xb8] sm:$0xff]
    %v775 = vld [vmem:[#allocation17 + $0xc0] sm:$0xff]
    %v776 = vld [vmem:[#allocation17 + $0xc8] sm:$0xff]
    %v777 = vld [vmem:[#allocation17 + $0xd0] sm:$0xff]
    %v778 = vld [vmem:[#allocation17 + $0xd8] sm:$0xff]
    %v779 = vld [vmem:[#allocation17 + $0xe0] sm:$0xff]
    %v780 = vld [vmem:[#allocation17 + $0xe8] sm:$0xff]
    %v781 = vld [vmem:[#allocation17 + $0xf0] sm:$0xff]
    %v782 = vld [vmem:[#allocation17 + $0xf8] sm:$0xff]
    %v783 = vld [vmem:[#allocation17 + $0x100] sm:$0xff]
    %v784 = vld [vmem:[#allocation17 + $0x108] sm:$0xff]
    %v785 = vld [vmem:[#allocation17 + $0x110] sm:$0xff]
    %v786 = vld [vmem:[#allocation17 + $0x118] sm:$0xff]
    %v787 = vld [vmem:[#allocation17 + $0x120] sm:$0xff]
    %v788 = vld [vmem:[#allocation17 + $0x128] sm:$0xff]
    %v789 = vld [vmem:[#allocation17 + $0x130] sm:$0xff]
    %v790 = vld [vmem:[#allocation17 + $0x138] sm:$0xff]
    %v791 = vld [vmem:[#allocation17 + $0x140] sm:$0xff]
    %v792 = vld [vmem:[#allocation17 + $0x148] sm:$0xff]
    %v793 = vld [vmem:[#allocation17 + $0x150] sm:$0xff]
    %v794 = vld [vmem:[#allocation17 + $0x158] sm:$0xff]
    %v795 = vld [vmem:[#allocation17 + $0x160] sm:$0xff]
    %v796 = vld [vmem:[#allocation17 + $0x168] sm:$0xff]
    %v797 = vld [vmem:[#allocation17 + $0x170] sm:$0xff]
    %v798 = vld [vmem:[#allocation17 + $0x178] sm:$0xff]
    %v799 = vld [vmem:[#allocation17 + $0x180] sm:$0xff]
    %v800 = vld [vmem:[#allocation17 + $0x188] sm:$0xff]
    %v801 = vld [vmem:[#allocation17 + $0x190] sm:$0xff]
    %v802 = vld [vmem:[#allocation17 + $0x198] sm:$0xff]
    %v803 = vld [vmem:[#allocation17 + $0x1a0] sm:$0xff]
    %v804 = vld [vmem:[#allocation17 + $0x1a8] sm:$0xff]
    %v805 = vld [vmem:[#allocation17 + $0x1b0] sm:$0xff]
    %v806 = vld [vmem:[#allocation17 + $0x1b8] sm:$0xff]
    %v807 = vld [vmem:[#allocation17 + $0x1c0] sm:$0xff]
    %v808 = vld [vmem:[#allocation17 + $0x1c8] sm:$0xff]
    %v809 = vld [vmem:[#allocation17 + $0x1d0] sm:$0xff]
    %v810 = vld [vmem:[#allocation17 + $0x1d8] sm:$0xff]
    %v811 = vld [vmem:[#allocation17 + $0x1e0] sm:$0xff]
    %v812 = vld [vmem:[#allocation17 + $0x1e8] sm:$0xff]
    %v813 = vld [vmem:[#allocation17 + $0x1f0] sm:$0xff]
    %v814 = vld [vmem:[#allocation17 + $0x1f8] sm:$0xff]
    %v879 = vunpack.c.l.b16 %v751
    %v880 = vunpack.c.h.b16 %v751
    %v881 = vunpack.c.l.b16 %v752
    %v882 = vunpack.c.h.b16 %v752
    %v883 = vunpack.c.l.b16 %v753
    %v884 = vunpack.c.h.b16 %v753
    %v885 = vunpack.c.l.b16 %v754
    %v886 = vunpack.c.h.b16 %v754
    %v887 = vunpack.c.l.b16 %v755
    %v888 = vunpack.c.h.b16 %v755
    %v889 = vunpack.c.l.b16 %v756
    %v890 = vunpack.c.h.b16 %v756
    %v891 = vunpack.c.l.b16 %v757
    %v892 = vunpack.c.h.b16 %v757
    %v893 = vunpack.c.l.b16 %v758
    %v894 = vunpack.c.h.b16 %v758
    %v895 = vunpack.c.l.b16 %v759
    %v896 = vunpack.c.h.b16 %v759
    %v897 = vunpack.c.l.b16 %v760
    %v898 = vunpack.c.h.b16 %v760
    %v899 = vunpack.c.l.b16 %v761
    %v900 = vunpack.c.h.b16 %v761
    %v901 = vunpack.c.l.b16 %v762
    %v902 = vunpack.c.h.b16 %v762
    %v903 = vunpack.c.l.b16 %v763
    %v904 = vunpack.c.h.b16 %v763
    %v905 = vunpack.c.l.b16 %v764
    %v906 = vunpack.c.h.b16 %v764
    %v907 = vunpack.c.l.b16 %v765
    %v908 = vunpack.c.h.b16 %v765
    %v909 = vunpack.c.l.b16 %v766
    %v910 = vunpack.c.h.b16 %v766
    %v911 = vunpack.c.l.b16 %v767
    %v912 = vunpack.c.h.b16 %v767
    %v913 = vunpack.c.l.b16 %v768
    %v914 = vunpack.c.h.b16 %v768
    %v915 = vunpack.c.l.b16 %v769
    %v916 = vunpack.c.h.b16 %v769
    %v917 = vunpack.c.l.b16 %v770
    %v918 = vunpack.c.h.b16 %v770
    %v919 = vunpack.c.l.b16 %v771
    %v920 = vunpack.c.h.b16 %v771
    %v921 = vunpack.c.l.b16 %v772
    %v922 = vunpack.c.h.b16 %v772
    %v923 = vunpack.c.l.b16 %v773
    %v924 = vunpack.c.h.b16 %v773
    %v925 = vunpack.c.l.b16 %v774
    %v926 = vunpack.c.h.b16 %v774
    %v927 = vunpack.c.l.b16 %v775
    %v928 = vunpack.c.h.b16 %v775
    %v929 = vunpack.c.l.b16 %v776
    %v930 = vunpack.c.h.b16 %v776
    %v931 = vunpack.c.l.b16 %v777
    %v932 = vunpack.c.h.b16 %v777
    %v933 = vunpack.c.l.b16 %v778
    %v934 = vunpack.c.h.b16 %v778
    %v935 = vunpack.c.l.b16 %v779
    %v936 = vunpack.c.h.b16 %v779
    %v937 = vunpack.c.l.b16 %v780
    %v938 = vunpack.c.h.b16 %v780
    %v939 = vunpack.c.l.b16 %v781
    %v940 = vunpack.c.h.b16 %v781
    %v941 = vunpack.c.l.b16 %v782
    %v942 = vunpack.c.h.b16 %v782
    %v943 = vunpack.c.l.b16 %v783
    %v944 = vunpack.c.h.b16 %v783
    %v945 = vunpack.c.l.b16 %v784
    %v946 = vunpack.c.h.b16 %v784
    %v947 = vunpack.c.l.b16 %v785
    %v948 = vunpack.c.h.b16 %v785
    %v949 = vunpack.c.l.b16 %v786
    %v950 = vunpack.c.h.b16 %v786
    %v951 = vunpack.c.l.b16 %v787
    %v952 = vunpack.c.h.b16 %v787
    %v953 = vunpack.c.l.b16 %v788
    %v954 = vunpack.c.h.b16 %v788
    %v955 = vunpack.c.l.b16 %v789
    %v956 = vunpack.c.h.b16 %v789
    %v957 = vunpack.c.l.b16 %v790
    %v958 = vunpack.c.h.b16 %v790
    %v959 = vunpack.c.l.b16 %v791
    %v960 = vunpack.c.h.b16 %v791
    %v961 = vunpack.c.l.b16 %v792
    %v962 = vunpack.c.h.b16 %v792
    %v963 = vunpack.c.l.b16 %v793
    %v964 = vunpack.c.h.b16 %v793
    %v965 = vunpack.c.l.b16 %v794
    %v966 = vunpack.c.h.b16 %v794
    %v967 = vunpack.c.l.b16 %v795
    %v968 = vunpack.c.h.b16 %v795
    %v969 = vunpack.c.l.b16 %v796
    %v970 = vunpack.c.h.b16 %v796
    %v971 = vunpack.c.l.b16 %v797
    %v972 = vunpack.c.h.b16 %v797
    %v973 = vunpack.c.l.b16 %v798
    %v974 = vunpack.c.h.b16 %v798
    %v975 = vunpack.c.l.b16 %v799
    %v976 = vunpack.c.h.b16 %v799
    %v977 = vunpack.c.l.b16 %v800
    %v978 = vunpack.c.h.b16 %v800
    %v979 = vunpack.c.l.b16 %v801
    %v980 = vunpack.c.h.b16 %v801
    %v981 = vunpack.c.l.b16 %v802
    %v982 = vunpack.c.h.b16 %v802
    %v983 = vunpack.c.l.b16 %v803
    %v984 = vunpack.c.h.b16 %v803
    %v985 = vunpack.c.l.b16 %v804
    %v986 = vunpack.c.h.b16 %v804
    %v987 = vunpack.c.l.b16 %v805
    %v988 = vunpack.c.h.b16 %v805
    %v989 = vunpack.c.l.b16 %v806
    %v990 = vunpack.c.h.b16 %v806
    %v991 = vunpack.c.l.b16 %v807
    %v992 = vunpack.c.h.b16 %v807
    %v993 = vunpack.c.l.b16 %v808
    %v994 = vunpack.c.h.b16 %v808
    %v995 = vunpack.c.l.b16 %v809
    %v996 = vunpack.c.h.b16 %v809
    %v997 = vunpack.c.l.b16 %v810
    %v998 = vunpack.c.h.b16 %v810
    %v999 = vunpack.c.l.b16 %v811
    %v1000 = vunpack.c.h.b16 %v811
    %v1001 = vunpack.c.l.b16 %v812
    %v1002 = vunpack.c.h.b16 %v812
    %v1003 = vunpack.c.l.b16 %v813
    %v1004 = vunpack.c.h.b16 %v813
    %v1005 = vunpack.c.l.b16 %v814
    %v1006 = vunpack.c.h.b16 %v814
    %v1007 = vpack.c.b16 %v883, %v879
    %v1008 = vpack.c.b16 %v884, %v880
    %v1009 = vpack.c.b16 %v885, %v881
    %v1010 = vpack.c.b16 %v886, %v882
    %v1011 = vpack.c.b16 %v891, %v887
    %v1012 = vpack.c.b16 %v892, %v888
    %v1013 = vpack.c.b16 %v893, %v889
    %v1014 = vpack.c.b16 %v894, %v890
    %v1015 = vpack.c.b16 %v899, %v895
    %v1016 = vpack.c.b16 %v900, %v896
    %v1017 = vpack.c.b16 %v901, %v897
    %v1018 = vpack.c.b16 %v902, %v898
    %v1019 = vpack.c.b16 %v907, %v903
    %v1020 = vpack.c.b16 %v908, %v904
    %v1021 = vpack.c.b16 %v909, %v905
    %v1022 = vpack.c.b16 %v910, %v906
    %v1023 = vpack.c.b16 %v915, %v911
    %v1024 = vpack.c.b16 %v916, %v912
    %v1025 = vpack.c.b16 %v917, %v913
    %v1026 = vpack.c.b16 %v918, %v914
    %v1027 = vpack.c.b16 %v923, %v919
    %v1028 = vpack.c.b16 %v924, %v920
    %v1029 = vpack.c.b16 %v925, %v921
    %v1030 = vpack.c.b16 %v926, %v922
    %v1031 = vpack.c.b16 %v931, %v927
    %v1032 = vpack.c.b16 %v932, %v928
    %v1033 = vpack.c.b16 %v933, %v929
    %v1034 = vpack.c.b16 %v934, %v930
    %v1035 = vpack.c.b16 %v939, %v935
    %v1036 = vpack.c.b16 %v940, %v936
    %v1037 = vpack.c.b16 %v941, %v937
    %v1038 = vpack.c.b16 %v942, %v938
    %v1039 = vpack.c.b16 %v947, %v943
    %v1040 = vpack.c.b16 %v948, %v944
    %v1041 = vpack.c.b16 %v949, %v945
    %v1042 = vpack.c.b16 %v950, %v946
    %v1043 = vpack.c.b16 %v955, %v951
    %v1044 = vpack.c.b16 %v956, %v952
    %v1045 = vpack.c.b16 %v957, %v953
    %v1046 = vpack.c.b16 %v958, %v954
    %v1047 = vpack.c.b16 %v963, %v959
    %v1048 = vpack.c.b16 %v964, %v960
    %v1049 = vpack.c.b16 %v965, %v961
    %v1050 = vpack.c.b16 %v966, %v962
    %v1051 = vpack.c.b16 %v971, %v967
    %v1052 = vpack.c.b16 %v972, %v968
    %v1053 = vpack.c.b16 %v973, %v969
    %v1054 = vpack.c.b16 %v974, %v970
    %v1055 = vpack.c.b16 %v979, %v975
    %v1056 = vpack.c.b16 %v980, %v976
    %v1057 = vpack.c.b16 %v981, %v977
    %v1058 = vpack.c.b16 %v982, %v978
    %v1059 = vpack.c.b16 %v987, %v983
    %v1060 = vpack.c.b16 %v988, %v984
    %v1061 = vpack.c.b16 %v989, %v985
    %v1062 = vpack.c.b16 %v990, %v986
    %v1063 = vpack.c.b16 %v995, %v991
    %v1064 = vpack.c.b16 %v996, %v992
    %v1065 = vpack.c.b16 %v997, %v993
    %v1066 = vpack.c.b16 %v998, %v994
    %v1067 = vpack.c.b16 %v1003, %v999
    %v1068 = vpack.c.b16 %v1004, %v1000
    %v1069 = vpack.c.b16 %v1005, %v1001
    %v1070 = vpack.c.b16 %v1006, %v1002
    %1135 = vmatpush.bf16.msra.mxu0 %v1035
    %1136 = vmatpush.bf16.msra.mxu0 %v1031
    %1137 = vmatpush.bf16.msra.mxu0 %v1027
    %1138 = vmatpush.bf16.msra.mxu0 %v1023
    %1139 = vmatpush.bf16.msra.mxu0 %v1019
    %1140 = vmatpush.bf16.msra.mxu0 %v1015
    %1141 = vmatpush.bf16.msra.mxu0 %v1011
    %1142 = vmatpush.bf16.msra.mxu0 %v1007
    %1143 = vmatmul.bf16.gmra.mxu0 %v749
    %v1144 = vpop.f32.mrf.mxu0
    %v1145 = vadd.f32 0.0, %v1144
    %v1146 = vpop.f32.mrf.mxu0
    %v1147 = vadd.f32 0.0, %v1146
    %1148 = vdwg.mxu0
    %1149 = vmatpush.bf16.msra.mxu0 %v1067
    %1150 = vmatpush.bf16.msra.mxu0 %v1063
    %1151 = vmatpush.bf16.msra.mxu0 %v1059
    %1152 = vmatpush.bf16.msra.mxu0 %v1055
    %1153 = vmatpush.bf16.msra.mxu0 %v1051
    %1154 = vmatpush.bf16.msra.mxu0 %v1047
    %1155 = vmatpush.bf16.msra.mxu0 %v1043
    %1156 = vmatpush.bf16.msra.mxu0 %v1039
    %1157 = vmatmul.bf16.gmra.mxu0 %v750
    %v1158 = vpop.f32.mrf.mxu0
    %v1159 = vadd.f32 %v1145, %v1158
    %v1160 = vpop.f32.mrf.mxu0
    %v1161 = vadd.f32 %v1147, %v1160
    %1162 = vdwg.mxu0
    %1163 = vmatpush.bf16.msra.mxu0 %v1036
    %1164 = vmatpush.bf16.msra.mxu0 %v1032
    %1165 = vmatpush.bf16.msra.mxu0 %v1028
    %1166 = vmatpush.bf16.msra.mxu0 %v1024
    %1167 = vmatpush.bf16.msra.mxu0 %v1020
    %1168 = vmatpush.bf16.msra.mxu0 %v1016
    %1169 = vmatpush.bf16.msra.mxu0 %v1012
    %1170 = vmatpush.bf16.msra.mxu0 %v1008
    %1171 = vmatmul.bf16.gmra.mxu0 %v749
    %v1172 = vpop.f32.mrf.mxu0
    %v1173 = vadd.f32 0.0, %v1172
    %v1174 = vpop.f32.mrf.mxu0
    %v1175 = vadd.f32 0.0, %v1174
    %1176 = vdwg.mxu0
    %1177 = vmatpush.bf16.msra.mxu0 %v1068
    %1178 = vmatpush.bf16.msra.mxu0 %v1064
    %1179 = vmatpush.bf16.msra.mxu0 %v1060
    %1180 = vmatpush.bf16.msra.mxu0 %v1056
    %1181 = vmatpush.bf16.msra.mxu0 %v1052
    %1182 = vmatpush.bf16.msra.mxu0 %v1048
    %1183 = vmatpush.bf16.msra.mxu0 %v1044
    %1184 = vmatpush.bf16.msra.mxu0 %v1040
    %1185 = vmatmul.bf16.gmra.mxu0 %v750
    %v1186 = vpop.f32.mrf.mxu0
    %v1187 = vadd.f32 %v1173, %v1186
    %v1188 = vpop.f32.mrf.mxu0
    %v1189 = vadd.f32 %v1175, %v1188
    %1190 = vdwg.mxu0
    %1191 = vmatpush.bf16.msra.mxu0 %v1037
    %1192 = vmatpush.bf16.msra.mxu0 %v1033
    %1193 = vmatpush.bf16.msra.mxu0 %v1029
    %1194 = vmatpush.bf16.msra.mxu0 %v1025
    %1195 = vmatpush.bf16.msra.mxu0 %v1021
    %1196 = vmatpush.bf16.msra.mxu0 %v1017
    %1197 = vmatpush.bf16.msra.mxu0 %v1013
    %1198 = vmatpush.bf16.msra.mxu0 %v1009
    %1199 = vmatmul.bf16.gmra.mxu0 %v749
    %v1200 = vpop.f32.mrf.mxu0
    %v1201 = vadd.f32 0.0, %v1200
    %v1202 = vpop.f32.mrf.mxu0
    %v1203 = vadd.f32 0.0, %v1202
    %1204 = vdwg.mxu0
    %1205 = vmatpush.bf16.msra.mxu0 %v1069
    %1206 = vmatpush.bf16.msra.mxu0 %v1065
    %1207 = vmatpush.bf16.msra.mxu0 %v1061
    %1208 = vmatpush.bf16.msra.mxu0 %v1057
    %1209 = vmatpush.bf16.msra.mxu0 %v1053
    %1210 = vmatpush.bf16.msra.mxu0 %v1049
    %1211 = vmatpush.bf16.msra.mxu0 %v1045
    %1212 = vmatpush.bf16.msra.mxu0 %v1041
    %1213 = vmatmul.bf16.gmra.mxu0 %v750
    %v1214 = vpop.f32.mrf.mxu0
    %v1215 = vadd.f32 %v1201, %v1214
    %v1216 = vpop.f32.mrf.mxu0
    %v1217 = vadd.f32 %v1203, %v1216
    %1218 = vdwg.mxu0
    %1219 = vmatpush.bf16.msra.mxu0 %v1038
    %1220 = vmatpush.bf16.msra.mxu0 %v1034
    %1221 = vmatpush.bf16.msra.mxu0 %v1030
    %1222 = vmatpush.bf16.msra.mxu0 %v1026
    %1223 = vmatpush.bf16.msra.mxu0 %v1022
    %1224 = vmatpush.bf16.msra.mxu0 %v1018
    %1225 = vmatpush.bf16.msra.mxu0 %v1014
    %1226 = vmatpush.bf16.msra.mxu0 %v1010
    %1227 = vmatmul.bf16.gmra.mxu0 %v749
    %v1228 = vpop.f32.mrf.mxu0
    %v1229 = vadd.f32 0.0, %v1228
    %v1230 = vpop.f32.mrf.mxu0
    %v1231 = vadd.f32 0.0, %v1230
    %1232 = vdwg.mxu0
    %1233 = vmatpush.bf16.msra.mxu0 %v1070
    %1234 = vmatpush.bf16.msra.mxu0 %v1066
    %1235 = vmatpush.bf16.msra.mxu0 %v1062
    %1236 = vmatpush.bf16.msra.mxu0 %v1058
    %1237 = vmatpush.bf16.msra.mxu0 %v1054
    %1238 = vmatpush.bf16.msra.mxu0 %v1050
    %1239 = vmatpush.bf16.msra.mxu0 %v1046
    %1240 = vmatpush.bf16.msra.mxu0 %v1042
    %1241 = vmatmul.bf16.gmra.mxu0 %v750
    %v1242 = vpop.f32.mrf.mxu0
    %v1243 = vadd.f32 %v1229, %v1242
    %v1244 = vpop.f32.mrf.mxu0
    %v1245 = vadd.f32 %v1231, %v1244
    %1246 = vdwg.mxu0
    %v1311 = vunpack.c.l.b16 %v685
    %v1312 = vunpack.c.h.b16 %v685
    %v1313 = vunpack.c.l.b16 %v686
    %v1314 = vunpack.c.h.b16 %v686
    %v1315 = vunpack.c.l.b16 %v687
    %v1316 = vunpack.c.h.b16 %v687
    %v1317 = vunpack.c.l.b16 %v688
    %v1318 = vunpack.c.h.b16 %v688
    %v1319 = vunpack.c.l.b16 %v689
    %v1320 = vunpack.c.h.b16 %v689
    %v1321 = vunpack.c.l.b16 %v690
    %v1322 = vunpack.c.h.b16 %v690
    %v1323 = vunpack.c.l.b16 %v691
    %v1324 = vunpack.c.h.b16 %v691
    %v1325 = vunpack.c.l.b16 %v692
    %v1326 = vunpack.c.h.b16 %v692
    %v1327 = vunpack.c.l.b16 %v693
    %v1328 = vunpack.c.h.b16 %v693
    %v1329 = vunpack.c.l.b16 %v694
    %v1330 = vunpack.c.h.b16 %v694
    %v1331 = vunpack.c.l.b16 %v695
    %v1332 = vunpack.c.h.b16 %v695
    %v1333 = vunpack.c.l.b16 %v696
    %v1334 = vunpack.c.h.b16 %v696
    %v1335 = vunpack.c.l.b16 %v697
    %v1336 = vunpack.c.h.b16 %v697
    %v1337 = vunpack.c.l.b16 %v698
    %v1338 = vunpack.c.h.b16 %v698
    %v1339 = vunpack.c.l.b16 %v699
    %v1340 = vunpack.c.h.b16 %v699
    %v1341 = vunpack.c.l.b16 %v700
    %v1342 = vunpack.c.h.b16 %v700
    %v1343 = vunpack.c.l.b16 %v701
    %v1344 = vunpack.c.h.b16 %v701
    %v1345 = vunpack.c.l.b16 %v702
    %v1346 = vunpack.c.h.b16 %v702
    %v1347 = vunpack.c.l.b16 %v703
    %v1348 = vunpack.c.h.b16 %v703
    %v1349 = vunpack.c.l.b16 %v704
    %v1350 = vunpack.c.h.b16 %v704
    %v1351 = vunpack.c.l.b16 %v705
    %v1352 = vunpack.c.h.b16 %v705
    %v1353 = vunpack.c.l.b16 %v706
    %v1354 = vunpack.c.h.b16 %v706
    %v1355 = vunpack.c.l.b16 %v707
    %v1356 = vunpack.c.h.b16 %v707
    %v1357 = vunpack.c.l.b16 %v708
    %v1358 = vunpack.c.h.b16 %v708
    %v1359 = vunpack.c.l.b16 %v709
    %v1360 = vunpack.c.h.b16 %v709
    %v1361 = vunpack.c.l.b16 %v710
    %v1362 = vunpack.c.h.b16 %v710
    %v1363 = vunpack.c.l.b16 %v711
    %v1364 = vunpack.c.h.b16 %v711
    %v1365 = vunpack.c.l.b16 %v712
    %v1366 = vunpack.c.h.b16 %v712
    %v1367 = vunpack.c.l.b16 %v713
    %v1368 = vunpack.c.h.b16 %v713
    %v1369 = vunpack.c.l.b16 %v714
    %v1370 = vunpack.c.h.b16 %v714
    %v1371 = vunpack.c.l.b16 %v715
    %v1372 = vunpack.c.h.b16 %v715
    %v1373 = vunpack.c.l.b16 %v716
    %v1374 = vunpack.c.h.b16 %v716
    %v1375 = vunpack.c.l.b16 %v717
    %v1376 = vunpack.c.h.b16 %v717
    %v1377 = vunpack.c.l.b16 %v718
    %v1378 = vunpack.c.h.b16 %v718
    %v1379 = vunpack.c.l.b16 %v719
    %v1380 = vunpack.c.h.b16 %v719
    %v1381 = vunpack.c.l.b16 %v720
    %v1382 = vunpack.c.h.b16 %v720
    %v1383 = vunpack.c.l.b16 %v721
    %v1384 = vunpack.c.h.b16 %v721
    %v1385 = vunpack.c.l.b16 %v722
    %v1386 = vunpack.c.h.b16 %v722
    %v1387 = vunpack.c.l.b16 %v723
    %v1388 = vunpack.c.h.b16 %v723
    %v1389 = vunpack.c.l.b16 %v724
    %v1390 = vunpack.c.h.b16 %v724
    %v1391 = vunpack.c.l.b16 %v725
    %v1392 = vunpack.c.h.b16 %v725
    %v1393 = vunpack.c.l.b16 %v726
    %v1394 = vunpack.c.h.b16 %v726
    %v1395 = vunpack.c.l.b16 %v727
    %v1396 = vunpack.c.h.b16 %v727
    %v1397 = vunpack.c.l.b16 %v728
    %v1398 = vunpack.c.h.b16 %v728
    %v1399 = vunpack.c.l.b16 %v729
    %v1400 = vunpack.c.h.b16 %v729
    %v1401 = vunpack.c.l.b16 %v730
    %v1402 = vunpack.c.h.b16 %v730
    %v1403 = vunpack.c.l.b16 %v731
    %v1404 = vunpack.c.h.b16 %v731
    %v1405 = vunpack.c.l.b16 %v732
    %v1406 = vunpack.c.h.b16 %v732
    %v1407 = vunpack.c.l.b16 %v733
    %v1408 = vunpack.c.h.b16 %v733
    %v1409 = vunpack.c.l.b16 %v734
    %v1410 = vunpack.c.h.b16 %v734
    %v1411 = vunpack.c.l.b16 %v735
    %v1412 = vunpack.c.h.b16 %v735
    %v1413 = vunpack.c.l.b16 %v736
    %v1414 = vunpack.c.h.b16 %v736
    %v1415 = vunpack.c.l.b16 %v737
    %v1416 = vunpack.c.h.b16 %v737
    %v1417 = vunpack.c.l.b16 %v738
    %v1418 = vunpack.c.h.b16 %v738
    %v1419 = vunpack.c.l.b16 %v739
    %v1420 = vunpack.c.h.b16 %v739
    %v1421 = vunpack.c.l.b16 %v740
    %v1422 = vunpack.c.h.b16 %v740
    %v1423 = vunpack.c.l.b16 %v741
    %v1424 = vunpack.c.h.b16 %v741
    %v1425 = vunpack.c.l.b16 %v742
    %v1426 = vunpack.c.h.b16 %v742
    %v1427 = vunpack.c.l.b16 %v743
    %v1428 = vunpack.c.h.b16 %v743
    %v1429 = vunpack.c.l.b16 %v744
    %v1430 = vunpack.c.h.b16 %v744
    %v1431 = vunpack.c.l.b16 %v745
    %v1432 = vunpack.c.h.b16 %v745
    %v1433 = vunpack.c.l.b16 %v746
    %v1434 = vunpack.c.h.b16 %v746
    %v1435 = vunpack.c.l.b16 %v747
    %v1436 = vunpack.c.h.b16 %v747
    %v1437 = vunpack.c.l.b16 %v748
    %v1438 = vunpack.c.h.b16 %v748
    %v1439 = vpack.c.b16 %v1315, %v1311
    %v1440 = vpack.c.b16 %v1316, %v1312
    %v1441 = vpack.c.b16 %v1317, %v1313
    %v1442 = vpack.c.b16 %v1318, %v1314
    %v1443 = vpack.c.b16 %v1323, %v1319
    %v1444 = vpack.c.b16 %v1324, %v1320
    %v1445 = vpack.c.b16 %v1325, %v1321
    %v1446 = vpack.c.b16 %v1326, %v1322
    %v1447 = vpack.c.b16 %v1331, %v1327
    %v1448 = vpack.c.b16 %v1332, %v1328
    %v1449 = vpack.c.b16 %v1333, %v1329
    %v1450 = vpack.c.b16 %v1334, %v1330
    %v1451 = vpack.c.b16 %v1339, %v1335
    %v1452 = vpack.c.b16 %v1340, %v1336
    %v1453 = vpack.c.b16 %v1341, %v1337
    %v1454 = vpack.c.b16 %v1342, %v1338
    %v1455 = vpack.c.b16 %v1347, %v1343
    %v1456 = vpack.c.b16 %v1348, %v1344
    %v1457 = vpack.c.b16 %v1349, %v1345
    %v1458 = vpack.c.b16 %v1350, %v1346
    %v1459 = vpack.c.b16 %v1355, %v1351
    %v1460 = vpack.c.b16 %v1356, %v1352
    %v1461 = vpack.c.b16 %v1357, %v1353
    %v1462 = vpack.c.b16 %v1358, %v1354
    %v1463 = vpack.c.b16 %v1363, %v1359
    %v1464 = vpack.c.b16 %v1364, %v1360
    %v1465 = vpack.c.b16 %v1365, %v1361
    %v1466 = vpack.c.b16 %v1366, %v1362
    %v1467 = vpack.c.b16 %v1371, %v1367
    %v1468 = vpack.c.b16 %v1372, %v1368
    %v1469 = vpack.c.b16 %v1373, %v1369
    %v1470 = vpack.c.b16 %v1374, %v1370
    %v1471 = vpack.c.b16 %v1379, %v1375
    %v1472 = vpack.c.b16 %v1380, %v1376
    %v1473 = vpack.c.b16 %v1381, %v1377
    %v1474 = vpack.c.b16 %v1382, %v1378
    %v1475 = vpack.c.b16 %v1387, %v1383
    %v1476 = vpack.c.b16 %v1388, %v1384
    %v1477 = vpack.c.b16 %v1389, %v1385
    %v1478 = vpack.c.b16 %v1390, %v1386
    %v1479 = vpack.c.b16 %v1395, %v1391
    %v1480 = vpack.c.b16 %v1396, %v1392
    %v1481 = vpack.c.b16 %v1397, %v1393
    %v1482 = vpack.c.b16 %v1398, %v1394
    %v1483 = vpack.c.b16 %v1403, %v1399
    %v1484 = vpack.c.b16 %v1404, %v1400
    %v1485 = vpack.c.b16 %v1405, %v1401
    %v1486 = vpack.c.b16 %v1406, %v1402
    %v1487 = vpack.c.b16 %v1411, %v1407
    %v1488 = vpack.c.b16 %v1412, %v1408
    %v1489 = vpack.c.b16 %v1413, %v1409
    %v1490 = vpack.c.b16 %v1414, %v1410
    %v1491 = vpack.c.b16 %v1419, %v1415
    %v1492 = vpack.c.b16 %v1420, %v1416
    %v1493 = vpack.c.b16 %v1421, %v1417
    %v1494 = vpack.c.b16 %v1422, %v1418
    %v1495 = vpack.c.b16 %v1427, %v1423
    %v1496 = vpack.c.b16 %v1428, %v1424
    %v1497 = vpack.c.b16 %v1429, %v1425
    %v1498 = vpack.c.b16 %v1430, %v1426
    %v1499 = vpack.c.b16 %v1435, %v1431
    %v1500 = vpack.c.b16 %v1436, %v1432
    %v1501 = vpack.c.b16 %v1437, %v1433
    %v1502 = vpack.c.b16 %v1438, %v1434
    %1567 = vmatpush.bf16.msra.mxu0 %v1467
    %1568 = vmatpush.bf16.msra.mxu0 %v1463
    %1569 = vmatpush.bf16.msra.mxu0 %v1459
    %1570 = vmatpush.bf16.msra.mxu0 %v1455
    %1571 = vmatpush.bf16.msra.mxu0 %v1451
    %1572 = vmatpush.bf16.msra.mxu0 %v1447
    %1573 = vmatpush.bf16.msra.mxu0 %v1443
    %1574 = vmatpush.bf16.msra.mxu0 %v1439
    %1575 = vmatmul.bf16.gmra.mxu0 %v683
    %v1576 = vpop.f32.mrf.mxu0
    %v1577 = vadd.f32 %v1159, %v1576
    %v1578 = vpop.f32.mrf.mxu0
    %v1579 = vadd.f32 %v1161, %v1578
    %1580 = vdwg.mxu0
    %1581 = vmatpush.bf16.msra.mxu0 %v1499
    %1582 = vmatpush.bf16.msra.mxu0 %v1495
    %1583 = vmatpush.bf16.msra.mxu0 %v1491
    %1584 = vmatpush.bf16.msra.mxu0 %v1487
    %1585 = vmatpush.bf16.msra.mxu0 %v1483
    %1586 = vmatpush.bf16.msra.mxu0 %v1479
    %1587 = vmatpush.bf16.msra.mxu0 %v1475
    %1588 = vmatpush.bf16.msra.mxu0 %v1471
    %1589 = vmatmul.bf16.gmra.mxu0 %v684
    %v1590 = vpop.f32.mrf.mxu0
    %v1591 = vadd.f32 %v1577, %v1590
    %v1592 = vpop.f32.mrf.mxu0
    %v1593 = vadd.f32 %v1579, %v1592
    %1594 = vdwg.mxu0
    %1595 = vmatpush.bf16.msra.mxu0 %v1468
    %1596 = vmatpush.bf16.msra.mxu0 %v1464
    %1597 = vmatpush.bf16.msra.mxu0 %v1460
    %1598 = vmatpush.bf16.msra.mxu0 %v1456
    %1599 = vmatpush.bf16.msra.mxu0 %v1452
    %1600 = vmatpush.bf16.msra.mxu0 %v1448
    %1601 = vmatpush.bf16.msra.mxu0 %v1444
    %1602 = vmatpush.bf16.msra.mxu0 %v1440
    %1603 = vmatmul.bf16.gmra.mxu0 %v683
    %v1604 = vpop.f32.mrf.mxu0
    %v1605 = vadd.f32 %v1187, %v1604
    %v1606 = vpop.f32.mrf.mxu0
    %v1607 = vadd.f32 %v1189, %v1606
    %1608 = vdwg.mxu0
    %1609 = vmatpush.bf16.msra.mxu0 %v1500
    %1610 = vmatpush.bf16.msra.mxu0 %v1496
    %1611 = vmatpush.bf16.msra.mxu0 %v1492
    %1612 = vmatpush.bf16.msra.mxu0 %v1488
    %1613 = vmatpush.bf16.msra.mxu0 %v1484
    %1614 = vmatpush.bf16.msra.mxu0 %v1480
    %1615 = vmatpush.bf16.msra.mxu0 %v1476
    %1616 = vmatpush.bf16.msra.mxu0 %v1472
    %1617 = vmatmul.bf16.gmra.mxu0 %v684
    %v1618 = vpop.f32.mrf.mxu0
    %v1619 = vadd.f32 %v1605, %v1618
    %v1620 = vpop.f32.mrf.mxu0
    %v1621 = vadd.f32 %v1607, %v1620
    %1622 = vdwg.mxu0
    %1623 = vmatpush.bf16.msra.mxu0 %v1469
    %1624 = vmatpush.bf16.msra.mxu0 %v1465
    %1625 = vmatpush.bf16.msra.mxu0 %v1461
    %1626 = vmatpush.bf16.msra.mxu0 %v1457
    %1627 = vmatpush.bf16.msra.mxu0 %v1453
    %1628 = vmatpush.bf16.msra.mxu0 %v1449
    %1629 = vmatpush.bf16.msra.mxu0 %v1445
    %1630 = vmatpush.bf16.msra.mxu0 %v1441
    %1631 = vmatmul.bf16.gmra.mxu0 %v683
    %v1632 = vpop.f32.mrf.mxu0
    %v1633 = vadd.f32 %v1215, %v1632
    %v1634 = vpop.f32.mrf.mxu0
    %v1635 = vadd.f32 %v1217, %v1634
    %1636 = vdwg.mxu0
    %1637 = vmatpush.bf16.msra.mxu0 %v1501
    %1638 = vmatpush.bf16.msra.mxu0 %v1497
    %1639 = vmatpush.bf16.msra.mxu0 %v1493
    %1640 = vmatpush.bf16.msra.mxu0 %v1489
    %1641 = vmatpush.bf16.msra.mxu0 %v1485
    %1642 = vmatpush.bf16.msra.mxu0 %v1481
    %1643 = vmatpush.bf16.msra.mxu0 %v1477
    %1644 = vmatpush.bf16.msra.mxu0 %v1473
    %1645 = vmatmul.bf16.gmra.mxu0 %v684
    %v1646 = vpop.f32.mrf.mxu0
    %v1647 = vadd.f32 %v1633, %v1646
    %v1648 = vpop.f32.mrf.mxu0
    %v1649 = vadd.f32 %v1635, %v1648
    %1650 = vdwg.mxu0
    %1651 = vmatpush.bf16.msra.mxu0 %v1470
    %1652 = vmatpush.bf16.msra.mxu0 %v1466
    %1653 = vmatpush.bf16.msra.mxu0 %v1462
    %1654 = vmatpush.bf16.msra.mxu0 %v1458
    %1655 = vmatpush.bf16.msra.mxu0 %v1454
    %1656 = vmatpush.bf16.msra.mxu0 %v1450
    %1657 = vmatpush.bf16.msra.mxu0 %v1446
    %1658 = vmatpush.bf16.msra.mxu0 %v1442
    %1659 = vmatmul.bf16.gmra.mxu0 %v683
    %v1660 = vpop.f32.mrf.mxu0
    %v1661 = vadd.f32 %v1243, %v1660
    %v1662 = vpop.f32.mrf.mxu0
    %v1663 = vadd.f32 %v1245, %v1662
    %1664 = vdwg.mxu0
    %1665 = vmatpush.bf16.msra.mxu0 %v1502
    %1666 = vmatpush.bf16.msra.mxu0 %v1498
    %1667 = vmatpush.bf16.msra.mxu0 %v1494
    %1668 = vmatpush.bf16.msra.mxu0 %v1490
    %1669 = vmatpush.bf16.msra.mxu0 %v1486
    %1670 = vmatpush.bf16.msra.mxu0 %v1482
    %1671 = vmatpush.bf16.msra.mxu0 %v1478
    %1672 = vmatpush.bf16.msra.mxu0 %v1474
    %1673 = vmatmul.bf16.gmra.mxu0 %v684
    %v1674 = vpop.f32.mrf.mxu0
    %v1675 = vadd.f32 %v1661, %v1674
    %v1676 = vpop.f32.mrf.mxu0
    %v1677 = vadd.f32 %v1663, %v1676
    %1678 = vdwg.mxu0
    %v1679 = vld [vmem:[#allocation19] sm:$0xf]
    %v1680 = vld [vmem:[#allocation20] sm:$0xf]
    %v1681 = vadd.f32 %v1591, %v1593
    %v1682 = vrot.slane %v1681, 4
    %v1683 = vadd.f32 %v1681, %v1682
    %v1684 = vrot.slane %v1683, 2
    %v1685 = vadd.f32 %v1683, %v1684
    %v1686 = vrot.slane %v1685, 1
    %v1687 = vadd.f32 %v1685, %v1686
    %v1688 = vadd.f32 %v1619, %v1621
    %v1689 = vrot.slane %v1688, 4
    %v1690 = vadd.f32 %v1688, %v1689
    %v1691 = vrot.slane %v1690, 2
    %v1692 = vadd.f32 %v1690, %v1691
    %v1693 = vrot.slane %v1692, 1
    %v1694 = vadd.f32 %v1692, %v1693
    %v1695 = vadd.f32 %v1647, %v1649
    %v1696 = vrot.slane %v1695, 4
    %v1697 = vadd.f32 %v1695, %v1696
    %v1698 = vrot.slane %v1697, 2
    %v1699 = vadd.f32 %v1697, %v1698
    %v1700 = vrot.slane %v1699, 1
    %v1701 = vadd.f32 %v1699, %v1700
    %v1702 = vadd.f32 %v1675, %v1677
    %v1703 = vrot.slane %v1702, 4
    %v1704 = vadd.f32 %v1702, %v1703
    %v1705 = vrot.slane %v1704, 2
    %v1706 = vadd.f32 %v1704, %v1705
    %v1707 = vrot.slane %v1706, 1
    %v1708 = vadd.f32 %v1706, %v1707
    %v1709 = vmul.f32 %v1591, %v1591
    %v1710 = vmul.f32 %v1619, %v1619
    %v1711 = vmul.f32 %v1647, %v1647
    %v1712 = vmul.f32 %v1675, %v1675
    %v1713 = vmul.f32 %v1593, %v1593
    %v1714 = vmul.f32 %v1621, %v1621
    %v1715 = vmul.f32 %v1649, %v1649
    %v1716 = vmul.f32 %v1677, %v1677
    %v1717 = vadd.f32 %v1709, %v1713
    %v1718 = vrot.slane %v1717, 4
    %v1719 = vadd.f32 %v1717, %v1718
    %v1720 = vrot.slane %v1719, 2
    %v1721 = vadd.f32 %v1719, %v1720
    %v1722 = vrot.slane %v1721, 1
    %v1723 = vadd.f32 %v1721, %v1722
    %v1724 = vadd.f32 %v1710, %v1714
    %v1725 = vrot.slane %v1724, 4
    %v1726 = vadd.f32 %v1724, %v1725
    %v1727 = vrot.slane %v1726, 2
    %v1728 = vadd.f32 %v1726, %v1727
    %v1729 = vrot.slane %v1728, 1
    %v1730 = vadd.f32 %v1728, %v1729
    %v1731 = vadd.f32 %v1711, %v1715
    %v1732 = vrot.slane %v1731, 4
    %v1733 = vadd.f32 %v1731, %v1732
    %v1734 = vrot.slane %v1733, 2
    %v1735 = vadd.f32 %v1733, %v1734
    %v1736 = vrot.slane %v1735, 1
    %v1737 = vadd.f32 %v1735, %v1736
    %v1738 = vadd.f32 %v1712, %v1716
    %v1739 = vrot.slane %v1738, 4
    %v1740 = vadd.f32 %v1738, %v1739
    %v1741 = vrot.slane %v1740, 2
    %v1742 = vadd.f32 %v1740, %v1741
    %v1743 = vrot.slane %v1742, 1
    %v1744 = vadd.f32 %v1742, %v1743
    %v1745 = vmul.f32 %v1687, 0.0625
    %v1746 = vmul.f32 %v1694, 0.0625
    %v1747 = vmul.f32 %v1701, 0.0625
    %v1748 = vmul.f32 %v1708, 0.0625
    %v1749 = vmul.f32 %v1723, 0.0625
    %v1750 = vmul.f32 %v1730, 0.0625
    %v1751 = vmul.f32 %v1737, 0.0625
    %v1752 = vmul.f32 %v1744, 0.0625
    %v1753 = vmul.f32 %v1745, %v1745
    %v1754 = vmul.f32 %v1746, %v1746
    %v1755 = vmul.f32 %v1747, %v1747
    %v1756 = vmul.f32 %v1748, %v1748
    %v1757 = vsub.f32 %v1749, %v1753
    %v1758 = vsub.f32 %v1750, %v1754
    %v1759 = vsub.f32 %v1751, %v1755
    %v1760 = vsub.f32 %v1752, %v1756
    %v1761 = vmax.f32 %v1757, 0.0
    %v1762 = vmax.f32 %v1758, 0.0
    %v1763 = vmax.f32 %v1759, 0.0
    %v1764 = vmax.f32 %v1760, 0.0
    %v1765 = vadd.f32 %v1761, 1e-05
    %v1766 = vadd.f32 %v1762, 1e-05
    %v1767 = vadd.f32 %v1763, 1e-05
    %v1768 = vadd.f32 %v1764, 1e-05
    %v1769 = vrsqrt.pop %v1765
    %v1770 = vmul.f32 %v1769, %v1765
    %v1771 = vmul.f32 %v1770, %v1769
    %v1772 = vmul.f32 0.5, %v1771
    %v1773 = vsub.f32 1.5, %v1772
    %v1774 = vmul.f32 %v1769, %v1773
    %vm1775 = vweird.f32 %v1765
    %vm1776 = vweird.f32 %v1769
    %vm1777 = vmor %vm1775, %vm1776
    %v1778 = vsel %vm1777, %v1769, %v1774
    %v1779 = vrsqrt.pop %v1766
    %v1780 = vmul.f32 %v1779, %v1766
    %v1781 = vmul.f32 %v1780, %v1779
    %v1782 = vmul.f32 0.5, %v1781
    %v1783 = vsub.f32 1.5, %v1782
    %v1784 = vmul.f32 %v1779, %v1783
    %vm1785 = vweird.f32 %v1766
    %vm1786 = vweird.f32 %v1779
    %vm1787 = vmor %vm1785, %vm1786
    %v1788 = vsel %vm1787, %v1779, %v1784
    %v1789 = vrsqrt.pop %v1767
    %v1790 = vmul.f32 %v1789, %v1767
    %v1791 = vmul.f32 %v1790, %v1789
    %v1792 = vmul.f32 0.5, %v1791
    %v1793 = vsub.f32 1.5, %v1792
    %v1794 = vmul.f32 %v1789, %v1793
    %vm1795 = vweird.f32 %v1767
    %vm1796 = vweird.f32 %v1789
    %vm1797 = vmor %vm1795, %vm1796
    %v1798 = vsel %vm1797, %v1789, %v1794
    %v1799 = vrsqrt.pop %v1768
    %v1800 = vmul.f32 %v1799, %v1768
    %v1801 = vmul.f32 %v1800, %v1799
    %v1802 = vmul.f32 0.5, %v1801
    %v1803 = vsub.f32 1.5, %v1802
    %v1804 = vmul.f32 %v1799, %v1803
    %vm1805 = vweird.f32 %v1768
    %vm1806 = vweird.f32 %v1799
    %vm1807 = vmor %vm1805, %vm1806
    %v1808 = vsel %vm1807, %v1799, %v1804
    %v1813 = vrot.slane %v1788, 7
    %v1814 = vrot.slane %v1798, 6
    %v1815 = vrot.slane %v1808, 5
    %v1816 = vsel %vm503, %v1778, %v1813
    %vm1817 = vcmask 1042434
    %v1818 = vsel %vm1817, %v1814, %v1815
    %vm1819 = vcmask 1041408
    %v1820 = vsel %vm1819, %v1816, %v1818
    %v1822 = vmul.f32 %v1679, %v1820
    %v1824 = vperm.slane %v1822, 0
    %v1825 = vperm.slane %v1822, 1
    %v1826 = vperm.slane %v1822, 2
    %v1827 = vperm.slane %v1822, 3
    %v1832 = vmul.f32 %v1745, %v1824
    %v1833 = vmul.f32 %v1746, %v1825
    %v1834 = vmul.f32 %v1747, %v1826
    %v1835 = vmul.f32 %v1748, %v1827
    %v1840 = vrot.slane %v1833, 7
    %v1841 = vrot.slane %v1834, 6
    %v1842 = vrot.slane %v1835, 5
    %v1843 = vsel %vm503, %v1832, %v1840
    %v1844 = vsel %vm1817, %v1841, %v1842
    %v1845 = vsel %vm1819, %v1843, %v1844
    %v1847 = vsub.f32 %v1680, %v1845
    %v1848 = vmul.f32 %v1591, %v1824
    %v1849 = vmul.f32 %v1619, %v1825
    %v1850 = vmul.f32 %v1647, %v1826
    %v1851 = vmul.f32 %v1675, %v1827
    %v1852 = vmul.f32 %v1593, %v1824
    %v1853 = vmul.f32 %v1621, %v1825
    %v1854 = vmul.f32 %v1649, %v1826
    %v1855 = vmul.f32 %v1677, %v1827
    %v1857 = vperm.slane %v1847, 0
    %v1858 = vperm.slane %v1847, 1
    %v1859 = vperm.slane %v1847, 2
    %v1860 = vperm.slane %v1847, 3
    %v1865 = vadd.f32 %v1848, %v1857
    %v1866 = vadd.f32 %v1849, %v1858
    %v1867 = vadd.f32 %v1850, %v1859
    %v1868 = vadd.f32 %v1851, %v1860
    %v1869 = vadd.f32 %v1852, %v1857
    %v1870 = vadd.f32 %v1853, %v1858
    %v1871 = vadd.f32 %v1854, %v1859
    %v1872 = vadd.f32 %v1855, %v1860
    %v1873 = vmax.f32 %v1865, 0.0
    %v1874 = vmax.f32 %v1866, 0.0
    %v1875 = vmax.f32 %v1867, 0.0
    %v1876 = vmax.f32 %v1868, 0.0
    %v1877 = vmax.f32 %v1869, 0.0
    %v1878 = vmax.f32 %v1870, 0.0
    %v1879 = vmax.f32 %v1871, 0.0
    %v1880 = vmax.f32 %v1872, 0.0
    %v1881 = vpack.c.bf16 %v1877, %v1873
    %v1882 = vpack.c.bf16 %v1878, %v1874
    %v1883 = vpack.c.bf16 %v1879, %v1875
    %v1884 = vpack.c.bf16 %v1880, %v1876
    %v1885 = vld [vmem:[#allocation22] sm:$0xff]
    %v1886 = vld [vmem:[#allocation22 + $0x8] sm:$0xff]
    %v1887 = vld [vmem:[#allocation22 + $0x10] sm:$0xff]
    %v1888 = vld [vmem:[#allocation22 + $0x18] sm:$0xff]
    %v1889 = vld [vmem:[#allocation22 + $0x20] sm:$0xff]
    %v1890 = vld [vmem:[#allocation22 + $0x28] sm:$0xff]
    %v1891 = vld [vmem:[#allocation22 + $0x30] sm:$0xff]
    %v1892 = vld [vmem:[#allocation22 + $0x38] sm:$0xff]
    %v1893 = vld [vmem:[#allocation22 + $0x40] sm:$0xff]
    %v1894 = vld [vmem:[#allocation22 + $0x48] sm:$0xff]
    %v1895 = vld [vmem:[#allocation22 + $0x50] sm:$0xff]
    %v1896 = vld [vmem:[#allocation22 + $0x58] sm:$0xff]
    %v1897 = vld [vmem:[#allocation22 + $0x60] sm:$0xff]
    %v1898 = vld [vmem:[#allocation22 + $0x68] sm:$0xff]
    %v1899 = vld [vmem:[#allocation22 + $0x70] sm:$0xff]
    %v1900 = vld [vmem:[#allocation22 + $0x78] sm:$0xff]
    %v1901 = vld [vmem:[#allocation22 + $0x80] sm:$0xff]
    %v1902 = vld [vmem:[#allocation22 + $0x88] sm:$0xff]
    %v1903 = vld [vmem:[#allocation22 + $0x90] sm:$0xff]
    %v1904 = vld [vmem:[#allocation22 + $0x98] sm:$0xff]
    %v1905 = vld [vmem:[#allocation22 + $0xa0] sm:$0xff]
    %v1906 = vld [vmem:[#allocation22 + $0xa8] sm:$0xff]
    %v1907 = vld [vmem:[#allocation22 + $0xb0] sm:$0xff]
    %v1908 = vld [vmem:[#allocation22 + $0xb8] sm:$0xff]
    %v1909 = vld [vmem:[#allocation22 + $0xc0] sm:$0xff]
    %v1910 = vld [vmem:[#allocation22 + $0xc8] sm:$0xff]
    %v1911 = vld [vmem:[#allocation22 + $0xd0] sm:$0xff]
    %v1912 = vld [vmem:[#allocation22 + $0xd8] sm:$0xff]
    %v1913 = vld [vmem:[#allocation22 + $0xe0] sm:$0xff]
    %v1914 = vld [vmem:[#allocation22 + $0xe8] sm:$0xff]
    %v1915 = vld [vmem:[#allocation22 + $0xf0] sm:$0xff]
    %v1916 = vld [vmem:[#allocation22 + $0xf8] sm:$0xff]
    %v1917 = vld [vmem:[#allocation22 + $0x100] sm:$0xff]
    %v1918 = vld [vmem:[#allocation22 + $0x108] sm:$0xff]
    %v1919 = vld [vmem:[#allocation22 + $0x110] sm:$0xff]
    %v1920 = vld [vmem:[#allocation22 + $0x118] sm:$0xff]
    %v1921 = vld [vmem:[#allocation22 + $0x120] sm:$0xff]
    %v1922 = vld [vmem:[#allocation22 + $0x128] sm:$0xff]
    %v1923 = vld [vmem:[#allocation22 + $0x130] sm:$0xff]
    %v1924 = vld [vmem:[#allocation22 + $0x138] sm:$0xff]
    %v1925 = vld [vmem:[#allocation22 + $0x140] sm:$0xff]
    %v1926 = vld [vmem:[#allocation22 + $0x148] sm:$0xff]
    %v1927 = vld [vmem:[#allocation22 + $0x150] sm:$0xff]
    %v1928 = vld [vmem:[#allocation22 + $0x158] sm:$0xff]
    %v1929 = vld [vmem:[#allocation22 + $0x160] sm:$0xff]
    %v1930 = vld [vmem:[#allocation22 + $0x168] sm:$0xff]
    %v1931 = vld [vmem:[#allocation22 + $0x170] sm:$0xff]
    %v1932 = vld [vmem:[#allocation22 + $0x178] sm:$0xff]
    %v1933 = vld [vmem:[#allocation22 + $0x180] sm:$0xff]
    %v1934 = vld [vmem:[#allocation22 + $0x188] sm:$0xff]
    %v1935 = vld [vmem:[#allocation22 + $0x190] sm:$0xff]
    %v1936 = vld [vmem:[#allocation22 + $0x198] sm:$0xff]
    %v1937 = vld [vmem:[#allocation22 + $0x1a0] sm:$0xff]
    %v1938 = vld [vmem:[#allocation22 + $0x1a8] sm:$0xff]
    %v1939 = vld [vmem:[#allocation22 + $0x1b0] sm:$0xff]
    %v1940 = vld [vmem:[#allocation22 + $0x1b8] sm:$0xff]
    %v1941 = vld [vmem:[#allocation22 + $0x1c0] sm:$0xff]
    %v1942 = vld [vmem:[#allocation22 + $0x1c8] sm:$0xff]
    %v1943 = vld [vmem:[#allocation22 + $0x1d0] sm:$0xff]
    %v1944 = vld [vmem:[#allocation22 + $0x1d8] sm:$0xff]
    %v1945 = vld [vmem:[#allocation22 + $0x1e0] sm:$0xff]
    %v1946 = vld [vmem:[#allocation22 + $0x1e8] sm:$0xff]
    %v1947 = vld [vmem:[#allocation22 + $0x1f0] sm:$0xff]
    %v1948 = vld [vmem:[#allocation22 + $0x1f8] sm:$0xff]
    %v1949 = vld [vmem:[#allocation22 + $0x200] sm:$0xff]
    %v1950 = vld [vmem:[#allocation22 + $0x208] sm:$0xff]
    %v1951 = vld [vmem:[#allocation22 + $0x210] sm:$0xff]
    %v1952 = vld [vmem:[#allocation22 + $0x218] sm:$0xff]
    %v1953 = vld [vmem:[#allocation22 + $0x220] sm:$0xff]
    %v1954 = vld [vmem:[#allocation22 + $0x228] sm:$0xff]
    %v1955 = vld [vmem:[#allocation22 + $0x230] sm:$0xff]
    %v1956 = vld [vmem:[#allocation22 + $0x238] sm:$0xff]
    %v1957 = vld [vmem:[#allocation22 + $0x240] sm:$0xff]
    %v1958 = vld [vmem:[#allocation22 + $0x248] sm:$0xff]
    %v1959 = vld [vmem:[#allocation22 + $0x250] sm:$0xff]
    %v1960 = vld [vmem:[#allocation22 + $0x258] sm:$0xff]
    %v1961 = vld [vmem:[#allocation22 + $0x260] sm:$0xff]
    %v1962 = vld [vmem:[#allocation22 + $0x268] sm:$0xff]
    %v1963 = vld [vmem:[#allocation22 + $0x270] sm:$0xff]
    %v1964 = vld [vmem:[#allocation22 + $0x278] sm:$0xff]
    %v1965 = vld [vmem:[#allocation22 + $0x280] sm:$0xff]
    %v1966 = vld [vmem:[#allocation22 + $0x288] sm:$0xff]
    %v1967 = vld [vmem:[#allocation22 + $0x290] sm:$0xff]
    %v1968 = vld [vmem:[#allocation22 + $0x298] sm:$0xff]
    %v1969 = vld [vmem:[#allocation22 + $0x2a0] sm:$0xff]
    %v1970 = vld [vmem:[#allocation22 + $0x2a8] sm:$0xff]
    %v1971 = vld [vmem:[#allocation22 + $0x2b0] sm:$0xff]
    %v1972 = vld [vmem:[#allocation22 + $0x2b8] sm:$0xff]
    %v1973 = vld [vmem:[#allocation22 + $0x2c0] sm:$0xff]
    %v1974 = vld [vmem:[#allocation22 + $0x2c8] sm:$0xff]
    %v1975 = vld [vmem:[#allocation22 + $0x2d0] sm:$0xff]
    %v1976 = vld [vmem:[#allocation22 + $0x2d8] sm:$0xff]
    %v1977 = vld [vmem:[#allocation22 + $0x2e0] sm:$0xff]
    %v1978 = vld [vmem:[#allocation22 + $0x2e8] sm:$0xff]
    %v1979 = vld [vmem:[#allocation22 + $0x2f0] sm:$0xff]
    %v1980 = vld [vmem:[#allocation22 + $0x2f8] sm:$0xff]
    %v1981 = vld [vmem:[#allocation22 + $0x300] sm:$0xff]
    %v1982 = vld [vmem:[#allocation22 + $0x308] sm:$0xff]
    %v1983 = vld [vmem:[#allocation22 + $0x310] sm:$0xff]
    %v1984 = vld [vmem:[#allocation22 + $0x318] sm:$0xff]
    %v1985 = vld [vmem:[#allocation22 + $0x320] sm:$0xff]
    %v1986 = vld [vmem:[#allocation22 + $0x328] sm:$0xff]
    %v1987 = vld [vmem:[#allocation22 + $0x330] sm:$0xff]
    %v1988 = vld [vmem:[#allocation22 + $0x338] sm:$0xff]
    %v1989 = vld [vmem:[#allocation22 + $0x340] sm:$0xff]
    %v1990 = vld [vmem:[#allocation22 + $0x348] sm:$0xff]
    %v1991 = vld [vmem:[#allocation22 + $0x350] sm:$0xff]
    %v1992 = vld [vmem:[#allocation22 + $0x358] sm:$0xff]
    %v1993 = vld [vmem:[#allocation22 + $0x360] sm:$0xff]
    %v1994 = vld [vmem:[#allocation22 + $0x368] sm:$0xff]
    %v1995 = vld [vmem:[#allocation22 + $0x370] sm:$0xff]
    %v1996 = vld [vmem:[#allocation22 + $0x378] sm:$0xff]
    %v1997 = vld [vmem:[#allocation22 + $0x380] sm:$0xff]
    %v1998 = vld [vmem:[#allocation22 + $0x388] sm:$0xff]
    %v1999 = vld [vmem:[#allocation22 + $0x390] sm:$0xff]
    %v2000 = vld [vmem:[#allocation22 + $0x398] sm:$0xff]
    %v2001 = vld [vmem:[#allocation22 + $0x3a0] sm:$0xff]
    %v2002 = vld [vmem:[#allocation22 + $0x3a8] sm:$0xff]
    %v2003 = vld [vmem:[#allocation22 + $0x3b0] sm:$0xff]
    %v2004 = vld [vmem:[#allocation22 + $0x3b8] sm:$0xff]
    %v2005 = vld [vmem:[#allocation22 + $0x3c0] sm:$0xff]
    %v2006 = vld [vmem:[#allocation22 + $0x3c8] sm:$0xff]
    %v2007 = vld [vmem:[#allocation22 + $0x3d0] sm:$0xff]
    %v2008 = vld [vmem:[#allocation22 + $0x3d8] sm:$0xff]
    %v2009 = vld [vmem:[#allocation22 + $0x3e0] sm:$0xff]
    %v2010 = vld [vmem:[#allocation22 + $0x3e8] sm:$0xff]
    %v2011 = vld [vmem:[#allocation22 + $0x3f0] sm:$0xff]
    %v2012 = vld [vmem:[#allocation22 + $0x3f8] sm:$0xff]
    %v2013 = vld [vmem:[#allocation22 + $0x400] sm:$0xff]
    %v2014 = vld [vmem:[#allocation22 + $0x408] sm:$0xff]
    %v2015 = vld [vmem:[#allocation22 + $0x410] sm:$0xff]
    %v2016 = vld [vmem:[#allocation22 + $0x418] sm:$0xff]
    %v2017 = vld [vmem:[#allocation22 + $0x420] sm:$0xff]
    %v2018 = vld [vmem:[#allocation22 + $0x428] sm:$0xff]
    %v2019 = vld [vmem:[#allocation22 + $0x430] sm:$0xff]
    %v2020 = vld [vmem:[#allocation22 + $0x438] sm:$0xff]
    %v2021 = vld [vmem:[#allocation22 + $0x440] sm:$0xff]
    %v2022 = vld [vmem:[#allocation22 + $0x448] sm:$0xff]
    %v2023 = vld [vmem:[#allocation22 + $0x450] sm:$0xff]
    %v2024 = vld [vmem:[#allocation22 + $0x458] sm:$0xff]
    %v2025 = vld [vmem:[#allocation22 + $0x460] sm:$0xff]
    %v2026 = vld [vmem:[#allocation22 + $0x468] sm:$0xff]
    %v2027 = vld [vmem:[#allocation22 + $0x470] sm:$0xff]
    %v2028 = vld [vmem:[#allocation22 + $0x478] sm:$0xff]
    %v2029 = vld [vmem:[#allocation22 + $0x480] sm:$0xff]
    %v2030 = vld [vmem:[#allocation22 + $0x488] sm:$0xff]
    %v2031 = vld [vmem:[#allocation22 + $0x490] sm:$0xff]
    %v2032 = vld [vmem:[#allocation22 + $0x498] sm:$0xff]
    %v2033 = vld [vmem:[#allocation22 + $0x4a0] sm:$0xff]
    %v2034 = vld [vmem:[#allocation22 + $0x4a8] sm:$0xff]
    %v2035 = vld [vmem:[#allocation22 + $0x4b0] sm:$0xff]
    %v2036 = vld [vmem:[#allocation22 + $0x4b8] sm:$0xff]
    %v2037 = vld [vmem:[#allocation22 + $0x4c0] sm:$0xff]
    %v2038 = vld [vmem:[#allocation22 + $0x4c8] sm:$0xff]
    %v2039 = vld [vmem:[#allocation22 + $0x4d0] sm:$0xff]
    %v2040 = vld [vmem:[#allocation22 + $0x4d8] sm:$0xff]
    %v2041 = vld [vmem:[#allocation22 + $0x4e0] sm:$0xff]
    %v2042 = vld [vmem:[#allocation22 + $0x4e8] sm:$0xff]
    %v2043 = vld [vmem:[#allocation22 + $0x4f0] sm:$0xff]
    %v2044 = vld [vmem:[#allocation22 + $0x4f8] sm:$0xff]
    %v2045 = vld [vmem:[#allocation22 + $0x500] sm:$0xff]
    %v2046 = vld [vmem:[#allocation22 + $0x508] sm:$0xff]
    %v2047 = vld [vmem:[#allocation22 + $0x510] sm:$0xff]
    %v2048 = vld [vmem:[#allocation22 + $0x518] sm:$0xff]
    %v2049 = vld [vmem:[#allocation22 + $0x520] sm:$0xff]
    %v2050 = vld [vmem:[#allocation22 + $0x528] sm:$0xff]
    %v2051 = vld [vmem:[#allocation22 + $0x530] sm:$0xff]
    %v2052 = vld [vmem:[#allocation22 + $0x538] sm:$0xff]
    %v2053 = vld [vmem:[#allocation22 + $0x540] sm:$0xff]
    %v2054 = vld [vmem:[#allocation22 + $0x548] sm:$0xff]
    %v2055 = vld [vmem:[#allocation22 + $0x550] sm:$0xff]
    %v2056 = vld [vmem:[#allocation22 + $0x558] sm:$0xff]
    %v2057 = vld [vmem:[#allocation22 + $0x560] sm:$0xff]
    %v2058 = vld [vmem:[#allocation22 + $0x568] sm:$0xff]
    %v2059 = vld [vmem:[#allocation22 + $0x570] sm:$0xff]
    %v2060 = vld [vmem:[#allocation22 + $0x578] sm:$0xff]
    %v2061 = vld [vmem:[#allocation22 + $0x580] sm:$0xff]
    %v2062 = vld [vmem:[#allocation22 + $0x588] sm:$0xff]
    %v2063 = vld [vmem:[#allocation22 + $0x590] sm:$0xff]
    %v2064 = vld [vmem:[#allocation22 + $0x598] sm:$0xff]
    %v2065 = vld [vmem:[#allocation22 + $0x5a0] sm:$0xff]
    %v2066 = vld [vmem:[#allocation22 + $0x5a8] sm:$0xff]
    %v2067 = vld [vmem:[#allocation22 + $0x5b0] sm:$0xff]
    %v2068 = vld [vmem:[#allocation22 + $0x5b8] sm:$0xff]
    %v2069 = vld [vmem:[#allocation22 + $0x5c0] sm:$0xff]
    %v2070 = vld [vmem:[#allocation22 + $0x5c8] sm:$0xff]
    %v2071 = vld [vmem:[#allocation22 + $0x5d0] sm:$0xff]
    %v2072 = vld [vmem:[#allocation22 + $0x5d8] sm:$0xff]
    %v2073 = vld [vmem:[#allocation22 + $0x5e0] sm:$0xff]
    %v2074 = vld [vmem:[#allocation22 + $0x5e8] sm:$0xff]
    %v2075 = vld [vmem:[#allocation22 + $0x5f0] sm:$0xff]
    %v2076 = vld [vmem:[#allocation22 + $0x5f8] sm:$0xff]
    %v2077 = vld [vmem:[#allocation22 + $0x600] sm:$0xff]
    %v2078 = vld [vmem:[#allocation22 + $0x608] sm:$0xff]
    %v2079 = vld [vmem:[#allocation22 + $0x610] sm:$0xff]
    %v2080 = vld [vmem:[#allocation22 + $0x618] sm:$0xff]
    %v2081 = vld [vmem:[#allocation22 + $0x620] sm:$0xff]
    %v2082 = vld [vmem:[#allocation22 + $0x628] sm:$0xff]
    %v2083 = vld [vmem:[#allocation22 + $0x630] sm:$0xff]
    %v2084 = vld [vmem:[#allocation22 + $0x638] sm:$0xff]
    %v2085 = vld [vmem:[#allocation22 + $0x640] sm:$0xff]
    %v2086 = vld [vmem:[#allocation22 + $0x648] sm:$0xff]
    %v2087 = vld [vmem:[#allocation22 + $0x650] sm:$0xff]
    %v2088 = vld [vmem:[#allocation22 + $0x658] sm:$0xff]
    %v2089 = vld [vmem:[#allocation22 + $0x660] sm:$0xff]
    %v2090 = vld [vmem:[#allocation22 + $0x668] sm:$0xff]
    %v2091 = vld [vmem:[#allocation22 + $0x670] sm:$0xff]
    %v2092 = vld [vmem:[#allocation22 + $0x678] sm:$0xff]
    %v2093 = vld [vmem:[#allocation22 + $0x680] sm:$0xff]
    %v2094 = vld [vmem:[#allocation22 + $0x688] sm:$0xff]
    %v2095 = vld [vmem:[#allocation22 + $0x690] sm:$0xff]
    %v2096 = vld [vmem:[#allocation22 + $0x698] sm:$0xff]
    %v2097 = vld [vmem:[#allocation22 + $0x6a0] sm:$0xff]
    %v2098 = vld [vmem:[#allocation22 + $0x6a8] sm:$0xff]
    %v2099 = vld [vmem:[#allocation22 + $0x6b0] sm:$0xff]
    %v2100 = vld [vmem:[#allocation22 + $0x6b8] sm:$0xff]
    %v2101 = vld [vmem:[#allocation22 + $0x6c0] sm:$0xff]
    %v2102 = vld [vmem:[#allocation22 + $0x6c8] sm:$0xff]
    %v2103 = vld [vmem:[#allocation22 + $0x6d0] sm:$0xff]
    %v2104 = vld [vmem:[#allocation22 + $0x6d8] sm:$0xff]
    %v2105 = vld [vmem:[#allocation22 + $0x6e0] sm:$0xff]
    %v2106 = vld [vmem:[#allocation22 + $0x6e8] sm:$0xff]
    %v2107 = vld [vmem:[#allocation22 + $0x6f0] sm:$0xff]
    %v2108 = vld [vmem:[#allocation22 + $0x6f8] sm:$0xff]
    %v2109 = vld [vmem:[#allocation22 + $0x700] sm:$0xff]
    %v2110 = vld [vmem:[#allocation22 + $0x708] sm:$0xff]
    %v2111 = vld [vmem:[#allocation22 + $0x710] sm:$0xff]
    %v2112 = vld [vmem:[#allocation22 + $0x718] sm:$0xff]
    %v2113 = vld [vmem:[#allocation22 + $0x720] sm:$0xff]
    %v2114 = vld [vmem:[#allocation22 + $0x728] sm:$0xff]
    %v2115 = vld [vmem:[#allocation22 + $0x730] sm:$0xff]
    %v2116 = vld [vmem:[#allocation22 + $0x738] sm:$0xff]
    %v2117 = vld [vmem:[#allocation22 + $0x740] sm:$0xff]
    %v2118 = vld [vmem:[#allocation22 + $0x748] sm:$0xff]
    %v2119 = vld [vmem:[#allocation22 + $0x750] sm:$0xff]
    %v2120 = vld [vmem:[#allocation22 + $0x758] sm:$0xff]
    %v2121 = vld [vmem:[#allocation22 + $0x760] sm:$0xff]
    %v2122 = vld [vmem:[#allocation22 + $0x768] sm:$0xff]
    %v2123 = vld [vmem:[#allocation22 + $0x770] sm:$0xff]
    %v2124 = vld [vmem:[#allocation22 + $0x778] sm:$0xff]
    %v2125 = vld [vmem:[#allocation22 + $0x780] sm:$0xff]
    %v2126 = vld [vmem:[#allocation22 + $0x788] sm:$0xff]
    %v2127 = vld [vmem:[#allocation22 + $0x790] sm:$0xff]
    %v2128 = vld [vmem:[#allocation22 + $0x798] sm:$0xff]
    %v2129 = vld [vmem:[#allocation22 + $0x7a0] sm:$0xff]
    %v2130 = vld [vmem:[#allocation22 + $0x7a8] sm:$0xff]
    %v2131 = vld [vmem:[#allocation22 + $0x7b0] sm:$0xff]
    %v2132 = vld [vmem:[#allocation22 + $0x7b8] sm:$0xff]
    %v2133 = vld [vmem:[#allocation22 + $0x7c0] sm:$0xff]
    %v2134 = vld [vmem:[#allocation22 + $0x7c8] sm:$0xff]
    %v2135 = vld [vmem:[#allocation22 + $0x7d0] sm:$0xff]
    %v2136 = vld [vmem:[#allocation22 + $0x7d8] sm:$0xff]
    %v2137 = vld [vmem:[#allocation22 + $0x7e0] sm:$0xff]
    %v2138 = vld [vmem:[#allocation22 + $0x7e8] sm:$0xff]
    %v2139 = vld [vmem:[#allocation22 + $0x7f0] sm:$0xff]
    %v2140 = vld [vmem:[#allocation22 + $0x7f8] sm:$0xff]
    %v2397 = vunpack.c.l.b16 %v1885
    %v2398 = vunpack.c.h.b16 %v1885
    %v2399 = vunpack.c.l.b16 %v1886
    %v2400 = vunpack.c.h.b16 %v1886
    %v2401 = vunpack.c.l.b16 %v1887
    %v2402 = vunpack.c.h.b16 %v1887
    %v2403 = vunpack.c.l.b16 %v1888
    %v2404 = vunpack.c.h.b16 %v1888
    %v2405 = vunpack.c.l.b16 %v1889
    %v2406 = vunpack.c.h.b16 %v1889
    %v2407 = vunpack.c.l.b16 %v1890
    %v2408 = vunpack.c.h.b16 %v1890
    %v2409 = vunpack.c.l.b16 %v1891
    %v2410 = vunpack.c.h.b16 %v1891
    %v2411 = vunpack.c.l.b16 %v1892
    %v2412 = vunpack.c.h.b16 %v1892
    %v2413 = vunpack.c.l.b16 %v1893
    %v2414 = vunpack.c.h.b16 %v1893
    %v2415 = vunpack.c.l.b16 %v1894
    %v2416 = vunpack.c.h.b16 %v1894
    %v2417 = vunpack.c.l.b16 %v1895
    %v2418 = vunpack.c.h.b16 %v1895
    %v2419 = vunpack.c.l.b16 %v1896
    %v2420 = vunpack.c.h.b16 %v1896
    %v2421 = vunpack.c.l.b16 %v1897
    %v2422 = vunpack.c.h.b16 %v1897
    %v2423 = vunpack.c.l.b16 %v1898
    %v2424 = vunpack.c.h.b16 %v1898
    %v2425 = vunpack.c.l.b16 %v1899
    %v2426 = vunpack.c.h.b16 %v1899
    %v2427 = vunpack.c.l.b16 %v1900
    %v2428 = vunpack.c.h.b16 %v1900
    %v2429 = vunpack.c.l.b16 %v1901
    %v2430 = vunpack.c.h.b16 %v1901
    %v2431 = vunpack.c.l.b16 %v1902
    %v2432 = vunpack.c.h.b16 %v1902
    %v2433 = vunpack.c.l.b16 %v1903
    %v2434 = vunpack.c.h.b16 %v1903
    %v2435 = vunpack.c.l.b16 %v1904
    %v2436 = vunpack.c.h.b16 %v1904
    %v2437 = vunpack.c.l.b16 %v1905
    %v2438 = vunpack.c.h.b16 %v1905
    %v2439 = vunpack.c.l.b16 %v1906
    %v2440 = vunpack.c.h.b16 %v1906
    %v2441 = vunpack.c.l.b16 %v1907
    %v2442 = vunpack.c.h.b16 %v1907
    %v2443 = vunpack.c.l.b16 %v1908
    %v2444 = vunpack.c.h.b16 %v1908
    %v2445 = vunpack.c.l.b16 %v1909
    %v2446 = vunpack.c.h.b16 %v1909
    %v2447 = vunpack.c.l.b16 %v1910
    %v2448 = vunpack.c.h.b16 %v1910
    %v2449 = vunpack.c.l.b16 %v1911
    %v2450 = vunpack.c.h.b16 %v1911
    %v2451 = vunpack.c.l.b16 %v1912
    %v2452 = vunpack.c.h.b16 %v1912
    %v2453 = vunpack.c.l.b16 %v1913
    %v2454 = vunpack.c.h.b16 %v1913
    %v2455 = vunpack.c.l.b16 %v1914
    %v2456 = vunpack.c.h.b16 %v1914
    %v2457 = vunpack.c.l.b16 %v1915
    %v2458 = vunpack.c.h.b16 %v1915
    %v2459 = vunpack.c.l.b16 %v1916
    %v2460 = vunpack.c.h.b16 %v1916
    %v2461 = vunpack.c.l.b16 %v1917
    %v2462 = vunpack.c.h.b16 %v1917
    %v2463 = vunpack.c.l.b16 %v1918
    %v2464 = vunpack.c.h.b16 %v1918
    %v2465 = vunpack.c.l.b16 %v1919
    %v2466 = vunpack.c.h.b16 %v1919
    %v2467 = vunpack.c.l.b16 %v1920
    %v2468 = vunpack.c.h.b16 %v1920
    %v2469 = vunpack.c.l.b16 %v1921
    %v2470 = vunpack.c.h.b16 %v1921
    %v2471 = vunpack.c.l.b16 %v1922
    %v2472 = vunpack.c.h.b16 %v1922
    %v2473 = vunpack.c.l.b16 %v1923
    %v2474 = vunpack.c.h.b16 %v1923
    %v2475 = vunpack.c.l.b16 %v1924
    %v2476 = vunpack.c.h.b16 %v1924
    %v2477 = vunpack.c.l.b16 %v1925
    %v2478 = vunpack.c.h.b16 %v1925
    %v2479 = vunpack.c.l.b16 %v1926
    %v2480 = vunpack.c.h.b16 %v1926
    %v2481 = vunpack.c.l.b16 %v1927
    %v2482 = vunpack.c.h.b16 %v1927
    %v2483 = vunpack.c.l.b16 %v1928
    %v2484 = vunpack.c.h.b16 %v1928
    %v2485 = vunpack.c.l.b16 %v1929
    %v2486 = vunpack.c.h.b16 %v1929
    %v2487 = vunpack.c.l.b16 %v1930
    %v2488 = vunpack.c.h.b16 %v1930
    %v2489 = vunpack.c.l.b16 %v1931
    %v2490 = vunpack.c.h.b16 %v1931
    %v2491 = vunpack.c.l.b16 %v1932
    %v2492 = vunpack.c.h.b16 %v1932
    %v2493 = vunpack.c.l.b16 %v1933
    %v2494 = vunpack.c.h.b16 %v1933
    %v2495 = vunpack.c.l.b16 %v1934
    %v2496 = vunpack.c.h.b16 %v1934
    %v2497 = vunpack.c.l.b16 %v1935
    %v2498 = vunpack.c.h.b16 %v1935
    %v2499 = vunpack.c.l.b16 %v1936
    %v2500 = vunpack.c.h.b16 %v1936
    %v2501 = vunpack.c.l.b16 %v1937
    %v2502 = vunpack.c.h.b16 %v1937
    %v2503 = vunpack.c.l.b16 %v1938
    %v2504 = vunpack.c.h.b16 %v1938
    %v2505 = vunpack.c.l.b16 %v1939
    %v2506 = vunpack.c.h.b16 %v1939
    %v2507 = vunpack.c.l.b16 %v1940
    %v2508 = vunpack.c.h.b16 %v1940
    %v2509 = vunpack.c.l.b16 %v1941
    %v2510 = vunpack.c.h.b16 %v1941
    %v2511 = vunpack.c.l.b16 %v1942
    %v2512 = vunpack.c.h.b16 %v1942
    %v2513 = vunpack.c.l.b16 %v1943
    %v2514 = vunpack.c.h.b16 %v1943
    %v2515 = vunpack.c.l.b16 %v1944
    %v2516 = vunpack.c.h.b16 %v1944
    %v2517 = vunpack.c.l.b16 %v1945
    %v2518 = vunpack.c.h.b16 %v1945
    %v2519 = vunpack.c.l.b16 %v1946
    %v2520 = vunpack.c.h.b16 %v1946
    %v2521 = vunpack.c.l.b16 %v1947
    %v2522 = vunpack.c.h.b16 %v1947
    %v2523 = vunpack.c.l.b16 %v1948
    %v2524 = vunpack.c.h.b16 %v1948
    %v2525 = vunpack.c.l.b16 %v1949
    %v2526 = vunpack.c.h.b16 %v1949
    %v2527 = vunpack.c.l.b16 %v1950
    %v2528 = vunpack.c.h.b16 %v1950
    %v2529 = vunpack.c.l.b16 %v1951
    %v2530 = vunpack.c.h.b16 %v1951
    %v2531 = vunpack.c.l.b16 %v1952
    %v2532 = vunpack.c.h.b16 %v1952
    %v2533 = vunpack.c.l.b16 %v1953
    %v2534 = vunpack.c.h.b16 %v1953
    %v2535 = vunpack.c.l.b16 %v1954
    %v2536 = vunpack.c.h.b16 %v1954
    %v2537 = vunpack.c.l.b16 %v1955
    %v2538 = vunpack.c.h.b16 %v1955
    %v2539 = vunpack.c.l.b16 %v1956
    %v2540 = vunpack.c.h.b16 %v1956
    %v2541 = vunpack.c.l.b16 %v1957
    %v2542 = vunpack.c.h.b16 %v1957
    %v2543 = vunpack.c.l.b16 %v1958
    %v2544 = vunpack.c.h.b16 %v1958
    %v2545 = vunpack.c.l.b16 %v1959
    %v2546 = vunpack.c.h.b16 %v1959
    %v2547 = vunpack.c.l.b16 %v1960
    %v2548 = vunpack.c.h.b16 %v1960
    %v2549 = vunpack.c.l.b16 %v1961
    %v2550 = vunpack.c.h.b16 %v1961
    %v2551 = vunpack.c.l.b16 %v1962
    %v2552 = vunpack.c.h.b16 %v1962
    %v2553 = vunpack.c.l.b16 %v1963
    %v2554 = vunpack.c.h.b16 %v1963
    %v2555 = vunpack.c.l.b16 %v1964
    %v2556 = vunpack.c.h.b16 %v1964
    %v2557 = vunpack.c.l.b16 %v1965
    %v2558 = vunpack.c.h.b16 %v1965
    %v2559 = vunpack.c.l.b16 %v1966
    %v2560 = vunpack.c.h.b16 %v1966
    %v2561 = vunpack.c.l.b16 %v1967
    %v2562 = vunpack.c.h.b16 %v1967
    %v2563 = vunpack.c.l.b16 %v1968
    %v2564 = vunpack.c.h.b16 %v1968
    %v2565 = vunpack.c.l.b16 %v1969
    %v2566 = vunpack.c.h.b16 %v1969
    %v2567 = vunpack.c.l.b16 %v1970
    %v2568 = vunpack.c.h.b16 %v1970
    %v2569 = vunpack.c.l.b16 %v1971
    %v2570 = vunpack.c.h.b16 %v1971
    %v2571 = vunpack.c.l.b16 %v1972
    %v2572 = vunpack.c.h.b16 %v1972
    %v2573 = vunpack.c.l.b16 %v1973
    %v2574 = vunpack.c.h.b16 %v1973
    %v2575 = vunpack.c.l.b16 %v1974
    %v2576 = vunpack.c.h.b16 %v1974
    %v2577 = vunpack.c.l.b16 %v1975
    %v2578 = vunpack.c.h.b16 %v1975
    %v2579 = vunpack.c.l.b16 %v1976
    %v2580 = vunpack.c.h.b16 %v1976
    %v2581 = vunpack.c.l.b16 %v1977
    %v2582 = vunpack.c.h.b16 %v1977
    %v2583 = vunpack.c.l.b16 %v1978
    %v2584 = vunpack.c.h.b16 %v1978
    %v2585 = vunpack.c.l.b16 %v1979
    %v2586 = vunpack.c.h.b16 %v1979
    %v2587 = vunpack.c.l.b16 %v1980
    %v2588 = vunpack.c.h.b16 %v1980
    %v2589 = vunpack.c.l.b16 %v1981
    %v2590 = vunpack.c.h.b16 %v1981
    %v2591 = vunpack.c.l.b16 %v1982
    %v2592 = vunpack.c.h.b16 %v1982
    %v2593 = vunpack.c.l.b16 %v1983
    %v2594 = vunpack.c.h.b16 %v1983
    %v2595 = vunpack.c.l.b16 %v1984
    %v2596 = vunpack.c.h.b16 %v1984
    %v2597 = vunpack.c.l.b16 %v1985
    %v2598 = vunpack.c.h.b16 %v1985
    %v2599 = vunpack.c.l.b16 %v1986
    %v2600 = vunpack.c.h.b16 %v1986
    %v2601 = vunpack.c.l.b16 %v1987
    %v2602 = vunpack.c.h.b16 %v1987
    %v2603 = vunpack.c.l.b16 %v1988
    %v2604 = vunpack.c.h.b16 %v1988
    %v2605 = vunpack.c.l.b16 %v1989
    %v2606 = vunpack.c.h.b16 %v1989
    %v2607 = vunpack.c.l.b16 %v1990
    %v2608 = vunpack.c.h.b16 %v1990
    %v2609 = vunpack.c.l.b16 %v1991
    %v2610 = vunpack.c.h.b16 %v1991
    %v2611 = vunpack.c.l.b16 %v1992
    %v2612 = vunpack.c.h.b16 %v1992
    %v2613 = vunpack.c.l.b16 %v1993
    %v2614 = vunpack.c.h.b16 %v1993
    %v2615 = vunpack.c.l.b16 %v1994
    %v2616 = vunpack.c.h.b16 %v1994
    %v2617 = vunpack.c.l.b16 %v1995
    %v2618 = vunpack.c.h.b16 %v1995
    %v2619 = vunpack.c.l.b16 %v1996
    %v2620 = vunpack.c.h.b16 %v1996
    %v2621 = vunpack.c.l.b16 %v1997
    %v2622 = vunpack.c.h.b16 %v1997
    %v2623 = vunpack.c.l.b16 %v1998
    %v2624 = vunpack.c.h.b16 %v1998
    %v2625 = vunpack.c.l.b16 %v1999
    %v2626 = vunpack.c.h.b16 %v1999
    %v2627 = vunpack.c.l.b16 %v2000
    %v2628 = vunpack.c.h.b16 %v2000
    %v2629 = vunpack.c.l.b16 %v2001
    %v2630 = vunpack.c.h.b16 %v2001
    %v2631 = vunpack.c.l.b16 %v2002
    %v2632 = vunpack.c.h.b16 %v2002
    %v2633 = vunpack.c.l.b16 %v2003
    %v2634 = vunpack.c.h.b16 %v2003
    %v2635 = vunpack.c.l.b16 %v2004
    %v2636 = vunpack.c.h.b16 %v2004
    %v2637 = vunpack.c.l.b16 %v2005
    %v2638 = vunpack.c.h.b16 %v2005
    %v2639 = vunpack.c.l.b16 %v2006
    %v2640 = vunpack.c.h.b16 %v2006
    %v2641 = vunpack.c.l.b16 %v2007
    %v2642 = vunpack.c.h.b16 %v2007
    %v2643 = vunpack.c.l.b16 %v2008
    %v2644 = vunpack.c.h.b16 %v2008
    %v2645 = vunpack.c.l.b16 %v2009
    %v2646 = vunpack.c.h.b16 %v2009
    %v2647 = vunpack.c.l.b16 %v2010
    %v2648 = vunpack.c.h.b16 %v2010
    %v2649 = vunpack.c.l.b16 %v2011
    %v2650 = vunpack.c.h.b16 %v2011
    %v2651 = vunpack.c.l.b16 %v2012
    %v2652 = vunpack.c.h.b16 %v2012
    %v2653 = vunpack.c.l.b16 %v2013
    %v2654 = vunpack.c.h.b16 %v2013
    %v2655 = vunpack.c.l.b16 %v2014
    %v2656 = vunpack.c.h.b16 %v2014
    %v2657 = vunpack.c.l.b16 %v2015
    %v2658 = vunpack.c.h.b16 %v2015
    %v2659 = vunpack.c.l.b16 %v2016
    %v2660 = vunpack.c.h.b16 %v2016
    %v2661 = vunpack.c.l.b16 %v2017
    %v2662 = vunpack.c.h.b16 %v2017
    %v2663 = vunpack.c.l.b16 %v2018
    %v2664 = vunpack.c.h.b16 %v2018
    %v2665 = vunpack.c.l.b16 %v2019
    %v2666 = vunpack.c.h.b16 %v2019
    %v2667 = vunpack.c.l.b16 %v2020
    %v2668 = vunpack.c.h.b16 %v2020
    %v2669 = vunpack.c.l.b16 %v2021
    %v2670 = vunpack.c.h.b16 %v2021
    %v2671 = vunpack.c.l.b16 %v2022
    %v2672 = vunpack.c.h.b16 %v2022
    %v2673 = vunpack.c.l.b16 %v2023
    %v2674 = vunpack.c.h.b16 %v2023
    %v2675 = vunpack.c.l.b16 %v2024
    %v2676 = vunpack.c.h.b16 %v2024
    %v2677 = vunpack.c.l.b16 %v2025
    %v2678 = vunpack.c.h.b16 %v2025
    %v2679 = vunpack.c.l.b16 %v2026
    %v2680 = vunpack.c.h.b16 %v2026
    %v2681 = vunpack.c.l.b16 %v2027
    %v2682 = vunpack.c.h.b16 %v2027
    %v2683 = vunpack.c.l.b16 %v2028
    %v2684 = vunpack.c.h.b16 %v2028
    %v2685 = vunpack.c.l.b16 %v2029
    %v2686 = vunpack.c.h.b16 %v2029
    %v2687 = vunpack.c.l.b16 %v2030
    %v2688 = vunpack.c.h.b16 %v2030
    %v2689 = vunpack.c.l.b16 %v2031
    %v2690 = vunpack.c.h.b16 %v2031
    %v2691 = vunpack.c.l.b16 %v2032
    %v2692 = vunpack.c.h.b16 %v2032
    %v2693 = vunpack.c.l.b16 %v2033
    %v2694 = vunpack.c.h.b16 %v2033
    %v2695 = vunpack.c.l.b16 %v2034
    %v2696 = vunpack.c.h.b16 %v2034
    %v2697 = vunpack.c.l.b16 %v2035
    %v2698 = vunpack.c.h.b16 %v2035
    %v2699 = vunpack.c.l.b16 %v2036
    %v2700 = vunpack.c.h.b16 %v2036
    %v2701 = vunpack.c.l.b16 %v2037
    %v2702 = vunpack.c.h.b16 %v2037
    %v2703 = vunpack.c.l.b16 %v2038
    %v2704 = vunpack.c.h.b16 %v2038
    %v2705 = vunpack.c.l.b16 %v2039
    %v2706 = vunpack.c.h.b16 %v2039
    %v2707 = vunpack.c.l.b16 %v2040
    %v2708 = vunpack.c.h.b16 %v2040
    %v2709 = vunpack.c.l.b16 %v2041
    %v2710 = vunpack.c.h.b16 %v2041
    %v2711 = vunpack.c.l.b16 %v2042
    %v2712 = vunpack.c.h.b16 %v2042
    %v2713 = vunpack.c.l.b16 %v2043
    %v2714 = vunpack.c.h.b16 %v2043
    %v2715 = vunpack.c.l.b16 %v2044
    %v2716 = vunpack.c.h.b16 %v2044
    %v2717 = vunpack.c.l.b16 %v2045
    %v2718 = vunpack.c.h.b16 %v2045
    %v2719 = vunpack.c.l.b16 %v2046
    %v2720 = vunpack.c.h.b16 %v2046
    %v2721 = vunpack.c.l.b16 %v2047
    %v2722 = vunpack.c.h.b16 %v2047
    %v2723 = vunpack.c.l.b16 %v2048
    %v2724 = vunpack.c.h.b16 %v2048
    %v2725 = vunpack.c.l.b16 %v2049
    %v2726 = vunpack.c.h.b16 %v2049
    %v2727 = vunpack.c.l.b16 %v2050
    %v2728 = vunpack.c.h.b16 %v2050
    %v2729 = vunpack.c.l.b16 %v2051
    %v2730 = vunpack.c.h.b16 %v2051
    %v2731 = vunpack.c.l.b16 %v2052
    %v2732 = vunpack.c.h.b16 %v2052
    %v2733 = vunpack.c.l.b16 %v2053
    %v2734 = vunpack.c.h.b16 %v2053
    %v2735 = vunpack.c.l.b16 %v2054
    %v2736 = vunpack.c.h.b16 %v2054
    %v2737 = vunpack.c.l.b16 %v2055
    %v2738 = vunpack.c.h.b16 %v2055
    %v2739 = vunpack.c.l.b16 %v2056
    %v2740 = vunpack.c.h.b16 %v2056
    %v2741 = vunpack.c.l.b16 %v2057
    %v2742 = vunpack.c.h.b16 %v2057
    %v2743 = vunpack.c.l.b16 %v2058
    %v2744 = vunpack.c.h.b16 %v2058
    %v2745 = vunpack.c.l.b16 %v2059
    %v2746 = vunpack.c.h.b16 %v2059
    %v2747 = vunpack.c.l.b16 %v2060
    %v2748 = vunpack.c.h.b16 %v2060
    %v2749 = vunpack.c.l.b16 %v2061
    %v2750 = vunpack.c.h.b16 %v2061
    %v2751 = vunpack.c.l.b16 %v2062
    %v2752 = vunpack.c.h.b16 %v2062
    %v2753 = vunpack.c.l.b16 %v2063
    %v2754 = vunpack.c.h.b16 %v2063
    %v2755 = vunpack.c.l.b16 %v2064
    %v2756 = vunpack.c.h.b16 %v2064
    %v2757 = vunpack.c.l.b16 %v2065
    %v2758 = vunpack.c.h.b16 %v2065
    %v2759 = vunpack.c.l.b16 %v2066
    %v2760 = vunpack.c.h.b16 %v2066
    %v2761 = vunpack.c.l.b16 %v2067
    %v2762 = vunpack.c.h.b16 %v2067
    %v2763 = vunpack.c.l.b16 %v2068
    %v2764 = vunpack.c.h.b16 %v2068
    %v2765 = vunpack.c.l.b16 %v2069
    %v2766 = vunpack.c.h.b16 %v2069
    %v2767 = vunpack.c.l.b16 %v2070
    %v2768 = vunpack.c.h.b16 %v2070
    %v2769 = vunpack.c.l.b16 %v2071
    %v2770 = vunpack.c.h.b16 %v2071
    %v2771 = vunpack.c.l.b16 %v2072
    %v2772 = vunpack.c.h.b16 %v2072
    %v2773 = vunpack.c.l.b16 %v2073
    %v2774 = vunpack.c.h.b16 %v2073
    %v2775 = vunpack.c.l.b16 %v2074
    %v2776 = vunpack.c.h.b16 %v2074
    %v2777 = vunpack.c.l.b16 %v2075
    %v2778 = vunpack.c.h.b16 %v2075
    %v2779 = vunpack.c.l.b16 %v2076
    %v2780 = vunpack.c.h.b16 %v2076
    %v2781 = vunpack.c.l.b16 %v2077
    %v2782 = vunpack.c.h.b16 %v2077
    %v2783 = vunpack.c.l.b16 %v2078
    %v2784 = vunpack.c.h.b16 %v2078
    %v2785 = vunpack.c.l.b16 %v2079
    %v2786 = vunpack.c.h.b16 %v2079
    %v2787 = vunpack.c.l.b16 %v2080
    %v2788 = vunpack.c.h.b16 %v2080
    %v2789 = vunpack.c.l.b16 %v2081
    %v2790 = vunpack.c.h.b16 %v2081
    %v2791 = vunpack.c.l.b16 %v2082
    %v2792 = vunpack.c.h.b16 %v2082
    %v2793 = vunpack.c.l.b16 %v2083
    %v2794 = vunpack.c.h.b16 %v2083
    %v2795 = vunpack.c.l.b16 %v2084
    %v2796 = vunpack.c.h.b16 %v2084
    %v2797 = vunpack.c.l.b16 %v2085
    %v2798 = vunpack.c.h.b16 %v2085
    %v2799 = vunpack.c.l.b16 %v2086
    %v2800 = vunpack.c.h.b16 %v2086
    %v2801 = vunpack.c.l.b16 %v2087
    %v2802 = vunpack.c.h.b16 %v2087
    %v2803 = vunpack.c.l.b16 %v2088
    %v2804 = vunpack.c.h.b16 %v2088
    %v2805 = vunpack.c.l.b16 %v2089
    %v2806 = vunpack.c.h.b16 %v2089
    %v2807 = vunpack.c.l.b16 %v2090
    %v2808 = vunpack.c.h.b16 %v2090
    %v2809 = vunpack.c.l.b16 %v2091
    %v2810 = vunpack.c.h.b16 %v2091
    %v2811 = vunpack.c.l.b16 %v2092
    %v2812 = vunpack.c.h.b16 %v2092
    %v2813 = vunpack.c.l.b16 %v2093
    %v2814 = vunpack.c.h.b16 %v2093
    %v2815 = vunpack.c.l.b16 %v2094
    %v2816 = vunpack.c.h.b16 %v2094
    %v2817 = vunpack.c.l.b16 %v2095
    %v2818 = vunpack.c.h.b16 %v2095
    %v2819 = vunpack.c.l.b16 %v2096
    %v2820 = vunpack.c.h.b16 %v2096
    %v2821 = vunpack.c.l.b16 %v2097
    %v2822 = vunpack.c.h.b16 %v2097
    %v2823 = vunpack.c.l.b16 %v2098
    %v2824 = vunpack.c.h.b16 %v2098
    %v2825 = vunpack.c.l.b16 %v2099
    %v2826 = vunpack.c.h.b16 %v2099
    %v2827 = vunpack.c.l.b16 %v2100
    %v2828 = vunpack.c.h.b16 %v2100
    %v2829 = vunpack.c.l.b16 %v2101
    %v2830 = vunpack.c.h.b16 %v2101
    %v2831 = vunpack.c.l.b16 %v2102
    %v2832 = vunpack.c.h.b16 %v2102
    %v2833 = vunpack.c.l.b16 %v2103
    %v2834 = vunpack.c.h.b16 %v2103
    %v2835 = vunpack.c.l.b16 %v2104
    %v2836 = vunpack.c.h.b16 %v2104
    %v2837 = vunpack.c.l.b16 %v2105
    %v2838 = vunpack.c.h.b16 %v2105
    %v2839 = vunpack.c.l.b16 %v2106
    %v2840 = vunpack.c.h.b16 %v2106
    %v2841 = vunpack.c.l.b16 %v2107
    %v2842 = vunpack.c.h.b16 %v2107
    %v2843 = vunpack.c.l.b16 %v2108
    %v2844 = vunpack.c.h.b16 %v2108
    %v2845 = vunpack.c.l.b16 %v2109
    %v2846 = vunpack.c.h.b16 %v2109
    %v2847 = vunpack.c.l.b16 %v2110
    %v2848 = vunpack.c.h.b16 %v2110
    %v2849 = vunpack.c.l.b16 %v2111
    %v2850 = vunpack.c.h.b16 %v2111
    %v2851 = vunpack.c.l.b16 %v2112
    %v2852 = vunpack.c.h.b16 %v2112
    %v2853 = vunpack.c.l.b16 %v2113
    %v2854 = vunpack.c.h.b16 %v2113
    %v2855 = vunpack.c.l.b16 %v2114
    %v2856 = vunpack.c.h.b16 %v2114
    %v2857 = vunpack.c.l.b16 %v2115
    %v2858 = vunpack.c.h.b16 %v2115
    %v2859 = vunpack.c.l.b16 %v2116
    %v2860 = vunpack.c.h.b16 %v2116
    %v2861 = vunpack.c.l.b16 %v2117
    %v2862 = vunpack.c.h.b16 %v2117
    %v2863 = vunpack.c.l.b16 %v2118
    %v2864 = vunpack.c.h.b16 %v2118
    %v2865 = vunpack.c.l.b16 %v2119
    %v2866 = vunpack.c.h.b16 %v2119
    %v2867 = vunpack.c.l.b16 %v2120
    %v2868 = vunpack.c.h.b16 %v2120
    %v2869 = vunpack.c.l.b16 %v2121
    %v2870 = vunpack.c.h.b16 %v2121
    %v2871 = vunpack.c.l.b16 %v2122
    %v2872 = vunpack.c.h.b16 %v2122
    %v2873 = vunpack.c.l.b16 %v2123
    %v2874 = vunpack.c.h.b16 %v2123
    %v2875 = vunpack.c.l.b16 %v2124
    %v2876 = vunpack.c.h.b16 %v2124
    %v2877 = vunpack.c.l.b16 %v2125
    %v2878 = vunpack.c.h.b16 %v2125
    %v2879 = vunpack.c.l.b16 %v2126
    %v2880 = vunpack.c.h.b16 %v2126
    %v2881 = vunpack.c.l.b16 %v2127
    %v2882 = vunpack.c.h.b16 %v2127
    %v2883 = vunpack.c.l.b16 %v2128
    %v2884 = vunpack.c.h.b16 %v2128
    %v2885 = vunpack.c.l.b16 %v2129
    %v2886 = vunpack.c.h.b16 %v2129
    %v2887 = vunpack.c.l.b16 %v2130
    %v2888 = vunpack.c.h.b16 %v2130
    %v2889 = vunpack.c.l.b16 %v2131
    %v2890 = vunpack.c.h.b16 %v2131
    %v2891 = vunpack.c.l.b16 %v2132
    %v2892 = vunpack.c.h.b16 %v2132
    %v2893 = vunpack.c.l.b16 %v2133
    %v2894 = vunpack.c.h.b16 %v2133
    %v2895 = vunpack.c.l.b16 %v2134
    %v2896 = vunpack.c.h.b16 %v2134
    %v2897 = vunpack.c.l.b16 %v2135
    %v2898 = vunpack.c.h.b16 %v2135
    %v2899 = vunpack.c.l.b16 %v2136
    %v2900 = vunpack.c.h.b16 %v2136
    %v2901 = vunpack.c.l.b16 %v2137
    %v2902 = vunpack.c.h.b16 %v2137
    %v2903 = vunpack.c.l.b16 %v2138
    %v2904 = vunpack.c.h.b16 %v2138
    %v2905 = vunpack.c.l.b16 %v2139
    %v2906 = vunpack.c.h.b16 %v2139
    %v2907 = vunpack.c.l.b16 %v2140
    %v2908 = vunpack.c.h.b16 %v2140
    %v2909 = vpack.c.b16 %v2405, %v2397
    %v2910 = vpack.c.b16 %v2406, %v2398
    %v2911 = vpack.c.b16 %v2407, %v2399
    %v2912 = vpack.c.b16 %v2408, %v2400
    %v2913 = vpack.c.b16 %v2409, %v2401
    %v2914 = vpack.c.b16 %v2410, %v2402
    %v2915 = vpack.c.b16 %v2411, %v2403
    %v2916 = vpack.c.b16 %v2412, %v2404
    %v2917 = vpack.c.b16 %v2421, %v2413
    %v2918 = vpack.c.b16 %v2422, %v2414
    %v2919 = vpack.c.b16 %v2423, %v2415
    %v2920 = vpack.c.b16 %v2424, %v2416
    %v2921 = vpack.c.b16 %v2425, %v2417
    %v2922 = vpack.c.b16 %v2426, %v2418
    %v2923 = vpack.c.b16 %v2427, %v2419
    %v2924 = vpack.c.b16 %v2428, %v2420
    %v2925 = vpack.c.b16 %v2437, %v2429
    %v2926 = vpack.c.b16 %v2438, %v2430
    %v2927 = vpack.c.b16 %v2439, %v2431
    %v2928 = vpack.c.b16 %v2440, %v2432
    %v2929 = vpack.c.b16 %v2441, %v2433
    %v2930 = vpack.c.b16 %v2442, %v2434
    %v2931 = vpack.c.b16 %v2443, %v2435
    %v2932 = vpack.c.b16 %v2444, %v2436
    %v2933 = vpack.c.b16 %v2453, %v2445
    %v2934 = vpack.c.b16 %v2454, %v2446
    %v2935 = vpack.c.b16 %v2455, %v2447
    %v2936 = vpack.c.b16 %v2456, %v2448
    %v2937 = vpack.c.b16 %v2457, %v2449
    %v2938 = vpack.c.b16 %v2458, %v2450
    %v2939 = vpack.c.b16 %v2459, %v2451
    %v2940 = vpack.c.b16 %v2460, %v2452
    %v2941 = vpack.c.b16 %v2469, %v2461
    %v2942 = vpack.c.b16 %v2470, %v2462
    %v2943 = vpack.c.b16 %v2471, %v2463
    %v2944 = vpack.c.b16 %v2472, %v2464
    %v2945 = vpack.c.b16 %v2473, %v2465
    %v2946 = vpack.c.b16 %v2474, %v2466
    %v2947 = vpack.c.b16 %v2475, %v2467
    %v2948 = vpack.c.b16 %v2476, %v2468
    %v2949 = vpack.c.b16 %v2485, %v2477
    %v2950 = vpack.c.b16 %v2486, %v2478
    %v2951 = vpack.c.b16 %v2487, %v2479
    %v2952 = vpack.c.b16 %v2488, %v2480
    %v2953 = vpack.c.b16 %v2489, %v2481
    %v2954 = vpack.c.b16 %v2490, %v2482
    %v2955 = vpack.c.b16 %v2491, %v2483
    %v2956 = vpack.c.b16 %v2492, %v2484
    %v2957 = vpack.c.b16 %v2501, %v2493
    %v2958 = vpack.c.b16 %v2502, %v2494
    %v2959 = vpack.c.b16 %v2503, %v2495
    %v2960 = vpack.c.b16 %v2504, %v2496
    %v2961 = vpack.c.b16 %v2505, %v2497
    %v2962 = vpack.c.b16 %v2506, %v2498
    %v2963 = vpack.c.b16 %v2507, %v2499
    %v2964 = vpack.c.b16 %v2508, %v2500
    %v2965 = vpack.c.b16 %v2517, %v2509
    %v2966 = vpack.c.b16 %v2518, %v2510
    %v2967 = vpack.c.b16 %v2519, %v2511
    %v2968 = vpack.c.b16 %v2520, %v2512
    %v2969 = vpack.c.b16 %v2521, %v2513
    %v2970 = vpack.c.b16 %v2522, %v2514
    %v2971 = vpack.c.b16 %v2523, %v2515
    %v2972 = vpack.c.b16 %v2524, %v2516
    %v2973 = vpack.c.b16 %v2533, %v2525
    %v2974 = vpack.c.b16 %v2534, %v2526
    %v2975 = vpack.c.b16 %v2535, %v2527
    %v2976 = vpack.c.b16 %v2536, %v2528
    %v2977 = vpack.c.b16 %v2537, %v2529
    %v2978 = vpack.c.b16 %v2538, %v2530
    %v2979 = vpack.c.b16 %v2539, %v2531
    %v2980 = vpack.c.b16 %v2540, %v2532
    %v2981 = vpack.c.b16 %v2549, %v2541
    %v2982 = vpack.c.b16 %v2550, %v2542
    %v2983 = vpack.c.b16 %v2551, %v2543
    %v2984 = vpack.c.b16 %v2552, %v2544
    %v2985 = vpack.c.b16 %v2553, %v2545
    %v2986 = vpack.c.b16 %v2554, %v2546
    %v2987 = vpack.c.b16 %v2555, %v2547
    %v2988 = vpack.c.b16 %v2556, %v2548
    %v2989 = vpack.c.b16 %v2565, %v2557
    %v2990 = vpack.c.b16 %v2566, %v2558
    %v2991 = vpack.c.b16 %v2567, %v2559
    %v2992 = vpack.c.b16 %v2568, %v2560
    %v2993 = vpack.c.b16 %v2569, %v2561
    %v2994 = vpack.c.b16 %v2570, %v2562
    %v2995 = vpack.c.b16 %v2571, %v2563
    %v2996 = vpack.c.b16 %v2572, %v2564
    %v2997 = vpack.c.b16 %v2581, %v2573
    %v2998 = vpack.c.b16 %v2582, %v2574
    %v2999 = vpack.c.b16 %v2583, %v2575
    %v3000 = vpack.c.b16 %v2584, %v2576
    %v3001 = vpack.c.b16 %v2585, %v2577
    %v3002 = vpack.c.b16 %v2586, %v2578
    %v3003 = vpack.c.b16 %v2587, %v2579
    %v3004 = vpack.c.b16 %v2588, %v2580
    %v3005 = vpack.c.b16 %v2597, %v2589
    %v3006 = vpack.c.b16 %v2598, %v2590
    %v3007 = vpack.c.b16 %v2599, %v2591
    %v3008 = vpack.c.b16 %v2600, %v2592
    %v3009 = vpack.c.b16 %v2601, %v2593
    %v3010 = vpack.c.b16 %v2602, %v2594
    %v3011 = vpack.c.b16 %v2603, %v2595
    %v3012 = vpack.c.b16 %v2604, %v2596
    %v3013 = vpack.c.b16 %v2613, %v2605
    %v3014 = vpack.c.b16 %v2614, %v2606
    %v3015 = vpack.c.b16 %v2615, %v2607
    %v3016 = vpack.c.b16 %v2616, %v2608
    %v3017 = vpack.c.b16 %v2617, %v2609
    %v3018 = vpack.c.b16 %v2618, %v2610
    %v3019 = vpack.c.b16 %v2619, %v2611
    %v3020 = vpack.c.b16 %v2620, %v2612
    %v3021 = vpack.c.b16 %v2629, %v2621
    %v3022 = vpack.c.b16 %v2630, %v2622
    %v3023 = vpack.c.b16 %v2631, %v2623
    %v3024 = vpack.c.b16 %v2632, %v2624
    %v3025 = vpack.c.b16 %v2633, %v2625
    %v3026 = vpack.c.b16 %v2634, %v2626
    %v3027 = vpack.c.b16 %v2635, %v2627
    %v3028 = vpack.c.b16 %v2636, %v2628
    %v3029 = vpack.c.b16 %v2645, %v2637
    %v3030 = vpack.c.b16 %v2646, %v2638
    %v3031 = vpack.c.b16 %v2647, %v2639
    %v3032 = vpack.c.b16 %v2648, %v2640
    %v3033 = vpack.c.b16 %v2649, %v2641
    %v3034 = vpack.c.b16 %v2650, %v2642
    %v3035 = vpack.c.b16 %v2651, %v2643
    %v3036 = vpack.c.b16 %v2652, %v2644
    %v3037 = vpack.c.b16 %v2661, %v2653
    %v3038 = vpack.c.b16 %v2662, %v2654
    %v3039 = vpack.c.b16 %v2663, %v2655
    %v3040 = vpack.c.b16 %v2664, %v2656
    %v3041 = vpack.c.b16 %v2665, %v2657
    %v3042 = vpack.c.b16 %v2666, %v2658
    %v3043 = vpack.c.b16 %v2667, %v2659
    %v3044 = vpack.c.b16 %v2668, %v2660
    %v3045 = vpack.c.b16 %v2677, %v2669
    %v3046 = vpack.c.b16 %v2678, %v2670
    %v3047 = vpack.c.b16 %v2679, %v2671
    %v3048 = vpack.c.b16 %v2680, %v2672
    %v3049 = vpack.c.b16 %v2681, %v2673
    %v3050 = vpack.c.b16 %v2682, %v2674
    %v3051 = vpack.c.b16 %v2683, %v2675
    %v3052 = vpack.c.b16 %v2684, %v2676
    %v3053 = vpack.c.b16 %v2693, %v2685
    %v3054 = vpack.c.b16 %v2694, %v2686
    %v3055 = vpack.c.b16 %v2695, %v2687
    %v3056 = vpack.c.b16 %v2696, %v2688
    %v3057 = vpack.c.b16 %v2697, %v2689
    %v3058 = vpack.c.b16 %v2698, %v2690
    %v3059 = vpack.c.b16 %v2699, %v2691
    %v3060 = vpack.c.b16 %v2700, %v2692
    %v3061 = vpack.c.b16 %v2709, %v2701
    %v3062 = vpack.c.b16 %v2710, %v2702
    %v3063 = vpack.c.b16 %v2711, %v2703
    %v3064 = vpack.c.b16 %v2712, %v2704
    %v3065 = vpack.c.b16 %v2713, %v2705
    %v3066 = vpack.c.b16 %v2714, %v2706
    %v3067 = vpack.c.b16 %v2715, %v2707
    %v3068 = vpack.c.b16 %v2716, %v2708
    %v3069 = vpack.c.b16 %v2725, %v2717
    %v3070 = vpack.c.b16 %v2726, %v2718
    %v3071 = vpack.c.b16 %v2727, %v2719
    %v3072 = vpack.c.b16 %v2728, %v2720
    %v3073 = vpack.c.b16 %v2729, %v2721
    %v3074 = vpack.c.b16 %v2730, %v2722
    %v3075 = vpack.c.b16 %v2731, %v2723
    %v3076 = vpack.c.b16 %v2732, %v2724
    %v3077 = vpack.c.b16 %v2741, %v2733
    %v3078 = vpack.c.b16 %v2742, %v2734
    %v3079 = vpack.c.b16 %v2743, %v2735
    %v3080 = vpack.c.b16 %v2744, %v2736
    %v3081 = vpack.c.b16 %v2745, %v2737
    %v3082 = vpack.c.b16 %v2746, %v2738
    %v3083 = vpack.c.b16 %v2747, %v2739
    %v3084 = vpack.c.b16 %v2748, %v2740
    %v3085 = vpack.c.b16 %v2757, %v2749
    %v3086 = vpack.c.b16 %v2758, %v2750
    %v3087 = vpack.c.b16 %v2759, %v2751
    %v3088 = vpack.c.b16 %v2760, %v2752
    %v3089 = vpack.c.b16 %v2761, %v2753
    %v3090 = vpack.c.b16 %v2762, %v2754
    %v3091 = vpack.c.b16 %v2763, %v2755
    %v3092 = vpack.c.b16 %v2764, %v2756
    %v3093 = vpack.c.b16 %v2773, %v2765
    %v3094 = vpack.c.b16 %v2774, %v2766
    %v3095 = vpack.c.b16 %v2775, %v2767
    %v3096 = vpack.c.b16 %v2776, %v2768
    %v3097 = vpack.c.b16 %v2777, %v2769
    %v3098 = vpack.c.b16 %v2778, %v2770
    %v3099 = vpack.c.b16 %v2779, %v2771
    %v3100 = vpack.c.b16 %v2780, %v2772
    %v3101 = vpack.c.b16 %v2789, %v2781
    %v3102 = vpack.c.b16 %v2790, %v2782
    %v3103 = vpack.c.b16 %v2791, %v2783
    %v3104 = vpack.c.b16 %v2792, %v2784
    %v3105 = vpack.c.b16 %v2793, %v2785
    %v3106 = vpack.c.b16 %v2794, %v2786
    %v3107 = vpack.c.b16 %v2795, %v2787
    %v3108 = vpack.c.b16 %v2796, %v2788
    %v3109 = vpack.c.b16 %v2805, %v2797
    %v3110 = vpack.c.b16 %v2806, %v2798
    %v3111 = vpack.c.b16 %v2807, %v2799
    %v3112 = vpack.c.b16 %v2808, %v2800
    %v3113 = vpack.c.b16 %v2809, %v2801
    %v3114 = vpack.c.b16 %v2810, %v2802
    %v3115 = vpack.c.b16 %v2811, %v2803
    %v3116 = vpack.c.b16 %v2812, %v2804
    %v3117 = vpack.c.b16 %v2821, %v2813
    %v3118 = vpack.c.b16 %v2822, %v2814
    %v3119 = vpack.c.b16 %v2823, %v2815
    %v3120 = vpack.c.b16 %v2824, %v2816
    %v3121 = vpack.c.b16 %v2825, %v2817
    %v3122 = vpack.c.b16 %v2826, %v2818
    %v3123 = vpack.c.b16 %v2827, %v2819
    %v3124 = vpack.c.b16 %v2828, %v2820
    %v3125 = vpack.c.b16 %v2837, %v2829
    %v3126 = vpack.c.b16 %v2838, %v2830
    %v3127 = vpack.c.b16 %v2839, %v2831
    %v3128 = vpack.c.b16 %v2840, %v2832
    %v3129 = vpack.c.b16 %v2841, %v2833
    %v3130 = vpack.c.b16 %v2842, %v2834
    %v3131 = vpack.c.b16 %v2843, %v2835
    %v3132 = vpack.c.b16 %v2844, %v2836
    %v3133 = vpack.c.b16 %v2853, %v2845
    %v3134 = vpack.c.b16 %v2854, %v2846
    %v3135 = vpack.c.b16 %v2855, %v2847
    %v3136 = vpack.c.b16 %v2856, %v2848
    %v3137 = vpack.c.b16 %v2857, %v2849
    %v3138 = vpack.c.b16 %v2858, %v2850
    %v3139 = vpack.c.b16 %v2859, %v2851
    %v3140 = vpack.c.b16 %v2860, %v2852
    %v3141 = vpack.c.b16 %v2869, %v2861
    %v3142 = vpack.c.b16 %v2870, %v2862
    %v3143 = vpack.c.b16 %v2871, %v2863
    %v3144 = vpack.c.b16 %v2872, %v2864
    %v3145 = vpack.c.b16 %v2873, %v2865
    %v3146 = vpack.c.b16 %v2874, %v2866
    %v3147 = vpack.c.b16 %v2875, %v2867
    %v3148 = vpack.c.b16 %v2876, %v2868
    %v3149 = vpack.c.b16 %v2885, %v2877
    %v3150 = vpack.c.b16 %v2886, %v2878
    %v3151 = vpack.c.b16 %v2887, %v2879
    %v3152 = vpack.c.b16 %v2888, %v2880
    %v3153 = vpack.c.b16 %v2889, %v2881
    %v3154 = vpack.c.b16 %v2890, %v2882
    %v3155 = vpack.c.b16 %v2891, %v2883
    %v3156 = vpack.c.b16 %v2892, %v2884
    %v3157 = vpack.c.b16 %v2901, %v2893
    %v3158 = vpack.c.b16 %v2902, %v2894
    %v3159 = vpack.c.b16 %v2903, %v2895
    %v3160 = vpack.c.b16 %v2904, %v2896
    %v3161 = vpack.c.b16 %v2905, %v2897
    %v3162 = vpack.c.b16 %v2906, %v2898
    %v3163 = vpack.c.b16 %v2907, %v2899
    %v3164 = vpack.c.b16 %v2908, %v2900
    %3421 = vmatpush.bf16.msra.mxu0 %v2965
    %3422 = vmatpush.bf16.msra.mxu0 %v2957
    %3423 = vmatpush.bf16.msra.mxu0 %v2949
    %3424 = vmatpush.bf16.msra.mxu0 %v2941
    %3425 = vmatpush.bf16.msra.mxu0 %v2933
    %3426 = vmatpush.bf16.msra.mxu0 %v2925
    %3427 = vmatpush.bf16.msra.mxu0 %v2917
    %3428 = vmatpush.bf16.msra.mxu0 %v2909
    %3429 = vmatmul.bf16.gmra.mxu0 %v1881
    %v3430 = vpop.f32.mrf.mxu0
    %v3431 = vadd.f32 0.0, %v3430
    %v3432 = vpop.f32.mrf.mxu0
    %v3433 = vadd.f32 0.0, %v3432
    %3434 = vdwg.mxu0
    %3435 = vmatpush.bf16.msra.mxu0 %v3029
    %3436 = vmatpush.bf16.msra.mxu0 %v3021
    %3437 = vmatpush.bf16.msra.mxu0 %v3013
    %3438 = vmatpush.bf16.msra.mxu0 %v3005
    %3439 = vmatpush.bf16.msra.mxu0 %v2997
    %3440 = vmatpush.bf16.msra.mxu0 %v2989
    %3441 = vmatpush.bf16.msra.mxu0 %v2981
    %3442 = vmatpush.bf16.msra.mxu0 %v2973
    %3443 = vmatmul.bf16.gmra.mxu0 %v1882
    %v3444 = vpop.f32.mrf.mxu0
    %v3445 = vadd.f32 %v3431, %v3444
    %v3446 = vpop.f32.mrf.mxu0
    %v3447 = vadd.f32 %v3433, %v3446
    %3448 = vdwg.mxu0
    %3449 = vmatpush.bf16.msra.mxu0 %v3093
    %3450 = vmatpush.bf16.msra.mxu0 %v3085
    %3451 = vmatpush.bf16.msra.mxu0 %v3077
    %3452 = vmatpush.bf16.msra.mxu0 %v3069
    %3453 = vmatpush.bf16.msra.mxu0 %v3061
    %3454 = vmatpush.bf16.msra.mxu0 %v3053
    %3455 = vmatpush.bf16.msra.mxu0 %v3045
    %3456 = vmatpush.bf16.msra.mxu0 %v3037
    %3457 = vmatmul.bf16.gmra.mxu0 %v1883
    %v3458 = vpop.f32.mrf.mxu0
    %v3459 = vadd.f32 %v3445, %v3458
    %v3460 = vpop.f32.mrf.mxu0
    %v3461 = vadd.f32 %v3447, %v3460
    %3462 = vdwg.mxu0
    %3463 = vmatpush.bf16.msra.mxu0 %v3157
    %3464 = vmatpush.bf16.msra.mxu0 %v3149
    %3465 = vmatpush.bf16.msra.mxu0 %v3141
    %3466 = vmatpush.bf16.msra.mxu0 %v3133
    %3467 = vmatpush.bf16.msra.mxu0 %v3125
    %3468 = vmatpush.bf16.msra.mxu0 %v3117
    %3469 = vmatpush.bf16.msra.mxu0 %v3109
    %3470 = vmatpush.bf16.msra.mxu0 %v3101
    %3471 = vmatmul.bf16.gmra.mxu0 %v1884
    %v3472 = vpop.f32.mrf.mxu0
    %v3473 = vadd.f32 %v3459, %v3472
    %v3474 = vpop.f32.mrf.mxu0
    %v3475 = vadd.f32 %v3461, %v3474
    %3476 = vdwg.mxu0
    %3477 = vmatpush.bf16.msra.mxu0 %v2966
    %3478 = vmatpush.bf16.msra.mxu0 %v2958
    %3479 = vmatpush.bf16.msra.mxu0 %v2950
    %3480 = vmatpush.bf16.msra.mxu0 %v2942
    %3481 = vmatpush.bf16.msra.mxu0 %v2934
    %3482 = vmatpush.bf16.msra.mxu0 %v2926
    %3483 = vmatpush.bf16.msra.mxu0 %v2918
    %3484 = vmatpush.bf16.msra.mxu0 %v2910
    %3485 = vmatmul.bf16.gmra.mxu0 %v1881
    %v3486 = vpop.f32.mrf.mxu0
    %v3487 = vadd.f32 0.0, %v3486
    %v3488 = vpop.f32.mrf.mxu0
    %v3489 = vadd.f32 0.0, %v3488
    %3490 = vdwg.mxu0
    %3491 = vmatpush.bf16.msra.mxu0 %v3030
    %3492 = vmatpush.bf16.msra.mxu0 %v3022
    %3493 = vmatpush.bf16.msra.mxu0 %v3014
    %3494 = vmatpush.bf16.msra.mxu0 %v3006
    %3495 = vmatpush.bf16.msra.mxu0 %v2998
    %3496 = vmatpush.bf16.msra.mxu0 %v2990
    %3497 = vmatpush.bf16.msra.mxu0 %v2982
    %3498 = vmatpush.bf16.msra.mxu0 %v2974
    %3499 = vmatmul.bf16.gmra.mxu0 %v1882
    %v3500 = vpop.f32.mrf.mxu0
    %v3501 = vadd.f32 %v3487, %v3500
    %v3502 = vpop.f32.mrf.mxu0
    %v3503 = vadd.f32 %v3489, %v3502
    %3504 = vdwg.mxu0
    %3505 = vmatpush.bf16.msra.mxu0 %v3094
    %3506 = vmatpush.bf16.msra.mxu0 %v3086
    %3507 = vmatpush.bf16.msra.mxu0 %v3078
    %3508 = vmatpush.bf16.msra.mxu0 %v3070
    %3509 = vmatpush.bf16.msra.mxu0 %v3062
    %3510 = vmatpush.bf16.msra.mxu0 %v3054
    %3511 = vmatpush.bf16.msra.mxu0 %v3046
    %3512 = vmatpush.bf16.msra.mxu0 %v3038
    %3513 = vmatmul.bf16.gmra.mxu0 %v1883
    %v3514 = vpop.f32.mrf.mxu0
    %v3515 = vadd.f32 %v3501, %v3514
    %v3516 = vpop.f32.mrf.mxu0
    %v3517 = vadd.f32 %v3503, %v3516
    %3518 = vdwg.mxu0
    %3519 = vmatpush.bf16.msra.mxu0 %v3158
    %3520 = vmatpush.bf16.msra.mxu0 %v3150
    %3521 = vmatpush.bf16.msra.mxu0 %v3142
    %3522 = vmatpush.bf16.msra.mxu0 %v3134
    %3523 = vmatpush.bf16.msra.mxu0 %v3126
    %3524 = vmatpush.bf16.msra.mxu0 %v3118
    %3525 = vmatpush.bf16.msra.mxu0 %v3110
    %3526 = vmatpush.bf16.msra.mxu0 %v3102
    %3527 = vmatmul.bf16.gmra.mxu0 %v1884
    %v3528 = vpop.f32.mrf.mxu0
    %v3529 = vadd.f32 %v3515, %v3528
    %v3530 = vpop.f32.mrf.mxu0
    %v3531 = vadd.f32 %v3517, %v3530
    %3532 = vdwg.mxu0
    %3533 = vmatpush.bf16.msra.mxu0 %v2967
    %3534 = vmatpush.bf16.msra.mxu0 %v2959
    %3535 = vmatpush.bf16.msra.mxu0 %v2951
    %3536 = vmatpush.bf16.msra.mxu0 %v2943
    %3537 = vmatpush.bf16.msra.mxu0 %v2935
    %3538 = vmatpush.bf16.msra.mxu0 %v2927
    %3539 = vmatpush.bf16.msra.mxu0 %v2919
    %3540 = vmatpush.bf16.msra.mxu0 %v2911
    %3541 = vmatmul.bf16.gmra.mxu0 %v1881
    %v3542 = vpop.f32.mrf.mxu0
    %v3543 = vadd.f32 0.0, %v3542
    %v3544 = vpop.f32.mrf.mxu0
    %v3545 = vadd.f32 0.0, %v3544
    %3546 = vdwg.mxu0
    %3547 = vmatpush.bf16.msra.mxu0 %v3031
    %3548 = vmatpush.bf16.msra.mxu0 %v3023
    %3549 = vmatpush.bf16.msra.mxu0 %v3015
    %3550 = vmatpush.bf16.msra.mxu0 %v3007
    %3551 = vmatpush.bf16.msra.mxu0 %v2999
    %3552 = vmatpush.bf16.msra.mxu0 %v2991
    %3553 = vmatpush.bf16.msra.mxu0 %v2983
    %3554 = vmatpush.bf16.msra.mxu0 %v2975
    %3555 = vmatmul.bf16.gmra.mxu0 %v1882
    %v3556 = vpop.f32.mrf.mxu0
    %v3557 = vadd.f32 %v3543, %v3556
    %v3558 = vpop.f32.mrf.mxu0
    %v3559 = vadd.f32 %v3545, %v3558
    %3560 = vdwg.mxu0
    %3561 = vmatpush.bf16.msra.mxu0 %v3095
    %3562 = vmatpush.bf16.msra.mxu0 %v3087
    %3563 = vmatpush.bf16.msra.mxu0 %v3079
    %3564 = vmatpush.bf16.msra.mxu0 %v3071
    %3565 = vmatpush.bf16.msra.mxu0 %v3063
    %3566 = vmatpush.bf16.msra.mxu0 %v3055
    %3567 = vmatpush.bf16.msra.mxu0 %v3047
    %3568 = vmatpush.bf16.msra.mxu0 %v3039
    %3569 = vmatmul.bf16.gmra.mxu0 %v1883
    %v3570 = vpop.f32.mrf.mxu0
    %v3571 = vadd.f32 %v3557, %v3570
    %v3572 = vpop.f32.mrf.mxu0
    %v3573 = vadd.f32 %v3559, %v3572
    %3574 = vdwg.mxu0
    %3575 = vmatpush.bf16.msra.mxu0 %v3159
    %3576 = vmatpush.bf16.msra.mxu0 %v3151
    %3577 = vmatpush.bf16.msra.mxu0 %v3143
    %3578 = vmatpush.bf16.msra.mxu0 %v3135
    %3579 = vmatpush.bf16.msra.mxu0 %v3127
    %3580 = vmatpush.bf16.msra.mxu0 %v3119
    %3581 = vmatpush.bf16.msra.mxu0 %v3111
    %3582 = vmatpush.bf16.msra.mxu0 %v3103
    %3583 = vmatmul.bf16.gmra.mxu0 %v1884
    %v3584 = vpop.f32.mrf.mxu0
    %v3585 = vadd.f32 %v3571, %v3584
    %v3586 = vpop.f32.mrf.mxu0
    %v3587 = vadd.f32 %v3573, %v3586
    %3588 = vdwg.mxu0
    %3589 = vmatpush.bf16.msra.mxu0 %v2968
    %3590 = vmatpush.bf16.msra.mxu0 %v2960
    %3591 = vmatpush.bf16.msra.mxu0 %v2952
    %3592 = vmatpush.bf16.msra.mxu0 %v2944
    %3593 = vmatpush.bf16.msra.mxu0 %v2936
    %3594 = vmatpush.bf16.msra.mxu0 %v2928
    %3595 = vmatpush.bf16.msra.mxu0 %v2920
    %3596 = vmatpush.bf16.msra.mxu0 %v2912
    %3597 = vmatmul.bf16.gmra.mxu0 %v1881
    %v3598 = vpop.f32.mrf.mxu0
    %v3599 = vadd.f32 0.0, %v3598
    %v3600 = vpop.f32.mrf.mxu0
    %v3601 = vadd.f32 0.0, %v3600
    %3602 = vdwg.mxu0
    %3603 = vmatpush.bf16.msra.mxu0 %v3032
    %3604 = vmatpush.bf16.msra.mxu0 %v3024
    %3605 = vmatpush.bf16.msra.mxu0 %v3016
    %3606 = vmatpush.bf16.msra.mxu0 %v3008
    %3607 = vmatpush.bf16.msra.mxu0 %v3000
    %3608 = vmatpush.bf16.msra.mxu0 %v2992
    %3609 = vmatpush.bf16.msra.mxu0 %v2984
    %3610 = vmatpush.bf16.msra.mxu0 %v2976
    %3611 = vmatmul.bf16.gmra.mxu0 %v1882
    %v3612 = vpop.f32.mrf.mxu0
    %v3613 = vadd.f32 %v3599, %v3612
    %v3614 = vpop.f32.mrf.mxu0
    %v3615 = vadd.f32 %v3601, %v3614
    %3616 = vdwg.mxu0
    %3617 = vmatpush.bf16.msra.mxu0 %v3096
    %3618 = vmatpush.bf16.msra.mxu0 %v3088
    %3619 = vmatpush.bf16.msra.mxu0 %v3080
    %3620 = vmatpush.bf16.msra.mxu0 %v3072
    %3621 = vmatpush.bf16.msra.mxu0 %v3064
    %3622 = vmatpush.bf16.msra.mxu0 %v3056
    %3623 = vmatpush.bf16.msra.mxu0 %v3048
    %3624 = vmatpush.bf16.msra.mxu0 %v3040
    %3625 = vmatmul.bf16.gmra.mxu0 %v1883
    %v3626 = vpop.f32.mrf.mxu0
    %v3627 = vadd.f32 %v3613, %v3626
    %v3628 = vpop.f32.mrf.mxu0
    %v3629 = vadd.f32 %v3615, %v3628
    %3630 = vdwg.mxu0
    %3631 = vmatpush.bf16.msra.mxu0 %v3160
    %3632 = vmatpush.bf16.msra.mxu0 %v3152
    %3633 = vmatpush.bf16.msra.mxu0 %v3144
    %3634 = vmatpush.bf16.msra.mxu0 %v3136
    %3635 = vmatpush.bf16.msra.mxu0 %v3128
    %3636 = vmatpush.bf16.msra.mxu0 %v3120
    %3637 = vmatpush.bf16.msra.mxu0 %v3112
    %3638 = vmatpush.bf16.msra.mxu0 %v3104
    %3639 = vmatmul.bf16.gmra.mxu0 %v1884
    %v3640 = vpop.f32.mrf.mxu0
    %v3641 = vadd.f32 %v3627, %v3640
    %v3642 = vpop.f32.mrf.mxu0
    %v3643 = vadd.f32 %v3629, %v3642
    %3644 = vdwg.mxu0
    %3645 = vmatpush.bf16.msra.mxu0 %v2969
    %3646 = vmatpush.bf16.msra.mxu0 %v2961
    %3647 = vmatpush.bf16.msra.mxu0 %v2953
    %3648 = vmatpush.bf16.msra.mxu0 %v2945
    %3649 = vmatpush.bf16.msra.mxu0 %v2937
    %3650 = vmatpush.bf16.msra.mxu0 %v2929
    %3651 = vmatpush.bf16.msra.mxu0 %v2921
    %3652 = vmatpush.bf16.msra.mxu0 %v2913
    %3653 = vmatmul.bf16.gmra.mxu0 %v1881
    %v3654 = vpop.f32.mrf.mxu0
    %v3655 = vadd.f32 0.0, %v3654
    %v3656 = vpop.f32.mrf.mxu0
    %v3657 = vadd.f32 0.0, %v3656
    %3658 = vdwg.mxu0
    %3659 = vmatpush.bf16.msra.mxu0 %v3033
    %3660 = vmatpush.bf16.msra.mxu0 %v3025
    %3661 = vmatpush.bf16.msra.mxu0 %v3017
    %3662 = vmatpush.bf16.msra.mxu0 %v3009
    %3663 = vmatpush.bf16.msra.mxu0 %v3001
    %3664 = vmatpush.bf16.msra.mxu0 %v2993
    %3665 = vmatpush.bf16.msra.mxu0 %v2985
    %3666 = vmatpush.bf16.msra.mxu0 %v2977
    %3667 = vmatmul.bf16.gmra.mxu0 %v1882
    %v3668 = vpop.f32.mrf.mxu0
    %v3669 = vadd.f32 %v3655, %v3668
    %v3670 = vpop.f32.mrf.mxu0
    %v3671 = vadd.f32 %v3657, %v3670
    %3672 = vdwg.mxu0
    %3673 = vmatpush.bf16.msra.mxu0 %v3097
    %3674 = vmatpush.bf16.msra.mxu0 %v3089
    %3675 = vmatpush.bf16.msra.mxu0 %v3081
    %3676 = vmatpush.bf16.msra.mxu0 %v3073
    %3677 = vmatpush.bf16.msra.mxu0 %v3065
    %3678 = vmatpush.bf16.msra.mxu0 %v3057
    %3679 = vmatpush.bf16.msra.mxu0 %v3049
    %3680 = vmatpush.bf16.msra.mxu0 %v3041
    %3681 = vmatmul.bf16.gmra.mxu0 %v1883
    %v3682 = vpop.f32.mrf.mxu0
    %v3683 = vadd.f32 %v3669, %v3682
    %v3684 = vpop.f32.mrf.mxu0
    %v3685 = vadd.f32 %v3671, %v3684
    %3686 = vdwg.mxu0
    %3687 = vmatpush.bf16.msra.mxu0 %v3161
    %3688 = vmatpush.bf16.msra.mxu0 %v3153
    %3689 = vmatpush.bf16.msra.mxu0 %v3145
    %3690 = vmatpush.bf16.msra.mxu0 %v3137
    %3691 = vmatpush.bf16.msra.mxu0 %v3129
    %3692 = vmatpush.bf16.msra.mxu0 %v3121
    %3693 = vmatpush.bf16.msra.mxu0 %v3113
    %3694 = vmatpush.bf16.msra.mxu0 %v3105
    %3695 = vmatmul.bf16.gmra.mxu0 %v1884
    %v3696 = vpop.f32.mrf.mxu0
    %v3697 = vadd.f32 %v3683, %v3696
    %v3698 = vpop.f32.mrf.mxu0
    %v3699 = vadd.f32 %v3685, %v3698
    %3700 = vdwg.mxu0
    %3701 = vmatpush.bf16.msra.mxu0 %v2970
    %3702 = vmatpush.bf16.msra.mxu0 %v2962
    %3703 = vmatpush.bf16.msra.mxu0 %v2954
    %3704 = vmatpush.bf16.msra.mxu0 %v2946
    %3705 = vmatpush.bf16.msra.mxu0 %v2938
    %3706 = vmatpush.bf16.msra.mxu0 %v2930
    %3707 = vmatpush.bf16.msra.mxu0 %v2922
    %3708 = vmatpush.bf16.msra.mxu0 %v2914
    %3709 = vmatmul.bf16.gmra.mxu0 %v1881
    %v3710 = vpop.f32.mrf.mxu0
    %v3711 = vadd.f32 0.0, %v3710
    %v3712 = vpop.f32.mrf.mxu0
    %v3713 = vadd.f32 0.0, %v3712
    %3714 = vdwg.mxu0
    %3715 = vmatpush.bf16.msra.mxu0 %v3034
    %3716 = vmatpush.bf16.msra.mxu0 %v3026
    %3717 = vmatpush.bf16.msra.mxu0 %v3018
    %3718 = vmatpush.bf16.msra.mxu0 %v3010
    %3719 = vmatpush.bf16.msra.mxu0 %v3002
    %3720 = vmatpush.bf16.msra.mxu0 %v2994
    %3721 = vmatpush.bf16.msra.mxu0 %v2986
    %3722 = vmatpush.bf16.msra.mxu0 %v2978
    %3723 = vmatmul.bf16.gmra.mxu0 %v1882
    %v3724 = vpop.f32.mrf.mxu0
    %v3725 = vadd.f32 %v3711, %v3724
    %v3726 = vpop.f32.mrf.mxu0
    %v3727 = vadd.f32 %v3713, %v3726
    %3728 = vdwg.mxu0
    %3729 = vmatpush.bf16.msra.mxu0 %v3098
    %3730 = vmatpush.bf16.msra.mxu0 %v3090
    %3731 = vmatpush.bf16.msra.mxu0 %v3082
    %3732 = vmatpush.bf16.msra.mxu0 %v3074
    %3733 = vmatpush.bf16.msra.mxu0 %v3066
    %3734 = vmatpush.bf16.msra.mxu0 %v3058
    %3735 = vmatpush.bf16.msra.mxu0 %v3050
    %3736 = vmatpush.bf16.msra.mxu0 %v3042
    %3737 = vmatmul.bf16.gmra.mxu0 %v1883
    %v3738 = vpop.f32.mrf.mxu0
    %v3739 = vadd.f32 %v3725, %v3738
    %v3740 = vpop.f32.mrf.mxu0
    %v3741 = vadd.f32 %v3727, %v3740
    %3742 = vdwg.mxu0
    %3743 = vmatpush.bf16.msra.mxu0 %v3162
    %3744 = vmatpush.bf16.msra.mxu0 %v3154
    %3745 = vmatpush.bf16.msra.mxu0 %v3146
    %3746 = vmatpush.bf16.msra.mxu0 %v3138
    %3747 = vmatpush.bf16.msra.mxu0 %v3130
    %3748 = vmatpush.bf16.msra.mxu0 %v3122
    %3749 = vmatpush.bf16.msra.mxu0 %v3114
    %3750 = vmatpush.bf16.msra.mxu0 %v3106
    %3751 = vmatmul.bf16.gmra.mxu0 %v1884
    %v3752 = vpop.f32.mrf.mxu0
    %v3753 = vadd.f32 %v3739, %v3752
    %v3754 = vpop.f32.mrf.mxu0
    %v3755 = vadd.f32 %v3741, %v3754
    %3756 = vdwg.mxu0
    %3757 = vmatpush.bf16.msra.mxu0 %v2971
    %3758 = vmatpush.bf16.msra.mxu0 %v2963
    %3759 = vmatpush.bf16.msra.mxu0 %v2955
    %3760 = vmatpush.bf16.msra.mxu0 %v2947
    %3761 = vmatpush.bf16.msra.mxu0 %v2939
    %3762 = vmatpush.bf16.msra.mxu0 %v2931
    %3763 = vmatpush.bf16.msra.mxu0 %v2923
    %3764 = vmatpush.bf16.msra.mxu0 %v2915
    %3765 = vmatmul.bf16.gmra.mxu0 %v1881
    %v3766 = vpop.f32.mrf.mxu0
    %v3767 = vadd.f32 0.0, %v3766
    %v3768 = vpop.f32.mrf.mxu0
    %v3769 = vadd.f32 0.0, %v3768
    %3770 = vdwg.mxu0
    %3771 = vmatpush.bf16.msra.mxu0 %v3035
    %3772 = vmatpush.bf16.msra.mxu0 %v3027
    %3773 = vmatpush.bf16.msra.mxu0 %v3019
    %3774 = vmatpush.bf16.msra.mxu0 %v3011
    %3775 = vmatpush.bf16.msra.mxu0 %v3003
    %3776 = vmatpush.bf16.msra.mxu0 %v2995
    %3777 = vmatpush.bf16.msra.mxu0 %v2987
    %3778 = vmatpush.bf16.msra.mxu0 %v2979
    %3779 = vmatmul.bf16.gmra.mxu0 %v1882
    %v3780 = vpop.f32.mrf.mxu0
    %v3781 = vadd.f32 %v3767, %v3780
    %v3782 = vpop.f32.mrf.mxu0
    %v3783 = vadd.f32 %v3769, %v3782
    %3784 = vdwg.mxu0
    %3785 = vmatpush.bf16.msra.mxu0 %v3099
    %3786 = vmatpush.bf16.msra.mxu0 %v3091
    %3787 = vmatpush.bf16.msra.mxu0 %v3083
    %3788 = vmatpush.bf16.msra.mxu0 %v3075
    %3789 = vmatpush.bf16.msra.mxu0 %v3067
    %3790 = vmatpush.bf16.msra.mxu0 %v3059
    %3791 = vmatpush.bf16.msra.mxu0 %v3051
    %3792 = vmatpush.bf16.msra.mxu0 %v3043
    %3793 = vmatmul.bf16.gmra.mxu0 %v1883
    %v3794 = vpop.f32.mrf.mxu0
    %v3795 = vadd.f32 %v3781, %v3794
    %v3796 = vpop.f32.mrf.mxu0
    %v3797 = vadd.f32 %v3783, %v3796
    %3798 = vdwg.mxu0
    %3799 = vmatpush.bf16.msra.mxu0 %v3163
    %3800 = vmatpush.bf16.msra.mxu0 %v3155
    %3801 = vmatpush.bf16.msra.mxu0 %v3147
    %3802 = vmatpush.bf16.msra.mxu0 %v3139
    %3803 = vmatpush.bf16.msra.mxu0 %v3131
    %3804 = vmatpush.bf16.msra.mxu0 %v3123
    %3805 = vmatpush.bf16.msra.mxu0 %v3115
    %3806 = vmatpush.bf16.msra.mxu0 %v3107
    %3807 = vmatmul.bf16.gmra.mxu0 %v1884
    %v3808 = vpop.f32.mrf.mxu0
    %v3809 = vadd.f32 %v3795, %v3808
    %v3810 = vpop.f32.mrf.mxu0
    %v3811 = vadd.f32 %v3797, %v3810
    %3812 = vdwg.mxu0
    %3813 = vmatpush.bf16.msra.mxu0 %v2972
    %3814 = vmatpush.bf16.msra.mxu0 %v2964
    %3815 = vmatpush.bf16.msra.mxu0 %v2956
    %3816 = vmatpush.bf16.msra.mxu0 %v2948
    %3817 = vmatpush.bf16.msra.mxu0 %v2940
    %3818 = vmatpush.bf16.msra.mxu0 %v2932
    %3819 = vmatpush.bf16.msra.mxu0 %v2924
    %3820 = vmatpush.bf16.msra.mxu0 %v2916
    %3821 = vmatmul.bf16.gmra.mxu0 %v1881
    %v3822 = vpop.f32.mrf.mxu0
    %v3823 = vadd.f32 0.0, %v3822
    %v3824 = vpop.f32.mrf.mxu0
    %v3825 = vadd.f32 0.0, %v3824
    %3826 = vdwg.mxu0
    %3827 = vmatpush.bf16.msra.mxu0 %v3036
    %3828 = vmatpush.bf16.msra.mxu0 %v3028
    %3829 = vmatpush.bf16.msra.mxu0 %v3020
    %3830 = vmatpush.bf16.msra.mxu0 %v3012
    %3831 = vmatpush.bf16.msra.mxu0 %v3004
    %3832 = vmatpush.bf16.msra.mxu0 %v2996
    %3833 = vmatpush.bf16.msra.mxu0 %v2988
    %3834 = vmatpush.bf16.msra.mxu0 %v2980
    %3835 = vmatmul.bf16.gmra.mxu0 %v1882
    %v3836 = vpop.f32.mrf.mxu0
    %v3837 = vadd.f32 %v3823, %v3836
    %v3838 = vpop.f32.mrf.mxu0
    %v3839 = vadd.f32 %v3825, %v3838
    %3840 = vdwg.mxu0
    %3841 = vmatpush.bf16.msra.mxu0 %v3100
    %3842 = vmatpush.bf16.msra.mxu0 %v3092
    %3843 = vmatpush.bf16.msra.mxu0 %v3084
    %3844 = vmatpush.bf16.msra.mxu0 %v3076
    %3845 = vmatpush.bf16.msra.mxu0 %v3068
    %3846 = vmatpush.bf16.msra.mxu0 %v3060
    %3847 = vmatpush.bf16.msra.mxu0 %v3052
    %3848 = vmatpush.bf16.msra.mxu0 %v3044
    %3849 = vmatmul.bf16.gmra.mxu0 %v1883
    %v3850 = vpop.f32.mrf.mxu0
    %v3851 = vadd.f32 %v3837, %v3850
    %v3852 = vpop.f32.mrf.mxu0
    %v3853 = vadd.f32 %v3839, %v3852
    %3854 = vdwg.mxu0
    %3855 = vmatpush.bf16.msra.mxu0 %v3164
    %3856 = vmatpush.bf16.msra.mxu0 %v3156
    %3857 = vmatpush.bf16.msra.mxu0 %v3148
    %3858 = vmatpush.bf16.msra.mxu0 %v3140
    %3859 = vmatpush.bf16.msra.mxu0 %v3132
    %3860 = vmatpush.bf16.msra.mxu0 %v3124
    %3861 = vmatpush.bf16.msra.mxu0 %v3116
    %3862 = vmatpush.bf16.msra.mxu0 %v3108
    %3863 = vmatmul.bf16.gmra.mxu0 %v1884
    %v3864 = vpop.f32.mrf.mxu0
    %v3865 = vadd.f32 %v3851, %v3864
    %v3866 = vpop.f32.mrf.mxu0
    %v3867 = vadd.f32 %v3853, %v3866
    %3868 = vdwg.mxu0
    %v3869 = vld [vmem:[#allocation23] sm:$0xff]
    %v3870 = vld [vmem:[#allocation25] sm:$0xff]
    %v3871 = vadd.f32 %v3473, %v3475
    %v3872 = vrot.slane %v3871, 4
    %v3873 = vadd.f32 %v3871, %v3872
    %v3874 = vrot.slane %v3873, 2
    %v3875 = vadd.f32 %v3873, %v3874
    %v3876 = vrot.slane %v3875, 1
    %v3877 = vadd.f32 %v3875, %v3876
    %v3878 = vadd.f32 %v3529, %v3531
    %v3879 = vrot.slane %v3878, 4
    %v3880 = vadd.f32 %v3878, %v3879
    %v3881 = vrot.slane %v3880, 2
    %v3882 = vadd.f32 %v3880, %v3881
    %v3883 = vrot.slane %v3882, 1
    %v3884 = vadd.f32 %v3882, %v3883
    %v3885 = vadd.f32 %v3585, %v3587
    %v3886 = vrot.slane %v3885, 4
    %v3887 = vadd.f32 %v3885, %v3886
    %v3888 = vrot.slane %v3887, 2
    %v3889 = vadd.f32 %v3887, %v3888
    %v3890 = vrot.slane %v3889, 1
    %v3891 = vadd.f32 %v3889, %v3890
    %v3892 = vadd.f32 %v3641, %v3643
    %v3893 = vrot.slane %v3892, 4
    %v3894 = vadd.f32 %v3892, %v3893
    %v3895 = vrot.slane %v3894, 2
    %v3896 = vadd.f32 %v3894, %v3895
    %v3897 = vrot.slane %v3896, 1
    %v3898 = vadd.f32 %v3896, %v3897
    %v3899 = vadd.f32 %v3697, %v3699
    %v3900 = vrot.slane %v3899, 4
    %v3901 = vadd.f32 %v3899, %v3900
    %v3902 = vrot.slane %v3901, 2
    %v3903 = vadd.f32 %v3901, %v3902
    %v3904 = vrot.slane %v3903, 1
    %v3905 = vadd.f32 %v3903, %v3904
    %v3906 = vadd.f32 %v3753, %v3755
    %v3907 = vrot.slane %v3906, 4
    %v3908 = vadd.f32 %v3906, %v3907
    %v3909 = vrot.slane %v3908, 2
    %v3910 = vadd.f32 %v3908, %v3909
    %v3911 = vrot.slane %v3910, 1
    %v3912 = vadd.f32 %v3910, %v3911
    %v3913 = vadd.f32 %v3809, %v3811
    %v3914 = vrot.slane %v3913, 4
    %v3915 = vadd.f32 %v3913, %v3914
    %v3916 = vrot.slane %v3915, 2
    %v3917 = vadd.f32 %v3915, %v3916
    %v3918 = vrot.slane %v3917, 1
    %v3919 = vadd.f32 %v3917, %v3918
    %v3920 = vadd.f32 %v3865, %v3867
    %v3921 = vrot.slane %v3920, 4
    %v3922 = vadd.f32 %v3920, %v3921
    %v3923 = vrot.slane %v3922, 2
    %v3924 = vadd.f32 %v3922, %v3923
    %v3925 = vrot.slane %v3924, 1
    %v3926 = vadd.f32 %v3924, %v3925
    %v3927 = vmul.f32 %v3473, %v3473
    %v3928 = vmul.f32 %v3529, %v3529
    %v3929 = vmul.f32 %v3585, %v3585
    %v3930 = vmul.f32 %v3641, %v3641
    %v3931 = vmul.f32 %v3697, %v3697
    %v3932 = vmul.f32 %v3753, %v3753
    %v3933 = vmul.f32 %v3809, %v3809
    %v3934 = vmul.f32 %v3865, %v3865
    %v3935 = vmul.f32 %v3475, %v3475
    %v3936 = vmul.f32 %v3531, %v3531
    %v3937 = vmul.f32 %v3587, %v3587
    %v3938 = vmul.f32 %v3643, %v3643
    %v3939 = vmul.f32 %v3699, %v3699
    %v3940 = vmul.f32 %v3755, %v3755
    %v3941 = vmul.f32 %v3811, %v3811
    %v3942 = vmul.f32 %v3867, %v3867
    %v3943 = vadd.f32 %v3927, %v3935
    %v3944 = vrot.slane %v3943, 4
    %v3945 = vadd.f32 %v3943, %v3944
    %v3946 = vrot.slane %v3945, 2
    %v3947 = vadd.f32 %v3945, %v3946
    %v3948 = vrot.slane %v3947, 1
    %v3949 = vadd.f32 %v3947, %v3948
    %v3950 = vadd.f32 %v3928, %v3936
    %v3951 = vrot.slane %v3950, 4
    %v3952 = vadd.f32 %v3950, %v3951
    %v3953 = vrot.slane %v3952, 2
    %v3954 = vadd.f32 %v3952, %v3953
    %v3955 = vrot.slane %v3954, 1
    %v3956 = vadd.f32 %v3954, %v3955
    %v3957 = vadd.f32 %v3929, %v3937
    %v3958 = vrot.slane %v3957, 4
    %v3959 = vadd.f32 %v3957, %v3958
    %v3960 = vrot.slane %v3959, 2
    %v3961 = vadd.f32 %v3959, %v3960
    %v3962 = vrot.slane %v3961, 1
    %v3963 = vadd.f32 %v3961, %v3962
    %v3964 = vadd.f32 %v3930, %v3938
    %v3965 = vrot.slane %v3964, 4
    %v3966 = vadd.f32 %v3964, %v3965
    %v3967 = vrot.slane %v3966, 2
    %v3968 = vadd.f32 %v3966, %v3967
    %v3969 = vrot.slane %v3968, 1
    %v3970 = vadd.f32 %v3968, %v3969
    %v3971 = vadd.f32 %v3931, %v3939
    %v3972 = vrot.slane %v3971, 4
    %v3973 = vadd.f32 %v3971, %v3972
    %v3974 = vrot.slane %v3973, 2
    %v3975 = vadd.f32 %v3973, %v3974
    %v3976 = vrot.slane %v3975, 1
    %v3977 = vadd.f32 %v3975, %v3976
    %v3978 = vadd.f32 %v3932, %v3940
    %v3979 = vrot.slane %v3978, 4
    %v3980 = vadd.f32 %v3978, %v3979
    %v3981 = vrot.slane %v3980, 2
    %v3982 = vadd.f32 %v3980, %v3981
    %v3983 = vrot.slane %v3982, 1
    %v3984 = vadd.f32 %v3982, %v3983
    %v3985 = vadd.f32 %v3933, %v3941
    %v3986 = vrot.slane %v3985, 4
    %v3987 = vadd.f32 %v3985, %v3986
    %v3988 = vrot.slane %v3987, 2
    %v3989 = vadd.f32 %v3987, %v3988
    %v3990 = vrot.slane %v3989, 1
    %v3991 = vadd.f32 %v3989, %v3990
    %v3992 = vadd.f32 %v3934, %v3942
    %v3993 = vrot.slane %v3992, 4
    %v3994 = vadd.f32 %v3992, %v3993
    %v3995 = vrot.slane %v3994, 2
    %v3996 = vadd.f32 %v3994, %v3995
    %v3997 = vrot.slane %v3996, 1
    %v3998 = vadd.f32 %v3996, %v3997
    %v3999 = vmul.f32 %v3877, 0.0625
    %v4000 = vmul.f32 %v3884, 0.0625
    %v4001 = vmul.f32 %v3891, 0.0625
    %v4002 = vmul.f32 %v3898, 0.0625
    %v4003 = vmul.f32 %v3905, 0.0625
    %v4004 = vmul.f32 %v3912, 0.0625
    %v4005 = vmul.f32 %v3919, 0.0625
    %v4006 = vmul.f32 %v3926, 0.0625
    %v4007 = vmul.f32 %v3949, 0.0625
    %v4008 = vmul.f32 %v3956, 0.0625
    %v4009 = vmul.f32 %v3963, 0.0625
    %v4010 = vmul.f32 %v3970, 0.0625
    %v4011 = vmul.f32 %v3977, 0.0625
    %v4012 = vmul.f32 %v3984, 0.0625
    %v4013 = vmul.f32 %v3991, 0.0625
    %v4014 = vmul.f32 %v3998, 0.0625
    %v4015 = vmul.f32 %v3999, %v3999
    %v4016 = vmul.f32 %v4000, %v4000
    %v4017 = vmul.f32 %v4001, %v4001
    %v4018 = vmul.f32 %v4002, %v4002
    %v4019 = vmul.f32 %v4003, %v4003
    %v4020 = vmul.f32 %v4004, %v4004
    %v4021 = vmul.f32 %v4005, %v4005
    %v4022 = vmul.f32 %v4006, %v4006
    %v4023 = vsub.f32 %v4007, %v4015
    %v4024 = vsub.f32 %v4008, %v4016
    %v4025 = vsub.f32 %v4009, %v4017
    %v4026 = vsub.f32 %v4010, %v4018
    %v4027 = vsub.f32 %v4011, %v4019
    %v4028 = vsub.f32 %v4012, %v4020
    %v4029 = vsub.f32 %v4013, %v4021
    %v4030 = vsub.f32 %v4014, %v4022
    %v4031 = vmax.f32 %v4023, 0.0
    %v4032 = vmax.f32 %v4024, 0.0
    %v4033 = vmax.f32 %v4025, 0.0
    %v4034 = vmax.f32 %v4026, 0.0
    %v4035 = vmax.f32 %v4027, 0.0
    %v4036 = vmax.f32 %v4028, 0.0
    %v4037 = vmax.f32 %v4029, 0.0
    %v4038 = vmax.f32 %v4030, 0.0
    %v4039 = vadd.f32 %v4031, 1e-05
    %v4040 = vadd.f32 %v4032, 1e-05
    %v4041 = vadd.f32 %v4033, 1e-05
    %v4042 = vadd.f32 %v4034, 1e-05
    %v4043 = vadd.f32 %v4035, 1e-05
    %v4044 = vadd.f32 %v4036, 1e-05
    %v4045 = vadd.f32 %v4037, 1e-05
    %v4046 = vadd.f32 %v4038, 1e-05
    %v4047 = vrsqrt.pop %v4039
    %v4048 = vmul.f32 %v4047, %v4039
    %v4049 = vmul.f32 %v4048, %v4047
    %v4050 = vmul.f32 0.5, %v4049
    %v4051 = vsub.f32 1.5, %v4050
    %v4052 = vmul.f32 %v4047, %v4051
    %vm4053 = vweird.f32 %v4039
    %vm4054 = vweird.f32 %v4047
    %vm4055 = vmor %vm4053, %vm4054
    %v4056 = vsel %vm4055, %v4047, %v4052
    %v4057 = vrsqrt.pop %v4040
    %v4058 = vmul.f32 %v4057, %v4040
    %v4059 = vmul.f32 %v4058, %v4057
    %v4060 = vmul.f32 0.5, %v4059
    %v4061 = vsub.f32 1.5, %v4060
    %v4062 = vmul.f32 %v4057, %v4061
    %vm4063 = vweird.f32 %v4040
    %vm4064 = vweird.f32 %v4057
    %vm4065 = vmor %vm4063, %vm4064
    %v4066 = vsel %vm4065, %v4057, %v4062
    %v4067 = vrsqrt.pop %v4041
    %v4068 = vmul.f32 %v4067, %v4041
    %v4069 = vmul.f32 %v4068, %v4067
    %v4070 = vmul.f32 0.5, %v4069
    %v4071 = vsub.f32 1.5, %v4070
    %v4072 = vmul.f32 %v4067, %v4071
    %vm4073 = vweird.f32 %v4041
    %vm4074 = vweird.f32 %v4067
    %vm4075 = vmor %vm4073, %vm4074
    %v4076 = vsel %vm4075, %v4067, %v4072
    %v4077 = vrsqrt.pop %v4042
    %v4078 = vmul.f32 %v4077, %v4042
    %v4079 = vmul.f32 %v4078, %v4077
    %v4080 = vmul.f32 0.5, %v4079
    %v4081 = vsub.f32 1.5, %v4080
    %v4082 = vmul.f32 %v4077, %v4081
    %vm4083 = vweird.f32 %v4042
    %vm4084 = vweird.f32 %v4077
    %vm4085 = vmor %vm4083, %vm4084
    %v4086 = vsel %vm4085, %v4077, %v4082
    %v4087 = vrsqrt.pop %v4043
    %v4088 = vmul.f32 %v4087, %v4043
    %v4089 = vmul.f32 %v4088, %v4087
    %v4090 = vmul.f32 0.5, %v4089
    %v4091 = vsub.f32 1.5, %v4090
    %v4092 = vmul.f32 %v4087, %v4091
    %vm4093 = vweird.f32 %v4043
    %vm4094 = vweird.f32 %v4087
    %vm4095 = vmor %vm4093, %vm4094
    %v4096 = vsel %vm4095, %v4087, %v4092
    %v4097 = vrsqrt.pop %v4044
    %v4098 = vmul.f32 %v4097, %v4044
    %v4099 = vmul.f32 %v4098, %v4097
    %v4100 = vmul.f32 0.5, %v4099
    %v4101 = vsub.f32 1.5, %v4100
    %v4102 = vmul.f32 %v4097, %v4101
    %vm4103 = vweird.f32 %v4044
    %vm4104 = vweird.f32 %v4097
    %vm4105 = vmor %vm4103, %vm4104
    %v4106 = vsel %vm4105, %v4097, %v4102
    %v4107 = vrsqrt.pop %v4045
    %v4108 = vmul.f32 %v4107, %v4045
    %v4109 = vmul.f32 %v4108, %v4107
    %v4110 = vmul.f32 0.5, %v4109
    %v4111 = vsub.f32 1.5, %v4110
    %v4112 = vmul.f32 %v4107, %v4111
    %vm4113 = vweird.f32 %v4045
    %vm4114 = vweird.f32 %v4107
    %vm4115 = vmor %vm4113, %vm4114
    %v4116 = vsel %vm4115, %v4107, %v4112
    %v4117 = vrsqrt.pop %v4046
    %v4118 = vmul.f32 %v4117, %v4046
    %v4119 = vmul.f32 %v4118, %v4117
    %v4120 = vmul.f32 0.5, %v4119
    %v4121 = vsub.f32 1.5, %v4120
    %v4122 = vmul.f32 %v4117, %v4121
    %vm4123 = vweird.f32 %v4046
    %vm4124 = vweird.f32 %v4117
    %vm4125 = vmor %vm4123, %vm4124
    %v4126 = vsel %vm4125, %v4117, %v4122
    %v4135 = vrot.slane %v4066, 7
    %v4136 = vrot.slane %v4076, 6
    %v4137 = vrot.slane %v4086, 5
    %v4138 = vrot.slane %v4096, 4
    %v4139 = vrot.slane %v4106, 3
    %v4140 = vrot.slane %v4116, 2
    %v4141 = vrot.slane %v4126, 1
    %v4142 = vsel %vm503, %v4056, %v4135
    %v4143 = vsel %vm1817, %v4136, %v4137
    %v4144 = vsel %vm1819, %v4142, %v4143
    %vm4145 = vcmask 1044484
    %v4146 = vsel %vm4145, %v4138, %v4139
    %vm4147 = vcmask 1046534
    %v4148 = vsel %vm4147, %v4140, %v4141
    %vm4149 = vcmask 1045508
    %v4150 = vsel %vm4149, %v4146, %v4148
    %vm4151 = vcmask 1043456
    %v4152 = vsel %vm4151, %v4144, %v4150
    %v4154 = vmul.f32 %v3869, %v4152
    %v4156 = vperm.slane %v4154, 0
    %v4157 = vperm.slane %v4154, 1
    %v4158 = vperm.slane %v4154, 2
    %v4159 = vperm.slane %v4154, 3
    %v4160 = vperm.slane %v4154, 4
    %v4161 = vperm.slane %v4154, 5
    %v4162 = vperm.slane %v4154, 6
    %v4163 = vperm.slane %v4154, 7
    %v4172 = vmul.f32 %v3999, %v4156
    %v4173 = vmul.f32 %v4000, %v4157
    %v4174 = vmul.f32 %v4001, %v4158
    %v4175 = vmul.f32 %v4002, %v4159
    %v4176 = vmul.f32 %v4003, %v4160
    %v4177 = vmul.f32 %v4004, %v4161
    %v4178 = vmul.f32 %v4005, %v4162
    %v4179 = vmul.f32 %v4006, %v4163
    %v4188 = vrot.slane %v4173, 7
    %v4189 = vrot.slane %v4174, 6
    %v4190 = vrot.slane %v4175, 5
    %v4191 = vrot.slane %v4176, 4
    %v4192 = vrot.slane %v4177, 3
    %v4193 = vrot.slane %v4178, 2
    %v4194 = vrot.slane %v4179, 1
    %v4195 = vsel %vm503, %v4172, %v4188
    %v4196 = vsel %vm1817, %v4189, %v4190
    %v4197 = vsel %vm1819, %v4195, %v4196
    %v4198 = vsel %vm4145, %v4191, %v4192
    %v4199 = vsel %vm4147, %v4193, %v4194
    %v4200 = vsel %vm4149, %v4198, %v4199
    %v4201 = vsel %vm4151, %v4197, %v4200
    %v4203 = vsub.f32 %v3870, %v4201
    %v4204 = vmul.f32 %v3473, %v4156
    %v4205 = vmul.f32 %v3529, %v4157
    %v4206 = vmul.f32 %v3585, %v4158
    %v4207 = vmul.f32 %v3641, %v4159
    %v4208 = vmul.f32 %v3697, %v4160
    %v4209 = vmul.f32 %v3753, %v4161
    %v4210 = vmul.f32 %v3809, %v4162
    %v4211 = vmul.f32 %v3865, %v4163
    %v4212 = vmul.f32 %v3475, %v4156
    %v4213 = vmul.f32 %v3531, %v4157
    %v4214 = vmul.f32 %v3587, %v4158
    %v4215 = vmul.f32 %v3643, %v4159
    %v4216 = vmul.f32 %v3699, %v4160
    %v4217 = vmul.f32 %v3755, %v4161
    %v4218 = vmul.f32 %v3811, %v4162
    %v4219 = vmul.f32 %v3867, %v4163
    %v4221 = vperm.slane %v4203, 0
    %v4222 = vperm.slane %v4203, 1
    %v4223 = vperm.slane %v4203, 2
    %v4224 = vperm.slane %v4203, 3
    %v4225 = vperm.slane %v4203, 4
    %v4226 = vperm.slane %v4203, 5
    %v4227 = vperm.slane %v4203, 6
    %v4228 = vperm.slane %v4203, 7
    %v4237 = vadd.f32 %v4204, %v4221
    %v4238 = vadd.f32 %v4205, %v4222
    %v4239 = vadd.f32 %v4206, %v4223
    %v4240 = vadd.f32 %v4207, %v4224
    %v4241 = vadd.f32 %v4208, %v4225
    %v4242 = vadd.f32 %v4209, %v4226
    %v4243 = vadd.f32 %v4210, %v4227
    %v4244 = vadd.f32 %v4211, %v4228
    %v4245 = vadd.f32 %v4212, %v4221
    %v4246 = vadd.f32 %v4213, %v4222
    %v4247 = vadd.f32 %v4214, %v4223
    %v4248 = vadd.f32 %v4215, %v4224
    %v4249 = vadd.f32 %v4216, %v4225
    %v4250 = vadd.f32 %v4217, %v4226
    %v4251 = vadd.f32 %v4218, %v4227
    %v4252 = vadd.f32 %v4219, %v4228
    %v4253 = vmax.f32 %v4237, 0.0
    %v4254 = vmax.f32 %v4238, 0.0
    %v4255 = vmax.f32 %v4239, 0.0
    %v4256 = vmax.f32 %v4240, 0.0
    %v4257 = vmax.f32 %v4241, 0.0
    %v4258 = vmax.f32 %v4242, 0.0
    %v4259 = vmax.f32 %v4243, 0.0
    %v4260 = vmax.f32 %v4244, 0.0
    %v4261 = vmax.f32 %v4245, 0.0
    %v4262 = vmax.f32 %v4246, 0.0
    %v4263 = vmax.f32 %v4247, 0.0
    %v4264 = vmax.f32 %v4248, 0.0
    %v4265 = vmax.f32 %v4249, 0.0
    %v4266 = vmax.f32 %v4250, 0.0
    %v4267 = vmax.f32 %v4251, 0.0
    %v4268 = vmax.f32 %v4252, 0.0
    %v4269 = vpack.c.bf16 %v4261, %v4253
    %v4270 = vpack.c.bf16 %v4262, %v4254
    %v4271 = vpack.c.bf16 %v4263, %v4255
    %v4272 = vpack.c.bf16 %v4264, %v4256
    %v4273 = vpack.c.bf16 %v4265, %v4257
    %v4274 = vpack.c.bf16 %v4266, %v4258
    %v4275 = vpack.c.bf16 %v4267, %v4259
    %v4276 = vpack.c.bf16 %v4268, %v4260
    %v4277 = vld [vmem:[#allocation26] sm:$0xff]
    %v4278 = vld [vmem:[#allocation26 + $0x8] sm:$0xff]
    %v4279 = vld [vmem:[#allocation26 + $0x10] sm:$0xff]
    %v4280 = vld [vmem:[#allocation26 + $0x18] sm:$0xf]
    %v4281 = vld [vmem:[#allocation26 + $0x1c] sm:$0xff]
    %v4282 = vld [vmem:[#allocation26 + $0x24] sm:$0xff]
    %v4283 = vld [vmem:[#allocation26 + $0x2c] sm:$0xff]
    %v4284 = vld [vmem:[#allocation26 + $0x34] sm:$0xf]
    %v4285 = vld [vmem:[#allocation26 + $0x38] sm:$0xff]
    %v4286 = vld [vmem:[#allocation26 + $0x40] sm:$0xff]
    %v4287 = vld [vmem:[#allocation26 + $0x48] sm:$0xff]
    %v4288 = vld [vmem:[#allocation26 + $0x50] sm:$0xf]
    %v4289 = vld [vmem:[#allocation26 + $0x54] sm:$0xff]
    %v4290 = vld [vmem:[#allocation26 + $0x5c] sm:$0xff]
    %v4291 = vld [vmem:[#allocation26 + $0x64] sm:$0xff]
    %v4292 = vld [vmem:[#allocation26 + $0x6c] sm:$0xf]
    %v4293 = vld [vmem:[#allocation26 + $0x70] sm:$0xff]
    %v4294 = vld [vmem:[#allocation26 + $0x78] sm:$0xff]
    %v4295 = vld [vmem:[#allocation26 + $0x80] sm:$0xff]
    %v4296 = vld [vmem:[#allocation26 + $0x88] sm:$0xf]
    %v4297 = vld [vmem:[#allocation26 + $0x8c] sm:$0xff]
    %v4298 = vld [vmem:[#allocation26 + $0x94] sm:$0xff]
    %v4299 = vld [vmem:[#allocation26 + $0x9c] sm:$0xff]
    %v4300 = vld [vmem:[#allocation26 + $0xa4] sm:$0xf]
    %v4301 = vld [vmem:[#allocation26 + $0xa8] sm:$0xff]
    %v4302 = vld [vmem:[#allocation26 + $0xb0] sm:$0xff]
    %v4303 = vld [vmem:[#allocation26 + $0xb8] sm:$0xff]
    %v4304 = vld [vmem:[#allocation26 + $0xc0] sm:$0xf]
    %v4305 = vld [vmem:[#allocation26 + $0xc4] sm:$0xff]
    %v4306 = vld [vmem:[#allocation26 + $0xcc] sm:$0xff]
    %v4307 = vld [vmem:[#allocation26 + $0xd4] sm:$0xff]
    %v4308 = vld [vmem:[#allocation26 + $0xdc] sm:$0xf]
    %v4309 = vld [vmem:[#allocation26 + $0xe0] sm:$0xff]
    %v4310 = vld [vmem:[#allocation26 + $0xe8] sm:$0xff]
    %v4311 = vld [vmem:[#allocation26 + $0xf0] sm:$0xff]
    %v4312 = vld [vmem:[#allocation26 + $0xf8] sm:$0xf]
    %v4313 = vld [vmem:[#allocation26 + $0xfc] sm:$0xff]
    %v4314 = vld [vmem:[#allocation26 + $0x104] sm:$0xff]
    %v4315 = vld [vmem:[#allocation26 + $0x10c] sm:$0xff]
    %v4316 = vld [vmem:[#allocation26 + $0x114] sm:$0xf]
    %v4317 = vld [vmem:[#allocation26 + $0x118] sm:$0xff]
    %v4318 = vld [vmem:[#allocation26 + $0x120] sm:$0xff]
    %v4319 = vld [vmem:[#allocation26 + $0x128] sm:$0xff]
    %v4320 = vld [vmem:[#allocation26 + $0x130] sm:$0xf]
    %v4321 = vld [vmem:[#allocation26 + $0x134] sm:$0xff]
    %v4322 = vld [vmem:[#allocation26 + $0x13c] sm:$0xff]
    %v4323 = vld [vmem:[#allocation26 + $0x144] sm:$0xff]
    %v4324 = vld [vmem:[#allocation26 + $0x14c] sm:$0xf]
    %v4325 = vld [vmem:[#allocation26 + $0x150] sm:$0xff]
    %v4326 = vld [vmem:[#allocation26 + $0x158] sm:$0xff]
    %v4327 = vld [vmem:[#allocation26 + $0x160] sm:$0xff]
    %v4328 = vld [vmem:[#allocation26 + $0x168] sm:$0xf]
    %v4329 = vld [vmem:[#allocation26 + $0x16c] sm:$0xff]
    %v4330 = vld [vmem:[#allocation26 + $0x174] sm:$0xff]
    %v4331 = vld [vmem:[#allocation26 + $0x17c] sm:$0xff]
    %v4332 = vld [vmem:[#allocation26 + $0x184] sm:$0xf]
    %v4333 = vld [vmem:[#allocation26 + $0x188] sm:$0xff]
    %v4334 = vld [vmem:[#allocation26 + $0x190] sm:$0xff]
    %v4335 = vld [vmem:[#allocation26 + $0x198] sm:$0xff]
    %v4336 = vld [vmem:[#allocation26 + $0x1a0] sm:$0xf]
    %v4337 = vld [vmem:[#allocation26 + $0x1a4] sm:$0xff]
    %v4338 = vld [vmem:[#allocation26 + $0x1ac] sm:$0xff]
    %v4339 = vld [vmem:[#allocation26 + $0x1b4] sm:$0xff]
    %v4340 = vld [vmem:[#allocation26 + $0x1bc] sm:$0xf]
    %v4341 = vld [vmem:[#allocation26 + $0x1c0] sm:$0xff]
    %v4342 = vld [vmem:[#allocation26 + $0x1c8] sm:$0xff]
    %v4343 = vld [vmem:[#allocation26 + $0x1d0] sm:$0xff]
    %v4344 = vld [vmem:[#allocation26 + $0x1d8] sm:$0xf]
    %v4345 = vld [vmem:[#allocation26 + $0x1dc] sm:$0xff]
    %v4346 = vld [vmem:[#allocation26 + $0x1e4] sm:$0xff]
    %v4347 = vld [vmem:[#allocation26 + $0x1ec] sm:$0xff]
    %v4348 = vld [vmem:[#allocation26 + $0x1f4] sm:$0xf]
    %v4349 = vld [vmem:[#allocation26 + $0x1f8] sm:$0xff]
    %v4350 = vld [vmem:[#allocation26 + $0x200] sm:$0xff]
    %v4351 = vld [vmem:[#allocation26 + $0x208] sm:$0xff]
    %v4352 = vld [vmem:[#allocation26 + $0x210] sm:$0xf]
    %v4353 = vld [vmem:[#allocation26 + $0x214] sm:$0xff]
    %v4354 = vld [vmem:[#allocation26 + $0x21c] sm:$0xff]
    %v4355 = vld [vmem:[#allocation26 + $0x224] sm:$0xff]
    %v4356 = vld [vmem:[#allocation26 + $0x22c] sm:$0xf]
    %v4357 = vld [vmem:[#allocation26 + $0x230] sm:$0xff]
    %v4358 = vld [vmem:[#allocation26 + $0x238] sm:$0xff]
    %v4359 = vld [vmem:[#allocation26 + $0x240] sm:$0xff]
    %v4360 = vld [vmem:[#allocation26 + $0x248] sm:$0xf]
    %v4361 = vld [vmem:[#allocation26 + $0x24c] sm:$0xff]
    %v4362 = vld [vmem:[#allocation26 + $0x254] sm:$0xff]
    %v4363 = vld [vmem:[#allocation26 + $0x25c] sm:$0xff]
    %v4364 = vld [vmem:[#allocation26 + $0x264] sm:$0xf]
    %v4365 = vld [vmem:[#allocation26 + $0x268] sm:$0xff]
    %v4366 = vld [vmem:[#allocation26 + $0x270] sm:$0xff]
    %v4367 = vld [vmem:[#allocation26 + $0x278] sm:$0xff]
    %v4368 = vld [vmem:[#allocation26 + $0x280] sm:$0xf]
    %v4369 = vld [vmem:[#allocation26 + $0x284] sm:$0xff]
    %v4370 = vld [vmem:[#allocation26 + $0x28c] sm:$0xff]
    %v4371 = vld [vmem:[#allocation26 + $0x294] sm:$0xff]
    %v4372 = vld [vmem:[#allocation26 + $0x29c] sm:$0xf]
    %v4373 = vld [vmem:[#allocation26 + $0x2a0] sm:$0xff]
    %v4374 = vld [vmem:[#allocation26 + $0x2a8] sm:$0xff]
    %v4375 = vld [vmem:[#allocation26 + $0x2b0] sm:$0xff]
    %v4376 = vld [vmem:[#allocation26 + $0x2b8] sm:$0xf]
    %v4377 = vld [vmem:[#allocation26 + $0x2bc] sm:$0xff]
    %v4378 = vld [vmem:[#allocation26 + $0x2c4] sm:$0xff]
    %v4379 = vld [vmem:[#allocation26 + $0x2cc] sm:$0xff]
    %v4380 = vld [vmem:[#allocation26 + $0x2d4] sm:$0xf]
    %v4381 = vld [vmem:[#allocation26 + $0x2d8] sm:$0xff]
    %v4382 = vld [vmem:[#allocation26 + $0x2e0] sm:$0xff]
    %v4383 = vld [vmem:[#allocation26 + $0x2e8] sm:$0xff]
    %v4384 = vld [vmem:[#allocation26 + $0x2f0] sm:$0xf]
    %v4385 = vld [vmem:[#allocation26 + $0x2f4] sm:$0xff]
    %v4386 = vld [vmem:[#allocation26 + $0x2fc] sm:$0xff]
    %v4387 = vld [vmem:[#allocation26 + $0x304] sm:$0xff]
    %v4388 = vld [vmem:[#allocation26 + $0x30c] sm:$0xf]
    %v4389 = vld [vmem:[#allocation26 + $0x310] sm:$0xff]
    %v4390 = vld [vmem:[#allocation26 + $0x318] sm:$0xff]
    %v4391 = vld [vmem:[#allocation26 + $0x320] sm:$0xff]
    %v4392 = vld [vmem:[#allocation26 + $0x328] sm:$0xf]
    %v4393 = vld [vmem:[#allocation26 + $0x32c] sm:$0xff]
    %v4394 = vld [vmem:[#allocation26 + $0x334] sm:$0xff]
    %v4395 = vld [vmem:[#allocation26 + $0x33c] sm:$0xff]
    %v4396 = vld [vmem:[#allocation26 + $0x344] sm:$0xf]
    %v4397 = vld [vmem:[#allocation26 + $0x348] sm:$0xff]
    %v4398 = vld [vmem:[#allocation26 + $0x350] sm:$0xff]
    %v4399 = vld [vmem:[#allocation26 + $0x358] sm:$0xff]
    %v4400 = vld [vmem:[#allocation26 + $0x360] sm:$0xf]
    %v4401 = vld [vmem:[#allocation26 + $0x364] sm:$0xff]
    %v4402 = vld [vmem:[#allocation26 + $0x36c] sm:$0xff]
    %v4403 = vld [vmem:[#allocation26 + $0x374] sm:$0xff]
    %v4404 = vld [vmem:[#allocation26 + $0x37c] sm:$0xf]
    %v4405 = vld [vmem:[#allocation26 + $0x380] sm:$0xff]
    %v4406 = vld [vmem:[#allocation26 + $0x388] sm:$0xff]
    %v4407 = vld [vmem:[#allocation26 + $0x390] sm:$0xff]
    %v4408 = vld [vmem:[#allocation26 + $0x398] sm:$0xf]
    %v4409 = vld [vmem:[#allocation26 + $0x39c] sm:$0xff]
    %v4410 = vld [vmem:[#allocation26 + $0x3a4] sm:$0xff]
    %v4411 = vld [vmem:[#allocation26 + $0x3ac] sm:$0xff]
    %v4412 = vld [vmem:[#allocation26 + $0x3b4] sm:$0xf]
    %v4413 = vld [vmem:[#allocation26 + $0x3b8] sm:$0xff]
    %v4414 = vld [vmem:[#allocation26 + $0x3c0] sm:$0xff]
    %v4415 = vld [vmem:[#allocation26 + $0x3c8] sm:$0xff]
    %v4416 = vld [vmem:[#allocation26 + $0x3d0] sm:$0xf]
    %v4417 = vld [vmem:[#allocation26 + $0x3d4] sm:$0xff]
    %v4418 = vld [vmem:[#allocation26 + $0x3dc] sm:$0xff]
    %v4419 = vld [vmem:[#allocation26 + $0x3e4] sm:$0xff]
    %v4420 = vld [vmem:[#allocation26 + $0x3ec] sm:$0xf]
    %v4421 = vld [vmem:[#allocation26 + $0x3f0] sm:$0xff]
    %v4422 = vld [vmem:[#allocation26 + $0x3f8] sm:$0xff]
    %v4423 = vld [vmem:[#allocation26 + $0x400] sm:$0xff]
    %v4424 = vld [vmem:[#allocation26 + $0x408] sm:$0xf]
    %v4425 = vld [vmem:[#allocation26 + $0x40c] sm:$0xff]
    %v4426 = vld [vmem:[#allocation26 + $0x414] sm:$0xff]
    %v4427 = vld [vmem:[#allocation26 + $0x41c] sm:$0xff]
    %v4428 = vld [vmem:[#allocation26 + $0x424] sm:$0xf]
    %v4429 = vld [vmem:[#allocation26 + $0x428] sm:$0xff]
    %v4430 = vld [vmem:[#allocation26 + $0x430] sm:$0xff]
    %v4431 = vld [vmem:[#allocation26 + $0x438] sm:$0xff]
    %v4432 = vld [vmem:[#allocation26 + $0x440] sm:$0xf]
    %v4433 = vld [vmem:[#allocation26 + $0x444] sm:$0xff]
    %v4434 = vld [vmem:[#allocation26 + $0x44c] sm:$0xff]
    %v4435 = vld [vmem:[#allocation26 + $0x454] sm:$0xff]
    %v4436 = vld [vmem:[#allocation26 + $0x45c] sm:$0xf]
    %v4437 = vld [vmem:[#allocation26 + $0x460] sm:$0xff]
    %v4438 = vld [vmem:[#allocation26 + $0x468] sm:$0xff]
    %v4439 = vld [vmem:[#allocation26 + $0x470] sm:$0xff]
    %v4440 = vld [vmem:[#allocation26 + $0x478] sm:$0xf]
    %v4441 = vld [vmem:[#allocation26 + $0x47c] sm:$0xff]
    %v4442 = vld [vmem:[#allocation26 + $0x484] sm:$0xff]
    %v4443 = vld [vmem:[#allocation26 + $0x48c] sm:$0xff]
    %v4444 = vld [vmem:[#allocation26 + $0x494] sm:$0xf]
    %v4445 = vld [vmem:[#allocation26 + $0x498] sm:$0xff]
    %v4446 = vld [vmem:[#allocation26 + $0x4a0] sm:$0xff]
    %v4447 = vld [vmem:[#allocation26 + $0x4a8] sm:$0xff]
    %v4448 = vld [vmem:[#allocation26 + $0x4b0] sm:$0xf]
    %v4449 = vld [vmem:[#allocation26 + $0x4b4] sm:$0xff]
    %v4450 = vld [vmem:[#allocation26 + $0x4bc] sm:$0xff]
    %v4451 = vld [vmem:[#allocation26 + $0x4c4] sm:$0xff]
    %v4452 = vld [vmem:[#allocation26 + $0x4cc] sm:$0xf]
    %v4453 = vld [vmem:[#allocation26 + $0x4d0] sm:$0xff]
    %v4454 = vld [vmem:[#allocation26 + $0x4d8] sm:$0xff]
    %v4455 = vld [vmem:[#allocation26 + $0x4e0] sm:$0xff]
    %v4456 = vld [vmem:[#allocation26 + $0x4e8] sm:$0xf]
    %v4457 = vld [vmem:[#allocation26 + $0x4ec] sm:$0xff]
    %v4458 = vld [vmem:[#allocation26 + $0x4f4] sm:$0xff]
    %v4459 = vld [vmem:[#allocation26 + $0x4fc] sm:$0xff]
    %v4460 = vld [vmem:[#allocation26 + $0x504] sm:$0xf]
    %v4461 = vld [vmem:[#allocation26 + $0x508] sm:$0xff]
    %v4462 = vld [vmem:[#allocation26 + $0x510] sm:$0xff]
    %v4463 = vld [vmem:[#allocation26 + $0x518] sm:$0xff]
    %v4464 = vld [vmem:[#allocation26 + $0x520] sm:$0xf]
    %v4465 = vld [vmem:[#allocation26 + $0x524] sm:$0xff]
    %v4466 = vld [vmem:[#allocation26 + $0x52c] sm:$0xff]
    %v4467 = vld [vmem:[#allocation26 + $0x534] sm:$0xff]
    %v4468 = vld [vmem:[#allocation26 + $0x53c] sm:$0xf]
    %v4469 = vld [vmem:[#allocation26 + $0x540] sm:$0xff]
    %v4470 = vld [vmem:[#allocation26 + $0x548] sm:$0xff]
    %v4471 = vld [vmem:[#allocation26 + $0x550] sm:$0xff]
    %v4472 = vld [vmem:[#allocation26 + $0x558] sm:$0xf]
    %v4473 = vld [vmem:[#allocation26 + $0x55c] sm:$0xff]
    %v4474 = vld [vmem:[#allocation26 + $0x564] sm:$0xff]
    %v4475 = vld [vmem:[#allocation26 + $0x56c] sm:$0xff]
    %v4476 = vld [vmem:[#allocation26 + $0x574] sm:$0xf]
    %v4477 = vld [vmem:[#allocation26 + $0x578] sm:$0xff]
    %v4478 = vld [vmem:[#allocation26 + $0x580] sm:$0xff]
    %v4479 = vld [vmem:[#allocation26 + $0x588] sm:$0xff]
    %v4480 = vld [vmem:[#allocation26 + $0x590] sm:$0xf]
    %v4481 = vld [vmem:[#allocation26 + $0x594] sm:$0xff]
    %v4482 = vld [vmem:[#allocation26 + $0x59c] sm:$0xff]
    %v4483 = vld [vmem:[#allocation26 + $0x5a4] sm:$0xff]
    %v4484 = vld [vmem:[#allocation26 + $0x5ac] sm:$0xf]
    %v4485 = vld [vmem:[#allocation26 + $0x5b0] sm:$0xff]
    %v4486 = vld [vmem:[#allocation26 + $0x5b8] sm:$0xff]
    %v4487 = vld [vmem:[#allocation26 + $0x5c0] sm:$0xff]
    %v4488 = vld [vmem:[#allocation26 + $0x5c8] sm:$0xf]
    %v4489 = vld [vmem:[#allocation26 + $0x5cc] sm:$0xff]
    %v4490 = vld [vmem:[#allocation26 + $0x5d4] sm:$0xff]
    %v4491 = vld [vmem:[#allocation26 + $0x5dc] sm:$0xff]
    %v4492 = vld [vmem:[#allocation26 + $0x5e4] sm:$0xf]
    %v4493 = vld [vmem:[#allocation26 + $0x5e8] sm:$0xff]
    %v4494 = vld [vmem:[#allocation26 + $0x5f0] sm:$0xff]
    %v4495 = vld [vmem:[#allocation26 + $0x5f8] sm:$0xff]
    %v4496 = vld [vmem:[#allocation26 + $0x600] sm:$0xf]
    %v4497 = vld [vmem:[#allocation26 + $0x604] sm:$0xff]
    %v4498 = vld [vmem:[#allocation26 + $0x60c] sm:$0xff]
    %v4499 = vld [vmem:[#allocation26 + $0x614] sm:$0xff]
    %v4500 = vld [vmem:[#allocation26 + $0x61c] sm:$0xf]
    %v4501 = vld [vmem:[#allocation26 + $0x620] sm:$0xff]
    %v4502 = vld [vmem:[#allocation26 + $0x628] sm:$0xff]
    %v4503 = vld [vmem:[#allocation26 + $0x630] sm:$0xff]
    %v4504 = vld [vmem:[#allocation26 + $0x638] sm:$0xf]
    %v4505 = vld [vmem:[#allocation26 + $0x63c] sm:$0xff]
    %v4506 = vld [vmem:[#allocation26 + $0x644] sm:$0xff]
    %v4507 = vld [vmem:[#allocation26 + $0x64c] sm:$0xff]
    %v4508 = vld [vmem:[#allocation26 + $0x654] sm:$0xf]
    %v4509 = vld [vmem:[#allocation26 + $0x658] sm:$0xff]
    %v4510 = vld [vmem:[#allocation26 + $0x660] sm:$0xff]
    %v4511 = vld [vmem:[#allocation26 + $0x668] sm:$0xff]
    %v4512 = vld [vmem:[#allocation26 + $0x670] sm:$0xf]
    %v4513 = vld [vmem:[#allocation26 + $0x674] sm:$0xff]
    %v4514 = vld [vmem:[#allocation26 + $0x67c] sm:$0xff]
    %v4515 = vld [vmem:[#allocation26 + $0x684] sm:$0xff]
    %v4516 = vld [vmem:[#allocation26 + $0x68c] sm:$0xf]
    %v4517 = vld [vmem:[#allocation26 + $0x690] sm:$0xff]
    %v4518 = vld [vmem:[#allocation26 + $0x698] sm:$0xff]
    %v4519 = vld [vmem:[#allocation26 + $0x6a0] sm:$0xff]
    %v4520 = vld [vmem:[#allocation26 + $0x6a8] sm:$0xf]
    %v4521 = vld [vmem:[#allocation26 + $0x6ac] sm:$0xff]
    %v4522 = vld [vmem:[#allocation26 + $0x6b4] sm:$0xff]
    %v4523 = vld [vmem:[#allocation26 + $0x6bc] sm:$0xff]
    %v4524 = vld [vmem:[#allocation26 + $0x6c4] sm:$0xf]
    %v4525 = vld [vmem:[#allocation26 + $0x6c8] sm:$0xff]
    %v4526 = vld [vmem:[#allocation26 + $0x6d0] sm:$0xff]
    %v4527 = vld [vmem:[#allocation26 + $0x6d8] sm:$0xff]
    %v4528 = vld [vmem:[#allocation26 + $0x6e0] sm:$0xf]
    %v4529 = vld [vmem:[#allocation26 + $0x6e4] sm:$0xff]
    %v4530 = vld [vmem:[#allocation26 + $0x6ec] sm:$0xff]
    %v4531 = vld [vmem:[#allocation26 + $0x6f4] sm:$0xff]
    %v4532 = vld [vmem:[#allocation26 + $0x6fc] sm:$0xf]
    %v4533 = vld [vmem:[#allocation26 + $0x700] sm:$0xff]
    %v4534 = vld [vmem:[#allocation26 + $0x708] sm:$0xff]
    %v4535 = vld [vmem:[#allocation26 + $0x710] sm:$0xff]
    %v4536 = vld [vmem:[#allocation26 + $0x718] sm:$0xf]
    %v4537 = vld [vmem:[#allocation26 + $0x71c] sm:$0xff]
    %v4538 = vld [vmem:[#allocation26 + $0x724] sm:$0xff]
    %v4539 = vld [vmem:[#allocation26 + $0x72c] sm:$0xff]
    %v4540 = vld [vmem:[#allocation26 + $0x734] sm:$0xf]
    %v4541 = vld [vmem:[#allocation26 + $0x738] sm:$0xff]
    %v4542 = vld [vmem:[#allocation26 + $0x740] sm:$0xff]
    %v4543 = vld [vmem:[#allocation26 + $0x748] sm:$0xff]
    %v4544 = vld [vmem:[#allocation26 + $0x750] sm:$0xf]
    %v4545 = vld [vmem:[#allocation26 + $0x754] sm:$0xff]
    %v4546 = vld [vmem:[#allocation26 + $0x75c] sm:$0xff]
    %v4547 = vld [vmem:[#allocation26 + $0x764] sm:$0xff]
    %v4548 = vld [vmem:[#allocation26 + $0x76c] sm:$0xf]
    %v4549 = vld [vmem:[#allocation26 + $0x770] sm:$0xff]
    %v4550 = vld [vmem:[#allocation26 + $0x778] sm:$0xff]
    %v4551 = vld [vmem:[#allocation26 + $0x780] sm:$0xff]
    %v4552 = vld [vmem:[#allocation26 + $0x788] sm:$0xf]
    %v4553 = vld [vmem:[#allocation26 + $0x78c] sm:$0xff]
    %v4554 = vld [vmem:[#allocation26 + $0x794] sm:$0xff]
    %v4555 = vld [vmem:[#allocation26 + $0x79c] sm:$0xff]
    %v4556 = vld [vmem:[#allocation26 + $0x7a4] sm:$0xf]
    %v4557 = vld [vmem:[#allocation26 + $0x7a8] sm:$0xff]
    %v4558 = vld [vmem:[#allocation26 + $0x7b0] sm:$0xff]
    %v4559 = vld [vmem:[#allocation26 + $0x7b8] sm:$0xff]
    %v4560 = vld [vmem:[#allocation26 + $0x7c0] sm:$0xf]
    %v4561 = vld [vmem:[#allocation26 + $0x7c4] sm:$0xff]
    %v4562 = vld [vmem:[#allocation26 + $0x7cc] sm:$0xff]
    %v4563 = vld [vmem:[#allocation26 + $0x7d4] sm:$0xff]
    %v4564 = vld [vmem:[#allocation26 + $0x7dc] sm:$0xf]
    %v4565 = vld [vmem:[#allocation26 + $0x7e0] sm:$0xff]
    %v4566 = vld [vmem:[#allocation26 + $0x7e8] sm:$0xff]
    %v4567 = vld [vmem:[#allocation26 + $0x7f0] sm:$0xff]
    %v4568 = vld [vmem:[#allocation26 + $0x7f8] sm:$0xf]
    %v4569 = vld [vmem:[#allocation26 + $0x7fc] sm:$0xff]
    %v4570 = vld [vmem:[#allocation26 + $0x804] sm:$0xff]
    %v4571 = vld [vmem:[#allocation26 + $0x80c] sm:$0xff]
    %v4572 = vld [vmem:[#allocation26 + $0x814] sm:$0xf]
    %v4573 = vld [vmem:[#allocation26 + $0x818] sm:$0xff]
    %v4574 = vld [vmem:[#allocation26 + $0x820] sm:$0xff]
    %v4575 = vld [vmem:[#allocation26 + $0x828] sm:$0xff]
    %v4576 = vld [vmem:[#allocation26 + $0x830] sm:$0xf]
    %v4577 = vld [vmem:[#allocation26 + $0x834] sm:$0xff]
    %v4578 = vld [vmem:[#allocation26 + $0x83c] sm:$0xff]
    %v4579 = vld [vmem:[#allocation26 + $0x844] sm:$0xff]
    %v4580 = vld [vmem:[#allocation26 + $0x84c] sm:$0xf]
    %v4581 = vld [vmem:[#allocation26 + $0x850] sm:$0xff]
    %v4582 = vld [vmem:[#allocation26 + $0x858] sm:$0xff]
    %v4583 = vld [vmem:[#allocation26 + $0x860] sm:$0xff]
    %v4584 = vld [vmem:[#allocation26 + $0x868] sm:$0xf]
    %v4585 = vld [vmem:[#allocation26 + $0x86c] sm:$0xff]
    %v4586 = vld [vmem:[#allocation26 + $0x874] sm:$0xff]
    %v4587 = vld [vmem:[#allocation26 + $0x87c] sm:$0xff]
    %v4588 = vld [vmem:[#allocation26 + $0x884] sm:$0xf]
    %v4589 = vld [vmem:[#allocation26 + $0x888] sm:$0xff]
    %v4590 = vld [vmem:[#allocation26 + $0x890] sm:$0xff]
    %v4591 = vld [vmem:[#allocation26 + $0x898] sm:$0xff]
    %v4592 = vld [vmem:[#allocation26 + $0x8a0] sm:$0xf]
    %v4593 = vld [vmem:[#allocation26 + $0x8a4] sm:$0xff]
    %v4594 = vld [vmem:[#allocation26 + $0x8ac] sm:$0xff]
    %v4595 = vld [vmem:[#allocation26 + $0x8b4] sm:$0xff]
    %v4596 = vld [vmem:[#allocation26 + $0x8bc] sm:$0xf]
    %v4597 = vld [vmem:[#allocation26 + $0x8c0] sm:$0xff]
    %v4598 = vld [vmem:[#allocation26 + $0x8c8] sm:$0xff]
    %v4599 = vld [vmem:[#allocation26 + $0x8d0] sm:$0xff]
    %v4600 = vld [vmem:[#allocation26 + $0x8d8] sm:$0xf]
    %v4601 = vld [vmem:[#allocation26 + $0x8dc] sm:$0xff]
    %v4602 = vld [vmem:[#allocation26 + $0x8e4] sm:$0xff]
    %v4603 = vld [vmem:[#allocation26 + $0x8ec] sm:$0xff]
    %v4604 = vld [vmem:[#allocation26 + $0x8f4] sm:$0xf]
    %v4605 = vld [vmem:[#allocation26 + $0x8f8] sm:$0xff]
    %v4606 = vld [vmem:[#allocation26 + $0x900] sm:$0xff]
    %v4607 = vld [vmem:[#allocation26 + $0x908] sm:$0xff]
    %v4608 = vld [vmem:[#allocation26 + $0x910] sm:$0xf]
    %v4609 = vld [vmem:[#allocation26 + $0x914] sm:$0xff]
    %v4610 = vld [vmem:[#allocation26 + $0x91c] sm:$0xff]
    %v4611 = vld [vmem:[#allocation26 + $0x924] sm:$0xff]
    %v4612 = vld [vmem:[#allocation26 + $0x92c] sm:$0xf]
    %v4613 = vld [vmem:[#allocation26 + $0x930] sm:$0xff]
    %v4614 = vld [vmem:[#allocation26 + $0x938] sm:$0xff]
    %v4615 = vld [vmem:[#allocation26 + $0x940] sm:$0xff]
    %v4616 = vld [vmem:[#allocation26 + $0x948] sm:$0xf]
    %v4617 = vld [vmem:[#allocation26 + $0x94c] sm:$0xff]
    %v4618 = vld [vmem:[#allocation26 + $0x954] sm:$0xff]
    %v4619 = vld [vmem:[#allocation26 + $0x95c] sm:$0xff]
    %v4620 = vld [vmem:[#allocation26 + $0x964] sm:$0xf]
    %v4621 = vld [vmem:[#allocation26 + $0x968] sm:$0xff]
    %v4622 = vld [vmem:[#allocation26 + $0x970] sm:$0xff]
    %v4623 = vld [vmem:[#allocation26 + $0x978] sm:$0xff]
    %v4624 = vld [vmem:[#allocation26 + $0x980] sm:$0xf]
    %v4625 = vld [vmem:[#allocation26 + $0x984] sm:$0xff]
    %v4626 = vld [vmem:[#allocation26 + $0x98c] sm:$0xff]
    %v4627 = vld [vmem:[#allocation26 + $0x994] sm:$0xff]
    %v4628 = vld [vmem:[#allocation26 + $0x99c] sm:$0xf]
    %v4629 = vld [vmem:[#allocation26 + $0x9a0] sm:$0xff]
    %v4630 = vld [vmem:[#allocation26 + $0x9a8] sm:$0xff]
    %v4631 = vld [vmem:[#allocation26 + $0x9b0] sm:$0xff]
    %v4632 = vld [vmem:[#allocation26 + $0x9b8] sm:$0xf]
    %v4633 = vld [vmem:[#allocation26 + $0x9bc] sm:$0xff]
    %v4634 = vld [vmem:[#allocation26 + $0x9c4] sm:$0xff]
    %v4635 = vld [vmem:[#allocation26 + $0x9cc] sm:$0xff]
    %v4636 = vld [vmem:[#allocation26 + $0x9d4] sm:$0xf]
    %v4637 = vld [vmem:[#allocation26 + $0x9d8] sm:$0xff]
    %v4638 = vld [vmem:[#allocation26 + $0x9e0] sm:$0xff]
    %v4639 = vld [vmem:[#allocation26 + $0x9e8] sm:$0xff]
    %v4640 = vld [vmem:[#allocation26 + $0x9f0] sm:$0xf]
    %v4641 = vld [vmem:[#allocation26 + $0x9f4] sm:$0xff]
    %v4642 = vld [vmem:[#allocation26 + $0x9fc] sm:$0xff]
    %v4643 = vld [vmem:[#allocation26 + $0xa04] sm:$0xff]
    %v4644 = vld [vmem:[#allocation26 + $0xa0c] sm:$0xf]
    %v4645 = vld [vmem:[#allocation26 + $0xa10] sm:$0xff]
    %v4646 = vld [vmem:[#allocation26 + $0xa18] sm:$0xff]
    %v4647 = vld [vmem:[#allocation26 + $0xa20] sm:$0xff]
    %v4648 = vld [vmem:[#allocation26 + $0xa28] sm:$0xf]
    %v4649 = vld [vmem:[#allocation26 + $0xa2c] sm:$0xff]
    %v4650 = vld [vmem:[#allocation26 + $0xa34] sm:$0xff]
    %v4651 = vld [vmem:[#allocation26 + $0xa3c] sm:$0xff]
    %v4652 = vld [vmem:[#allocation26 + $0xa44] sm:$0xf]
    %v4653 = vld [vmem:[#allocation26 + $0xa48] sm:$0xff]
    %v4654 = vld [vmem:[#allocation26 + $0xa50] sm:$0xff]
    %v4655 = vld [vmem:[#allocation26 + $0xa58] sm:$0xff]
    %v4656 = vld [vmem:[#allocation26 + $0xa60] sm:$0xf]
    %v4657 = vld [vmem:[#allocation26 + $0xa64] sm:$0xff]
    %v4658 = vld [vmem:[#allocation26 + $0xa6c] sm:$0xff]
    %v4659 = vld [vmem:[#allocation26 + $0xa74] sm:$0xff]
    %v4660 = vld [vmem:[#allocation26 + $0xa7c] sm:$0xf]
    %v4661 = vld [vmem:[#allocation26 + $0xa80] sm:$0xff]
    %v4662 = vld [vmem:[#allocation26 + $0xa88] sm:$0xff]
    %v4663 = vld [vmem:[#allocation26 + $0xa90] sm:$0xff]
    %v4664 = vld [vmem:[#allocation26 + $0xa98] sm:$0xf]
    %v4665 = vld [vmem:[#allocation26 + $0xa9c] sm:$0xff]
    %v4666 = vld [vmem:[#allocation26 + $0xaa4] sm:$0xff]
    %v4667 = vld [vmem:[#allocation26 + $0xaac] sm:$0xff]
    %v4668 = vld [vmem:[#allocation26 + $0xab4] sm:$0xf]
    %v4669 = vld [vmem:[#allocation26 + $0xab8] sm:$0xff]
    %v4670 = vld [vmem:[#allocation26 + $0xac0] sm:$0xff]
    %v4671 = vld [vmem:[#allocation26 + $0xac8] sm:$0xff]
    %v4672 = vld [vmem:[#allocation26 + $0xad0] sm:$0xf]
    %v4673 = vld [vmem:[#allocation26 + $0xad4] sm:$0xff]
    %v4674 = vld [vmem:[#allocation26 + $0xadc] sm:$0xff]
    %v4675 = vld [vmem:[#allocation26 + $0xae4] sm:$0xff]
    %v4676 = vld [vmem:[#allocation26 + $0xaec] sm:$0xf]
    %v4677 = vld [vmem:[#allocation26 + $0xaf0] sm:$0xff]
    %v4678 = vld [vmem:[#allocation26 + $0xaf8] sm:$0xff]
    %v4679 = vld [vmem:[#allocation26 + $0xb00] sm:$0xff]
    %v4680 = vld [vmem:[#allocation26 + $0xb08] sm:$0xf]
    %v4681 = vld [vmem:[#allocation26 + $0xb0c] sm:$0xff]
    %v4682 = vld [vmem:[#allocation26 + $0xb14] sm:$0xff]
    %v4683 = vld [vmem:[#allocation26 + $0xb1c] sm:$0xff]
    %v4684 = vld [vmem:[#allocation26 + $0xb24] sm:$0xf]
    %v4685 = vld [vmem:[#allocation26 + $0xb28] sm:$0xff]
    %v4686 = vld [vmem:[#allocation26 + $0xb30] sm:$0xff]
    %v4687 = vld [vmem:[#allocation26 + $0xb38] sm:$0xff]
    %v4688 = vld [vmem:[#allocation26 + $0xb40] sm:$0xf]
    %v4689 = vld [vmem:[#allocation26 + $0xb44] sm:$0xff]
    %v4690 = vld [vmem:[#allocation26 + $0xb4c] sm:$0xff]
    %v4691 = vld [vmem:[#allocation26 + $0xb54] sm:$0xff]
    %v4692 = vld [vmem:[#allocation26 + $0xb5c] sm:$0xf]
    %v4693 = vld [vmem:[#allocation26 + $0xb60] sm:$0xff]
    %v4694 = vld [vmem:[#allocation26 + $0xb68] sm:$0xff]
    %v4695 = vld [vmem:[#allocation26 + $0xb70] sm:$0xff]
    %v4696 = vld [vmem:[#allocation26 + $0xb78] sm:$0xf]
    %v4697 = vld [vmem:[#allocation26 + $0xb7c] sm:$0xff]
    %v4698 = vld [vmem:[#allocation26 + $0xb84] sm:$0xff]
    %v4699 = vld [vmem:[#allocation26 + $0xb8c] sm:$0xff]
    %v4700 = vld [vmem:[#allocation26 + $0xb94] sm:$0xf]
    %v4701 = vld [vmem:[#allocation26 + $0xb98] sm:$0xff]
    %v4702 = vld [vmem:[#allocation26 + $0xba0] sm:$0xff]
    %v4703 = vld [vmem:[#allocation26 + $0xba8] sm:$0xff]
    %v4704 = vld [vmem:[#allocation26 + $0xbb0] sm:$0xf]
    %v4705 = vld [vmem:[#allocation26 + $0xbb4] sm:$0xff]
    %v4706 = vld [vmem:[#allocation26 + $0xbbc] sm:$0xff]
    %v4707 = vld [vmem:[#allocation26 + $0xbc4] sm:$0xff]
    %v4708 = vld [vmem:[#allocation26 + $0xbcc] sm:$0xf]
    %v4709 = vld [vmem:[#allocation26 + $0xbd0] sm:$0xff]
    %v4710 = vld [vmem:[#allocation26 + $0xbd8] sm:$0xff]
    %v4711 = vld [vmem:[#allocation26 + $0xbe0] sm:$0xff]
    %v4712 = vld [vmem:[#allocation26 + $0xbe8] sm:$0xf]
    %v4713 = vld [vmem:[#allocation26 + $0xbec] sm:$0xff]
    %v4714 = vld [vmem:[#allocation26 + $0xbf4] sm:$0xff]
    %v4715 = vld [vmem:[#allocation26 + $0xbfc] sm:$0xff]
    %v4716 = vld [vmem:[#allocation26 + $0xc04] sm:$0xf]
    %v4717 = vld [vmem:[#allocation26 + $0xc08] sm:$0xff]
    %v4718 = vld [vmem:[#allocation26 + $0xc10] sm:$0xff]
    %v4719 = vld [vmem:[#allocation26 + $0xc18] sm:$0xff]
    %v4720 = vld [vmem:[#allocation26 + $0xc20] sm:$0xf]
    %v4721 = vld [vmem:[#allocation26 + $0xc24] sm:$0xff]
    %v4722 = vld [vmem:[#allocation26 + $0xc2c] sm:$0xff]
    %v4723 = vld [vmem:[#allocation26 + $0xc34] sm:$0xff]
    %v4724 = vld [vmem:[#allocation26 + $0xc3c] sm:$0xf]
    %v4725 = vld [vmem:[#allocation26 + $0xc40] sm:$0xff]
    %v4726 = vld [vmem:[#allocation26 + $0xc48] sm:$0xff]
    %v4727 = vld [vmem:[#allocation26 + $0xc50] sm:$0xff]
    %v4728 = vld [vmem:[#allocation26 + $0xc58] sm:$0xf]
    %v4729 = vld [vmem:[#allocation26 + $0xc5c] sm:$0xff]
    %v4730 = vld [vmem:[#allocation26 + $0xc64] sm:$0xff]
    %v4731 = vld [vmem:[#allocation26 + $0xc6c] sm:$0xff]
    %v4732 = vld [vmem:[#allocation26 + $0xc74] sm:$0xf]
    %v4733 = vld [vmem:[#allocation26 + $0xc78] sm:$0xff]
    %v4734 = vld [vmem:[#allocation26 + $0xc80] sm:$0xff]
    %v4735 = vld [vmem:[#allocation26 + $0xc88] sm:$0xff]
    %v4736 = vld [vmem:[#allocation26 + $0xc90] sm:$0xf]
    %v4737 = vld [vmem:[#allocation26 + $0xc94] sm:$0xff]
    %v4738 = vld [vmem:[#allocation26 + $0xc9c] sm:$0xff]
    %v4739 = vld [vmem:[#allocation26 + $0xca4] sm:$0xff]
    %v4740 = vld [vmem:[#allocation26 + $0xcac] sm:$0xf]
    %v4741 = vld [vmem:[#allocation26 + $0xcb0] sm:$0xff]
    %v4742 = vld [vmem:[#allocation26 + $0xcb8] sm:$0xff]
    %v4743 = vld [vmem:[#allocation26 + $0xcc0] sm:$0xff]
    %v4744 = vld [vmem:[#allocation26 + $0xcc8] sm:$0xf]
    %v4745 = vld [vmem:[#allocation26 + $0xccc] sm:$0xff]
    %v4746 = vld [vmem:[#allocation26 + $0xcd4] sm:$0xff]
    %v4747 = vld [vmem:[#allocation26 + $0xcdc] sm:$0xff]
    %v4748 = vld [vmem:[#allocation26 + $0xce4] sm:$0xf]
    %v4749 = vld [vmem:[#allocation26 + $0xce8] sm:$0xff]
    %v4750 = vld [vmem:[#allocation26 + $0xcf0] sm:$0xff]
    %v4751 = vld [vmem:[#allocation26 + $0xcf8] sm:$0xff]
    %v4752 = vld [vmem:[#allocation26 + $0xd00] sm:$0xf]
    %v4753 = vld [vmem:[#allocation26 + $0xd04] sm:$0xff]
    %v4754 = vld [vmem:[#allocation26 + $0xd0c] sm:$0xff]
    %v4755 = vld [vmem:[#allocation26 + $0xd14] sm:$0xff]
    %v4756 = vld [vmem:[#allocation26 + $0xd1c] sm:$0xf]
    %v4757 = vld [vmem:[#allocation26 + $0xd20] sm:$0xff]
    %v4758 = vld [vmem:[#allocation26 + $0xd28] sm:$0xff]
    %v4759 = vld [vmem:[#allocation26 + $0xd30] sm:$0xff]
    %v4760 = vld [vmem:[#allocation26 + $0xd38] sm:$0xf]
    %v4761 = vld [vmem:[#allocation26 + $0xd3c] sm:$0xff]
    %v4762 = vld [vmem:[#allocation26 + $0xd44] sm:$0xff]
    %v4763 = vld [vmem:[#allocation26 + $0xd4c] sm:$0xff]
    %v4764 = vld [vmem:[#allocation26 + $0xd54] sm:$0xf]
    %v4765 = vld [vmem:[#allocation26 + $0xd58] sm:$0xff]
    %v4766 = vld [vmem:[#allocation26 + $0xd60] sm:$0xff]
    %v4767 = vld [vmem:[#allocation26 + $0xd68] sm:$0xff]
    %v4768 = vld [vmem:[#allocation26 + $0xd70] sm:$0xf]
    %v4769 = vld [vmem:[#allocation26 + $0xd74] sm:$0xff]
    %v4770 = vld [vmem:[#allocation26 + $0xd7c] sm:$0xff]
    %v4771 = vld [vmem:[#allocation26 + $0xd84] sm:$0xff]
    %v4772 = vld [vmem:[#allocation26 + $0xd8c] sm:$0xf]
    %v4773 = vld [vmem:[#allocation26 + $0xd90] sm:$0xff]
    %v4774 = vld [vmem:[#allocation26 + $0xd98] sm:$0xff]
    %v4775 = vld [vmem:[#allocation26 + $0xda0] sm:$0xff]
    %v4776 = vld [vmem:[#allocation26 + $0xda8] sm:$0xf]
    %v4777 = vld [vmem:[#allocation26 + $0xdac] sm:$0xff]
    %v4778 = vld [vmem:[#allocation26 + $0xdb4] sm:$0xff]
    %v4779 = vld [vmem:[#allocation26 + $0xdbc] sm:$0xff]
    %v4780 = vld [vmem:[#allocation26 + $0xdc4] sm:$0xf]
    %v4781 = vld [vmem:[#allocation26 + $0xdc8] sm:$0xff]
    %v4782 = vld [vmem:[#allocation26 + $0xdd0] sm:$0xff]
    %v4783 = vld [vmem:[#allocation26 + $0xdd8] sm:$0xff]
    %v4784 = vld [vmem:[#allocation26 + $0xde0] sm:$0xf]
    %v4785 = vld [vmem:[#allocation26 + $0xde4] sm:$0xff]
    %v4786 = vld [vmem:[#allocation26 + $0xdec] sm:$0xff]
    %v4787 = vld [vmem:[#allocation26 + $0xdf4] sm:$0xff]
    %v4788 = vld [vmem:[#allocation26 + $0xdfc] sm:$0xf]
    %v4789 = vld [vmem:[#allocation28] sm:$0xff]
    %v4791 = vperm.slane %v4789, 0
    %v4792 = vperm.slane %v4789, 1
    %v4793 = vperm.slane %v4789, 2
    %v4794 = vperm.slane %v4789, 3
    %v4795 = vperm.slane %v4789, 4
    %v4796 = vperm.slane %v4789, 5
    %v4797 = vperm.slane %v4789, 6
    %v5317 = vunpack.c.l.b16 %v4277
    %v5318 = vunpack.c.h.b16 %v4277
    %v5319 = vunpack.c.l.b16 %v4278
    %v5320 = vunpack.c.h.b16 %v4278
    %v5321 = vunpack.c.l.b16 %v4279
    %v5322 = vunpack.c.h.b16 %v4279
    %v5323 = vunpack.c.l.b16 %v4280
    %v5324 = vunpack.c.l.b16 %v4281
    %v5325 = vunpack.c.h.b16 %v4281
    %v5326 = vunpack.c.l.b16 %v4282
    %v5327 = vunpack.c.h.b16 %v4282
    %v5328 = vunpack.c.l.b16 %v4283
    %v5329 = vunpack.c.h.b16 %v4283
    %v5330 = vunpack.c.l.b16 %v4284
    %v5331 = vunpack.c.l.b16 %v4285
    %v5332 = vunpack.c.h.b16 %v4285
    %v5333 = vunpack.c.l.b16 %v4286
    %v5334 = vunpack.c.h.b16 %v4286
    %v5335 = vunpack.c.l.b16 %v4287
    %v5336 = vunpack.c.h.b16 %v4287
    %v5337 = vunpack.c.l.b16 %v4288
    %v5338 = vunpack.c.l.b16 %v4289
    %v5339 = vunpack.c.h.b16 %v4289
    %v5340 = vunpack.c.l.b16 %v4290
    %v5341 = vunpack.c.h.b16 %v4290
    %v5342 = vunpack.c.l.b16 %v4291
    %v5343 = vunpack.c.h.b16 %v4291
    %v5344 = vunpack.c.l.b16 %v4292
    %v5345 = vunpack.c.l.b16 %v4293
    %v5346 = vunpack.c.h.b16 %v4293
    %v5347 = vunpack.c.l.b16 %v4294
    %v5348 = vunpack.c.h.b16 %v4294
    %v5349 = vunpack.c.l.b16 %v4295
    %v5350 = vunpack.c.h.b16 %v4295
    %v5351 = vunpack.c.l.b16 %v4296
    %v5352 = vunpack.c.l.b16 %v4297
    %v5353 = vunpack.c.h.b16 %v4297
    %v5354 = vunpack.c.l.b16 %v4298
    %v5355 = vunpack.c.h.b16 %v4298
    %v5356 = vunpack.c.l.b16 %v4299
    %v5357 = vunpack.c.h.b16 %v4299
    %v5358 = vunpack.c.l.b16 %v4300
    %v5359 = vunpack.c.l.b16 %v4301
    %v5360 = vunpack.c.h.b16 %v4301
    %v5361 = vunpack.c.l.b16 %v4302
    %v5362 = vunpack.c.h.b16 %v4302
    %v5363 = vunpack.c.l.b16 %v4303
    %v5364 = vunpack.c.h.b16 %v4303
    %v5365 = vunpack.c.l.b16 %v4304
    %v5366 = vunpack.c.l.b16 %v4305
    %v5367 = vunpack.c.h.b16 %v4305
    %v5368 = vunpack.c.l.b16 %v4306
    %v5369 = vunpack.c.h.b16 %v4306
    %v5370 = vunpack.c.l.b16 %v4307
    %v5371 = vunpack.c.h.b16 %v4307
    %v5372 = vunpack.c.l.b16 %v4308
    %v5373 = vunpack.c.l.b16 %v4309
    %v5374 = vunpack.c.h.b16 %v4309
    %v5375 = vunpack.c.l.b16 %v4310
    %v5376 = vunpack.c.h.b16 %v4310
    %v5377 = vunpack.c.l.b16 %v4311
    %v5378 = vunpack.c.h.b16 %v4311
    %v5379 = vunpack.c.l.b16 %v4312
    %v5380 = vunpack.c.l.b16 %v4313
    %v5381 = vunpack.c.h.b16 %v4313
    %v5382 = vunpack.c.l.b16 %v4314
    %v5383 = vunpack.c.h.b16 %v4314
    %v5384 = vunpack.c.l.b16 %v4315
    %v5385 = vunpack.c.h.b16 %v4315
    %v5386 = vunpack.c.l.b16 %v4316
    %v5387 = vunpack.c.l.b16 %v4317
    %v5388 = vunpack.c.h.b16 %v4317
    %v5389 = vunpack.c.l.b16 %v4318
    %v5390 = vunpack.c.h.b16 %v4318
    %v5391 = vunpack.c.l.b16 %v4319
    %v5392 = vunpack.c.h.b16 %v4319
    %v5393 = vunpack.c.l.b16 %v4320
    %v5394 = vunpack.c.l.b16 %v4321
    %v5395 = vunpack.c.h.b16 %v4321
    %v5396 = vunpack.c.l.b16 %v4322
    %v5397 = vunpack.c.h.b16 %v4322
    %v5398 = vunpack.c.l.b16 %v4323
    %v5399 = vunpack.c.h.b16 %v4323
    %v5400 = vunpack.c.l.b16 %v4324
    %v5401 = vunpack.c.l.b16 %v4325
    %v5402 = vunpack.c.h.b16 %v4325
    %v5403 = vunpack.c.l.b16 %v4326
    %v5404 = vunpack.c.h.b16 %v4326
    %v5405 = vunpack.c.l.b16 %v4327
    %v5406 = vunpack.c.h.b16 %v4327
    %v5407 = vunpack.c.l.b16 %v4328
    %v5408 = vunpack.c.l.b16 %v4329
    %v5409 = vunpack.c.h.b16 %v4329
    %v5410 = vunpack.c.l.b16 %v4330
    %v5411 = vunpack.c.h.b16 %v4330
    %v5412 = vunpack.c.l.b16 %v4331
    %v5413 = vunpack.c.h.b16 %v4331
    %v5414 = vunpack.c.l.b16 %v4332
    %v5415 = vunpack.c.l.b16 %v4333
    %v5416 = vunpack.c.h.b16 %v4333
    %v5417 = vunpack.c.l.b16 %v4334
    %v5418 = vunpack.c.h.b16 %v4334
    %v5419 = vunpack.c.l.b16 %v4335
    %v5420 = vunpack.c.h.b16 %v4335
    %v5421 = vunpack.c.l.b16 %v4336
    %v5422 = vunpack.c.l.b16 %v4337
    %v5423 = vunpack.c.h.b16 %v4337
    %v5424 = vunpack.c.l.b16 %v4338
    %v5425 = vunpack.c.h.b16 %v4338
    %v5426 = vunpack.c.l.b16 %v4339
    %v5427 = vunpack.c.h.b16 %v4339
    %v5428 = vunpack.c.l.b16 %v4340
    %v5429 = vunpack.c.l.b16 %v4341
    %v5430 = vunpack.c.h.b16 %v4341
    %v5431 = vunpack.c.l.b16 %v4342
    %v5432 = vunpack.c.h.b16 %v4342
    %v5433 = vunpack.c.l.b16 %v4343
    %v5434 = vunpack.c.h.b16 %v4343
    %v5435 = vunpack.c.l.b16 %v4344
    %v5436 = vunpack.c.l.b16 %v4345
    %v5437 = vunpack.c.h.b16 %v4345
    %v5438 = vunpack.c.l.b16 %v4346
    %v5439 = vunpack.c.h.b16 %v4346
    %v5440 = vunpack.c.l.b16 %v4347
    %v5441 = vunpack.c.h.b16 %v4347
    %v5442 = vunpack.c.l.b16 %v4348
    %v5443 = vunpack.c.l.b16 %v4349
    %v5444 = vunpack.c.h.b16 %v4349
    %v5445 = vunpack.c.l.b16 %v4350
    %v5446 = vunpack.c.h.b16 %v4350
    %v5447 = vunpack.c.l.b16 %v4351
    %v5448 = vunpack.c.h.b16 %v4351
    %v5449 = vunpack.c.l.b16 %v4352
    %v5450 = vunpack.c.l.b16 %v4353
    %v5451 = vunpack.c.h.b16 %v4353
    %v5452 = vunpack.c.l.b16 %v4354
    %v5453 = vunpack.c.h.b16 %v4354
    %v5454 = vunpack.c.l.b16 %v4355
    %v5455 = vunpack.c.h.b16 %v4355
    %v5456 = vunpack.c.l.b16 %v4356
    %v5457 = vunpack.c.l.b16 %v4357
    %v5458 = vunpack.c.h.b16 %v4357
    %v5459 = vunpack.c.l.b16 %v4358
    %v5460 = vunpack.c.h.b16 %v4358
    %v5461 = vunpack.c.l.b16 %v4359
    %v5462 = vunpack.c.h.b16 %v4359
    %v5463 = vunpack.c.l.b16 %v4360
    %v5464 = vunpack.c.l.b16 %v4361
    %v5465 = vunpack.c.h.b16 %v4361
    %v5466 = vunpack.c.l.b16 %v4362
    %v5467 = vunpack.c.h.b16 %v4362
    %v5468 = vunpack.c.l.b16 %v4363
    %v5469 = vunpack.c.h.b16 %v4363
    %v5470 = vunpack.c.l.b16 %v4364
    %v5471 = vunpack.c.l.b16 %v4365
    %v5472 = vunpack.c.h.b16 %v4365
    %v5473 = vunpack.c.l.b16 %v4366
    %v5474 = vunpack.c.h.b16 %v4366
    %v5475 = vunpack.c.l.b16 %v4367
    %v5476 = vunpack.c.h.b16 %v4367
    %v5477 = vunpack.c.l.b16 %v4368
    %v5478 = vunpack.c.l.b16 %v4369
    %v5479 = vunpack.c.h.b16 %v4369
    %v5480 = vunpack.c.l.b16 %v4370
    %v5481 = vunpack.c.h.b16 %v4370
    %v5482 = vunpack.c.l.b16 %v4371
    %v5483 = vunpack.c.h.b16 %v4371
    %v5484 = vunpack.c.l.b16 %v4372
    %v5485 = vunpack.c.l.b16 %v4373
    %v5486 = vunpack.c.h.b16 %v4373
    %v5487 = vunpack.c.l.b16 %v4374
    %v5488 = vunpack.c.h.b16 %v4374
    %v5489 = vunpack.c.l.b16 %v4375
    %v5490 = vunpack.c.h.b16 %v4375
    %v5491 = vunpack.c.l.b16 %v4376
    %v5492 = vunpack.c.l.b16 %v4377
    %v5493 = vunpack.c.h.b16 %v4377
    %v5494 = vunpack.c.l.b16 %v4378
    %v5495 = vunpack.c.h.b16 %v4378
    %v5496 = vunpack.c.l.b16 %v4379
    %v5497 = vunpack.c.h.b16 %v4379
    %v5498 = vunpack.c.l.b16 %v4380
    %v5499 = vunpack.c.l.b16 %v4381
    %v5500 = vunpack.c.h.b16 %v4381
    %v5501 = vunpack.c.l.b16 %v4382
    %v5502 = vunpack.c.h.b16 %v4382
    %v5503 = vunpack.c.l.b16 %v4383
    %v5504 = vunpack.c.h.b16 %v4383
    %v5505 = vunpack.c.l.b16 %v4384
    %v5506 = vunpack.c.l.b16 %v4385
    %v5507 = vunpack.c.h.b16 %v4385
    %v5508 = vunpack.c.l.b16 %v4386
    %v5509 = vunpack.c.h.b16 %v4386
    %v5510 = vunpack.c.l.b16 %v4387
    %v5511 = vunpack.c.h.b16 %v4387
    %v5512 = vunpack.c.l.b16 %v4388
    %v5513 = vunpack.c.l.b16 %v4389
    %v5514 = vunpack.c.h.b16 %v4389
    %v5515 = vunpack.c.l.b16 %v4390
    %v5516 = vunpack.c.h.b16 %v4390
    %v5517 = vunpack.c.l.b16 %v4391
    %v5518 = vunpack.c.h.b16 %v4391
    %v5519 = vunpack.c.l.b16 %v4392
    %v5520 = vunpack.c.l.b16 %v4393
    %v5521 = vunpack.c.h.b16 %v4393
    %v5522 = vunpack.c.l.b16 %v4394
    %v5523 = vunpack.c.h.b16 %v4394
    %v5524 = vunpack.c.l.b16 %v4395
    %v5525 = vunpack.c.h.b16 %v4395
    %v5526 = vunpack.c.l.b16 %v4396
    %v5527 = vunpack.c.l.b16 %v4397
    %v5528 = vunpack.c.h.b16 %v4397
    %v5529 = vunpack.c.l.b16 %v4398
    %v5530 = vunpack.c.h.b16 %v4398
    %v5531 = vunpack.c.l.b16 %v4399
    %v5532 = vunpack.c.h.b16 %v4399
    %v5533 = vunpack.c.l.b16 %v4400
    %v5534 = vunpack.c.l.b16 %v4401
    %v5535 = vunpack.c.h.b16 %v4401
    %v5536 = vunpack.c.l.b16 %v4402
    %v5537 = vunpack.c.h.b16 %v4402
    %v5538 = vunpack.c.l.b16 %v4403
    %v5539 = vunpack.c.h.b16 %v4403
    %v5540 = vunpack.c.l.b16 %v4404
    %v5541 = vunpack.c.l.b16 %v4405
    %v5542 = vunpack.c.h.b16 %v4405
    %v5543 = vunpack.c.l.b16 %v4406
    %v5544 = vunpack.c.h.b16 %v4406
    %v5545 = vunpack.c.l.b16 %v4407
    %v5546 = vunpack.c.h.b16 %v4407
    %v5547 = vunpack.c.l.b16 %v4408
    %v5548 = vunpack.c.l.b16 %v4409
    %v5549 = vunpack.c.h.b16 %v4409
    %v5550 = vunpack.c.l.b16 %v4410
    %v5551 = vunpack.c.h.b16 %v4410
    %v5552 = vunpack.c.l.b16 %v4411
    %v5553 = vunpack.c.h.b16 %v4411
    %v5554 = vunpack.c.l.b16 %v4412
    %v5555 = vunpack.c.l.b16 %v4413
    %v5556 = vunpack.c.h.b16 %v4413
    %v5557 = vunpack.c.l.b16 %v4414
    %v5558 = vunpack.c.h.b16 %v4414
    %v5559 = vunpack.c.l.b16 %v4415
    %v5560 = vunpack.c.h.b16 %v4415
    %v5561 = vunpack.c.l.b16 %v4416
    %v5562 = vunpack.c.l.b16 %v4417
    %v5563 = vunpack.c.h.b16 %v4417
    %v5564 = vunpack.c.l.b16 %v4418
    %v5565 = vunpack.c.h.b16 %v4418
    %v5566 = vunpack.c.l.b16 %v4419
    %v5567 = vunpack.c.h.b16 %v4419
    %v5568 = vunpack.c.l.b16 %v4420
    %v5569 = vunpack.c.l.b16 %v4421
    %v5570 = vunpack.c.h.b16 %v4421
    %v5571 = vunpack.c.l.b16 %v4422
    %v5572 = vunpack.c.h.b16 %v4422
    %v5573 = vunpack.c.l.b16 %v4423
    %v5574 = vunpack.c.h.b16 %v4423
    %v5575 = vunpack.c.l.b16 %v4424
    %v5576 = vunpack.c.l.b16 %v4425
    %v5577 = vunpack.c.h.b16 %v4425
    %v5578 = vunpack.c.l.b16 %v4426
    %v5579 = vunpack.c.h.b16 %v4426
    %v5580 = vunpack.c.l.b16 %v4427
    %v5581 = vunpack.c.h.b16 %v4427
    %v5582 = vunpack.c.l.b16 %v4428
    %v5583 = vunpack.c.l.b16 %v4429
    %v5584 = vunpack.c.h.b16 %v4429
    %v5585 = vunpack.c.l.b16 %v4430
    %v5586 = vunpack.c.h.b16 %v4430
    %v5587 = vunpack.c.l.b16 %v4431
    %v5588 = vunpack.c.h.b16 %v4431
    %v5589 = vunpack.c.l.b16 %v4432
    %v5590 = vunpack.c.l.b16 %v4433
    %v5591 = vunpack.c.h.b16 %v4433
    %v5592 = vunpack.c.l.b16 %v4434
    %v5593 = vunpack.c.h.b16 %v4434
    %v5594 = vunpack.c.l.b16 %v4435
    %v5595 = vunpack.c.h.b16 %v4435
    %v5596 = vunpack.c.l.b16 %v4436
    %v5597 = vunpack.c.l.b16 %v4437
    %v5598 = vunpack.c.h.b16 %v4437
    %v5599 = vunpack.c.l.b16 %v4438
    %v5600 = vunpack.c.h.b16 %v4438
    %v5601 = vunpack.c.l.b16 %v4439
    %v5602 = vunpack.c.h.b16 %v4439
    %v5603 = vunpack.c.l.b16 %v4440
    %v5604 = vunpack.c.l.b16 %v4441
    %v5605 = vunpack.c.h.b16 %v4441
    %v5606 = vunpack.c.l.b16 %v4442
    %v5607 = vunpack.c.h.b16 %v4442
    %v5608 = vunpack.c.l.b16 %v4443
    %v5609 = vunpack.c.h.b16 %v4443
    %v5610 = vunpack.c.l.b16 %v4444
    %v5611 = vunpack.c.l.b16 %v4445
    %v5612 = vunpack.c.h.b16 %v4445
    %v5613 = vunpack.c.l.b16 %v4446
    %v5614 = vunpack.c.h.b16 %v4446
    %v5615 = vunpack.c.l.b16 %v4447
    %v5616 = vunpack.c.h.b16 %v4447
    %v5617 = vunpack.c.l.b16 %v4448
    %v5618 = vunpack.c.l.b16 %v4449
    %v5619 = vunpack.c.h.b16 %v4449
    %v5620 = vunpack.c.l.b16 %v4450
    %v5621 = vunpack.c.h.b16 %v4450
    %v5622 = vunpack.c.l.b16 %v4451
    %v5623 = vunpack.c.h.b16 %v4451
    %v5624 = vunpack.c.l.b16 %v4452
    %v5625 = vunpack.c.l.b16 %v4453
    %v5626 = vunpack.c.h.b16 %v4453
    %v5627 = vunpack.c.l.b16 %v4454
    %v5628 = vunpack.c.h.b16 %v4454
    %v5629 = vunpack.c.l.b16 %v4455
    %v5630 = vunpack.c.h.b16 %v4455
    %v5631 = vunpack.c.l.b16 %v4456
    %v5632 = vunpack.c.l.b16 %v4457
    %v5633 = vunpack.c.h.b16 %v4457
    %v5634 = vunpack.c.l.b16 %v4458
    %v5635 = vunpack.c.h.b16 %v4458
    %v5636 = vunpack.c.l.b16 %v4459
    %v5637 = vunpack.c.h.b16 %v4459
    %v5638 = vunpack.c.l.b16 %v4460
    %v5639 = vunpack.c.l.b16 %v4461
    %v5640 = vunpack.c.h.b16 %v4461
    %v5641 = vunpack.c.l.b16 %v4462
    %v5642 = vunpack.c.h.b16 %v4462
    %v5643 = vunpack.c.l.b16 %v4463
    %v5644 = vunpack.c.h.b16 %v4463
    %v5645 = vunpack.c.l.b16 %v4464
    %v5646 = vunpack.c.l.b16 %v4465
    %v5647 = vunpack.c.h.b16 %v4465
    %v5648 = vunpack.c.l.b16 %v4466
    %v5649 = vunpack.c.h.b16 %v4466
    %v5650 = vunpack.c.l.b16 %v4467
    %v5651 = vunpack.c.h.b16 %v4467
    %v5652 = vunpack.c.l.b16 %v4468
    %v5653 = vunpack.c.l.b16 %v4469
    %v5654 = vunpack.c.h.b16 %v4469
    %v5655 = vunpack.c.l.b16 %v4470
    %v5656 = vunpack.c.h.b16 %v4470
    %v5657 = vunpack.c.l.b16 %v4471
    %v5658 = vunpack.c.h.b16 %v4471
    %v5659 = vunpack.c.l.b16 %v4472
    %v5660 = vunpack.c.l.b16 %v4473
    %v5661 = vunpack.c.h.b16 %v4473
    %v5662 = vunpack.c.l.b16 %v4474
    %v5663 = vunpack.c.h.b16 %v4474
    %v5664 = vunpack.c.l.b16 %v4475
    %v5665 = vunpack.c.h.b16 %v4475
    %v5666 = vunpack.c.l.b16 %v4476
    %v5667 = vunpack.c.l.b16 %v4477
    %v5668 = vunpack.c.h.b16 %v4477
    %v5669 = vunpack.c.l.b16 %v4478
    %v5670 = vunpack.c.h.b16 %v4478
    %v5671 = vunpack.c.l.b16 %v4479
    %v5672 = vunpack.c.h.b16 %v4479
    %v5673 = vunpack.c.l.b16 %v4480
    %v5674 = vunpack.c.l.b16 %v4481
    %v5675 = vunpack.c.h.b16 %v4481
    %v5676 = vunpack.c.l.b16 %v4482
    %v5677 = vunpack.c.h.b16 %v4482
    %v5678 = vunpack.c.l.b16 %v4483
    %v5679 = vunpack.c.h.b16 %v4483
    %v5680 = vunpack.c.l.b16 %v4484
    %v5681 = vunpack.c.l.b16 %v4485
    %v5682 = vunpack.c.h.b16 %v4485
    %v5683 = vunpack.c.l.b16 %v4486
    %v5684 = vunpack.c.h.b16 %v4486
    %v5685 = vunpack.c.l.b16 %v4487
    %v5686 = vunpack.c.h.b16 %v4487
    %v5687 = vunpack.c.l.b16 %v4488
    %v5688 = vunpack.c.l.b16 %v4489
    %v5689 = vunpack.c.h.b16 %v4489
    %v5690 = vunpack.c.l.b16 %v4490
    %v5691 = vunpack.c.h.b16 %v4490
    %v5692 = vunpack.c.l.b16 %v4491
    %v5693 = vunpack.c.h.b16 %v4491
    %v5694 = vunpack.c.l.b16 %v4492
    %v5695 = vunpack.c.l.b16 %v4493
    %v5696 = vunpack.c.h.b16 %v4493
    %v5697 = vunpack.c.l.b16 %v4494
    %v5698 = vunpack.c.h.b16 %v4494
    %v5699 = vunpack.c.l.b16 %v4495
    %v5700 = vunpack.c.h.b16 %v4495
    %v5701 = vunpack.c.l.b16 %v4496
    %v5702 = vunpack.c.l.b16 %v4497
    %v5703 = vunpack.c.h.b16 %v4497
    %v5704 = vunpack.c.l.b16 %v4498
    %v5705 = vunpack.c.h.b16 %v4498
    %v5706 = vunpack.c.l.b16 %v4499
    %v5707 = vunpack.c.h.b16 %v4499
    %v5708 = vunpack.c.l.b16 %v4500
    %v5709 = vunpack.c.l.b16 %v4501
    %v5710 = vunpack.c.h.b16 %v4501
    %v5711 = vunpack.c.l.b16 %v4502
    %v5712 = vunpack.c.h.b16 %v4502
    %v5713 = vunpack.c.l.b16 %v4503
    %v5714 = vunpack.c.h.b16 %v4503
    %v5715 = vunpack.c.l.b16 %v4504
    %v5716 = vunpack.c.l.b16 %v4505
    %v5717 = vunpack.c.h.b16 %v4505
    %v5718 = vunpack.c.l.b16 %v4506
    %v5719 = vunpack.c.h.b16 %v4506
    %v5720 = vunpack.c.l.b16 %v4507
    %v5721 = vunpack.c.h.b16 %v4507
    %v5722 = vunpack.c.l.b16 %v4508
    %v5723 = vunpack.c.l.b16 %v4509
    %v5724 = vunpack.c.h.b16 %v4509
    %v5725 = vunpack.c.l.b16 %v4510
    %v5726 = vunpack.c.h.b16 %v4510
    %v5727 = vunpack.c.l.b16 %v4511
    %v5728 = vunpack.c.h.b16 %v4511
    %v5729 = vunpack.c.l.b16 %v4512
    %v5730 = vunpack.c.l.b16 %v4513
    %v5731 = vunpack.c.h.b16 %v4513
    %v5732 = vunpack.c.l.b16 %v4514
    %v5733 = vunpack.c.h.b16 %v4514
    %v5734 = vunpack.c.l.b16 %v4515
    %v5735 = vunpack.c.h.b16 %v4515
    %v5736 = vunpack.c.l.b16 %v4516
    %v5737 = vunpack.c.l.b16 %v4517
    %v5738 = vunpack.c.h.b16 %v4517
    %v5739 = vunpack.c.l.b16 %v4518
    %v5740 = vunpack.c.h.b16 %v4518
    %v5741 = vunpack.c.l.b16 %v4519
    %v5742 = vunpack.c.h.b16 %v4519
    %v5743 = vunpack.c.l.b16 %v4520
    %v5744 = vunpack.c.l.b16 %v4521
    %v5745 = vunpack.c.h.b16 %v4521
    %v5746 = vunpack.c.l.b16 %v4522
    %v5747 = vunpack.c.h.b16 %v4522
    %v5748 = vunpack.c.l.b16 %v4523
    %v5749 = vunpack.c.h.b16 %v4523
    %v5750 = vunpack.c.l.b16 %v4524
    %v5751 = vunpack.c.l.b16 %v4525
    %v5752 = vunpack.c.h.b16 %v4525
    %v5753 = vunpack.c.l.b16 %v4526
    %v5754 = vunpack.c.h.b16 %v4526
    %v5755 = vunpack.c.l.b16 %v4527
    %v5756 = vunpack.c.h.b16 %v4527
    %v5757 = vunpack.c.l.b16 %v4528
    %v5758 = vunpack.c.l.b16 %v4529
    %v5759 = vunpack.c.h.b16 %v4529
    %v5760 = vunpack.c.l.b16 %v4530
    %v5761 = vunpack.c.h.b16 %v4530
    %v5762 = vunpack.c.l.b16 %v4531
    %v5763 = vunpack.c.h.b16 %v4531
    %v5764 = vunpack.c.l.b16 %v4532
    %v5765 = vunpack.c.l.b16 %v4533
    %v5766 = vunpack.c.h.b16 %v4533
    %v5767 = vunpack.c.l.b16 %v4534
    %v5768 = vunpack.c.h.b16 %v4534
    %v5769 = vunpack.c.l.b16 %v4535
    %v5770 = vunpack.c.h.b16 %v4535
    %v5771 = vunpack.c.l.b16 %v4536
    %v5772 = vunpack.c.l.b16 %v4537
    %v5773 = vunpack.c.h.b16 %v4537
    %v5774 = vunpack.c.l.b16 %v4538
    %v5775 = vunpack.c.h.b16 %v4538
    %v5776 = vunpack.c.l.b16 %v4539
    %v5777 = vunpack.c.h.b16 %v4539
    %v5778 = vunpack.c.l.b16 %v4540
    %v5779 = vunpack.c.l.b16 %v4541
    %v5780 = vunpack.c.h.b16 %v4541
    %v5781 = vunpack.c.l.b16 %v4542
    %v5782 = vunpack.c.h.b16 %v4542
    %v5783 = vunpack.c.l.b16 %v4543
    %v5784 = vunpack.c.h.b16 %v4543
    %v5785 = vunpack.c.l.b16 %v4544
    %v5786 = vunpack.c.l.b16 %v4545
    %v5787 = vunpack.c.h.b16 %v4545
    %v5788 = vunpack.c.l.b16 %v4546
    %v5789 = vunpack.c.h.b16 %v4546
    %v5790 = vunpack.c.l.b16 %v4547
    %v5791 = vunpack.c.h.b16 %v4547
    %v5792 = vunpack.c.l.b16 %v4548
    %v5793 = vunpack.c.l.b16 %v4549
    %v5794 = vunpack.c.h.b16 %v4549
    %v5795 = vunpack.c.l.b16 %v4550
    %v5796 = vunpack.c.h.b16 %v4550
    %v5797 = vunpack.c.l.b16 %v4551
    %v5798 = vunpack.c.h.b16 %v4551
    %v5799 = vunpack.c.l.b16 %v4552
    %v5800 = vunpack.c.l.b16 %v4553
    %v5801 = vunpack.c.h.b16 %v4553
    %v5802 = vunpack.c.l.b16 %v4554
    %v5803 = vunpack.c.h.b16 %v4554
    %v5804 = vunpack.c.l.b16 %v4555
    %v5805 = vunpack.c.h.b16 %v4555
    %v5806 = vunpack.c.l.b16 %v4556
    %v5807 = vunpack.c.l.b16 %v4557
    %v5808 = vunpack.c.h.b16 %v4557
    %v5809 = vunpack.c.l.b16 %v4558
    %v5810 = vunpack.c.h.b16 %v4558
    %v5811 = vunpack.c.l.b16 %v4559
    %v5812 = vunpack.c.h.b16 %v4559
    %v5813 = vunpack.c.l.b16 %v4560
    %v5814 = vunpack.c.l.b16 %v4561
    %v5815 = vunpack.c.h.b16 %v4561
    %v5816 = vunpack.c.l.b16 %v4562
    %v5817 = vunpack.c.h.b16 %v4562
    %v5818 = vunpack.c.l.b16 %v4563
    %v5819 = vunpack.c.h.b16 %v4563
    %v5820 = vunpack.c.l.b16 %v4564
    %v5821 = vunpack.c.l.b16 %v4565
    %v5822 = vunpack.c.h.b16 %v4565
    %v5823 = vunpack.c.l.b16 %v4566
    %v5824 = vunpack.c.h.b16 %v4566
    %v5825 = vunpack.c.l.b16 %v4567
    %v5826 = vunpack.c.h.b16 %v4567
    %v5827 = vunpack.c.l.b16 %v4568
    %v5828 = vunpack.c.l.b16 %v4569
    %v5829 = vunpack.c.h.b16 %v4569
    %v5830 = vunpack.c.l.b16 %v4570
    %v5831 = vunpack.c.h.b16 %v4570
    %v5832 = vunpack.c.l.b16 %v4571
    %v5833 = vunpack.c.h.b16 %v4571
    %v5834 = vunpack.c.l.b16 %v4572
    %v5835 = vunpack.c.l.b16 %v4573
    %v5836 = vunpack.c.h.b16 %v4573
    %v5837 = vunpack.c.l.b16 %v4574
    %v5838 = vunpack.c.h.b16 %v4574
    %v5839 = vunpack.c.l.b16 %v4575
    %v5840 = vunpack.c.h.b16 %v4575
    %v5841 = vunpack.c.l.b16 %v4576
    %v5842 = vunpack.c.l.b16 %v4577
    %v5843 = vunpack.c.h.b16 %v4577
    %v5844 = vunpack.c.l.b16 %v4578
    %v5845 = vunpack.c.h.b16 %v4578
    %v5846 = vunpack.c.l.b16 %v4579
    %v5847 = vunpack.c.h.b16 %v4579
    %v5848 = vunpack.c.l.b16 %v4580
    %v5849 = vunpack.c.l.b16 %v4581
    %v5850 = vunpack.c.h.b16 %v4581
    %v5851 = vunpack.c.l.b16 %v4582
    %v5852 = vunpack.c.h.b16 %v4582
    %v5853 = vunpack.c.l.b16 %v4583
    %v5854 = vunpack.c.h.b16 %v4583
    %v5855 = vunpack.c.l.b16 %v4584
    %v5856 = vunpack.c.l.b16 %v4585
    %v5857 = vunpack.c.h.b16 %v4585
    %v5858 = vunpack.c.l.b16 %v4586
    %v5859 = vunpack.c.h.b16 %v4586
    %v5860 = vunpack.c.l.b16 %v4587
    %v5861 = vunpack.c.h.b16 %v4587
    %v5862 = vunpack.c.l.b16 %v4588
    %v5863 = vunpack.c.l.b16 %v4589
    %v5864 = vunpack.c.h.b16 %v4589
    %v5865 = vunpack.c.l.b16 %v4590
    %v5866 = vunpack.c.h.b16 %v4590
    %v5867 = vunpack.c.l.b16 %v4591
    %v5868 = vunpack.c.h.b16 %v4591
    %v5869 = vunpack.c.l.b16 %v4592
    %v5870 = vunpack.c.l.b16 %v4593
    %v5871 = vunpack.c.h.b16 %v4593
    %v5872 = vunpack.c.l.b16 %v4594
    %v5873 = vunpack.c.h.b16 %v4594
    %v5874 = vunpack.c.l.b16 %v4595
    %v5875 = vunpack.c.h.b16 %v4595
    %v5876 = vunpack.c.l.b16 %v4596
    %v5877 = vunpack.c.l.b16 %v4597
    %v5878 = vunpack.c.h.b16 %v4597
    %v5879 = vunpack.c.l.b16 %v4598
    %v5880 = vunpack.c.h.b16 %v4598
    %v5881 = vunpack.c.l.b16 %v4599
    %v5882 = vunpack.c.h.b16 %v4599
    %v5883 = vunpack.c.l.b16 %v4600
    %v5884 = vunpack.c.l.b16 %v4601
    %v5885 = vunpack.c.h.b16 %v4601
    %v5886 = vunpack.c.l.b16 %v4602
    %v5887 = vunpack.c.h.b16 %v4602
    %v5888 = vunpack.c.l.b16 %v4603
    %v5889 = vunpack.c.h.b16 %v4603
    %v5890 = vunpack.c.l.b16 %v4604
    %v5891 = vunpack.c.l.b16 %v4605
    %v5892 = vunpack.c.h.b16 %v4605
    %v5893 = vunpack.c.l.b16 %v4606
    %v5894 = vunpack.c.h.b16 %v4606
    %v5895 = vunpack.c.l.b16 %v4607
    %v5896 = vunpack.c.h.b16 %v4607
    %v5897 = vunpack.c.l.b16 %v4608
    %v5898 = vunpack.c.l.b16 %v4609
    %v5899 = vunpack.c.h.b16 %v4609
    %v5900 = vunpack.c.l.b16 %v4610
    %v5901 = vunpack.c.h.b16 %v4610
    %v5902 = vunpack.c.l.b16 %v4611
    %v5903 = vunpack.c.h.b16 %v4611
    %v5904 = vunpack.c.l.b16 %v4612
    %v5905 = vunpack.c.l.b16 %v4613
    %v5906 = vunpack.c.h.b16 %v4613
    %v5907 = vunpack.c.l.b16 %v4614
    %v5908 = vunpack.c.h.b16 %v4614
    %v5909 = vunpack.c.l.b16 %v4615
    %v5910 = vunpack.c.h.b16 %v4615
    %v5911 = vunpack.c.l.b16 %v4616
    %v5912 = vunpack.c.l.b16 %v4617
    %v5913 = vunpack.c.h.b16 %v4617
    %v5914 = vunpack.c.l.b16 %v4618
    %v5915 = vunpack.c.h.b16 %v4618
    %v5916 = vunpack.c.l.b16 %v4619
    %v5917 = vunpack.c.h.b16 %v4619
    %v5918 = vunpack.c.l.b16 %v4620
    %v5919 = vunpack.c.l.b16 %v4621
    %v5920 = vunpack.c.h.b16 %v4621
    %v5921 = vunpack.c.l.b16 %v4622
    %v5922 = vunpack.c.h.b16 %v4622
    %v5923 = vunpack.c.l.b16 %v4623
    %v5924 = vunpack.c.h.b16 %v4623
    %v5925 = vunpack.c.l.b16 %v4624
    %v5926 = vunpack.c.l.b16 %v4625
    %v5927 = vunpack.c.h.b16 %v4625
    %v5928 = vunpack.c.l.b16 %v4626
    %v5929 = vunpack.c.h.b16 %v4626
    %v5930 = vunpack.c.l.b16 %v4627
    %v5931 = vunpack.c.h.b16 %v4627
    %v5932 = vunpack.c.l.b16 %v4628
    %v5933 = vunpack.c.l.b16 %v4629
    %v5934 = vunpack.c.h.b16 %v4629
    %v5935 = vunpack.c.l.b16 %v4630
    %v5936 = vunpack.c.h.b16 %v4630
    %v5937 = vunpack.c.l.b16 %v4631
    %v5938 = vunpack.c.h.b16 %v4631
    %v5939 = vunpack.c.l.b16 %v4632
    %v5940 = vunpack.c.l.b16 %v4633
    %v5941 = vunpack.c.h.b16 %v4633
    %v5942 = vunpack.c.l.b16 %v4634
    %v5943 = vunpack.c.h.b16 %v4634
    %v5944 = vunpack.c.l.b16 %v4635
    %v5945 = vunpack.c.h.b16 %v4635
    %v5946 = vunpack.c.l.b16 %v4636
    %v5947 = vunpack.c.l.b16 %v4637
    %v5948 = vunpack.c.h.b16 %v4637
    %v5949 = vunpack.c.l.b16 %v4638
    %v5950 = vunpack.c.h.b16 %v4638
    %v5951 = vunpack.c.l.b16 %v4639
    %v5952 = vunpack.c.h.b16 %v4639
    %v5953 = vunpack.c.l.b16 %v4640
    %v5954 = vunpack.c.l.b16 %v4641
    %v5955 = vunpack.c.h.b16 %v4641
    %v5956 = vunpack.c.l.b16 %v4642
    %v5957 = vunpack.c.h.b16 %v4642
    %v5958 = vunpack.c.l.b16 %v4643
    %v5959 = vunpack.c.h.b16 %v4643
    %v5960 = vunpack.c.l.b16 %v4644
    %v5961 = vunpack.c.l.b16 %v4645
    %v5962 = vunpack.c.h.b16 %v4645
    %v5963 = vunpack.c.l.b16 %v4646
    %v5964 = vunpack.c.h.b16 %v4646
    %v5965 = vunpack.c.l.b16 %v4647
    %v5966 = vunpack.c.h.b16 %v4647
    %v5967 = vunpack.c.l.b16 %v4648
    %v5968 = vunpack.c.l.b16 %v4649
    %v5969 = vunpack.c.h.b16 %v4649
    %v5970 = vunpack.c.l.b16 %v4650
    %v5971 = vunpack.c.h.b16 %v4650
    %v5972 = vunpack.c.l.b16 %v4651
    %v5973 = vunpack.c.h.b16 %v4651
    %v5974 = vunpack.c.l.b16 %v4652
    %v5975 = vunpack.c.l.b16 %v4653
    %v5976 = vunpack.c.h.b16 %v4653
    %v5977 = vunpack.c.l.b16 %v4654
    %v5978 = vunpack.c.h.b16 %v4654
    %v5979 = vunpack.c.l.b16 %v4655
    %v5980 = vunpack.c.h.b16 %v4655
    %v5981 = vunpack.c.l.b16 %v4656
    %v5982 = vunpack.c.l.b16 %v4657
    %v5983 = vunpack.c.h.b16 %v4657
    %v5984 = vunpack.c.l.b16 %v4658
    %v5985 = vunpack.c.h.b16 %v4658
    %v5986 = vunpack.c.l.b16 %v4659
    %v5987 = vunpack.c.h.b16 %v4659
    %v5988 = vunpack.c.l.b16 %v4660
    %v5989 = vunpack.c.l.b16 %v4661
    %v5990 = vunpack.c.h.b16 %v4661
    %v5991 = vunpack.c.l.b16 %v4662
    %v5992 = vunpack.c.h.b16 %v4662
    %v5993 = vunpack.c.l.b16 %v4663
    %v5994 = vunpack.c.h.b16 %v4663
    %v5995 = vunpack.c.l.b16 %v4664
    %v5996 = vunpack.c.l.b16 %v4665
    %v5997 = vunpack.c.h.b16 %v4665
    %v5998 = vunpack.c.l.b16 %v4666
    %v5999 = vunpack.c.h.b16 %v4666
    %v6000 = vunpack.c.l.b16 %v4667
    %v6001 = vunpack.c.h.b16 %v4667
    %v6002 = vunpack.c.l.b16 %v4668
    %v6003 = vunpack.c.l.b16 %v4669
    %v6004 = vunpack.c.h.b16 %v4669
    %v6005 = vunpack.c.l.b16 %v4670
    %v6006 = vunpack.c.h.b16 %v4670
    %v6007 = vunpack.c.l.b16 %v4671
    %v6008 = vunpack.c.h.b16 %v4671
    %v6009 = vunpack.c.l.b16 %v4672
    %v6010 = vunpack.c.l.b16 %v4673
    %v6011 = vunpack.c.h.b16 %v4673
    %v6012 = vunpack.c.l.b16 %v4674
    %v6013 = vunpack.c.h.b16 %v4674
    %v6014 = vunpack.c.l.b16 %v4675
    %v6015 = vunpack.c.h.b16 %v4675
    %v6016 = vunpack.c.l.b16 %v4676
    %v6017 = vunpack.c.l.b16 %v4677
    %v6018 = vunpack.c.h.b16 %v4677
    %v6019 = vunpack.c.l.b16 %v4678
    %v6020 = vunpack.c.h.b16 %v4678
    %v6021 = vunpack.c.l.b16 %v4679
    %v6022 = vunpack.c.h.b16 %v4679
    %v6023 = vunpack.c.l.b16 %v4680
    %v6024 = vunpack.c.l.b16 %v4681
    %v6025 = vunpack.c.h.b16 %v4681
    %v6026 = vunpack.c.l.b16 %v4682
    %v6027 = vunpack.c.h.b16 %v4682
    %v6028 = vunpack.c.l.b16 %v4683
    %v6029 = vunpack.c.h.b16 %v4683
    %v6030 = vunpack.c.l.b16 %v4684
    %v6031 = vunpack.c.l.b16 %v4685
    %v6032 = vunpack.c.h.b16 %v4685
    %v6033 = vunpack.c.l.b16 %v4686
    %v6034 = vunpack.c.h.b16 %v4686
    %v6035 = vunpack.c.l.b16 %v4687
    %v6036 = vunpack.c.h.b16 %v4687
    %v6037 = vunpack.c.l.b16 %v4688
    %v6038 = vunpack.c.l.b16 %v4689
    %v6039 = vunpack.c.h.b16 %v4689
    %v6040 = vunpack.c.l.b16 %v4690
    %v6041 = vunpack.c.h.b16 %v4690
    %v6042 = vunpack.c.l.b16 %v4691
    %v6043 = vunpack.c.h.b16 %v4691
    %v6044 = vunpack.c.l.b16 %v4692
    %v6045 = vunpack.c.l.b16 %v4693
    %v6046 = vunpack.c.h.b16 %v4693
    %v6047 = vunpack.c.l.b16 %v4694
    %v6048 = vunpack.c.h.b16 %v4694
    %v6049 = vunpack.c.l.b16 %v4695
    %v6050 = vunpack.c.h.b16 %v4695
    %v6051 = vunpack.c.l.b16 %v4696
    %v6052 = vunpack.c.l.b16 %v4697
    %v6053 = vunpack.c.h.b16 %v4697
    %v6054 = vunpack.c.l.b16 %v4698
    %v6055 = vunpack.c.h.b16 %v4698
    %v6056 = vunpack.c.l.b16 %v4699
    %v6057 = vunpack.c.h.b16 %v4699
    %v6058 = vunpack.c.l.b16 %v4700
    %v6059 = vunpack.c.l.b16 %v4701
    %v6060 = vunpack.c.h.b16 %v4701
    %v6061 = vunpack.c.l.b16 %v4702
    %v6062 = vunpack.c.h.b16 %v4702
    %v6063 = vunpack.c.l.b16 %v4703
    %v6064 = vunpack.c.h.b16 %v4703
    %v6065 = vunpack.c.l.b16 %v4704
    %v6066 = vunpack.c.l.b16 %v4705
    %v6067 = vunpack.c.h.b16 %v4705
    %v6068 = vunpack.c.l.b16 %v4706
    %v6069 = vunpack.c.h.b16 %v4706
    %v6070 = vunpack.c.l.b16 %v4707
    %v6071 = vunpack.c.h.b16 %v4707
    %v6072 = vunpack.c.l.b16 %v4708
    %v6073 = vunpack.c.l.b16 %v4709
    %v6074 = vunpack.c.h.b16 %v4709
    %v6075 = vunpack.c.l.b16 %v4710
    %v6076 = vunpack.c.h.b16 %v4710
    %v6077 = vunpack.c.l.b16 %v4711
    %v6078 = vunpack.c.h.b16 %v4711
    %v6079 = vunpack.c.l.b16 %v4712
    %v6080 = vunpack.c.l.b16 %v4713
    %v6081 = vunpack.c.h.b16 %v4713
    %v6082 = vunpack.c.l.b16 %v4714
    %v6083 = vunpack.c.h.b16 %v4714
    %v6084 = vunpack.c.l.b16 %v4715
    %v6085 = vunpack.c.h.b16 %v4715
    %v6086 = vunpack.c.l.b16 %v4716
    %v6087 = vunpack.c.l.b16 %v4717
    %v6088 = vunpack.c.h.b16 %v4717
    %v6089 = vunpack.c.l.b16 %v4718
    %v6090 = vunpack.c.h.b16 %v4718
    %v6091 = vunpack.c.l.b16 %v4719
    %v6092 = vunpack.c.h.b16 %v4719
    %v6093 = vunpack.c.l.b16 %v4720
    %v6094 = vunpack.c.l.b16 %v4721
    %v6095 = vunpack.c.h.b16 %v4721
    %v6096 = vunpack.c.l.b16 %v4722
    %v6097 = vunpack.c.h.b16 %v4722
    %v6098 = vunpack.c.l.b16 %v4723
    %v6099 = vunpack.c.h.b16 %v4723
    %v6100 = vunpack.c.l.b16 %v4724
    %v6101 = vunpack.c.l.b16 %v4725
    %v6102 = vunpack.c.h.b16 %v4725
    %v6103 = vunpack.c.l.b16 %v4726
    %v6104 = vunpack.c.h.b16 %v4726
    %v6105 = vunpack.c.l.b16 %v4727
    %v6106 = vunpack.c.h.b16 %v4727
    %v6107 = vunpack.c.l.b16 %v4728
    %v6108 = vunpack.c.l.b16 %v4729
    %v6109 = vunpack.c.h.b16 %v4729
    %v6110 = vunpack.c.l.b16 %v4730
    %v6111 = vunpack.c.h.b16 %v4730
    %v6112 = vunpack.c.l.b16 %v4731
    %v6113 = vunpack.c.h.b16 %v4731
    %v6114 = vunpack.c.l.b16 %v4732
    %v6115 = vunpack.c.l.b16 %v4733
    %v6116 = vunpack.c.h.b16 %v4733
    %v6117 = vunpack.c.l.b16 %v4734
    %v6118 = vunpack.c.h.b16 %v4734
    %v6119 = vunpack.c.l.b16 %v4735
    %v6120 = vunpack.c.h.b16 %v4735
    %v6121 = vunpack.c.l.b16 %v4736
    %v6122 = vunpack.c.l.b16 %v4737
    %v6123 = vunpack.c.h.b16 %v4737
    %v6124 = vunpack.c.l.b16 %v4738
    %v6125 = vunpack.c.h.b16 %v4738
    %v6126 = vunpack.c.l.b16 %v4739
    %v6127 = vunpack.c.h.b16 %v4739
    %v6128 = vunpack.c.l.b16 %v4740
    %v6129 = vunpack.c.l.b16 %v4741
    %v6130 = vunpack.c.h.b16 %v4741
    %v6131 = vunpack.c.l.b16 %v4742
    %v6132 = vunpack.c.h.b16 %v4742
    %v6133 = vunpack.c.l.b16 %v4743
    %v6134 = vunpack.c.h.b16 %v4743
    %v6135 = vunpack.c.l.b16 %v4744
    %v6136 = vunpack.c.l.b16 %v4745
    %v6137 = vunpack.c.h.b16 %v4745
    %v6138 = vunpack.c.l.b16 %v4746
    %v6139 = vunpack.c.h.b16 %v4746
    %v6140 = vunpack.c.l.b16 %v4747
    %v6141 = vunpack.c.h.b16 %v4747
    %v6142 = vunpack.c.l.b16 %v4748
    %v6143 = vunpack.c.l.b16 %v4749
    %v6144 = vunpack.c.h.b16 %v4749
    %v6145 = vunpack.c.l.b16 %v4750
    %v6146 = vunpack.c.h.b16 %v4750
    %v6147 = vunpack.c.l.b16 %v4751
    %v6148 = vunpack.c.h.b16 %v4751
    %v6149 = vunpack.c.l.b16 %v4752
    %v6150 = vunpack.c.l.b16 %v4753
    %v6151 = vunpack.c.h.b16 %v4753
    %v6152 = vunpack.c.l.b16 %v4754
    %v6153 = vunpack.c.h.b16 %v4754
    %v6154 = vunpack.c.l.b16 %v4755
    %v6155 = vunpack.c.h.b16 %v4755
    %v6156 = vunpack.c.l.b16 %v4756
    %v6157 = vunpack.c.l.b16 %v4757
    %v6158 = vunpack.c.h.b16 %v4757
    %v6159 = vunpack.c.l.b16 %v4758
    %v6160 = vunpack.c.h.b16 %v4758
    %v6161 = vunpack.c.l.b16 %v4759
    %v6162 = vunpack.c.h.b16 %v4759
    %v6163 = vunpack.c.l.b16 %v4760
    %v6164 = vunpack.c.l.b16 %v4761
    %v6165 = vunpack.c.h.b16 %v4761
    %v6166 = vunpack.c.l.b16 %v4762
    %v6167 = vunpack.c.h.b16 %v4762
    %v6168 = vunpack.c.l.b16 %v4763
    %v6169 = vunpack.c.h.b16 %v4763
    %v6170 = vunpack.c.l.b16 %v4764
    %v6171 = vunpack.c.l.b16 %v4765
    %v6172 = vunpack.c.h.b16 %v4765
    %v6173 = vunpack.c.l.b16 %v4766
    %v6174 = vunpack.c.h.b16 %v4766
    %v6175 = vunpack.c.l.b16 %v4767
    %v6176 = vunpack.c.h.b16 %v4767
    %v6177 = vunpack.c.l.b16 %v4768
    %v6178 = vunpack.c.l.b16 %v4769
    %v6179 = vunpack.c.h.b16 %v4769
    %v6180 = vunpack.c.l.b16 %v4770
    %v6181 = vunpack.c.h.b16 %v4770
    %v6182 = vunpack.c.l.b16 %v4771
    %v6183 = vunpack.c.h.b16 %v4771
    %v6184 = vunpack.c.l.b16 %v4772
    %v6185 = vunpack.c.l.b16 %v4773
    %v6186 = vunpack.c.h.b16 %v4773
    %v6187 = vunpack.c.l.b16 %v4774
    %v6188 = vunpack.c.h.b16 %v4774
    %v6189 = vunpack.c.l.b16 %v4775
    %v6190 = vunpack.c.h.b16 %v4775
    %v6191 = vunpack.c.l.b16 %v4776
    %v6192 = vunpack.c.l.b16 %v4777
    %v6193 = vunpack.c.h.b16 %v4777
    %v6194 = vunpack.c.l.b16 %v4778
    %v6195 = vunpack.c.h.b16 %v4778
    %v6196 = vunpack.c.l.b16 %v4779
    %v6197 = vunpack.c.h.b16 %v4779
    %v6198 = vunpack.c.l.b16 %v4780
    %v6199 = vunpack.c.l.b16 %v4781
    %v6200 = vunpack.c.h.b16 %v4781
    %v6201 = vunpack.c.l.b16 %v4782
    %v6202 = vunpack.c.h.b16 %v4782
    %v6203 = vunpack.c.l.b16 %v4783
    %v6204 = vunpack.c.h.b16 %v4783
    %v6205 = vunpack.c.l.b16 %v4784
    %v6206 = vunpack.c.l.b16 %v4785
    %v6207 = vunpack.c.h.b16 %v4785
    %v6208 = vunpack.c.l.b16 %v4786
    %v6209 = vunpack.c.h.b16 %v4786
    %v6210 = vunpack.c.l.b16 %v4787
    %v6211 = vunpack.c.h.b16 %v4787
    %v6212 = vunpack.c.l.b16 %v4788
    %v6213 = vpack.c.b16 %v5324, %v5317
    %v6214 = vpack.c.b16 %v5325, %v5318
    %v6215 = vpack.c.b16 %v5326, %v5319
    %v6216 = vpack.c.b16 %v5327, %v5320
    %v6217 = vpack.c.b16 %v5328, %v5321
    %v6218 = vpack.c.b16 %v5329, %v5322
    %v6219 = vpack.c.b16 %v5330, %v5323
    %v6220 = vpack.c.b16 %v5338, %v5331
    %v6221 = vpack.c.b16 %v5339, %v5332
    %v6222 = vpack.c.b16 %v5340, %v5333
    %v6223 = vpack.c.b16 %v5341, %v5334
    %v6224 = vpack.c.b16 %v5342, %v5335
    %v6225 = vpack.c.b16 %v5343, %v5336
    %v6226 = vpack.c.b16 %v5344, %v5337
    %v6227 = vpack.c.b16 %v5352, %v5345
    %v6228 = vpack.c.b16 %v5353, %v5346
    %v6229 = vpack.c.b16 %v5354, %v5347
    %v6230 = vpack.c.b16 %v5355, %v5348
    %v6231 = vpack.c.b16 %v5356, %v5349
    %v6232 = vpack.c.b16 %v5357, %v5350
    %v6233 = vpack.c.b16 %v5358, %v5351
    %v6234 = vpack.c.b16 %v5366, %v5359
    %v6235 = vpack.c.b16 %v5367, %v5360
    %v6236 = vpack.c.b16 %v5368, %v5361
    %v6237 = vpack.c.b16 %v5369, %v5362
    %v6238 = vpack.c.b16 %v5370, %v5363
    %v6239 = vpack.c.b16 %v5371, %v5364
    %v6240 = vpack.c.b16 %v5372, %v5365
    %v6241 = vpack.c.b16 %v5380, %v5373
    %v6242 = vpack.c.b16 %v5381, %v5374
    %v6243 = vpack.c.b16 %v5382, %v5375
    %v6244 = vpack.c.b16 %v5383, %v5376
    %v6245 = vpack.c.b16 %v5384, %v5377
    %v6246 = vpack.c.b16 %v5385, %v5378
    %v6247 = vpack.c.b16 %v5386, %v5379
    %v6248 = vpack.c.b16 %v5394, %v5387
    %v6249 = vpack.c.b16 %v5395, %v5388
    %v6250 = vpack.c.b16 %v5396, %v5389
    %v6251 = vpack.c.b16 %v5397, %v5390
    %v6252 = vpack.c.b16 %v5398, %v5391
    %v6253 = vpack.c.b16 %v5399, %v5392
    %v6254 = vpack.c.b16 %v5400, %v5393
    %v6255 = vpack.c.b16 %v5408, %v5401
    %v6256 = vpack.c.b16 %v5409, %v5402
    %v6257 = vpack.c.b16 %v5410, %v5403
    %v6258 = vpack.c.b16 %v5411, %v5404
    %v6259 = vpack.c.b16 %v5412, %v5405
    %v6260 = vpack.c.b16 %v5413, %v5406
    %v6261 = vpack.c.b16 %v5414, %v5407
    %v6262 = vpack.c.b16 %v5422, %v5415
    %v6263 = vpack.c.b16 %v5423, %v5416
    %v6264 = vpack.c.b16 %v5424, %v5417
    %v6265 = vpack.c.b16 %v5425, %v5418
    %v6266 = vpack.c.b16 %v5426, %v5419
    %v6267 = vpack.c.b16 %v5427, %v5420
    %v6268 = vpack.c.b16 %v5428, %v5421
    %v6269 = vpack.c.b16 %v5436, %v5429
    %v6270 = vpack.c.b16 %v5437, %v5430
    %v6271 = vpack.c.b16 %v5438, %v5431
    %v6272 = vpack.c.b16 %v5439, %v5432
    %v6273 = vpack.c.b16 %v5440, %v5433
    %v6274 = vpack.c.b16 %v5441, %v5434
    %v6275 = vpack.c.b16 %v5442, %v5435
    %v6276 = vpack.c.b16 %v5450, %v5443
    %v6277 = vpack.c.b16 %v5451, %v5444
    %v6278 = vpack.c.b16 %v5452, %v5445
    %v6279 = vpack.c.b16 %v5453, %v5446
    %v6280 = vpack.c.b16 %v5454, %v5447
    %v6281 = vpack.c.b16 %v5455, %v5448
    %v6282 = vpack.c.b16 %v5456, %v5449
    %v6283 = vpack.c.b16 %v5464, %v5457
    %v6284 = vpack.c.b16 %v5465, %v5458
    %v6285 = vpack.c.b16 %v5466, %v5459
    %v6286 = vpack.c.b16 %v5467, %v5460
    %v6287 = vpack.c.b16 %v5468, %v5461
    %v6288 = vpack.c.b16 %v5469, %v5462
    %v6289 = vpack.c.b16 %v5470, %v5463
    %v6290 = vpack.c.b16 %v5478, %v5471
    %v6291 = vpack.c.b16 %v5479, %v5472
    %v6292 = vpack.c.b16 %v5480, %v5473
    %v6293 = vpack.c.b16 %v5481, %v5474
    %v6294 = vpack.c.b16 %v5482, %v5475
    %v6295 = vpack.c.b16 %v5483, %v5476
    %v6296 = vpack.c.b16 %v5484, %v5477
    %v6297 = vpack.c.b16 %v5492, %v5485
    %v6298 = vpack.c.b16 %v5493, %v5486
    %v6299 = vpack.c.b16 %v5494, %v5487
    %v6300 = vpack.c.b16 %v5495, %v5488
    %v6301 = vpack.c.b16 %v5496, %v5489
    %v6302 = vpack.c.b16 %v5497, %v5490
    %v6303 = vpack.c.b16 %v5498, %v5491
    %v6304 = vpack.c.b16 %v5506, %v5499
    %v6305 = vpack.c.b16 %v5507, %v5500
    %v6306 = vpack.c.b16 %v5508, %v5501
    %v6307 = vpack.c.b16 %v5509, %v5502
    %v6308 = vpack.c.b16 %v5510, %v5503
    %v6309 = vpack.c.b16 %v5511, %v5504
    %v6310 = vpack.c.b16 %v5512, %v5505
    %v6311 = vpack.c.b16 %v5520, %v5513
    %v6312 = vpack.c.b16 %v5521, %v5514
    %v6313 = vpack.c.b16 %v5522, %v5515
    %v6314 = vpack.c.b16 %v5523, %v5516
    %v6315 = vpack.c.b16 %v5524, %v5517
    %v6316 = vpack.c.b16 %v5525, %v5518
    %v6317 = vpack.c.b16 %v5526, %v5519
    %v6318 = vpack.c.b16 %v5534, %v5527
    %v6319 = vpack.c.b16 %v5535, %v5528
    %v6320 = vpack.c.b16 %v5536, %v5529
    %v6321 = vpack.c.b16 %v5537, %v5530
    %v6322 = vpack.c.b16 %v5538, %v5531
    %v6323 = vpack.c.b16 %v5539, %v5532
    %v6324 = vpack.c.b16 %v5540, %v5533
    %v6325 = vpack.c.b16 %v5548, %v5541
    %v6326 = vpack.c.b16 %v5549, %v5542
    %v6327 = vpack.c.b16 %v5550, %v5543
    %v6328 = vpack.c.b16 %v5551, %v5544
    %v6329 = vpack.c.b16 %v5552, %v5545
    %v6330 = vpack.c.b16 %v5553, %v5546
    %v6331 = vpack.c.b16 %v5554, %v5547
    %v6332 = vpack.c.b16 %v5562, %v5555
    %v6333 = vpack.c.b16 %v5563, %v5556
    %v6334 = vpack.c.b16 %v5564, %v5557
    %v6335 = vpack.c.b16 %v5565, %v5558
    %v6336 = vpack.c.b16 %v5566, %v5559
    %v6337 = vpack.c.b16 %v5567, %v5560
    %v6338 = vpack.c.b16 %v5568, %v5561
    %v6339 = vpack.c.b16 %v5576, %v5569
    %v6340 = vpack.c.b16 %v5577, %v5570
    %v6341 = vpack.c.b16 %v5578, %v5571
    %v6342 = vpack.c.b16 %v5579, %v5572
    %v6343 = vpack.c.b16 %v5580, %v5573
    %v6344 = vpack.c.b16 %v5581, %v5574
    %v6345 = vpack.c.b16 %v5582, %v5575
    %v6346 = vpack.c.b16 %v5590, %v5583
    %v6347 = vpack.c.b16 %v5591, %v5584
    %v6348 = vpack.c.b16 %v5592, %v5585
    %v6349 = vpack.c.b16 %v5593, %v5586
    %v6350 = vpack.c.b16 %v5594, %v5587
    %v6351 = vpack.c.b16 %v5595, %v5588
    %v6352 = vpack.c.b16 %v5596, %v5589
    %v6353 = vpack.c.b16 %v5604, %v5597
    %v6354 = vpack.c.b16 %v5605, %v5598
    %v6355 = vpack.c.b16 %v5606, %v5599
    %v6356 = vpack.c.b16 %v5607, %v5600
    %v6357 = vpack.c.b16 %v5608, %v5601
    %v6358 = vpack.c.b16 %v5609, %v5602
    %v6359 = vpack.c.b16 %v5610, %v5603
    %v6360 = vpack.c.b16 %v5618, %v5611
    %v6361 = vpack.c.b16 %v5619, %v5612
    %v6362 = vpack.c.b16 %v5620, %v5613
    %v6363 = vpack.c.b16 %v5621, %v5614
    %v6364 = vpack.c.b16 %v5622, %v5615
    %v6365 = vpack.c.b16 %v5623, %v5616
    %v6366 = vpack.c.b16 %v5624, %v5617
    %v6367 = vpack.c.b16 %v5632, %v5625
    %v6368 = vpack.c.b16 %v5633, %v5626
    %v6369 = vpack.c.b16 %v5634, %v5627
    %v6370 = vpack.c.b16 %v5635, %v5628
    %v6371 = vpack.c.b16 %v5636, %v5629
    %v6372 = vpack.c.b16 %v5637, %v5630
    %v6373 = vpack.c.b16 %v5638, %v5631
    %v6374 = vpack.c.b16 %v5646, %v5639
    %v6375 = vpack.c.b16 %v5647, %v5640
    %v6376 = vpack.c.b16 %v5648, %v5641
    %v6377 = vpack.c.b16 %v5649, %v5642
    %v6378 = vpack.c.b16 %v5650, %v5643
    %v6379 = vpack.c.b16 %v5651, %v5644
    %v6380 = vpack.c.b16 %v5652, %v5645
    %v6381 = vpack.c.b16 %v5660, %v5653
    %v6382 = vpack.c.b16 %v5661, %v5654
    %v6383 = vpack.c.b16 %v5662, %v5655
    %v6384 = vpack.c.b16 %v5663, %v5656
    %v6385 = vpack.c.b16 %v5664, %v5657
    %v6386 = vpack.c.b16 %v5665, %v5658
    %v6387 = vpack.c.b16 %v5666, %v5659
    %v6388 = vpack.c.b16 %v5674, %v5667
    %v6389 = vpack.c.b16 %v5675, %v5668
    %v6390 = vpack.c.b16 %v5676, %v5669
    %v6391 = vpack.c.b16 %v5677, %v5670
    %v6392 = vpack.c.b16 %v5678, %v5671
    %v6393 = vpack.c.b16 %v5679, %v5672
    %v6394 = vpack.c.b16 %v5680, %v5673
    %v6395 = vpack.c.b16 %v5688, %v5681
    %v6396 = vpack.c.b16 %v5689, %v5682
    %v6397 = vpack.c.b16 %v5690, %v5683
    %v6398 = vpack.c.b16 %v5691, %v5684
    %v6399 = vpack.c.b16 %v5692, %v5685
    %v6400 = vpack.c.b16 %v5693, %v5686
    %v6401 = vpack.c.b16 %v5694, %v5687
    %v6402 = vpack.c.b16 %v5702, %v5695
    %v6403 = vpack.c.b16 %v5703, %v5696
    %v6404 = vpack.c.b16 %v5704, %v5697
    %v6405 = vpack.c.b16 %v5705, %v5698
    %v6406 = vpack.c.b16 %v5706, %v5699
    %v6407 = vpack.c.b16 %v5707, %v5700
    %v6408 = vpack.c.b16 %v5708, %v5701
    %v6409 = vpack.c.b16 %v5716, %v5709
    %v6410 = vpack.c.b16 %v5717, %v5710
    %v6411 = vpack.c.b16 %v5718, %v5711
    %v6412 = vpack.c.b16 %v5719, %v5712
    %v6413 = vpack.c.b16 %v5720, %v5713
    %v6414 = vpack.c.b16 %v5721, %v5714
    %v6415 = vpack.c.b16 %v5722, %v5715
    %v6416 = vpack.c.b16 %v5730, %v5723
    %v6417 = vpack.c.b16 %v5731, %v5724
    %v6418 = vpack.c.b16 %v5732, %v5725
    %v6419 = vpack.c.b16 %v5733, %v5726
    %v6420 = vpack.c.b16 %v5734, %v5727
    %v6421 = vpack.c.b16 %v5735, %v5728
    %v6422 = vpack.c.b16 %v5736, %v5729
    %v6423 = vpack.c.b16 %v5744, %v5737
    %v6424 = vpack.c.b16 %v5745, %v5738
    %v6425 = vpack.c.b16 %v5746, %v5739
    %v6426 = vpack.c.b16 %v5747, %v5740
    %v6427 = vpack.c.b16 %v5748, %v5741
    %v6428 = vpack.c.b16 %v5749, %v5742
    %v6429 = vpack.c.b16 %v5750, %v5743
    %v6430 = vpack.c.b16 %v5758, %v5751
    %v6431 = vpack.c.b16 %v5759, %v5752
    %v6432 = vpack.c.b16 %v5760, %v5753
    %v6433 = vpack.c.b16 %v5761, %v5754
    %v6434 = vpack.c.b16 %v5762, %v5755
    %v6435 = vpack.c.b16 %v5763, %v5756
    %v6436 = vpack.c.b16 %v5764, %v5757
    %v6437 = vpack.c.b16 %v5772, %v5765
    %v6438 = vpack.c.b16 %v5773, %v5766
    %v6439 = vpack.c.b16 %v5774, %v5767
    %v6440 = vpack.c.b16 %v5775, %v5768
    %v6441 = vpack.c.b16 %v5776, %v5769
    %v6442 = vpack.c.b16 %v5777, %v5770
    %v6443 = vpack.c.b16 %v5778, %v5771
    %v6444 = vpack.c.b16 %v5786, %v5779
    %v6445 = vpack.c.b16 %v5787, %v5780
    %v6446 = vpack.c.b16 %v5788, %v5781
    %v6447 = vpack.c.b16 %v5789, %v5782
    %v6448 = vpack.c.b16 %v5790, %v5783
    %v6449 = vpack.c.b16 %v5791, %v5784
    %v6450 = vpack.c.b16 %v5792, %v5785
    %v6451 = vpack.c.b16 %v5800, %v5793
    %v6452 = vpack.c.b16 %v5801, %v5794
    %v6453 = vpack.c.b16 %v5802, %v5795
    %v6454 = vpack.c.b16 %v5803, %v5796
    %v6455 = vpack.c.b16 %v5804, %v5797
    %v6456 = vpack.c.b16 %v5805, %v5798
    %v6457 = vpack.c.b16 %v5806, %v5799
    %v6458 = vpack.c.b16 %v5814, %v5807
    %v6459 = vpack.c.b16 %v5815, %v5808
    %v6460 = vpack.c.b16 %v5816, %v5809
    %v6461 = vpack.c.b16 %v5817, %v5810
    %v6462 = vpack.c.b16 %v5818, %v5811
    %v6463 = vpack.c.b16 %v5819, %v5812
    %v6464 = vpack.c.b16 %v5820, %v5813
    %v6465 = vpack.c.b16 %v5828, %v5821
    %v6466 = vpack.c.b16 %v5829, %v5822
    %v6467 = vpack.c.b16 %v5830, %v5823
    %v6468 = vpack.c.b16 %v5831, %v5824
    %v6469 = vpack.c.b16 %v5832, %v5825
    %v6470 = vpack.c.b16 %v5833, %v5826
    %v6471 = vpack.c.b16 %v5834, %v5827
    %v6472 = vpack.c.b16 %v5842, %v5835
    %v6473 = vpack.c.b16 %v5843, %v5836
    %v6474 = vpack.c.b16 %v5844, %v5837
    %v6475 = vpack.c.b16 %v5845, %v5838
    %v6476 = vpack.c.b16 %v5846, %v5839
    %v6477 = vpack.c.b16 %v5847, %v5840
    %v6478 = vpack.c.b16 %v5848, %v5841
    %v6479 = vpack.c.b16 %v5856, %v5849
    %v6480 = vpack.c.b16 %v5857, %v5850
    %v6481 = vpack.c.b16 %v5858, %v5851
    %v6482 = vpack.c.b16 %v5859, %v5852
    %v6483 = vpack.c.b16 %v5860, %v5853
    %v6484 = vpack.c.b16 %v5861, %v5854
    %v6485 = vpack.c.b16 %v5862, %v5855
    %v6486 = vpack.c.b16 %v5870, %v5863
    %v6487 = vpack.c.b16 %v5871, %v5864
    %v6488 = vpack.c.b16 %v5872, %v5865
    %v6489 = vpack.c.b16 %v5873, %v5866
    %v6490 = vpack.c.b16 %v5874, %v5867
    %v6491 = vpack.c.b16 %v5875, %v5868
    %v6492 = vpack.c.b16 %v5876, %v5869
    %v6493 = vpack.c.b16 %v5884, %v5877
    %v6494 = vpack.c.b16 %v5885, %v5878
    %v6495 = vpack.c.b16 %v5886, %v5879
    %v6496 = vpack.c.b16 %v5887, %v5880
    %v6497 = vpack.c.b16 %v5888, %v5881
    %v6498 = vpack.c.b16 %v5889, %v5882
    %v6499 = vpack.c.b16 %v5890, %v5883
    %v6500 = vpack.c.b16 %v5898, %v5891
    %v6501 = vpack.c.b16 %v5899, %v5892
    %v6502 = vpack.c.b16 %v5900, %v5893
    %v6503 = vpack.c.b16 %v5901, %v5894
    %v6504 = vpack.c.b16 %v5902, %v5895
    %v6505 = vpack.c.b16 %v5903, %v5896
    %v6506 = vpack.c.b16 %v5904, %v5897
    %v6507 = vpack.c.b16 %v5912, %v5905
    %v6508 = vpack.c.b16 %v5913, %v5906
    %v6509 = vpack.c.b16 %v5914, %v5907
    %v6510 = vpack.c.b16 %v5915, %v5908
    %v6511 = vpack.c.b16 %v5916, %v5909
    %v6512 = vpack.c.b16 %v5917, %v5910
    %v6513 = vpack.c.b16 %v5918, %v5911
    %v6514 = vpack.c.b16 %v5926, %v5919
    %v6515 = vpack.c.b16 %v5927, %v5920
    %v6516 = vpack.c.b16 %v5928, %v5921
    %v6517 = vpack.c.b16 %v5929, %v5922
    %v6518 = vpack.c.b16 %v5930, %v5923
    %v6519 = vpack.c.b16 %v5931, %v5924
    %v6520 = vpack.c.b16 %v5932, %v5925
    %v6521 = vpack.c.b16 %v5940, %v5933
    %v6522 = vpack.c.b16 %v5941, %v5934
    %v6523 = vpack.c.b16 %v5942, %v5935
    %v6524 = vpack.c.b16 %v5943, %v5936
    %v6525 = vpack.c.b16 %v5944, %v5937
    %v6526 = vpack.c.b16 %v5945, %v5938
    %v6527 = vpack.c.b16 %v5946, %v5939
    %v6528 = vpack.c.b16 %v5954, %v5947
    %v6529 = vpack.c.b16 %v5955, %v5948
    %v6530 = vpack.c.b16 %v5956, %v5949
    %v6531 = vpack.c.b16 %v5957, %v5950
    %v6532 = vpack.c.b16 %v5958, %v5951
    %v6533 = vpack.c.b16 %v5959, %v5952
    %v6534 = vpack.c.b16 %v5960, %v5953
    %v6535 = vpack.c.b16 %v5968, %v5961
    %v6536 = vpack.c.b16 %v5969, %v5962
    %v6537 = vpack.c.b16 %v5970, %v5963
    %v6538 = vpack.c.b16 %v5971, %v5964
    %v6539 = vpack.c.b16 %v5972, %v5965
    %v6540 = vpack.c.b16 %v5973, %v5966
    %v6541 = vpack.c.b16 %v5974, %v5967
    %v6542 = vpack.c.b16 %v5982, %v5975
    %v6543 = vpack.c.b16 %v5983, %v5976
    %v6544 = vpack.c.b16 %v5984, %v5977
    %v6545 = vpack.c.b16 %v5985, %v5978
    %v6546 = vpack.c.b16 %v5986, %v5979
    %v6547 = vpack.c.b16 %v5987, %v5980
    %v6548 = vpack.c.b16 %v5988, %v5981
    %v6549 = vpack.c.b16 %v5996, %v5989
    %v6550 = vpack.c.b16 %v5997, %v5990
    %v6551 = vpack.c.b16 %v5998, %v5991
    %v6552 = vpack.c.b16 %v5999, %v5992
    %v6553 = vpack.c.b16 %v6000, %v5993
    %v6554 = vpack.c.b16 %v6001, %v5994
    %v6555 = vpack.c.b16 %v6002, %v5995
    %v6556 = vpack.c.b16 %v6010, %v6003
    %v6557 = vpack.c.b16 %v6011, %v6004
    %v6558 = vpack.c.b16 %v6012, %v6005
    %v6559 = vpack.c.b16 %v6013, %v6006
    %v6560 = vpack.c.b16 %v6014, %v6007
    %v6561 = vpack.c.b16 %v6015, %v6008
    %v6562 = vpack.c.b16 %v6016, %v6009
    %v6563 = vpack.c.b16 %v6024, %v6017
    %v6564 = vpack.c.b16 %v6025, %v6018
    %v6565 = vpack.c.b16 %v6026, %v6019
    %v6566 = vpack.c.b16 %v6027, %v6020
    %v6567 = vpack.c.b16 %v6028, %v6021
    %v6568 = vpack.c.b16 %v6029, %v6022
    %v6569 = vpack.c.b16 %v6030, %v6023
    %v6570 = vpack.c.b16 %v6038, %v6031
    %v6571 = vpack.c.b16 %v6039, %v6032
    %v6572 = vpack.c.b16 %v6040, %v6033
    %v6573 = vpack.c.b16 %v6041, %v6034
    %v6574 = vpack.c.b16 %v6042, %v6035
    %v6575 = vpack.c.b16 %v6043, %v6036
    %v6576 = vpack.c.b16 %v6044, %v6037
    %v6577 = vpack.c.b16 %v6052, %v6045
    %v6578 = vpack.c.b16 %v6053, %v6046
    %v6579 = vpack.c.b16 %v6054, %v6047
    %v6580 = vpack.c.b16 %v6055, %v6048
    %v6581 = vpack.c.b16 %v6056, %v6049
    %v6582 = vpack.c.b16 %v6057, %v6050
    %v6583 = vpack.c.b16 %v6058, %v6051
    %v6584 = vpack.c.b16 %v6066, %v6059
    %v6585 = vpack.c.b16 %v6067, %v6060
    %v6586 = vpack.c.b16 %v6068, %v6061
    %v6587 = vpack.c.b16 %v6069, %v6062
    %v6588 = vpack.c.b16 %v6070, %v6063
    %v6589 = vpack.c.b16 %v6071, %v6064
    %v6590 = vpack.c.b16 %v6072, %v6065
    %v6591 = vpack.c.b16 %v6080, %v6073
    %v6592 = vpack.c.b16 %v6081, %v6074
    %v6593 = vpack.c.b16 %v6082, %v6075
    %v6594 = vpack.c.b16 %v6083, %v6076
    %v6595 = vpack.c.b16 %v6084, %v6077
    %v6596 = vpack.c.b16 %v6085, %v6078
    %v6597 = vpack.c.b16 %v6086, %v6079
    %v6598 = vpack.c.b16 %v6094, %v6087
    %v6599 = vpack.c.b16 %v6095, %v6088
    %v6600 = vpack.c.b16 %v6096, %v6089
    %v6601 = vpack.c.b16 %v6097, %v6090
    %v6602 = vpack.c.b16 %v6098, %v6091
    %v6603 = vpack.c.b16 %v6099, %v6092
    %v6604 = vpack.c.b16 %v6100, %v6093
    %v6605 = vpack.c.b16 %v6108, %v6101
    %v6606 = vpack.c.b16 %v6109, %v6102
    %v6607 = vpack.c.b16 %v6110, %v6103
    %v6608 = vpack.c.b16 %v6111, %v6104
    %v6609 = vpack.c.b16 %v6112, %v6105
    %v6610 = vpack.c.b16 %v6113, %v6106
    %v6611 = vpack.c.b16 %v6114, %v6107
    %v6612 = vpack.c.b16 %v6122, %v6115
    %v6613 = vpack.c.b16 %v6123, %v6116
    %v6614 = vpack.c.b16 %v6124, %v6117
    %v6615 = vpack.c.b16 %v6125, %v6118
    %v6616 = vpack.c.b16 %v6126, %v6119
    %v6617 = vpack.c.b16 %v6127, %v6120
    %v6618 = vpack.c.b16 %v6128, %v6121
    %v6619 = vpack.c.b16 %v6136, %v6129
    %v6620 = vpack.c.b16 %v6137, %v6130
    %v6621 = vpack.c.b16 %v6138, %v6131
    %v6622 = vpack.c.b16 %v6139, %v6132
    %v6623 = vpack.c.b16 %v6140, %v6133
    %v6624 = vpack.c.b16 %v6141, %v6134
    %v6625 = vpack.c.b16 %v6142, %v6135
    %v6626 = vpack.c.b16 %v6150, %v6143
    %v6627 = vpack.c.b16 %v6151, %v6144
    %v6628 = vpack.c.b16 %v6152, %v6145
    %v6629 = vpack.c.b16 %v6153, %v6146
    %v6630 = vpack.c.b16 %v6154, %v6147
    %v6631 = vpack.c.b16 %v6155, %v6148
    %v6632 = vpack.c.b16 %v6156, %v6149
    %v6633 = vpack.c.b16 %v6164, %v6157
    %v6634 = vpack.c.b16 %v6165, %v6158
    %v6635 = vpack.c.b16 %v6166, %v6159
    %v6636 = vpack.c.b16 %v6167, %v6160
    %v6637 = vpack.c.b16 %v6168, %v6161
    %v6638 = vpack.c.b16 %v6169, %v6162
    %v6639 = vpack.c.b16 %v6170, %v6163
    %v6640 = vpack.c.b16 %v6178, %v6171
    %v6641 = vpack.c.b16 %v6179, %v6172
    %v6642 = vpack.c.b16 %v6180, %v6173
    %v6643 = vpack.c.b16 %v6181, %v6174
    %v6644 = vpack.c.b16 %v6182, %v6175
    %v6645 = vpack.c.b16 %v6183, %v6176
    %v6646 = vpack.c.b16 %v6184, %v6177
    %v6647 = vpack.c.b16 %v6192, %v6185
    %v6648 = vpack.c.b16 %v6193, %v6186
    %v6649 = vpack.c.b16 %v6194, %v6187
    %v6650 = vpack.c.b16 %v6195, %v6188
    %v6651 = vpack.c.b16 %v6196, %v6189
    %v6652 = vpack.c.b16 %v6197, %v6190
    %v6653 = vpack.c.b16 %v6198, %v6191
    %v6654 = vpack.c.b16 %v6206, %v6199
    %v6655 = vpack.c.b16 %v6207, %v6200
    %v6656 = vpack.c.b16 %v6208, %v6201
    %v6657 = vpack.c.b16 %v6209, %v6202
    %v6658 = vpack.c.b16 %v6210, %v6203
    %v6659 = vpack.c.b16 %v6211, %v6204
    %v6660 = vpack.c.b16 %v6212, %v6205
    %7109 = vmatpush.bf16.msra.mxu0 %v6262
    %7110 = vmatpush.bf16.msra.mxu0 %v6255
    %7111 = vmatpush.bf16.msra.mxu0 %v6248
    %7112 = vmatpush.bf16.msra.mxu0 %v6241
    %7113 = vmatpush.bf16.msra.mxu0 %v6234
    %7114 = vmatpush.bf16.msra.mxu0 %v6227
    %7115 = vmatpush.bf16.msra.mxu0 %v6220
    %7116 = vmatpush.bf16.msra.mxu0 %v6213
    %7117 = vmatmul.bf16.gmra.mxu0 %v4269
    %v7118 = vpop.f32.mrf.mxu0
    %v7119 = vadd.f32 %v4791, %v7118
    %v7120 = vpop.f32.mrf.mxu0
    %v7121 = vadd.f32 %v4791, %v7120
    %7122 = vdwg.mxu0
    %7123 = vmatpush.bf16.msra.mxu0 %v6318
    %7124 = vmatpush.bf16.msra.mxu0 %v6311
    %7125 = vmatpush.bf16.msra.mxu0 %v6304
    %7126 = vmatpush.bf16.msra.mxu0 %v6297
    %7127 = vmatpush.bf16.msra.mxu0 %v6290
    %7128 = vmatpush.bf16.msra.mxu0 %v6283
    %7129 = vmatpush.bf16.msra.mxu0 %v6276
    %7130 = vmatpush.bf16.msra.mxu0 %v6269
    %7131 = vmatmul.bf16.gmra.mxu0 %v4270
    %v7132 = vpop.f32.mrf.mxu0
    %v7133 = vadd.f32 %v7119, %v7132
    %v7134 = vpop.f32.mrf.mxu0
    %v7135 = vadd.f32 %v7121, %v7134
    %7136 = vdwg.mxu0
    %7137 = vmatpush.bf16.msra.mxu0 %v6374
    %7138 = vmatpush.bf16.msra.mxu0 %v6367
    %7139 = vmatpush.bf16.msra.mxu0 %v6360
    %7140 = vmatpush.bf16.msra.mxu0 %v6353
    %7141 = vmatpush.bf16.msra.mxu0 %v6346
    %7142 = vmatpush.bf16.msra.mxu0 %v6339
    %7143 = vmatpush.bf16.msra.mxu0 %v6332
    %7144 = vmatpush.bf16.msra.mxu0 %v6325
    %7145 = vmatmul.bf16.gmra.mxu0 %v4271
    %v7146 = vpop.f32.mrf.mxu0
    %v7147 = vadd.f32 %v7133, %v7146
    %v7148 = vpop.f32.mrf.mxu0
    %v7149 = vadd.f32 %v7135, %v7148
    %7150 = vdwg.mxu0
    %7151 = vmatpush.bf16.msra.mxu0 %v6430
    %7152 = vmatpush.bf16.msra.mxu0 %v6423
    %7153 = vmatpush.bf16.msra.mxu0 %v6416
    %7154 = vmatpush.bf16.msra.mxu0 %v6409
    %7155 = vmatpush.bf16.msra.mxu0 %v6402
    %7156 = vmatpush.bf16.msra.mxu0 %v6395
    %7157 = vmatpush.bf16.msra.mxu0 %v6388
    %7158 = vmatpush.bf16.msra.mxu0 %v6381
    %7159 = vmatmul.bf16.gmra.mxu0 %v4272
    %v7160 = vpop.f32.mrf.mxu0
    %v7161 = vadd.f32 %v7147, %v7160
    %v7162 = vpop.f32.mrf.mxu0
    %v7163 = vadd.f32 %v7149, %v7162
    %7164 = vdwg.mxu0
    %7165 = vmatpush.bf16.msra.mxu0 %v6486
    %7166 = vmatpush.bf16.msra.mxu0 %v6479
    %7167 = vmatpush.bf16.msra.mxu0 %v6472
    %7168 = vmatpush.bf16.msra.mxu0 %v6465
    %7169 = vmatpush.bf16.msra.mxu0 %v6458
    %7170 = vmatpush.bf16.msra.mxu0 %v6451
    %7171 = vmatpush.bf16.msra.mxu0 %v6444
    %7172 = vmatpush.bf16.msra.mxu0 %v6437
    %7173 = vmatmul.bf16.gmra.mxu0 %v4273
    %v7174 = vpop.f32.mrf.mxu0
    %v7175 = vadd.f32 %v7161, %v7174
    %v7176 = vpop.f32.mrf.mxu0
    %v7177 = vadd.f32 %v7163, %v7176
    %7178 = vdwg.mxu0
    %7179 = vmatpush.bf16.msra.mxu0 %v6542
    %7180 = vmatpush.bf16.msra.mxu0 %v6535
    %7181 = vmatpush.bf16.msra.mxu0 %v6528
    %7182 = vmatpush.bf16.msra.mxu0 %v6521
    %7183 = vmatpush.bf16.msra.mxu0 %v6514
    %7184 = vmatpush.bf16.msra.mxu0 %v6507
    %7185 = vmatpush.bf16.msra.mxu0 %v6500
    %7186 = vmatpush.bf16.msra.mxu0 %v6493
    %7187 = vmatmul.bf16.gmra.mxu0 %v4274
    %v7188 = vpop.f32.mrf.mxu0
    %v7189 = vadd.f32 %v7175, %v7188
    %v7190 = vpop.f32.mrf.mxu0
    %v7191 = vadd.f32 %v7177, %v7190
    %7192 = vdwg.mxu0
    %7193 = vmatpush.bf16.msra.mxu0 %v6598
    %7194 = vmatpush.bf16.msra.mxu0 %v6591
    %7195 = vmatpush.bf16.msra.mxu0 %v6584
    %7196 = vmatpush.bf16.msra.mxu0 %v6577
    %7197 = vmatpush.bf16.msra.mxu0 %v6570
    %7198 = vmatpush.bf16.msra.mxu0 %v6563
    %7199 = vmatpush.bf16.msra.mxu0 %v6556
    %7200 = vmatpush.bf16.msra.mxu0 %v6549
    %7201 = vmatmul.bf16.gmra.mxu0 %v4275
    %v7202 = vpop.f32.mrf.mxu0
    %v7203 = vadd.f32 %v7189, %v7202
    %v7204 = vpop.f32.mrf.mxu0
    %v7205 = vadd.f32 %v7191, %v7204
    %7206 = vdwg.mxu0
    %7207 = vmatpush.bf16.msra.mxu0 %v6654
    %7208 = vmatpush.bf16.msra.mxu0 %v6647
    %7209 = vmatpush.bf16.msra.mxu0 %v6640
    %7210 = vmatpush.bf16.msra.mxu0 %v6633
    %7211 = vmatpush.bf16.msra.mxu0 %v6626
    %7212 = vmatpush.bf16.msra.mxu0 %v6619
    %7213 = vmatpush.bf16.msra.mxu0 %v6612
    %7214 = vmatpush.bf16.msra.mxu0 %v6605
    %7215 = vmatmul.bf16.gmra.mxu0 %v4276
    %v7216 = vpop.f32.mrf.mxu0
    %v7217 = vadd.f32 %v7203, %v7216
    %v7218 = vpop.f32.mrf.mxu0
    %v7219 = vadd.f32 %v7205, %v7218
    %7220 = vdwg.mxu0
    %7221 = vmatpush.bf16.msra.mxu0 %v6263
    %7222 = vmatpush.bf16.msra.mxu0 %v6256
    %7223 = vmatpush.bf16.msra.mxu0 %v6249
    %7224 = vmatpush.bf16.msra.mxu0 %v6242
    %7225 = vmatpush.bf16.msra.mxu0 %v6235
    %7226 = vmatpush.bf16.msra.mxu0 %v6228
    %7227 = vmatpush.bf16.msra.mxu0 %v6221
    %7228 = vmatpush.bf16.msra.mxu0 %v6214
    %7229 = vmatmul.bf16.gmra.mxu0 %v4269
    %v7230 = vpop.f32.mrf.mxu0
    %v7231 = vadd.f32 %v4792, %v7230
    %v7232 = vpop.f32.mrf.mxu0
    %v7233 = vadd.f32 %v4792, %v7232
    %7234 = vdwg.mxu0
    %7235 = vmatpush.bf16.msra.mxu0 %v6319
    %7236 = vmatpush.bf16.msra.mxu0 %v6312
    %7237 = vmatpush.bf16.msra.mxu0 %v6305
    %7238 = vmatpush.bf16.msra.mxu0 %v6298
    %7239 = vmatpush.bf16.msra.mxu0 %v6291
    %7240 = vmatpush.bf16.msra.mxu0 %v6284
    %7241 = vmatpush.bf16.msra.mxu0 %v6277
    %7242 = vmatpush.bf16.msra.mxu0 %v6270
    %7243 = vmatmul.bf16.gmra.mxu0 %v4270
    %v7244 = vpop.f32.mrf.mxu0
    %v7245 = vadd.f32 %v7231, %v7244
    %v7246 = vpop.f32.mrf.mxu0
    %v7247 = vadd.f32 %v7233, %v7246
    %7248 = vdwg.mxu0
    %7249 = vmatpush.bf16.msra.mxu0 %v6375
    %7250 = vmatpush.bf16.msra.mxu0 %v6368
    %7251 = vmatpush.bf16.msra.mxu0 %v6361
    %7252 = vmatpush.bf16.msra.mxu0 %v6354
    %7253 = vmatpush.bf16.msra.mxu0 %v6347
    %7254 = vmatpush.bf16.msra.mxu0 %v6340
    %7255 = vmatpush.bf16.msra.mxu0 %v6333
    %7256 = vmatpush.bf16.msra.mxu0 %v6326
    %7257 = vmatmul.bf16.gmra.mxu0 %v4271
    %v7258 = vpop.f32.mrf.mxu0
    %v7259 = vadd.f32 %v7245, %v7258
    %v7260 = vpop.f32.mrf.mxu0
    %v7261 = vadd.f32 %v7247, %v7260
    %7262 = vdwg.mxu0
    %7263 = vmatpush.bf16.msra.mxu0 %v6431
    %7264 = vmatpush.bf16.msra.mxu0 %v6424
    %7265 = vmatpush.bf16.msra.mxu0 %v6417
    %7266 = vmatpush.bf16.msra.mxu0 %v6410
    %7267 = vmatpush.bf16.msra.mxu0 %v6403
    %7268 = vmatpush.bf16.msra.mxu0 %v6396
    %7269 = vmatpush.bf16.msra.mxu0 %v6389
    %7270 = vmatpush.bf16.msra.mxu0 %v6382
    %7271 = vmatmul.bf16.gmra.mxu0 %v4272
    %v7272 = vpop.f32.mrf.mxu0
    %v7273 = vadd.f32 %v7259, %v7272
    %v7274 = vpop.f32.mrf.mxu0
    %v7275 = vadd.f32 %v7261, %v7274
    %7276 = vdwg.mxu0
    %7277 = vmatpush.bf16.msra.mxu0 %v6487
    %7278 = vmatpush.bf16.msra.mxu0 %v6480
    %7279 = vmatpush.bf16.msra.mxu0 %v6473
    %7280 = vmatpush.bf16.msra.mxu0 %v6466
    %7281 = vmatpush.bf16.msra.mxu0 %v6459
    %7282 = vmatpush.bf16.msra.mxu0 %v6452
    %7283 = vmatpush.bf16.msra.mxu0 %v6445
    %7284 = vmatpush.bf16.msra.mxu0 %v6438
    %7285 = vmatmul.bf16.gmra.mxu0 %v4273
    %v7286 = vpop.f32.mrf.mxu0
    %v7287 = vadd.f32 %v7273, %v7286
    %v7288 = vpop.f32.mrf.mxu0
    %v7289 = vadd.f32 %v7275, %v7288
    %7290 = vdwg.mxu0
    %7291 = vmatpush.bf16.msra.mxu0 %v6543
    %7292 = vmatpush.bf16.msra.mxu0 %v6536
    %7293 = vmatpush.bf16.msra.mxu0 %v6529
    %7294 = vmatpush.bf16.msra.mxu0 %v6522
    %7295 = vmatpush.bf16.msra.mxu0 %v6515
    %7296 = vmatpush.bf16.msra.mxu0 %v6508
    %7297 = vmatpush.bf16.msra.mxu0 %v6501
    %7298 = vmatpush.bf16.msra.mxu0 %v6494
    %7299 = vmatmul.bf16.gmra.mxu0 %v4274
    %v7300 = vpop.f32.mrf.mxu0
    %v7301 = vadd.f32 %v7287, %v7300
    %v7302 = vpop.f32.mrf.mxu0
    %v7303 = vadd.f32 %v7289, %v7302
    %7304 = vdwg.mxu0
    %7305 = vmatpush.bf16.msra.mxu0 %v6599
    %7306 = vmatpush.bf16.msra.mxu0 %v6592
    %7307 = vmatpush.bf16.msra.mxu0 %v6585
    %7308 = vmatpush.bf16.msra.mxu0 %v6578
    %7309 = vmatpush.bf16.msra.mxu0 %v6571
    %7310 = vmatpush.bf16.msra.mxu0 %v6564
    %7311 = vmatpush.bf16.msra.mxu0 %v6557
    %7312 = vmatpush.bf16.msra.mxu0 %v6550
    %7313 = vmatmul.bf16.gmra.mxu0 %v4275
    %v7314 = vpop.f32.mrf.mxu0
    %v7315 = vadd.f32 %v7301, %v7314
    %v7316 = vpop.f32.mrf.mxu0
    %v7317 = vadd.f32 %v7303, %v7316
    %7318 = vdwg.mxu0
    %7319 = vmatpush.bf16.msra.mxu0 %v6655
    %7320 = vmatpush.bf16.msra.mxu0 %v6648
    %7321 = vmatpush.bf16.msra.mxu0 %v6641
    %7322 = vmatpush.bf16.msra.mxu0 %v6634
    %7323 = vmatpush.bf16.msra.mxu0 %v6627
    %7324 = vmatpush.bf16.msra.mxu0 %v6620
    %7325 = vmatpush.bf16.msra.mxu0 %v6613
    %7326 = vmatpush.bf16.msra.mxu0 %v6606
    %7327 = vmatmul.bf16.gmra.mxu0 %v4276
    %v7328 = vpop.f32.mrf.mxu0
    %v7329 = vadd.f32 %v7315, %v7328
    %v7330 = vpop.f32.mrf.mxu0
    %v7331 = vadd.f32 %v7317, %v7330
    %7332 = vdwg.mxu0
    %7333 = vmatpush.bf16.msra.mxu0 %v6264
    %7334 = vmatpush.bf16.msra.mxu0 %v6257
    %7335 = vmatpush.bf16.msra.mxu0 %v6250
    %7336 = vmatpush.bf16.msra.mxu0 %v6243
    %7337 = vmatpush.bf16.msra.mxu0 %v6236
    %7338 = vmatpush.bf16.msra.mxu0 %v6229
    %7339 = vmatpush.bf16.msra.mxu0 %v6222
    %7340 = vmatpush.bf16.msra.mxu0 %v6215
    %7341 = vmatmul.bf16.gmra.mxu0 %v4269
    %v7342 = vpop.f32.mrf.mxu0
    %v7343 = vadd.f32 %v4793, %v7342
    %v7344 = vpop.f32.mrf.mxu0
    %v7345 = vadd.f32 %v4793, %v7344
    %7346 = vdwg.mxu0
    %7347 = vmatpush.bf16.msra.mxu0 %v6320
    %7348 = vmatpush.bf16.msra.mxu0 %v6313
    %7349 = vmatpush.bf16.msra.mxu0 %v6306
    %7350 = vmatpush.bf16.msra.mxu0 %v6299
    %7351 = vmatpush.bf16.msra.mxu0 %v6292
    %7352 = vmatpush.bf16.msra.mxu0 %v6285
    %7353 = vmatpush.bf16.msra.mxu0 %v6278
    %7354 = vmatpush.bf16.msra.mxu0 %v6271
    %7355 = vmatmul.bf16.gmra.mxu0 %v4270
    %v7356 = vpop.f32.mrf.mxu0
    %v7357 = vadd.f32 %v7343, %v7356
    %v7358 = vpop.f32.mrf.mxu0
    %v7359 = vadd.f32 %v7345, %v7358
    %7360 = vdwg.mxu0
    %7361 = vmatpush.bf16.msra.mxu0 %v6376
    %7362 = vmatpush.bf16.msra.mxu0 %v6369
    %7363 = vmatpush.bf16.msra.mxu0 %v6362
    %7364 = vmatpush.bf16.msra.mxu0 %v6355
    %7365 = vmatpush.bf16.msra.mxu0 %v6348
    %7366 = vmatpush.bf16.msra.mxu0 %v6341
    %7367 = vmatpush.bf16.msra.mxu0 %v6334
    %7368 = vmatpush.bf16.msra.mxu0 %v6327
    %7369 = vmatmul.bf16.gmra.mxu0 %v4271
    %v7370 = vpop.f32.mrf.mxu0
    %v7371 = vadd.f32 %v7357, %v7370
    %v7372 = vpop.f32.mrf.mxu0
    %v7373 = vadd.f32 %v7359, %v7372
    %7374 = vdwg.mxu0
    %7375 = vmatpush.bf16.msra.mxu0 %v6432
    %7376 = vmatpush.bf16.msra.mxu0 %v6425
    %7377 = vmatpush.bf16.msra.mxu0 %v6418
    %7378 = vmatpush.bf16.msra.mxu0 %v6411
    %7379 = vmatpush.bf16.msra.mxu0 %v6404
    %7380 = vmatpush.bf16.msra.mxu0 %v6397
    %7381 = vmatpush.bf16.msra.mxu0 %v6390
    %7382 = vmatpush.bf16.msra.mxu0 %v6383
    %7383 = vmatmul.bf16.gmra.mxu0 %v4272
    %v7384 = vpop.f32.mrf.mxu0
    %v7385 = vadd.f32 %v7371, %v7384
    %v7386 = vpop.f32.mrf.mxu0
    %v7387 = vadd.f32 %v7373, %v7386
    %7388 = vdwg.mxu0
    %7389 = vmatpush.bf16.msra.mxu0 %v6488
    %7390 = vmatpush.bf16.msra.mxu0 %v6481
    %7391 = vmatpush.bf16.msra.mxu0 %v6474
    %7392 = vmatpush.bf16.msra.mxu0 %v6467
    %7393 = vmatpush.bf16.msra.mxu0 %v6460
    %7394 = vmatpush.bf16.msra.mxu0 %v6453
    %7395 = vmatpush.bf16.msra.mxu0 %v6446
    %7396 = vmatpush.bf16.msra.mxu0 %v6439
    %7397 = vmatmul.bf16.gmra.mxu0 %v4273
    %v7398 = vpop.f32.mrf.mxu0
    %v7399 = vadd.f32 %v7385, %v7398
    %v7400 = vpop.f32.mrf.mxu0
    %v7401 = vadd.f32 %v7387, %v7400
    %7402 = vdwg.mxu0
    %7403 = vmatpush.bf16.msra.mxu0 %v6544
    %7404 = vmatpush.bf16.msra.mxu0 %v6537
    %7405 = vmatpush.bf16.msra.mxu0 %v6530
    %7406 = vmatpush.bf16.msra.mxu0 %v6523
    %7407 = vmatpush.bf16.msra.mxu0 %v6516
    %7408 = vmatpush.bf16.msra.mxu0 %v6509
    %7409 = vmatpush.bf16.msra.mxu0 %v6502
    %7410 = vmatpush.bf16.msra.mxu0 %v6495
    %7411 = vmatmul.bf16.gmra.mxu0 %v4274
    %v7412 = vpop.f32.mrf.mxu0
    %v7413 = vadd.f32 %v7399, %v7412
    %v7414 = vpop.f32.mrf.mxu0
    %v7415 = vadd.f32 %v7401, %v7414
    %7416 = vdwg.mxu0
    %7417 = vmatpush.bf16.msra.mxu0 %v6600
    %7418 = vmatpush.bf16.msra.mxu0 %v6593
    %7419 = vmatpush.bf16.msra.mxu0 %v6586
    %7420 = vmatpush.bf16.msra.mxu0 %v6579
    %7421 = vmatpush.bf16.msra.mxu0 %v6572
    %7422 = vmatpush.bf16.msra.mxu0 %v6565
    %7423 = vmatpush.bf16.msra.mxu0 %v6558
    %7424 = vmatpush.bf16.msra.mxu0 %v6551
    %7425 = vmatmul.bf16.gmra.mxu0 %v4275
    %v7426 = vpop.f32.mrf.mxu0
    %v7427 = vadd.f32 %v7413, %v7426
    %v7428 = vpop.f32.mrf.mxu0
    %v7429 = vadd.f32 %v7415, %v7428
    %7430 = vdwg.mxu0
    %7431 = vmatpush.bf16.msra.mxu0 %v6656
    %7432 = vmatpush.bf16.msra.mxu0 %v6649
    %7433 = vmatpush.bf16.msra.mxu0 %v6642
    %7434 = vmatpush.bf16.msra.mxu0 %v6635
    %7435 = vmatpush.bf16.msra.mxu0 %v6628
    %7436 = vmatpush.bf16.msra.mxu0 %v6621
    %7437 = vmatpush.bf16.msra.mxu0 %v6614
    %7438 = vmatpush.bf16.msra.mxu0 %v6607
    %7439 = vmatmul.bf16.gmra.mxu0 %v4276
    %v7440 = vpop.f32.mrf.mxu0
    %v7441 = vadd.f32 %v7427, %v7440
    %v7442 = vpop.f32.mrf.mxu0
    %v7443 = vadd.f32 %v7429, %v7442
    %7444 = vdwg.mxu0
    %7445 = vmatpush.bf16.msra.mxu0 %v6265
    %7446 = vmatpush.bf16.msra.mxu0 %v6258
    %7447 = vmatpush.bf16.msra.mxu0 %v6251
    %7448 = vmatpush.bf16.msra.mxu0 %v6244
    %7449 = vmatpush.bf16.msra.mxu0 %v6237
    %7450 = vmatpush.bf16.msra.mxu0 %v6230
    %7451 = vmatpush.bf16.msra.mxu0 %v6223
    %7452 = vmatpush.bf16.msra.mxu0 %v6216
    %7453 = vmatmul.bf16.gmra.mxu0 %v4269
    %v7454 = vpop.f32.mrf.mxu0
    %v7455 = vadd.f32 %v4794, %v7454
    %v7456 = vpop.f32.mrf.mxu0
    %v7457 = vadd.f32 %v4794, %v7456
    %7458 = vdwg.mxu0
    %7459 = vmatpush.bf16.msra.mxu0 %v6321
    %7460 = vmatpush.bf16.msra.mxu0 %v6314
    %7461 = vmatpush.bf16.msra.mxu0 %v6307
    %7462 = vmatpush.bf16.msra.mxu0 %v6300
    %7463 = vmatpush.bf16.msra.mxu0 %v6293
    %7464 = vmatpush.bf16.msra.mxu0 %v6286
    %7465 = vmatpush.bf16.msra.mxu0 %v6279
    %7466 = vmatpush.bf16.msra.mxu0 %v6272
    %7467 = vmatmul.bf16.gmra.mxu0 %v4270
    %v7468 = vpop.f32.mrf.mxu0
    %v7469 = vadd.f32 %v7455, %v7468
    %v7470 = vpop.f32.mrf.mxu0
    %v7471 = vadd.f32 %v7457, %v7470
    %7472 = vdwg.mxu0
    %7473 = vmatpush.bf16.msra.mxu0 %v6377
    %7474 = vmatpush.bf16.msra.mxu0 %v6370
    %7475 = vmatpush.bf16.msra.mxu0 %v6363
    %7476 = vmatpush.bf16.msra.mxu0 %v6356
    %7477 = vmatpush.bf16.msra.mxu0 %v6349
    %7478 = vmatpush.bf16.msra.mxu0 %v6342
    %7479 = vmatpush.bf16.msra.mxu0 %v6335
    %7480 = vmatpush.bf16.msra.mxu0 %v6328
    %7481 = vmatmul.bf16.gmra.mxu0 %v4271
    %v7482 = vpop.f32.mrf.mxu0
    %v7483 = vadd.f32 %v7469, %v7482
    %v7484 = vpop.f32.mrf.mxu0
    %v7485 = vadd.f32 %v7471, %v7484
    %7486 = vdwg.mxu0
    %7487 = vmatpush.bf16.msra.mxu0 %v6433
    %7488 = vmatpush.bf16.msra.mxu0 %v6426
    %7489 = vmatpush.bf16.msra.mxu0 %v6419
    %7490 = vmatpush.bf16.msra.mxu0 %v6412
    %7491 = vmatpush.bf16.msra.mxu0 %v6405
    %7492 = vmatpush.bf16.msra.mxu0 %v6398
    %7493 = vmatpush.bf16.msra.mxu0 %v6391
    %7494 = vmatpush.bf16.msra.mxu0 %v6384
    %7495 = vmatmul.bf16.gmra.mxu0 %v4272
    %v7496 = vpop.f32.mrf.mxu0
    %v7497 = vadd.f32 %v7483, %v7496
    %v7498 = vpop.f32.mrf.mxu0
    %v7499 = vadd.f32 %v7485, %v7498
    %7500 = vdwg.mxu0
    %7501 = vmatpush.bf16.msra.mxu0 %v6489
    %7502 = vmatpush.bf16.msra.mxu0 %v6482
    %7503 = vmatpush.bf16.msra.mxu0 %v6475
    %7504 = vmatpush.bf16.msra.mxu0 %v6468
    %7505 = vmatpush.bf16.msra.mxu0 %v6461
    %7506 = vmatpush.bf16.msra.mxu0 %v6454
    %7507 = vmatpush.bf16.msra.mxu0 %v6447
    %7508 = vmatpush.bf16.msra.mxu0 %v6440
    %7509 = vmatmul.bf16.gmra.mxu0 %v4273
    %v7510 = vpop.f32.mrf.mxu0
    %v7511 = vadd.f32 %v7497, %v7510
    %v7512 = vpop.f32.mrf.mxu0
    %v7513 = vadd.f32 %v7499, %v7512
    %7514 = vdwg.mxu0
    %7515 = vmatpush.bf16.msra.mxu0 %v6545
    %7516 = vmatpush.bf16.msra.mxu0 %v6538
    %7517 = vmatpush.bf16.msra.mxu0 %v6531
    %7518 = vmatpush.bf16.msra.mxu0 %v6524
    %7519 = vmatpush.bf16.msra.mxu0 %v6517
    %7520 = vmatpush.bf16.msra.mxu0 %v6510
    %7521 = vmatpush.bf16.msra.mxu0 %v6503
    %7522 = vmatpush.bf16.msra.mxu0 %v6496
    %7523 = vmatmul.bf16.gmra.mxu0 %v4274
    %v7524 = vpop.f32.mrf.mxu0
    %v7525 = vadd.f32 %v7511, %v7524
    %v7526 = vpop.f32.mrf.mxu0
    %v7527 = vadd.f32 %v7513, %v7526
    %7528 = vdwg.mxu0
    %7529 = vmatpush.bf16.msra.mxu0 %v6601
    %7530 = vmatpush.bf16.msra.mxu0 %v6594
    %7531 = vmatpush.bf16.msra.mxu0 %v6587
    %7532 = vmatpush.bf16.msra.mxu0 %v6580
    %7533 = vmatpush.bf16.msra.mxu0 %v6573
    %7534 = vmatpush.bf16.msra.mxu0 %v6566
    %7535 = vmatpush.bf16.msra.mxu0 %v6559
    %7536 = vmatpush.bf16.msra.mxu0 %v6552
    %7537 = vmatmul.bf16.gmra.mxu0 %v4275
    %v7538 = vpop.f32.mrf.mxu0
    %v7539 = vadd.f32 %v7525, %v7538
    %v7540 = vpop.f32.mrf.mxu0
    %v7541 = vadd.f32 %v7527, %v7540
    %7542 = vdwg.mxu0
    %7543 = vmatpush.bf16.msra.mxu0 %v6657
    %7544 = vmatpush.bf16.msra.mxu0 %v6650
    %7545 = vmatpush.bf16.msra.mxu0 %v6643
    %7546 = vmatpush.bf16.msra.mxu0 %v6636
    %7547 = vmatpush.bf16.msra.mxu0 %v6629
    %7548 = vmatpush.bf16.msra.mxu0 %v6622
    %7549 = vmatpush.bf16.msra.mxu0 %v6615
    %7550 = vmatpush.bf16.msra.mxu0 %v6608
    %7551 = vmatmul.bf16.gmra.mxu0 %v4276
    %v7552 = vpop.f32.mrf.mxu0
    %v7553 = vadd.f32 %v7539, %v7552
    %v7554 = vpop.f32.mrf.mxu0
    %v7555 = vadd.f32 %v7541, %v7554
    %7556 = vdwg.mxu0
    %7557 = vmatpush.bf16.msra.mxu0 %v6266
    %7558 = vmatpush.bf16.msra.mxu0 %v6259
    %7559 = vmatpush.bf16.msra.mxu0 %v6252
    %7560 = vmatpush.bf16.msra.mxu0 %v6245
    %7561 = vmatpush.bf16.msra.mxu0 %v6238
    %7562 = vmatpush.bf16.msra.mxu0 %v6231
    %7563 = vmatpush.bf16.msra.mxu0 %v6224
    %7564 = vmatpush.bf16.msra.mxu0 %v6217
    %7565 = vmatmul.bf16.gmra.mxu0 %v4269
    %v7566 = vpop.f32.mrf.mxu0
    %v7567 = vadd.f32 %v4795, %v7566
    %v7568 = vpop.f32.mrf.mxu0
    %v7569 = vadd.f32 %v4795, %v7568
    %7570 = vdwg.mxu0
    %7571 = vmatpush.bf16.msra.mxu0 %v6322
    %7572 = vmatpush.bf16.msra.mxu0 %v6315
    %7573 = vmatpush.bf16.msra.mxu0 %v6308
    %7574 = vmatpush.bf16.msra.mxu0 %v6301
    %7575 = vmatpush.bf16.msra.mxu0 %v6294
    %7576 = vmatpush.bf16.msra.mxu0 %v6287
    %7577 = vmatpush.bf16.msra.mxu0 %v6280
    %7578 = vmatpush.bf16.msra.mxu0 %v6273
    %7579 = vmatmul.bf16.gmra.mxu0 %v4270
    %v7580 = vpop.f32.mrf.mxu0
    %v7581 = vadd.f32 %v7567, %v7580
    %v7582 = vpop.f32.mrf.mxu0
    %v7583 = vadd.f32 %v7569, %v7582
    %7584 = vdwg.mxu0
    %7585 = vmatpush.bf16.msra.mxu0 %v6378
    %7586 = vmatpush.bf16.msra.mxu0 %v6371
    %7587 = vmatpush.bf16.msra.mxu0 %v6364
    %7588 = vmatpush.bf16.msra.mxu0 %v6357
    %7589 = vmatpush.bf16.msra.mxu0 %v6350
    %7590 = vmatpush.bf16.msra.mxu0 %v6343
    %7591 = vmatpush.bf16.msra.mxu0 %v6336
    %7592 = vmatpush.bf16.msra.mxu0 %v6329
    %7593 = vmatmul.bf16.gmra.mxu0 %v4271
    %v7594 = vpop.f32.mrf.mxu0
    %v7595 = vadd.f32 %v7581, %v7594
    %v7596 = vpop.f32.mrf.mxu0
    %v7597 = vadd.f32 %v7583, %v7596
    %7598 = vdwg.mxu0
    %7599 = vmatpush.bf16.msra.mxu0 %v6434
    %7600 = vmatpush.bf16.msra.mxu0 %v6427
    %7601 = vmatpush.bf16.msra.mxu0 %v6420
    %7602 = vmatpush.bf16.msra.mxu0 %v6413
    %7603 = vmatpush.bf16.msra.mxu0 %v6406
    %7604 = vmatpush.bf16.msra.mxu0 %v6399
    %7605 = vmatpush.bf16.msra.mxu0 %v6392
    %7606 = vmatpush.bf16.msra.mxu0 %v6385
    %7607 = vmatmul.bf16.gmra.mxu0 %v4272
    %v7608 = vpop.f32.mrf.mxu0
    %v7609 = vadd.f32 %v7595, %v7608
    %v7610 = vpop.f32.mrf.mxu0
    %v7611 = vadd.f32 %v7597, %v7610
    %7612 = vdwg.mxu0
    %7613 = vmatpush.bf16.msra.mxu0 %v6490
    %7614 = vmatpush.bf16.msra.mxu0 %v6483
    %7615 = vmatpush.bf16.msra.mxu0 %v6476
    %7616 = vmatpush.bf16.msra.mxu0 %v6469
    %7617 = vmatpush.bf16.msra.mxu0 %v6462
    %7618 = vmatpush.bf16.msra.mxu0 %v6455
    %7619 = vmatpush.bf16.msra.mxu0 %v6448
    %7620 = vmatpush.bf16.msra.mxu0 %v6441
    %7621 = vmatmul.bf16.gmra.mxu0 %v4273
    %v7622 = vpop.f32.mrf.mxu0
    %v7623 = vadd.f32 %v7609, %v7622
    %v7624 = vpop.f32.mrf.mxu0
    %v7625 = vadd.f32 %v7611, %v7624
    %7626 = vdwg.mxu0
    %7627 = vmatpush.bf16.msra.mxu0 %v6546
    %7628 = vmatpush.bf16.msra.mxu0 %v6539
    %7629 = vmatpush.bf16.msra.mxu0 %v6532
    %7630 = vmatpush.bf16.msra.mxu0 %v6525
    %7631 = vmatpush.bf16.msra.mxu0 %v6518
    %7632 = vmatpush.bf16.msra.mxu0 %v6511
    %7633 = vmatpush.bf16.msra.mxu0 %v6504
    %7634 = vmatpush.bf16.msra.mxu0 %v6497
    %7635 = vmatmul.bf16.gmra.mxu0 %v4274
    %v7636 = vpop.f32.mrf.mxu0
    %v7637 = vadd.f32 %v7623, %v7636
    %v7638 = vpop.f32.mrf.mxu0
    %v7639 = vadd.f32 %v7625, %v7638
    %7640 = vdwg.mxu0
    %7641 = vmatpush.bf16.msra.mxu0 %v6602
    %7642 = vmatpush.bf16.msra.mxu0 %v6595
    %7643 = vmatpush.bf16.msra.mxu0 %v6588
    %7644 = vmatpush.bf16.msra.mxu0 %v6581
    %7645 = vmatpush.bf16.msra.mxu0 %v6574
    %7646 = vmatpush.bf16.msra.mxu0 %v6567
    %7647 = vmatpush.bf16.msra.mxu0 %v6560
    %7648 = vmatpush.bf16.msra.mxu0 %v6553
    %7649 = vmatmul.bf16.gmra.mxu0 %v4275
    %v7650 = vpop.f32.mrf.mxu0
    %v7651 = vadd.f32 %v7637, %v7650
    %v7652 = vpop.f32.mrf.mxu0
    %v7653 = vadd.f32 %v7639, %v7652
    %7654 = vdwg.mxu0
    %7655 = vmatpush.bf16.msra.mxu0 %v6658
    %7656 = vmatpush.bf16.msra.mxu0 %v6651
    %7657 = vmatpush.bf16.msra.mxu0 %v6644
    %7658 = vmatpush.bf16.msra.mxu0 %v6637
    %7659 = vmatpush.bf16.msra.mxu0 %v6630
    %7660 = vmatpush.bf16.msra.mxu0 %v6623
    %7661 = vmatpush.bf16.msra.mxu0 %v6616
    %7662 = vmatpush.bf16.msra.mxu0 %v6609
    %7663 = vmatmul.bf16.gmra.mxu0 %v4276
    %v7664 = vpop.f32.mrf.mxu0
    %v7665 = vadd.f32 %v7651, %v7664
    %v7666 = vpop.f32.mrf.mxu0
    %v7667 = vadd.f32 %v7653, %v7666
    %7668 = vdwg.mxu0
    %7669 = vmatpush.bf16.msra.mxu0 %v6267
    %7670 = vmatpush.bf16.msra.mxu0 %v6260
    %7671 = vmatpush.bf16.msra.mxu0 %v6253
    %7672 = vmatpush.bf16.msra.mxu0 %v6246
    %7673 = vmatpush.bf16.msra.mxu0 %v6239
    %7674 = vmatpush.bf16.msra.mxu0 %v6232
    %7675 = vmatpush.bf16.msra.mxu0 %v6225
    %7676 = vmatpush.bf16.msra.mxu0 %v6218
    %7677 = vmatmul.bf16.gmra.mxu0 %v4269
    %v7678 = vpop.f32.mrf.mxu0
    %v7679 = vadd.f32 %v4796, %v7678
    %v7680 = vpop.f32.mrf.mxu0
    %v7681 = vadd.f32 %v4796, %v7680
    %7682 = vdwg.mxu0
    %7683 = vmatpush.bf16.msra.mxu0 %v6323
    %7684 = vmatpush.bf16.msra.mxu0 %v6316
    %7685 = vmatpush.bf16.msra.mxu0 %v6309
    %7686 = vmatpush.bf16.msra.mxu0 %v6302
    %7687 = vmatpush.bf16.msra.mxu0 %v6295
    %7688 = vmatpush.bf16.msra.mxu0 %v6288
    %7689 = vmatpush.bf16.msra.mxu0 %v6281
    %7690 = vmatpush.bf16.msra.mxu0 %v6274
    %7691 = vmatmul.bf16.gmra.mxu0 %v4270
    %v7692 = vpop.f32.mrf.mxu0
    %v7693 = vadd.f32 %v7679, %v7692
    %v7694 = vpop.f32.mrf.mxu0
    %v7695 = vadd.f32 %v7681, %v7694
    %7696 = vdwg.mxu0
    %7697 = vmatpush.bf16.msra.mxu0 %v6379
    %7698 = vmatpush.bf16.msra.mxu0 %v6372
    %7699 = vmatpush.bf16.msra.mxu0 %v6365
    %7700 = vmatpush.bf16.msra.mxu0 %v6358
    %7701 = vmatpush.bf16.msra.mxu0 %v6351
    %7702 = vmatpush.bf16.msra.mxu0 %v6344
    %7703 = vmatpush.bf16.msra.mxu0 %v6337
    %7704 = vmatpush.bf16.msra.mxu0 %v6330
    %7705 = vmatmul.bf16.gmra.mxu0 %v4271
    %v7706 = vpop.f32.mrf.mxu0
    %v7707 = vadd.f32 %v7693, %v7706
    %v7708 = vpop.f32.mrf.mxu0
    %v7709 = vadd.f32 %v7695, %v7708
    %7710 = vdwg.mxu0
    %7711 = vmatpush.bf16.msra.mxu0 %v6435
    %7712 = vmatpush.bf16.msra.mxu0 %v6428
    %7713 = vmatpush.bf16.msra.mxu0 %v6421
    %7714 = vmatpush.bf16.msra.mxu0 %v6414
    %7715 = vmatpush.bf16.msra.mxu0 %v6407
    %7716 = vmatpush.bf16.msra.mxu0 %v6400
    %7717 = vmatpush.bf16.msra.mxu0 %v6393
    %7718 = vmatpush.bf16.msra.mxu0 %v6386
    %7719 = vmatmul.bf16.gmra.mxu0 %v4272
    %v7720 = vpop.f32.mrf.mxu0
    %v7721 = vadd.f32 %v7707, %v7720
    %v7722 = vpop.f32.mrf.mxu0
    %v7723 = vadd.f32 %v7709, %v7722
    %7724 = vdwg.mxu0
    %7725 = vmatpush.bf16.msra.mxu0 %v6491
    %7726 = vmatpush.bf16.msra.mxu0 %v6484
    %7727 = vmatpush.bf16.msra.mxu0 %v6477
    %7728 = vmatpush.bf16.msra.mxu0 %v6470
    %7729 = vmatpush.bf16.msra.mxu0 %v6463
    %7730 = vmatpush.bf16.msra.mxu0 %v6456
    %7731 = vmatpush.bf16.msra.mxu0 %v6449
    %7732 = vmatpush.bf16.msra.mxu0 %v6442
    %7733 = vmatmul.bf16.gmra.mxu0 %v4273
    %v7734 = vpop.f32.mrf.mxu0
    %v7735 = vadd.f32 %v7721, %v7734
    %v7736 = vpop.f32.mrf.mxu0
    %v7737 = vadd.f32 %v7723, %v7736
    %7738 = vdwg.mxu0
    %7739 = vmatpush.bf16.msra.mxu0 %v6547
    %7740 = vmatpush.bf16.msra.mxu0 %v6540
    %7741 = vmatpush.bf16.msra.mxu0 %v6533
    %7742 = vmatpush.bf16.msra.mxu0 %v6526
    %7743 = vmatpush.bf16.msra.mxu0 %v6519
    %7744 = vmatpush.bf16.msra.mxu0 %v6512
    %7745 = vmatpush.bf16.msra.mxu0 %v6505
    %7746 = vmatpush.bf16.msra.mxu0 %v6498
    %7747 = vmatmul.bf16.gmra.mxu0 %v4274
    %v7748 = vpop.f32.mrf.mxu0
    %v7749 = vadd.f32 %v7735, %v7748
    %v7750 = vpop.f32.mrf.mxu0
    %v7751 = vadd.f32 %v7737, %v7750
    %7752 = vdwg.mxu0
    %7753 = vmatpush.bf16.msra.mxu0 %v6603
    %7754 = vmatpush.bf16.msra.mxu0 %v6596
    %7755 = vmatpush.bf16.msra.mxu0 %v6589
    %7756 = vmatpush.bf16.msra.mxu0 %v6582
    %7757 = vmatpush.bf16.msra.mxu0 %v6575
    %7758 = vmatpush.bf16.msra.mxu0 %v6568
    %7759 = vmatpush.bf16.msra.mxu0 %v6561
    %7760 = vmatpush.bf16.msra.mxu0 %v6554
    %7761 = vmatmul.bf16.gmra.mxu0 %v4275
    %v7762 = vpop.f32.mrf.mxu0
    %v7763 = vadd.f32 %v7749, %v7762
    %v7764 = vpop.f32.mrf.mxu0
    %v7765 = vadd.f32 %v7751, %v7764
    %7766 = vdwg.mxu0
    %7767 = vmatpush.bf16.msra.mxu0 %v6659
    %7768 = vmatpush.bf16.msra.mxu0 %v6652
    %7769 = vmatpush.bf16.msra.mxu0 %v6645
    %7770 = vmatpush.bf16.msra.mxu0 %v6638
    %7771 = vmatpush.bf16.msra.mxu0 %v6631
    %7772 = vmatpush.bf16.msra.mxu0 %v6624
    %7773 = vmatpush.bf16.msra.mxu0 %v6617
    %7774 = vmatpush.bf16.msra.mxu0 %v6610
    %7775 = vmatmul.bf16.gmra.mxu0 %v4276
    %v7776 = vpop.f32.mrf.mxu0
    %v7777 = vadd.f32 %v7763, %v7776
    %v7778 = vpop.f32.mrf.mxu0
    %v7779 = vadd.f32 %v7765, %v7778
    %7780 = vdwg.mxu0
    %7781 = vmatpush.bf16.msra.mxu0 %v6268
    %7782 = vmatpush.bf16.msra.mxu0 %v6261
    %7783 = vmatpush.bf16.msra.mxu0 %v6254
    %7784 = vmatpush.bf16.msra.mxu0 %v6247
    %7785 = vmatpush.bf16.msra.mxu0 %v6240
    %7786 = vmatpush.bf16.msra.mxu0 %v6233
    %7787 = vmatpush.bf16.msra.mxu0 %v6226
    %7788 = vmatpush.bf16.msra.mxu0 %v6219
    %7789 = vmatmul.bf16.gmra.mxu0 %v4269
    %v7790 = vpop.f32.mrf.mxu0
    %v7791 = vadd.f32 %v4797, %v7790
    %v7792 = vpop.f32.mrf.mxu0
    %v7793 = vadd.f32 %v4797, %v7792
    %7794 = vdwg.mxu0
    %7795 = vmatpush.bf16.msra.mxu0 %v6324
    %7796 = vmatpush.bf16.msra.mxu0 %v6317
    %7797 = vmatpush.bf16.msra.mxu0 %v6310
    %7798 = vmatpush.bf16.msra.mxu0 %v6303
    %7799 = vmatpush.bf16.msra.mxu0 %v6296
    %7800 = vmatpush.bf16.msra.mxu0 %v6289
    %7801 = vmatpush.bf16.msra.mxu0 %v6282
    %7802 = vmatpush.bf16.msra.mxu0 %v6275
    %7803 = vmatmul.bf16.gmra.mxu0 %v4270
    %v7804 = vpop.f32.mrf.mxu0
    %v7805 = vadd.f32 %v7791, %v7804
    %v7806 = vpop.f32.mrf.mxu0
    %v7807 = vadd.f32 %v7793, %v7806
    %7808 = vdwg.mxu0
    %7809 = vmatpush.bf16.msra.mxu0 %v6380
    %7810 = vmatpush.bf16.msra.mxu0 %v6373
    %7811 = vmatpush.bf16.msra.mxu0 %v6366
    %7812 = vmatpush.bf16.msra.mxu0 %v6359
    %7813 = vmatpush.bf16.msra.mxu0 %v6352
    %7814 = vmatpush.bf16.msra.mxu0 %v6345
    %7815 = vmatpush.bf16.msra.mxu0 %v6338
    %7816 = vmatpush.bf16.msra.mxu0 %v6331
    %7817 = vmatmul.bf16.gmra.mxu0 %v4271
    %v7818 = vpop.f32.mrf.mxu0
    %v7819 = vadd.f32 %v7805, %v7818
    %v7820 = vpop.f32.mrf.mxu0
    %v7821 = vadd.f32 %v7807, %v7820
    %7822 = vdwg.mxu0
    %7823 = vmatpush.bf16.msra.mxu0 %v6436
    %7824 = vmatpush.bf16.msra.mxu0 %v6429
    %7825 = vmatpush.bf16.msra.mxu0 %v6422
    %7826 = vmatpush.bf16.msra.mxu0 %v6415
    %7827 = vmatpush.bf16.msra.mxu0 %v6408
    %7828 = vmatpush.bf16.msra.mxu0 %v6401
    %7829 = vmatpush.bf16.msra.mxu0 %v6394
    %7830 = vmatpush.bf16.msra.mxu0 %v6387
    %7831 = vmatmul.bf16.gmra.mxu0 %v4272
    %v7832 = vpop.f32.mrf.mxu0
    %v7833 = vadd.f32 %v7819, %v7832
    %v7834 = vpop.f32.mrf.mxu0
    %v7835 = vadd.f32 %v7821, %v7834
    %7836 = vdwg.mxu0
    %7837 = vmatpush.bf16.msra.mxu0 %v6492
    %7838 = vmatpush.bf16.msra.mxu0 %v6485
    %7839 = vmatpush.bf16.msra.mxu0 %v6478
    %7840 = vmatpush.bf16.msra.mxu0 %v6471
    %7841 = vmatpush.bf16.msra.mxu0 %v6464
    %7842 = vmatpush.bf16.msra.mxu0 %v6457
    %7843 = vmatpush.bf16.msra.mxu0 %v6450
    %7844 = vmatpush.bf16.msra.mxu0 %v6443
    %7845 = vmatmul.bf16.gmra.mxu0 %v4273
    %v7846 = vpop.f32.mrf.mxu0
    %v7847 = vadd.f32 %v7833, %v7846
    %v7848 = vpop.f32.mrf.mxu0
    %v7849 = vadd.f32 %v7835, %v7848
    %7850 = vdwg.mxu0
    %7851 = vmatpush.bf16.msra.mxu0 %v6548
    %7852 = vmatpush.bf16.msra.mxu0 %v6541
    %7853 = vmatpush.bf16.msra.mxu0 %v6534
    %7854 = vmatpush.bf16.msra.mxu0 %v6527
    %7855 = vmatpush.bf16.msra.mxu0 %v6520
    %7856 = vmatpush.bf16.msra.mxu0 %v6513
    %7857 = vmatpush.bf16.msra.mxu0 %v6506
    %7858 = vmatpush.bf16.msra.mxu0 %v6499
    %7859 = vmatmul.bf16.gmra.mxu0 %v4274
    %v7860 = vpop.f32.mrf.mxu0
    %v7861 = vadd.f32 %v7847, %v7860
    %v7862 = vpop.f32.mrf.mxu0
    %v7863 = vadd.f32 %v7849, %v7862
    %7864 = vdwg.mxu0
    %7865 = vmatpush.bf16.msra.mxu0 %v6604
    %7866 = vmatpush.bf16.msra.mxu0 %v6597
    %7867 = vmatpush.bf16.msra.mxu0 %v6590
    %7868 = vmatpush.bf16.msra.mxu0 %v6583
    %7869 = vmatpush.bf16.msra.mxu0 %v6576
    %7870 = vmatpush.bf16.msra.mxu0 %v6569
    %7871 = vmatpush.bf16.msra.mxu0 %v6562
    %7872 = vmatpush.bf16.msra.mxu0 %v6555
    %7873 = vmatmul.bf16.gmra.mxu0 %v4275
    %v7874 = vpop.f32.mrf.mxu0
    %v7875 = vadd.f32 %v7861, %v7874
    %v7876 = vpop.f32.mrf.mxu0
    %v7877 = vadd.f32 %v7863, %v7876
    %7878 = vdwg.mxu0
    %7879 = vmatpush.bf16.msra.mxu0 %v6660
    %7880 = vmatpush.bf16.msra.mxu0 %v6653
    %7881 = vmatpush.bf16.msra.mxu0 %v6646
    %7882 = vmatpush.bf16.msra.mxu0 %v6639
    %7883 = vmatpush.bf16.msra.mxu0 %v6632
    %7884 = vmatpush.bf16.msra.mxu0 %v6625
    %7885 = vmatpush.bf16.msra.mxu0 %v6618
    %7886 = vmatpush.bf16.msra.mxu0 %v6611
    %7887 = vmatmul.bf16.gmra.mxu0 %v4276
    %v7888 = vpop.f32.mrf.mxu0
    %v7889 = vadd.f32 %v7875, %v7888
    %v7890 = vpop.f32.mrf.mxu0
    %v7891 = vadd.f32 %v7877, %v7890
    %7892 = vdwg.mxu0
    %v7893 = vtanh.pop %v7217
    %v7894 = vtanh.pop %v7329
    %v7895 = vtanh.pop %v7441
    %v7896 = vtanh.pop %v7553
    %v7897 = vtanh.pop %v7665
    %v7898 = vtanh.pop %v7777
    %v7899 = vtanh.pop %v7889
    %v7900 = vtanh.pop %v7219
    %v7901 = vtanh.pop %v7331
    %v7902 = vtanh.pop %v7443
    %v7903 = vtanh.pop %v7555
    %v7904 = vtanh.pop %v7667
    %v7905 = vtanh.pop %v7779
    %v7906 = vtanh.pop %v7891
    %7907 = vst [vmem:[#allocation29] sm:$0xff] %v7893
    %7908 = vst [vmem:[#allocation29 + $0x8] sm:$0xff] %v7894
    %7909 = vst [vmem:[#allocation29 + $0x10] sm:$0xff] %v7895
    %7910 = vst [vmem:[#allocation29 + $0x18] sm:$0xff] %v7896
    %7911 = vst [vmem:[#allocation29 + $0x20] sm:$0xff] %v7897
    %7912 = vst [vmem:[#allocation29 + $0x28] sm:$0xff] %v7898
    %7913 = vst [vmem:[#allocation29 + $0x30] sm:$0xff] %v7899
    %7914 = vst [vmem:[#allocation29 + $0x38] sm:$0xff] %v7900
    %7915 = vst [vmem:[#allocation29 + $0x40] sm:$0xff] %v7901
    %7916 = vst [vmem:[#allocation29 + $0x48] sm:$0xff] %v7902
    %7917 = vst [vmem:[#allocation29 + $0x50] sm:$0xff] %v7903
    %7918 = vst [vmem:[#allocation29 + $0x58] sm:$0xff] %v7904
    %7919 = vst [vmem:[#allocation29 + $0x60] sm:$0xff] %v7905
    %7920 = vst [vmem:[#allocation29 + $0x68] sm:$0xff] %v7906
    // Predicated region
    $region138: #{tpu_custom_call.1} parent=1 // pred_check
      _
    $region139: #{tpu_custom_call.1} parent=1 // pred_check_branch
      %7922 = sbr.rel (0) target = $region141
    $region140: #{tpu_custom_call.1} parent=1 // pred_region
      %7924 = vsyncadd [#allocation4], 0
      %s7925 = sshll.u32 [#allocation29], 4
      %s7926 = int_to_ptr.vmem [resolvable:$true] %s7925
      %s7927 = sshll.u32 %s17, 4
      %s7928 = int_to_ptr.hbm [resolvable:$true] %s7927
      %7933 = dma.vmem_to_hbm [thread:$0]  %s7926, 1792, %s7928, [#allocation4], 896, 896, 56
    $region141: #{tpu_custom_call.1} parent=1 // pred_fallthru
      _
    // Predicated region
    $region142: #{tpu_custom_call.1} parent=1 // pred_check
      _
    $region143: #{tpu_custom_call.1} parent=1 // pred_check_branch
      %7935 = sbr.rel (0) target = $region145
    $region144: #{tpu_custom_call.1} parent=1 // pred_region
      %7937 = dma.done [#allocation4], 1792
    $region145: #{tpu_custom_call.1} parent=1 // pred_fallthru
      _
    %7938 = vsyncpa [#allocation3], 1
    %7939 = vsyncpa [#allocation6], 1
    %7940 = vsyncpa [#allocation9], 1
    %7941 = vsyncpa [#allocation12], 1
    %7942 = vsyncpa [#allocation15], 1
    %7943 = vsyncpa [#allocation18], 1
    %7944 = vsyncpa [#allocation21], 1
    %7945 = vsyncpa [#allocation24], 1
    %7946 = vsyncpa [#allocation27], 1
    %7947 = vsyncpa [#allocation4], 1

</llo_original>
